<compile_context>
chip_gen: v7x
topology: tpu7x:2x2x1
jax: 0.10.0
libtpu: 0.0.40
codegen_flags: <defaults>
</compile_context>

<pallas_src>
import math
from functools import partial

import jax
import jax.numpy as jnp
from jax.experimental import pallas as pl
from jax.experimental.pallas import tpu as pltpu


# ----------------------------- helpers --------------------------------------

def _gelu_exact(x):
    # exact (erf-based) GELU, matching torch.nn.GELU() defaults.
    # erf is evaluated with the Abramowitz-Stegun 7.1.26 polynomial
    # (|abs err| < 1.5e-7) so the kernel only needs exp / mul / add / div,
    # all of which lower cleanly on Mosaic.
    z = x * 0.7071067811865476
    za = jnp.abs(z)
    t = 1.0 / (1.0 + 0.3275911 * za)
    poly = ((((1.061405429 * t - 1.453152027) * t + 1.421413741) * t
             - 0.284496736) * t + 0.254829592) * t
    erf_abs = 1.0 - poly * jnp.exp(-za * za)
    erf = jnp.where(z >= 0, erf_abs, -erf_abs)
    return 0.5 * x * (1.0 + erf)


def _shift_matrices(H, W, M):
    """(9, N, N) 0/1 matrices: S[t] @ tokens == image tokens shifted by tap t
    of a 3x3 window (zero padding), msg rows/cols are zero.  Built once in XLA
    (constant-folded), consumed by both fused kernels."""
    Nx = H * W
    N = Nx + M
    n = jnp.arange(Nx)
    hh = n // W
    ww = n % W
    cols = jnp.arange(N)[None, :]
    mats = []
    for kh in range(3):
        for kw in range(3):
            di, dj = kh - 1, kw - 1
            hi = hh + di
            wj = ww + dj
            valid = (hi >= 0) & (hi < H) & (wj >= 0) & (wj < W)
            src = hi * W + wj
            m = ((cols == src[:, None]) & valid[:, None]).astype(jnp.float32)
            m = jnp.concatenate([m, jnp.zeros((M, N), jnp.float32)], axis=0)
            mats.append(m)
    return jnp.stack(mats, axis=0)


def _rep_spec(shape):
    # full-array block, same block for every grid step (stays VMEM-resident)
    if len(shape) == 2:
        return pl.BlockSpec(shape, lambda b: (0, 0))
    return pl.BlockSpec(shape, lambda b: (0, 0, 0))


# ----------------------------- fused Pallas kernels --------------------------

def _attn_block_kernel(tok_ref, g_ref, b_ref, qkvw_ref, lcw_ref, lcb_ref,
                       pw_ref, pb_ref, S_ref, o_ref, *, num_heads, scale, n_img):
    # tok_ref: (1, N, C)  pre-norm [image tokens ; msg tokens] for one batch elt
    N = tok_ref.shape[1]
    C = tok_ref.shape[2]
    hd = C // num_heads

    xc = tok_ref[0].astype(jnp.float32)                       # identity (N, C)

    # LayerNorm (norm1); row-wise LN of the concat == separate LN of x and msg
    mu = jnp.mean(xc, axis=-1, keepdims=True)
    var = jnp.mean((xc - mu) ** 2, axis=-1, keepdims=True)    # biased, like torch
    xn = (xc - mu) * jax.lax.rsqrt(var + 1e-5) * g_ref[...] + b_ref[...]

    # fused q / k / v projection (qkv_bias=False) -> (N, 3C)
    qkv = jnp.dot(xn, qkvw_ref[...], preferred_element_type=jnp.float32)
    q = qkv[:, :C]
    k = qkv[:, C:2 * C]
    v = qkv[:, 2 * C:]

    # multi-head attention: per-head column masks keep everything (N, C)
    # lane-dense (no (N, hd=4) blocks); masked columns contribute exactly 0.
    col = jax.lax.broadcasted_iota(jnp.int32, (1, C), 1)
    attn_seq = jnp.zeros((N, C), jnp.float32)
    for h in range(num_heads):
        hm = (col >= h * hd) & (col < (h + 1) * hd)
        qh = jnp.where(hm, q, 0.0)
        kh = jnp.where(hm, k, 0.0)
        vh = jnp.where(hm, v, 0.0)
        s = jax.lax.dot_general(qh, kh, (((1,), (1,)), ((), ())),
                                preferred_element_type=jnp.float32) * scale
        s = s - jnp.max(s, axis=-1, keepdims=True)
        pexp = jnp.exp(s)
        pexp = pexp * pl.reciprocal(jnp.sum(pexp, axis=-1, keepdims=True),
                                    approx=True)
        attn_seq = attn_seq + jnp.dot(pexp, vh,
                                      preferred_element_type=jnp.float32)

    # local depthwise 3x3 conv on the image part of V (zero padding), expressed
    # as 9 shift-matrix matmuls; msg rows of V pass through untouched.
    conv = jnp.zeros((N, C), jnp.float32)
    for ti in range(9):
        conv = conv + jnp.dot(S_ref[ti], v,
                              preferred_element_type=jnp.float32) * lcw_ref[ti]
    row = jax.lax.broadcasted_iota(jnp.int32, (N, 1), 0)
    local = jnp.where(row < n_img, conv + lcb_ref[...], v)

    y = attn_seq + local
    y = jnp.dot(y, pw_ref[...], preferred_element_type=jnp.float32) + pb_ref[...]
    o_ref[0] = (xc + y).astype(o_ref.dtype)


def _mlp_block_kernel(tok_ref, g_ref, b_ref, w1_ref, b1_ref, dww_ref, dwb_ref,
                      wsum_ref, w2_ref, b2_ref, S_ref, o_ref, *, n_img):
    N = tok_ref.shape[1]

    xc = tok_ref[0].astype(jnp.float32)                       # identity (N, C)

    mu = jnp.mean(xc, axis=-1, keepdims=True)
    var = jnp.mean((xc - mu) ** 2, axis=-1, keepdims=True)
    xn = (xc - mu) * jax.lax.rsqrt(var + 1e-5) * g_ref[...] + b_ref[...]

    # fc1 (applied to image and msg tokens alike, matching the reference)
    h = jnp.dot(xn, w1_ref[...], preferred_element_type=jnp.float32) + b1_ref[...]

    # depthwise 3x3 on the image tokens; msg tokens use the collapsed
    # per-channel weight sum exactly as the PyTorch reference does.
    conv = jnp.zeros(h.shape, jnp.float32)
    for ti in range(9):
        conv = conv + jnp.dot(S_ref[ti], h,
                              preferred_element_type=jnp.float32) * dww_ref[ti]
    row = jax.lax.broadcasted_iota(jnp.int32, (N, 1), 0)
    mid = h + dwb_ref[...] + jnp.where(row < n_img, conv, h * wsum_ref[...])

    act = _gelu_exact(mid)
    y = jnp.dot(act, w2_ref[...], preferred_element_type=jnp.float32) + b2_ref[...]
    o_ref[0] = (xc + y).astype(o_ref.dtype)


# ----------------------------- Block forward ---------------------------------

def block_forward(p, x, msg, H, W, B_outer, T, num_heads, msg_shift=None):
    B, Nx, C = x.shape
    M = msg.shape[1]
    N = Nx + M
    hd = C // num_heads
    scale = float(hd) ** (-0.5)
    hidden = p['fc1_w'].shape[0]

    S = _shift_matrices(H, W, M)                               # (9, N, N)

    # weight plumbing done once in XLA (tiny, parameter-sized)
    qkv_wt = jnp.concatenate([p['q_w'], p['kv_w']], axis=0).T  # (C, 3C)
    lcw = p['lc_w'].reshape(9, 1, C)
    dww = p['dw_w'].reshape(9, 1, hidden)
    wsum = p['dw_w'].sum(axis=(0, 1)).reshape(1, hidden)

    tokens = jnp.concatenate([x, msg], axis=1)                 # (B, N, C)
    tok_spec = pl.BlockSpec((1, N, C), lambda b: (b, 0, 0))

    # ---------------- fused attention sub-block ----------------
    out1 = pl.pallas_call(
        partial(_attn_block_kernel, num_heads=num_heads, scale=scale, n_img=Nx),
        out_shape=jax.ShapeDtypeStruct((B, N, C), jnp.float32),
        grid=(B,),
        in_specs=[
            tok_spec,
            _rep_spec((1, C)), _rep_spec((1, C)),
            _rep_spec((C, 3 * C)),
            _rep_spec((9, 1, C)), _rep_spec((1, C)),
            _rep_spec((C, C)), _rep_spec((1, C)),
            _rep_spec((9, N, N)),
        ],
        out_specs=tok_spec,
        compiler_params=pltpu.CompilerParams(dimension_semantics=("parallel",)),
    )(tokens,
      p['n1_g'].reshape(1, C), p['n1_b'].reshape(1, C),
      qkv_wt,
      lcw, p['lc_b'].reshape(1, C),
      p['proj_w'].T, p['proj_b'].reshape(1, C),
      S)

    # ---------------- fused MLP sub-block ----------------
    out2 = pl.pallas_call(
        partial(_mlp_block_kernel, n_img=Nx),
        out_shape=jax.ShapeDtypeStruct((B, N, C), jnp.float32),
        grid=(B,),
        in_specs=[
            tok_spec,
            _rep_spec((1, C)), _rep_spec((1, C)),
            _rep_spec((C, hidden)), _rep_spec((1, hidden)),
            _rep_spec((9, 1, hidden)), _rep_spec((1, hidden)), _rep_spec((1, hidden)),
            _rep_spec((hidden, C)), _rep_spec((1, C)),
            _rep_spec((9, N, N)),
        ],
        out_specs=tok_spec,
        compiler_params=pltpu.CompilerParams(dimension_semantics=("parallel",)),
    )(out1,
      p['n2_g'].reshape(1, C), p['n2_b'].reshape(1, C),
      p['fc1_w'].T, p['fc1_b'].reshape(1, hidden),
      dww, p['dw_b'].reshape(1, hidden), wsum,
      p['fc2_w'].T, p['fc2_b'].reshape(1, C),
      S)

    x2 = out2[:, :Nx]
    m2 = out2[:, Nx:]

    if msg_shift is not None:
        m2 = m2.reshape(B_outer, T, M, C)
        chunks = jnp.split(m2, len(msg_shift), axis=2)
        chunks = [jnp.roll(c, r, axis=1) for c, r in zip(chunks, msg_shift)]
        m2 = jnp.concatenate(chunks, axis=2).reshape(B_outer * T, M, C)

    return x2, m2


# ----------------------------- params + demo ---------------------------------

def make_params(key, C, hidden):
    ks = jax.random.split(key, 7)
    conv_std = math.sqrt(2.0 / 9.0)   # fan_out = 3*3*out // groups = 9 (depthwise)
    return {
        'n1_g': jnp.ones((C,), jnp.float32), 'n1_b': jnp.zeros((C,), jnp.float32),
        'n2_g': jnp.ones((C,), jnp.float32), 'n2_b': jnp.zeros((C,), jnp.float32),
        'q_w': 0.02 * jax.random.normal(ks[0], (C, C), jnp.float32),
        'kv_w': 0.02 * jax.random.normal(ks[1], (2 * C, C), jnp.float32),
        'proj_w': 0.02 * jax.random.normal(ks[2], (C, C), jnp.float32),
        'proj_b': jnp.zeros((C,), jnp.float32),
        'lc_w': conv_std * jax.random.normal(ks[3], (3, 3, C), jnp.float32),
        'lc_b': jnp.zeros((C,), jnp.float32),
        'fc1_w': 0.02 * jax.random.normal(ks[4], (hidden, C), jnp.float32),
        'fc1_b': jnp.zeros((hidden,), jnp.float32),
        'dw_w': conv_std * jax.random.normal(ks[5], (3, 3, hidden), jnp.float32),
        'dw_b': jnp.zeros((hidden,), jnp.float32),
        'fc2_w': 0.02 * jax.random.normal(ks[6], (C, hidden), jnp.float32),
        'fc2_b': jnp.zeros((C,), jnp.float32),
    }


if __name__ == "__main__":
    key = jax.random.PRNGKey(0)
    k_p, k_x, k_m = jax.random.split(key, 3)

    # small shapes consistent with the module
    B_outer, T = 2, 1
    B = B_outer * T
    H = W = 8
    C = 32
    num_heads = 8
    mlp_ratio = 4.0
    hidden = int(C * mlp_ratio)       # 128 -> lane-dense MLP intermediate
    msg_nums = 8

    params = make_params(k_p, C, hidden)
    x = jax.random.normal(k_x, (B, H * W, C), jnp.float32)
    msg_tokens = jax.random.normal(k_m, (B, msg_nums, C), jnp.float32)

    fwd = jax.jit(lambda p, xx, mm: block_forward(
        p, xx, mm, H, W, B_outer, T, num_heads, msg_shift=None))

    x_out, msg_out = fwd(params, x, msg_tokens)
    jax.block_until_ready((x_out, msg_out))

    assert x_out.shape == (B, H * W, C)
    assert msg_out.shape == (B, msg_nums, C)
    # TODO(synk): sr_ratio > 1 branch of Attention (sr1/sr2/kv1/kv2) not exercised;
    # Block defaults to sr_ratio=1 which is what is implemented here.
    print("KERNEL_OK")
</pallas_src>

<mosaic_0001>
module attributes {stable_mosaic.version = 11 : i64} {
  func.func @_attn_block_kernel(%arg0: i32, %arg1: memref<1x72x32xf32, #tpu.memory_space<vmem>>, %arg2: memref<1x32xf32, #tpu.memory_space<vmem>>, %arg3: memref<1x32xf32, #tpu.memory_space<vmem>>, %arg4: memref<32x96xf32, #tpu.memory_space<vmem>>, %arg5: memref<9x1x32xf32, #tpu.memory_space<vmem>>, %arg6: memref<1x32xf32, #tpu.memory_space<vmem>>, %arg7: memref<32x32xf32, #tpu.memory_space<vmem>>, %arg8: memref<1x32xf32, #tpu.memory_space<vmem>>, %arg9: memref<9x72x72xf32, #tpu.memory_space<vmem>>, %arg10: memref<1x72x32xf32, #tpu.memory_space<vmem>>) attributes {dimension_semantics = [#tpu.dimension_semantics<parallel>], iteration_bounds = array<i64: 2>, scalar_prefetch = 0 : i64, scratch_operands = 0 : i64, tpu.core_type = #tpu.core_type<tc>, window_params = [{transform_indices = @transform_0, window_bounds = array<i64: 1, 72, 32>}, {pipeline_mode = #tpu.pipeline_mode<synchronous>, transform_indices = @transform_1, window_bounds = array<i64: 1, 32>}, {pipeline_mode = #tpu.pipeline_mode<synchronous>, transform_indices = @transform_2, window_bounds = array<i64: 1, 32>}, {pipeline_mode = #tpu.pipeline_mode<synchronous>, transform_indices = @transform_3, window_bounds = array<i64: 32, 96>}, {pipeline_mode = #tpu.pipeline_mode<synchronous>, transform_indices = @transform_4, window_bounds = array<i64: 9, 1, 32>}, {pipeline_mode = #tpu.pipeline_mode<synchronous>, transform_indices = @transform_5, window_bounds = array<i64: 1, 32>}, {pipeline_mode = #tpu.pipeline_mode<synchronous>, transform_indices = @transform_6, window_bounds = array<i64: 32, 32>}, {pipeline_mode = #tpu.pipeline_mode<synchronous>, transform_indices = @transform_7, window_bounds = array<i64: 1, 32>}, {pipeline_mode = #tpu.pipeline_mode<synchronous>, transform_indices = @transform_8, window_bounds = array<i64: 9, 72, 72>}, {transform_indices = @transform_9, window_bounds = array<i64: 1, 72, 32>}]} {
    %c0 = arith.constant 0 : index
    %c0_0 = arith.constant 0 : index
    %c0_1 = arith.constant 0 : index
    %0 = vector.load %arg1[%c0, %c0_0, %c0_1] : memref<1x72x32xf32, #tpu.memory_space<vmem>>, vector<1x72x32xf32>
    %1 = vector.shape_cast %0 : vector<1x72x32xf32> to vector<72x32xf32>
    %cst = arith.constant dense<0.000000e+00> : vector<72xf32>
    %2 = vector.multi_reduction <add>, %1, %cst [1] : vector<72x32xf32> to vector<72xf32>
    %3 = vector.shape_cast %2 : vector<72xf32> to vector<72x1xf32>
    %cst_2 = arith.constant 3.200000e+01 : f32
    %4 = vector.broadcast %cst_2 : f32 to vector<72x1xf32>
    %5 = arith.divf %3, %4 : vector<72x1xf32>
    %6 = vector.broadcast %5 : vector<72x1xf32> to vector<72x32xf32>
    %7 = arith.subf %1, %6 : vector<72x32xf32>
    %8 = arith.mulf %7, %7 : vector<72x32xf32>
    %cst_3 = arith.constant dense<0.000000e+00> : vector<72xf32>
    %9 = vector.multi_reduction <add>, %8, %cst_3 [1] : vector<72x32xf32> to vector<72xf32>
    %10 = vector.shape_cast %9 : vector<72xf32> to vector<72x1xf32>
    %cst_4 = arith.constant 3.200000e+01 : f32
    %11 = vector.broadcast %cst_4 : f32 to vector<72x1xf32>
    %12 = arith.divf %10, %11 : vector<72x1xf32>
    %13 = vector.broadcast %5 : vector<72x1xf32> to vector<72x32xf32>
    %14 = arith.subf %1, %13 : vector<72x32xf32>
    %cst_5 = arith.constant 9.99999974E-6 : f32
    %15 = vector.broadcast %cst_5 : f32 to vector<72x1xf32>
    %16 = arith.addf %12, %15 : vector<72x1xf32>
    %17 = math.rsqrt %16 : vector<72x1xf32>
    %18 = vector.broadcast %17 : vector<72x1xf32> to vector<72x32xf32>
    %19 = arith.mulf %14, %18 : vector<72x32xf32>
    %c0_6 = arith.constant 0 : index
    %c0_7 = arith.constant 0 : index
    %20 = vector.load %arg2[%c0_6, %c0_7] : memref<1x32xf32, #tpu.memory_space<vmem>>, vector<1x32xf32>
    %21 = vector.broadcast %20 : vector<1x32xf32> to vector<72x32xf32>
    %22 = arith.mulf %19, %21 : vector<72x32xf32>
    %c0_8 = arith.constant 0 : index
    %c0_9 = arith.constant 0 : index
    %23 = vector.load %arg3[%c0_8, %c0_9] : memref<1x32xf32, #tpu.memory_space<vmem>>, vector<1x32xf32>
    %24 = vector.broadcast %23 : vector<1x32xf32> to vector<72x32xf32>
    %25 = arith.addf %22, %24 : vector<72x32xf32>
    %c0_10 = arith.constant 0 : index
    %c0_11 = arith.constant 0 : index
    %26 = vector.load %arg4[%c0_10, %c0_11] : memref<32x96xf32, #tpu.memory_space<vmem>>, vector<32x96xf32>
    %cst_12 = arith.constant dense<0.000000e+00> : vector<72x96xf32>
    %27 = tpu.matmul %25, %26, %cst_12 {dimension_numbers = #tpu.dot_dimension_numbers<[1], [0], [0], [1], [0, 0, 1, 1], [], []>} : vector<72x32xf32>, vector<32x96xf32>, vector<72x96xf32> -> vector<72x96xf32>
    %28 = vector.extract_strided_slice %27 {offsets = [0, 0], sizes = [72, 32], strides = [1, 1]} : vector<72x96xf32> to vector<72x32xf32>
    %29 = vector.extract_strided_slice %27 {offsets = [0, 32], sizes = [72, 32], strides = [1, 1]} : vector<72x96xf32> to vector<72x32xf32>
    %30 = vector.extract_strided_slice %27 {offsets = [0, 64], sizes = [72, 32], strides = [1, 1]} : vector<72x96xf32> to vector<72x32xf32>
    %31 = tpu.iota {dimensions = array<i32: 1>} : vector<1x32xi32>
    %cst_13 = arith.constant 0.000000e+00 : f32
    %32 = vector.broadcast %cst_13 : f32 to vector<72x32xf32>
    %c0_i32 = arith.constant 0 : i32
    %33 = vector.broadcast %c0_i32 : i32 to vector<1x32xi32>
    %34 = arith.cmpi sge, %31, %33 : vector<1x32xi32>
    %c4_i32 = arith.constant 4 : i32
    %35 = vector.broadcast %c4_i32 : i32 to vector<1x32xi32>
    %36 = arith.cmpi slt, %31, %35 : vector<1x32xi32>
    %37 = arith.andi %34, %36 : vector<1x32xi1>
    %cst_14 = arith.constant 0.000000e+00 : f32
    %38 = vector.shape_cast %37 : vector<1x32xi1> to vector<1x32xi1>
    %39 = vector.broadcast %38 : vector<1x32xi1> to vector<72x32xi1>
    %40 = vector.broadcast %cst_14 : f32 to vector<72x32xf32>
    %41 = arith.select %39, %28, %40 : vector<72x32xi1>, vector<72x32xf32>
    %cst_15 = arith.constant 0.000000e+00 : f32
    %42 = vector.shape_cast %37 : vector<1x32xi1> to vector<1x32xi1>
    %43 = vector.broadcast %42 : vector<1x32xi1> to vector<72x32xi1>
    %44 = vector.broadcast %cst_15 : f32 to vector<72x32xf32>
    %45 = arith.select %43, %29, %44 : vector<72x32xi1>, vector<72x32xf32>
    %cst_16 = arith.constant 0.000000e+00 : f32
    %46 = vector.shape_cast %37 : vector<1x32xi1> to vector<1x32xi1>
    %47 = vector.broadcast %46 : vector<1x32xi1> to vector<72x32xi1>
    %48 = vector.broadcast %cst_16 : f32 to vector<72x32xf32>
    %49 = arith.select %47, %30, %48 : vector<72x32xi1>, vector<72x32xf32>
    %cst_17 = arith.constant dense<0.000000e+00> : vector<72x72xf32>
    %50 = tpu.matmul %41, %45, %cst_17 {dimension_numbers = #tpu.dot_dimension_numbers<[1], [1], [0], [0], [0, 0, 1, 0], [], []>} : vector<72x32xf32>, vector<72x32xf32>, vector<72x72xf32> -> vector<72x72xf32>
    %cst_18 = arith.constant 5.000000e-01 : f32
    %51 = vector.broadcast %cst_18 : f32 to vector<72x72xf32>
    %52 = arith.mulf %50, %51 : vector<72x72xf32>
    %cst_19 = arith.constant dense<0xFF800000> : vector<72xf32>
    %53 = vector.multi_reduction <maximumf>, %52, %cst_19 [1] : vector<72x72xf32> to vector<72xf32>
    %54 = vector.shape_cast %53 : vector<72xf32> to vector<72x1xf32>
    %55 = vector.broadcast %54 : vector<72x1xf32> to vector<72x72xf32>
    %56 = arith.subf %52, %55 : vector<72x72xf32>
    %57 = math.exp %56 : vector<72x72xf32>
    %cst_20 = arith.constant dense<0.000000e+00> : vector<72xf32>
    %58 = vector.multi_reduction <add>, %57, %cst_20 [1] : vector<72x72xf32> to vector<72xf32>
    %59 = vector.shape_cast %58 : vector<72xf32> to vector<72x1xf32>
    %60 = tpu.reciprocal %59 {approx = true} : vector<72x1xf32> -> vector<72x1xf32>
    %61 = vector.broadcast %60 : vector<72x1xf32> to vector<72x72xf32>
    %62 = arith.mulf %57, %61 : vector<72x72xf32>
    %cst_21 = arith.constant dense<0.000000e+00> : vector<72x32xf32>
    %63 = tpu.matmul %62, %49, %cst_21 {dimension_numbers = #tpu.dot_dimension_numbers<[1], [0], [0], [1], [0, 0, 1, 1], [], []>} : vector<72x72xf32>, vector<72x32xf32>, vector<72x32xf32> -> vector<72x32xf32>
    %64 = arith.addf %32, %63 : vector<72x32xf32>
    %c4_i32_22 = arith.constant 4 : i32
    %65 = vector.broadcast %c4_i32_22 : i32 to vector<1x32xi32>
    %66 = arith.cmpi sge, %31, %65 : vector<1x32xi32>
    %c8_i32 = arith.constant 8 : i32
    %67 = vector.broadcast %c8_i32 : i32 to vector<1x32xi32>
    %68 = arith.cmpi slt, %31, %67 : vector<1x32xi32>
    %69 = arith.andi %66, %68 : vector<1x32xi1>
    %cst_23 = arith.constant 0.000000e+00 : f32
    %70 = vector.shape_cast %69 : vector<1x32xi1> to vector<1x32xi1>
    %71 = vector.broadcast %70 : vector<1x32xi1> to vector<72x32xi1>
    %72 = vector.broadcast %cst_23 : f32 to vector<72x32xf32>
    %73 = arith.select %71, %28, %72 : vector<72x32xi1>, vector<72x32xf32>
    %cst_24 = arith.constant 0.000000e+00 : f32
    %74 = vector.shape_cast %69 : vector<1x32xi1> to vector<1x32xi1>
    %75 = vector.broadcast %74 : vector<1x32xi1> to vector<72x32xi1>
    %76 = vector.broadcast %cst_24 : f32 to vector<72x32xf32>
    %77 = arith.select %75, %29, %76 : vector<72x32xi1>, vector<72x32xf32>
    %cst_25 = arith.constant 0.000000e+00 : f32
    %78 = vector.shape_cast %69 : vector<1x32xi1> to vector<1x32xi1>
    %79 = vector.broadcast %78 : vector<1x32xi1> to vector<72x32xi1>
    %80 = vector.broadcast %cst_25 : f32 to vector<72x32xf32>
    %81 = arith.select %79, %30, %80 : vector<72x32xi1>, vector<72x32xf32>
    %cst_26 = arith.constant dense<0.000000e+00> : vector<72x72xf32>
    %82 = tpu.matmul %73, %77, %cst_26 {dimension_numbers = #tpu.dot_dimension_numbers<[1], [1], [0], [0], [0, 0, 1, 0], [], []>} : vector<72x32xf32>, vector<72x32xf32>, vector<72x72xf32> -> vector<72x72xf32>
    %cst_27 = arith.constant 5.000000e-01 : f32
    %83 = vector.broadcast %cst_27 : f32 to vector<72x72xf32>
    %84 = arith.mulf %82, %83 : vector<72x72xf32>
    %cst_28 = arith.constant dense<0xFF800000> : vector<72xf32>
    %85 = vector.multi_reduction <maximumf>, %84, %cst_28 [1] : vector<72x72xf32> to vector<72xf32>
    %86 = vector.shape_cast %85 : vector<72xf32> to vector<72x1xf32>
    %87 = vector.broadcast %86 : vector<72x1xf32> to vector<72x72xf32>
    %88 = arith.subf %84, %87 : vector<72x72xf32>
    %89 = math.exp %88 : vector<72x72xf32>
    %cst_29 = arith.constant dense<0.000000e+00> : vector<72xf32>
    %90 = vector.multi_reduction <add>, %89, %cst_29 [1] : vector<72x72xf32> to vector<72xf32>
    %91 = vector.shape_cast %90 : vector<72xf32> to vector<72x1xf32>
    %92 = tpu.reciprocal %91 {approx = true} : vector<72x1xf32> -> vector<72x1xf32>
    %93 = vector.broadcast %92 : vector<72x1xf32> to vector<72x72xf32>
    %94 = arith.mulf %89, %93 : vector<72x72xf32>
    %cst_30 = arith.constant dense<0.000000e+00> : vector<72x32xf32>
    %95 = tpu.matmul %94, %81, %cst_30 {dimension_numbers = #tpu.dot_dimension_numbers<[1], [0], [0], [1], [0, 0, 1, 1], [], []>} : vector<72x72xf32>, vector<72x32xf32>, vector<72x32xf32> -> vector<72x32xf32>
    %96 = arith.addf %64, %95 : vector<72x32xf32>
    %c8_i32_31 = arith.constant 8 : i32
    %97 = vector.broadcast %c8_i32_31 : i32 to vector<1x32xi32>
    %98 = arith.cmpi sge, %31, %97 : vector<1x32xi32>
    %c12_i32 = arith.constant 12 : i32
    %99 = vector.broadcast %c12_i32 : i32 to vector<1x32xi32>
    %100 = arith.cmpi slt, %31, %99 : vector<1x32xi32>
    %101 = arith.andi %98, %100 : vector<1x32xi1>
    %cst_32 = arith.constant 0.000000e+00 : f32
    %102 = vector.shape_cast %101 : vector<1x32xi1> to vector<1x32xi1>
    %103 = vector.broadcast %102 : vector<1x32xi1> to vector<72x32xi1>
    %104 = vector.broadcast %cst_32 : f32 to vector<72x32xf32>
    %105 = arith.select %103, %28, %104 : vector<72x32xi1>, vector<72x32xf32>
    %cst_33 = arith.constant 0.000000e+00 : f32
    %106 = vector.shape_cast %101 : vector<1x32xi1> to vector<1x32xi1>
    %107 = vector.broadcast %106 : vector<1x32xi1> to vector<72x32xi1>
    %108 = vector.broadcast %cst_33 : f32 to vector<72x32xf32>
    %109 = arith.select %107, %29, %108 : vector<72x32xi1>, vector<72x32xf32>
    %cst_34 = arith.constant 0.000000e+00 : f32
    %110 = vector.shape_cast %101 : vector<1x32xi1> to vector<1x32xi1>
    %111 = vector.broadcast %110 : vector<1x32xi1> to vector<72x32xi1>
    %112 = vector.broadcast %cst_34 : f32 to vector<72x32xf32>
    %113 = arith.select %111, %30, %112 : vector<72x32xi1>, vector<72x32xf32>
    %cst_35 = arith.constant dense<0.000000e+00> : vector<72x72xf32>
    %114 = tpu.matmul %105, %109, %cst_35 {dimension_numbers = #tpu.dot_dimension_numbers<[1], [1], [0], [0], [0, 0, 1, 0], [], []>} : vector<72x32xf32>, vector<72x32xf32>, vector<72x72xf32> -> vector<72x72xf32>
    %cst_36 = arith.constant 5.000000e-01 : f32
    %115 = vector.broadcast %cst_36 : f32 to vector<72x72xf32>
    %116 = arith.mulf %114, %115 : vector<72x72xf32>
    %cst_37 = arith.constant dense<0xFF800000> : vector<72xf32>
    %117 = vector.multi_reduction <maximumf>, %116, %cst_37 [1] : vector<72x72xf32> to vector<72xf32>
    %118 = vector.shape_cast %117 : vector<72xf32> to vector<72x1xf32>
    %119 = vector.broadcast %118 : vector<72x1xf32> to vector<72x72xf32>
    %120 = arith.subf %116, %119 : vector<72x72xf32>
    %121 = math.exp %120 : vector<72x72xf32>
    %cst_38 = arith.constant dense<0.000000e+00> : vector<72xf32>
    %122 = vector.multi_reduction <add>, %121, %cst_38 [1] : vector<72x72xf32> to vector<72xf32>
    %123 = vector.shape_cast %122 : vector<72xf32> to vector<72x1xf32>
    %124 = tpu.reciprocal %123 {approx = true} : vector<72x1xf32> -> vector<72x1xf32>
    %125 = vector.broadcast %124 : vector<72x1xf32> to vector<72x72xf32>
    %126 = arith.mulf %121, %125 : vector<72x72xf32>
    %cst_39 = arith.constant dense<0.000000e+00> : vector<72x32xf32>
    %127 = tpu.matmul %126, %113, %cst_39 {dimension_numbers = #tpu.dot_dimension_numbers<[1], [0], [0], [1], [0, 0, 1, 1], [], []>} : vector<72x72xf32>, vector<72x32xf32>, vector<72x32xf32> -> vector<72x32xf32>
    %128 = arith.addf %96, %127 : vector<72x32xf32>
    %c12_i32_40 = arith.constant 12 : i32
    %129 = vector.broadcast %c12_i32_40 : i32 to vector<1x32xi32>
    %130 = arith.cmpi sge, %31, %129 : vector<1x32xi32>
    %c16_i32 = arith.constant 16 : i32
    %131 = vector.broadcast %c16_i32 : i32 to vector<1x32xi32>
    %132 = arith.cmpi slt, %31, %131 : vector<1x32xi32>
    %133 = arith.andi %130, %132 : vector<1x32xi1>
    %cst_41 = arith.constant 0.000000e+00 : f32
    %134 = vector.shape_cast %133 : vector<1x32xi1> to vector<1x32xi1>
    %135 = vector.broadcast %134 : vector<1x32xi1> to vector<72x32xi1>
    %136 = vector.broadcast %cst_41 : f32 to vector<72x32xf32>
    %137 = arith.select %135, %28, %136 : vector<72x32xi1>, vector<72x32xf32>
    %cst_42 = arith.constant 0.000000e+00 : f32
    %138 = vector.shape_cast %133 : vector<1x32xi1> to vector<1x32xi1>
    %139 = vector.broadcast %138 : vector<1x32xi1> to vector<72x32xi1>
    %140 = vector.broadcast %cst_42 : f32 to vector<72x32xf32>
    %141 = arith.select %139, %29, %140 : vector<72x32xi1>, vector<72x32xf32>
    %cst_43 = arith.constant 0.000000e+00 : f32
    %142 = vector.shape_cast %133 : vector<1x32xi1> to vector<1x32xi1>
    %143 = vector.broadcast %142 : vector<1x32xi1> to vector<72x32xi1>
    %144 = vector.broadcast %cst_43 : f32 to vector<72x32xf32>
    %145 = arith.select %143, %30, %144 : vector<72x32xi1>, vector<72x32xf32>
    %cst_44 = arith.constant dense<0.000000e+00> : vector<72x72xf32>
    %146 = tpu.matmul %137, %141, %cst_44 {dimension_numbers = #tpu.dot_dimension_numbers<[1], [1], [0], [0], [0, 0, 1, 0], [], []>} : vector<72x32xf32>, vector<72x32xf32>, vector<72x72xf32> -> vector<72x72xf32>
    %cst_45 = arith.constant 5.000000e-01 : f32
    %147 = vector.broadcast %cst_45 : f32 to vector<72x72xf32>
    %148 = arith.mulf %146, %147 : vector<72x72xf32>
    %cst_46 = arith.constant dense<0xFF800000> : vector<72xf32>
    %149 = vector.multi_reduction <maximumf>, %148, %cst_46 [1] : vector<72x72xf32> to vector<72xf32>
    %150 = vector.shape_cast %149 : vector<72xf32> to vector<72x1xf32>
    %151 = vector.broadcast %150 : vector<72x1xf32> to vector<72x72xf32>
    %152 = arith.subf %148, %151 : vector<72x72xf32>
    %153 = math.exp %152 : vector<72x72xf32>
    %cst_47 = arith.constant dense<0.000000e+00> : vector<72xf32>
    %154 = vector.multi_reduction <add>, %153, %cst_47 [1] : vector<72x72xf32> to vector<72xf32>
    %155 = vector.shape_cast %154 : vector<72xf32> to vector<72x1xf32>
    %156 = tpu.reciprocal %155 {approx = true} : vector<72x1xf32> -> vector<72x1xf32>
    %157 = vector.broadcast %156 : vector<72x1xf32> to vector<72x72xf32>
    %158 = arith.mulf %153, %157 : vector<72x72xf32>
    %cst_48 = arith.constant dense<0.000000e+00> : vector<72x32xf32>
    %159 = tpu.matmul %158, %145, %cst_48 {dimension_numbers = #tpu.dot_dimension_numbers<[1], [0], [0], [1], [0, 0, 1, 1], [], []>} : vector<72x72xf32>, vector<72x32xf32>, vector<72x32xf32> -> vector<72x32xf32>
    %160 = arith.addf %128, %159 : vector<72x32xf32>
    %c16_i32_49 = arith.constant 16 : i32
    %161 = vector.broadcast %c16_i32_49 : i32 to vector<1x32xi32>
    %162 = arith.cmpi sge, %31, %161 : vector<1x32xi32>
    %c20_i32 = arith.constant 20 : i32
    %163 = vector.broadcast %c20_i32 : i32 to vector<1x32xi32>
    %164 = arith.cmpi slt, %31, %163 : vector<1x32xi32>
    %165 = arith.andi %162, %164 : vector<1x32xi1>
    %cst_50 = arith.constant 0.000000e+00 : f32
    %166 = vector.shape_cast %165 : vector<1x32xi1> to vector<1x32xi1>
    %167 = vector.broadcast %166 : vector<1x32xi1> to vector<72x32xi1>
    %168 = vector.broadcast %cst_50 : f32 to vector<72x32xf32>
    %169 = arith.select %167, %28, %168 : vector<72x32xi1>, vector<72x32xf32>
    %cst_51 = arith.constant 0.000000e+00 : f32
    %170 = vector.shape_cast %165 : vector<1x32xi1> to vector<1x32xi1>
    %171 = vector.broadcast %170 : vector<1x32xi1> to vector<72x32xi1>
    %172 = vector.broadcast %cst_51 : f32 to vector<72x32xf32>
    %173 = arith.select %171, %29, %172 : vector<72x32xi1>, vector<72x32xf32>
    %cst_52 = arith.constant 0.000000e+00 : f32
    %174 = vector.shape_cast %165 : vector<1x32xi1> to vector<1x32xi1>
    %175 = vector.broadcast %174 : vector<1x32xi1> to vector<72x32xi1>
    %176 = vector.broadcast %cst_52 : f32 to vector<72x32xf32>
    %177 = arith.select %175, %30, %176 : vector<72x32xi1>, vector<72x32xf32>
    %cst_53 = arith.constant dense<0.000000e+00> : vector<72x72xf32>
    %178 = tpu.matmul %169, %173, %cst_53 {dimension_numbers = #tpu.dot_dimension_numbers<[1], [1], [0], [0], [0, 0, 1, 0], [], []>} : vector<72x32xf32>, vector<72x32xf32>, vector<72x72xf32> -> vector<72x72xf32>
    %cst_54 = arith.constant 5.000000e-01 : f32
    %179 = vector.broadcast %cst_54 : f32 to vector<72x72xf32>
    %180 = arith.mulf %178, %179 : vector<72x72xf32>
    %cst_55 = arith.constant dense<0xFF800000> : vector<72xf32>
    %181 = vector.multi_reduction <maximumf>, %180, %cst_55 [1] : vector<72x72xf32> to vector<72xf32>
    %182 = vector.shape_cast %181 : vector<72xf32> to vector<72x1xf32>
    %183 = vector.broadcast %182 : vector<72x1xf32> to vector<72x72xf32>
    %184 = arith.subf %180, %183 : vector<72x72xf32>
    %185 = math.exp %184 : vector<72x72xf32>
    %cst_56 = arith.constant dense<0.000000e+00> : vector<72xf32>
    %186 = vector.multi_reduction <add>, %185, %cst_56 [1] : vector<72x72xf32> to vector<72xf32>
    %187 = vector.shape_cast %186 : vector<72xf32> to vector<72x1xf32>
    %188 = tpu.reciprocal %187 {approx = true} : vector<72x1xf32> -> vector<72x1xf32>
    %189 = vector.broadcast %188 : vector<72x1xf32> to vector<72x72xf32>
    %190 = arith.mulf %185, %189 : vector<72x72xf32>
    %cst_57 = arith.constant dense<0.000000e+00> : vector<72x32xf32>
    %191 = tpu.matmul %190, %177, %cst_57 {dimension_numbers = #tpu.dot_dimension_numbers<[1], [0], [0], [1], [0, 0, 1, 1], [], []>} : vector<72x72xf32>, vector<72x32xf32>, vector<72x32xf32> -> vector<72x32xf32>
    %192 = arith.addf %160, %191 : vector<72x32xf32>
    %c20_i32_58 = arith.constant 20 : i32
    %193 = vector.broadcast %c20_i32_58 : i32 to vector<1x32xi32>
    %194 = arith.cmpi sge, %31, %193 : vector<1x32xi32>
    %c24_i32 = arith.constant 24 : i32
    %195 = vector.broadcast %c24_i32 : i32 to vector<1x32xi32>
    %196 = arith.cmpi slt, %31, %195 : vector<1x32xi32>
    %197 = arith.andi %194, %196 : vector<1x32xi1>
    %cst_59 = arith.constant 0.000000e+00 : f32
    %198 = vector.shape_cast %197 : vector<1x32xi1> to vector<1x32xi1>
    %199 = vector.broadcast %198 : vector<1x32xi1> to vector<72x32xi1>
    %200 = vector.broadcast %cst_59 : f32 to vector<72x32xf32>
    %201 = arith.select %199, %28, %200 : vector<72x32xi1>, vector<72x32xf32>
    %cst_60 = arith.constant 0.000000e+00 : f32
    %202 = vector.shape_cast %197 : vector<1x32xi1> to vector<1x32xi1>
    %203 = vector.broadcast %202 : vector<1x32xi1> to vector<72x32xi1>
    %204 = vector.broadcast %cst_60 : f32 to vector<72x32xf32>
    %205 = arith.select %203, %29, %204 : vector<72x32xi1>, vector<72x32xf32>
    %cst_61 = arith.constant 0.000000e+00 : f32
    %206 = vector.shape_cast %197 : vector<1x32xi1> to vector<1x32xi1>
    %207 = vector.broadcast %206 : vector<1x32xi1> to vector<72x32xi1>
    %208 = vector.broadcast %cst_61 : f32 to vector<72x32xf32>
    %209 = arith.select %207, %30, %208 : vector<72x32xi1>, vector<72x32xf32>
    %cst_62 = arith.constant dense<0.000000e+00> : vector<72x72xf32>
    %210 = tpu.matmul %201, %205, %cst_62 {dimension_numbers = #tpu.dot_dimension_numbers<[1], [1], [0], [0], [0, 0, 1, 0], [], []>} : vector<72x32xf32>, vector<72x32xf32>, vector<72x72xf32> -> vector<72x72xf32>
    %cst_63 = arith.constant 5.000000e-01 : f32
    %211 = vector.broadcast %cst_63 : f32 to vector<72x72xf32>
    %212 = arith.mulf %210, %211 : vector<72x72xf32>
    %cst_64 = arith.constant dense<0xFF800000> : vector<72xf32>
    %213 = vector.multi_reduction <maximumf>, %212, %cst_64 [1] : vector<72x72xf32> to vector<72xf32>
    %214 = vector.shape_cast %213 : vector<72xf32> to vector<72x1xf32>
    %215 = vector.broadcast %214 : vector<72x1xf32> to vector<72x72xf32>
    %216 = arith.subf %212, %215 : vector<72x72xf32>
    %217 = math.exp %216 : vector<72x72xf32>
    %cst_65 = arith.constant dense<0.000000e+00> : vector<72xf32>
    %218 = vector.multi_reduction <add>, %217, %cst_65 [1] : vector<72x72xf32> to vector<72xf32>
    %219 = vector.shape_cast %218 : vector<72xf32> to vector<72x1xf32>
    %220 = tpu.reciprocal %219 {approx = true} : vector<72x1xf32> -> vector<72x1xf32>
    %221 = vector.broadcast %220 : vector<72x1xf32> to vector<72x72xf32>
    %222 = arith.mulf %217, %221 : vector<72x72xf32>
    %cst_66 = arith.constant dense<0.000000e+00> : vector<72x32xf32>
    %223 = tpu.matmul %222, %209, %cst_66 {dimension_numbers = #tpu.dot_dimension_numbers<[1], [0], [0], [1], [0, 0, 1, 1], [], []>} : vector<72x72xf32>, vector<72x32xf32>, vector<72x32xf32> -> vector<72x32xf32>
    %224 = arith.addf %192, %223 : vector<72x32xf32>
    %c24_i32_67 = arith.constant 24 : i32
    %225 = vector.broadcast %c24_i32_67 : i32 to vector<1x32xi32>
    %226 = arith.cmpi sge, %31, %225 : vector<1x32xi32>
    %c28_i32 = arith.constant 28 : i32
    %227 = vector.broadcast %c28_i32 : i32 to vector<1x32xi32>
    %228 = arith.cmpi slt, %31, %227 : vector<1x32xi32>
    %229 = arith.andi %226, %228 : vector<1x32xi1>
    %cst_68 = arith.constant 0.000000e+00 : f32
    %230 = vector.shape_cast %229 : vector<1x32xi1> to vector<1x32xi1>
    %231 = vector.broadcast %230 : vector<1x32xi1> to vector<72x32xi1>
    %232 = vector.broadcast %cst_68 : f32 to vector<72x32xf32>
    %233 = arith.select %231, %28, %232 : vector<72x32xi1>, vector<72x32xf32>
    %cst_69 = arith.constant 0.000000e+00 : f32
    %234 = vector.shape_cast %229 : vector<1x32xi1> to vector<1x32xi1>
    %235 = vector.broadcast %234 : vector<1x32xi1> to vector<72x32xi1>
    %236 = vector.broadcast %cst_69 : f32 to vector<72x32xf32>
    %237 = arith.select %235, %29, %236 : vector<72x32xi1>, vector<72x32xf32>
    %cst_70 = arith.constant 0.000000e+00 : f32
    %238 = vector.shape_cast %229 : vector<1x32xi1> to vector<1x32xi1>
    %239 = vector.broadcast %238 : vector<1x32xi1> to vector<72x32xi1>
    %240 = vector.broadcast %cst_70 : f32 to vector<72x32xf32>
    %241 = arith.select %239, %30, %240 : vector<72x32xi1>, vector<72x32xf32>
    %cst_71 = arith.constant dense<0.000000e+00> : vector<72x72xf32>
    %242 = tpu.matmul %233, %237, %cst_71 {dimension_numbers = #tpu.dot_dimension_numbers<[1], [1], [0], [0], [0, 0, 1, 0], [], []>} : vector<72x32xf32>, vector<72x32xf32>, vector<72x72xf32> -> vector<72x72xf32>
    %cst_72 = arith.constant 5.000000e-01 : f32
    %243 = vector.broadcast %cst_72 : f32 to vector<72x72xf32>
    %244 = arith.mulf %242, %243 : vector<72x72xf32>
    %cst_73 = arith.constant dense<0xFF800000> : vector<72xf32>
    %245 = vector.multi_reduction <maximumf>, %244, %cst_73 [1] : vector<72x72xf32> to vector<72xf32>
    %246 = vector.shape_cast %245 : vector<72xf32> to vector<72x1xf32>
    %247 = vector.broadcast %246 : vector<72x1xf32> to vector<72x72xf32>
    %248 = arith.subf %244, %247 : vector<72x72xf32>
    %249 = math.exp %248 : vector<72x72xf32>
    %cst_74 = arith.constant dense<0.000000e+00> : vector<72xf32>
    %250 = vector.multi_reduction <add>, %249, %cst_74 [1] : vector<72x72xf32> to vector<72xf32>
    %251 = vector.shape_cast %250 : vector<72xf32> to vector<72x1xf32>
    %252 = tpu.reciprocal %251 {approx = true} : vector<72x1xf32> -> vector<72x1xf32>
    %253 = vector.broadcast %252 : vector<72x1xf32> to vector<72x72xf32>
    %254 = arith.mulf %249, %253 : vector<72x72xf32>
    %cst_75 = arith.constant dense<0.000000e+00> : vector<72x32xf32>
    %255 = tpu.matmul %254, %241, %cst_75 {dimension_numbers = #tpu.dot_dimension_numbers<[1], [0], [0], [1], [0, 0, 1, 1], [], []>} : vector<72x72xf32>, vector<72x32xf32>, vector<72x32xf32> -> vector<72x32xf32>
    %256 = arith.addf %224, %255 : vector<72x32xf32>
    %c28_i32_76 = arith.constant 28 : i32
    %257 = vector.broadcast %c28_i32_76 : i32 to vector<1x32xi32>
    %258 = arith.cmpi sge, %31, %257 : vector<1x32xi32>
    %c32_i32 = arith.constant 32 : i32
    %259 = vector.broadcast %c32_i32 : i32 to vector<1x32xi32>
    %260 = arith.cmpi slt, %31, %259 : vector<1x32xi32>
    %261 = arith.andi %258, %260 : vector<1x32xi1>
    %cst_77 = arith.constant 0.000000e+00 : f32
    %262 = vector.shape_cast %261 : vector<1x32xi1> to vector<1x32xi1>
    %263 = vector.broadcast %262 : vector<1x32xi1> to vector<72x32xi1>
    %264 = vector.broadcast %cst_77 : f32 to vector<72x32xf32>
    %265 = arith.select %263, %28, %264 : vector<72x32xi1>, vector<72x32xf32>
    %cst_78 = arith.constant 0.000000e+00 : f32
    %266 = vector.shape_cast %261 : vector<1x32xi1> to vector<1x32xi1>
    %267 = vector.broadcast %266 : vector<1x32xi1> to vector<72x32xi1>
    %268 = vector.broadcast %cst_78 : f32 to vector<72x32xf32>
    %269 = arith.select %267, %29, %268 : vector<72x32xi1>, vector<72x32xf32>
    %cst_79 = arith.constant 0.000000e+00 : f32
    %270 = vector.shape_cast %261 : vector<1x32xi1> to vector<1x32xi1>
    %271 = vector.broadcast %270 : vector<1x32xi1> to vector<72x32xi1>
    %272 = vector.broadcast %cst_79 : f32 to vector<72x32xf32>
    %273 = arith.select %271, %30, %272 : vector<72x32xi1>, vector<72x32xf32>
    %cst_80 = arith.constant dense<0.000000e+00> : vector<72x72xf32>
    %274 = tpu.matmul %265, %269, %cst_80 {dimension_numbers = #tpu.dot_dimension_numbers<[1], [1], [0], [0], [0, 0, 1, 0], [], []>} : vector<72x32xf32>, vector<72x32xf32>, vector<72x72xf32> -> vector<72x72xf32>
    %cst_81 = arith.constant 5.000000e-01 : f32
    %275 = vector.broadcast %cst_81 : f32 to vector<72x72xf32>
    %276 = arith.mulf %274, %275 : vector<72x72xf32>
    %cst_82 = arith.constant dense<0xFF800000> : vector<72xf32>
    %277 = vector.multi_reduction <maximumf>, %276, %cst_82 [1] : vector<72x72xf32> to vector<72xf32>
    %278 = vector.shape_cast %277 : vector<72xf32> to vector<72x1xf32>
    %279 = vector.broadcast %278 : vector<72x1xf32> to vector<72x72xf32>
    %280 = arith.subf %276, %279 : vector<72x72xf32>
    %281 = math.exp %280 : vector<72x72xf32>
    %cst_83 = arith.constant dense<0.000000e+00> : vector<72xf32>
    %282 = vector.multi_reduction <add>, %281, %cst_83 [1] : vector<72x72xf32> to vector<72xf32>
    %283 = vector.shape_cast %282 : vector<72xf32> to vector<72x1xf32>
    %284 = tpu.reciprocal %283 {approx = true} : vector<72x1xf32> -> vector<72x1xf32>
    %285 = vector.broadcast %284 : vector<72x1xf32> to vector<72x72xf32>
    %286 = arith.mulf %281, %285 : vector<72x72xf32>
    %cst_84 = arith.constant dense<0.000000e+00> : vector<72x32xf32>
    %287 = tpu.matmul %286, %273, %cst_84 {dimension_numbers = #tpu.dot_dimension_numbers<[1], [0], [0], [1], [0, 0, 1, 1], [], []>} : vector<72x72xf32>, vector<72x32xf32>, vector<72x32xf32> -> vector<72x32xf32>
    %288 = arith.addf %256, %287 : vector<72x32xf32>
    %cst_85 = arith.constant 0.000000e+00 : f32
    %289 = vector.broadcast %cst_85 : f32 to vector<72x32xf32>
    %c0_86 = arith.constant 0 : index
    %c0_87 = arith.constant 0 : index
    %c0_88 = arith.constant 0 : index
    %290 = vector.load %arg9[%c0_86, %c0_87, %c0_88] : memref<9x72x72xf32, #tpu.memory_space<vmem>>, vector<1x72x72xf32>
    %291 = vector.shape_cast %290 : vector<1x72x72xf32> to vector<72x72xf32>
    %cst_89 = arith.constant dense<0.000000e+00> : vector<72x32xf32>
    %292 = tpu.matmul %291, %30, %cst_89 {dimension_numbers = #tpu.dot_dimension_numbers<[1], [0], [0], [1], [0, 0, 1, 1], [], []>} : vector<72x72xf32>, vector<72x32xf32>, vector<72x32xf32> -> vector<72x32xf32>
    %c0_90 = arith.constant 0 : index
    %c0_91 = arith.constant 0 : index
    %c0_92 = arith.constant 0 : index
    %293 = vector.load %arg5[%c0_90, %c0_91, %c0_92] : memref<9x1x32xf32, #tpu.memory_space<vmem>>, vector<1x1x32xf32>
    %294 = vector.shape_cast %293 : vector<1x1x32xf32> to vector<1x32xf32>
    %295 = vector.broadcast %294 : vector<1x32xf32> to vector<72x32xf32>
    %296 = arith.mulf %292, %295 : vector<72x32xf32>
    %297 = arith.addf %289, %296 : vector<72x32xf32>
    %c1 = arith.constant 1 : index
    %c0_93 = arith.constant 0 : index
    %c0_94 = arith.constant 0 : index
    %298 = vector.load %arg9[%c1, %c0_93, %c0_94] : memref<9x72x72xf32, #tpu.memory_space<vmem>>, vector<1x72x72xf32>
    %299 = vector.shape_cast %298 : vector<1x72x72xf32> to vector<72x72xf32>
    %cst_95 = arith.constant dense<0.000000e+00> : vector<72x32xf32>
    %300 = tpu.matmul %299, %30, %cst_95 {dimension_numbers = #tpu.dot_dimension_numbers<[1], [0], [0], [1], [0, 0, 1, 1], [], []>} : vector<72x72xf32>, vector<72x32xf32>, vector<72x32xf32> -> vector<72x32xf32>
    %c1_96 = arith.constant 1 : index
    %c0_97 = arith.constant 0 : index
    %c0_98 = arith.constant 0 : index
    %301 = vector.load %arg5[%c1_96, %c0_97, %c0_98] : memref<9x1x32xf32, #tpu.memory_space<vmem>>, vector<1x1x32xf32>
    %302 = vector.shape_cast %301 : vector<1x1x32xf32> to vector<1x32xf32>
    %303 = vector.broadcast %302 : vector<1x32xf32> to vector<72x32xf32>
    %304 = arith.mulf %300, %303 : vector<72x32xf32>
    %305 = arith.addf %297, %304 : vector<72x32xf32>
    %c2 = arith.constant 2 : index
    %c0_99 = arith.constant 0 : index
    %c0_100 = arith.constant 0 : index
    %306 = vector.load %arg9[%c2, %c0_99, %c0_100] : memref<9x72x72xf32, #tpu.memory_space<vmem>>, vector<1x72x72xf32>
    %307 = vector.shape_cast %306 : vector<1x72x72xf32> to vector<72x72xf32>
    %cst_101 = arith.constant dense<0.000000e+00> : vector<72x32xf32>
    %308 = tpu.matmul %307, %30, %cst_101 {dimension_numbers = #tpu.dot_dimension_numbers<[1], [0], [0], [1], [0, 0, 1, 1], [], []>} : vector<72x72xf32>, vector<72x32xf32>, vector<72x32xf32> -> vector<72x32xf32>
    %c2_102 = arith.constant 2 : index
    %c0_103 = arith.constant 0 : index
    %c0_104 = arith.constant 0 : index
    %309 = vector.load %arg5[%c2_102, %c0_103, %c0_104] : memref<9x1x32xf32, #tpu.memory_space<vmem>>, vector<1x1x32xf32>
    %310 = vector.shape_cast %309 : vector<1x1x32xf32> to vector<1x32xf32>
    %311 = vector.broadcast %310 : vector<1x32xf32> to vector<72x32xf32>
    %312 = arith.mulf %308, %311 : vector<72x32xf32>
    %313 = arith.addf %305, %312 : vector<72x32xf32>
    %c3 = arith.constant 3 : index
    %c0_105 = arith.constant 0 : index
    %c0_106 = arith.constant 0 : index
    %314 = vector.load %arg9[%c3, %c0_105, %c0_106] : memref<9x72x72xf32, #tpu.memory_space<vmem>>, vector<1x72x72xf32>
    %315 = vector.shape_cast %314 : vector<1x72x72xf32> to vector<72x72xf32>
    %cst_107 = arith.constant dense<0.000000e+00> : vector<72x32xf32>
    %316 = tpu.matmul %315, %30, %cst_107 {dimension_numbers = #tpu.dot_dimension_numbers<[1], [0], [0], [1], [0, 0, 1, 1], [], []>} : vector<72x72xf32>, vector<72x32xf32>, vector<72x32xf32> -> vector<72x32xf32>
    %c3_108 = arith.constant 3 : index
    %c0_109 = arith.constant 0 : index
    %c0_110 = arith.constant 0 : index
    %317 = vector.load %arg5[%c3_108, %c0_109, %c0_110] : memref<9x1x32xf32, #tpu.memory_space<vmem>>, vector<1x1x32xf32>
    %318 = vector.shape_cast %317 : vector<1x1x32xf32> to vector<1x32xf32>
    %319 = vector.broadcast %318 : vector<1x32xf32> to vector<72x32xf32>
    %320 = arith.mulf %316, %319 : vector<72x32xf32>
    %321 = arith.addf %313, %320 : vector<72x32xf32>
    %c4 = arith.constant 4 : index
    %c0_111 = arith.constant 0 : index
    %c0_112 = arith.constant 0 : index
    %322 = vector.load %arg9[%c4, %c0_111, %c0_112] : memref<9x72x72xf32, #tpu.memory_space<vmem>>, vector<1x72x72xf32>
    %323 = vector.shape_cast %322 : vector<1x72x72xf32> to vector<72x72xf32>
    %cst_113 = arith.constant dense<0.000000e+00> : vector<72x32xf32>
    %324 = tpu.matmul %323, %30, %cst_113 {dimension_numbers = #tpu.dot_dimension_numbers<[1], [0], [0], [1], [0, 0, 1, 1], [], []>} : vector<72x72xf32>, vector<72x32xf32>, vector<72x32xf32> -> vector<72x32xf32>
    %c4_114 = arith.constant 4 : index
    %c0_115 = arith.constant 0 : index
    %c0_116 = arith.constant 0 : index
    %325 = vector.load %arg5[%c4_114, %c0_115, %c0_116] : memref<9x1x32xf32, #tpu.memory_space<vmem>>, vector<1x1x32xf32>
    %326 = vector.shape_cast %325 : vector<1x1x32xf32> to vector<1x32xf32>
    %327 = vector.broadcast %326 : vector<1x32xf32> to vector<72x32xf32>
    %328 = arith.mulf %324, %327 : vector<72x32xf32>
    %329 = arith.addf %321, %328 : vector<72x32xf32>
    %c5 = arith.constant 5 : index
    %c0_117 = arith.constant 0 : index
    %c0_118 = arith.constant 0 : index
    %330 = vector.load %arg9[%c5, %c0_117, %c0_118] : memref<9x72x72xf32, #tpu.memory_space<vmem>>, vector<1x72x72xf32>
    %331 = vector.shape_cast %330 : vector<1x72x72xf32> to vector<72x72xf32>
    %cst_119 = arith.constant dense<0.000000e+00> : vector<72x32xf32>
    %332 = tpu.matmul %331, %30, %cst_119 {dimension_numbers = #tpu.dot_dimension_numbers<[1], [0], [0], [1], [0, 0, 1, 1], [], []>} : vector<72x72xf32>, vector<72x32xf32>, vector<72x32xf32> -> vector<72x32xf32>
    %c5_120 = arith.constant 5 : index
    %c0_121 = arith.constant 0 : index
    %c0_122 = arith.constant 0 : index
    %333 = vector.load %arg5[%c5_120, %c0_121, %c0_122] : memref<9x1x32xf32, #tpu.memory_space<vmem>>, vector<1x1x32xf32>
    %334 = vector.shape_cast %333 : vector<1x1x32xf32> to vector<1x32xf32>
    %335 = vector.broadcast %334 : vector<1x32xf32> to vector<72x32xf32>
    %336 = arith.mulf %332, %335 : vector<72x32xf32>
    %337 = arith.addf %329, %336 : vector<72x32xf32>
    %c6 = arith.constant 6 : index
    %c0_123 = arith.constant 0 : index
    %c0_124 = arith.constant 0 : index
    %338 = vector.load %arg9[%c6, %c0_123, %c0_124] : memref<9x72x72xf32, #tpu.memory_space<vmem>>, vector<1x72x72xf32>
    %339 = vector.shape_cast %338 : vector<1x72x72xf32> to vector<72x72xf32>
    %cst_125 = arith.constant dense<0.000000e+00> : vector<72x32xf32>
    %340 = tpu.matmul %339, %30, %cst_125 {dimension_numbers = #tpu.dot_dimension_numbers<[1], [0], [0], [1], [0, 0, 1, 1], [], []>} : vector<72x72xf32>, vector<72x32xf32>, vector<72x32xf32> -> vector<72x32xf32>
    %c6_126 = arith.constant 6 : index
    %c0_127 = arith.constant 0 : index
    %c0_128 = arith.constant 0 : index
    %341 = vector.load %arg5[%c6_126, %c0_127, %c0_128] : memref<9x1x32xf32, #tpu.memory_space<vmem>>, vector<1x1x32xf32>
    %342 = vector.shape_cast %341 : vector<1x1x32xf32> to vector<1x32xf32>
    %343 = vector.broadcast %342 : vector<1x32xf32> to vector<72x32xf32>
    %344 = arith.mulf %340, %343 : vector<72x32xf32>
    %345 = arith.addf %337, %344 : vector<72x32xf32>
    %c7 = arith.constant 7 : index
    %c0_129 = arith.constant 0 : index
    %c0_130 = arith.constant 0 : index
    %346 = vector.load %arg9[%c7, %c0_129, %c0_130] : memref<9x72x72xf32, #tpu.memory_space<vmem>>, vector<1x72x72xf32>
    %347 = vector.shape_cast %346 : vector<1x72x72xf32> to vector<72x72xf32>
    %cst_131 = arith.constant dense<0.000000e+00> : vector<72x32xf32>
    %348 = tpu.matmul %347, %30, %cst_131 {dimension_numbers = #tpu.dot_dimension_numbers<[1], [0], [0], [1], [0, 0, 1, 1], [], []>} : vector<72x72xf32>, vector<72x32xf32>, vector<72x32xf32> -> vector<72x32xf32>
    %c7_132 = arith.constant 7 : index
    %c0_133 = arith.constant 0 : index
    %c0_134 = arith.constant 0 : index
    %349 = vector.load %arg5[%c7_132, %c0_133, %c0_134] : memref<9x1x32xf32, #tpu.memory_space<vmem>>, vector<1x1x32xf32>
    %350 = vector.shape_cast %349 : vector<1x1x32xf32> to vector<1x32xf32>
    %351 = vector.broadcast %350 : vector<1x32xf32> to vector<72x32xf32>
    %352 = arith.mulf %348, %351 : vector<72x32xf32>
    %353 = arith.addf %345, %352 : vector<72x32xf32>
    %c8 = arith.constant 8 : index
    %c0_135 = arith.constant 0 : index
    %c0_136 = arith.constant 0 : index
    %354 = vector.load %arg9[%c8, %c0_135, %c0_136] : memref<9x72x72xf32, #tpu.memory_space<vmem>>, vector<1x72x72xf32>
    %355 = vector.shape_cast %354 : vector<1x72x72xf32> to vector<72x72xf32>
    %cst_137 = arith.constant dense<0.000000e+00> : vector<72x32xf32>
    %356 = tpu.matmul %355, %30, %cst_137 {dimension_numbers = #tpu.dot_dimension_numbers<[1], [0], [0], [1], [0, 0, 1, 1], [], []>} : vector<72x72xf32>, vector<72x32xf32>, vector<72x32xf32> -> vector<72x32xf32>
    %c8_138 = arith.constant 8 : index
    %c0_139 = arith.constant 0 : index
    %c0_140 = arith.constant 0 : index
    %357 = vector.load %arg5[%c8_138, %c0_139, %c0_140] : memref<9x1x32xf32, #tpu.memory_space<vmem>>, vector<1x1x32xf32>
    %358 = vector.shape_cast %357 : vector<1x1x32xf32> to vector<1x32xf32>
    %359 = vector.broadcast %358 : vector<1x32xf32> to vector<72x32xf32>
    %360 = arith.mulf %356, %359 : vector<72x32xf32>
    %361 = arith.addf %353, %360 : vector<72x32xf32>
    %362 = tpu.iota {dimensions = array<i32: 0>} : vector<72x1xi32>
    %c64_i32 = arith.constant 64 : i32
    %363 = vector.broadcast %c64_i32 : i32 to vector<72x1xi32>
    %364 = arith.cmpi slt, %362, %363 : vector<72x1xi32>
    %c0_141 = arith.constant 0 : index
    %c0_142 = arith.constant 0 : index
    %365 = vector.load %arg6[%c0_141, %c0_142] : memref<1x32xf32, #tpu.memory_space<vmem>>, vector<1x32xf32>
    %366 = vector.broadcast %365 : vector<1x32xf32> to vector<72x32xf32>
    %367 = arith.addf %361, %366 : vector<72x32xf32>
    %368 = vector.shape_cast %364 : vector<72x1xi1> to vector<72x1xi1>
    %369 = vector.broadcast %368 : vector<72x1xi1> to vector<72x32xi1>
    %370 = arith.select %369, %367, %30 : vector<72x32xi1>, vector<72x32xf32>
    %371 = arith.addf %288, %370 : vector<72x32xf32>
    %c0_143 = arith.constant 0 : index
    %c0_144 = arith.constant 0 : index
    %372 = vector.load %arg7[%c0_143, %c0_144] : memref<32x32xf32, #tpu.memory_space<vmem>>, vector<32x32xf32>
    %cst_145 = arith.constant dense<0.000000e+00> : vector<72x32xf32>
    %373 = tpu.matmul %371, %372, %cst_145 {dimension_numbers = #tpu.dot_dimension_numbers<[1], [0], [0], [1], [0, 0, 1, 1], [], []>} : vector<72x32xf32>, vector<32x32xf32>, vector<72x32xf32> -> vector<72x32xf32>
    %c0_146 = arith.constant 0 : index
    %c0_147 = arith.constant 0 : index
    %374 = vector.load %arg8[%c0_146, %c0_147] : memref<1x32xf32, #tpu.memory_space<vmem>>, vector<1x32xf32>
    %375 = vector.broadcast %374 : vector<1x32xf32> to vector<72x32xf32>
    %376 = arith.addf %373, %375 : vector<72x32xf32>
    %377 = arith.addf %1, %376 : vector<72x32xf32>
    %c0_148 = arith.constant 0 : index
    %c0_149 = arith.constant 0 : index
    %c0_150 = arith.constant 0 : index
    %378 = vector.load %arg10[%c0_148, %c0_149, %c0_150] : memref<1x72x32xf32, #tpu.memory_space<vmem>>, vector<1x72x32xf32>
    %379 = vector.shape_cast %378 : vector<1x72x32xf32> to vector<72x32xf32>
    %380 = vector.shape_cast %377 : vector<72x32xf32> to vector<1x72x32xf32>
    tpu.vector_store %arg10[%c0_148, %c0_149, %c0_150], %380 {strides = array<i32>} : memref<1x72x32xf32, #tpu.memory_space<vmem>>, vector<1x72x32xf32>,
    return
  }
  func.func @transform_0(%arg0: i32) -> (i32, i32, i32) {
    %c0_i32 = arith.constant 0 : i32
    %c0_i32_0 = arith.constant 0 : i32
    %c0_i32_1 = arith.constant 0 : i32
    return %arg0, %c0_i32, %c0_i32_0 : i32, i32, i32
  }
  func.func @transform_1(%arg0: i32) -> (i32, i32) {
    %c0_i32 = arith.constant 0 : i32
    %c0_i32_0 = arith.constant 0 : i32
    %c0_i32_1 = arith.constant 0 : i32
    return %c0_i32, %c0_i32_0 : i32, i32
  }
  func.func @transform_2(%arg0: i32) -> (i32, i32) {
    %c0_i32 = arith.constant 0 : i32
    %c0_i32_0 = arith.constant 0 : i32
    %c0_i32_1 = arith.constant 0 : i32
    return %c0_i32, %c0_i32_0 : i32, i32
  }
  func.func @transform_3(%arg0: i32) -> (i32, i32) {
    %c0_i32 = arith.constant 0 : i32
    %c0_i32_0 = arith.constant 0 : i32
    %c0_i32_1 = arith.constant 0 : i32
    return %c0_i32, %c0_i32_0 : i32, i32
  }
  func.func @transform_4(%arg0: i32) -> (i32, i32, i32) {
    %c0_i32 = arith.constant 0 : i32
    %c0_i32_0 = arith.constant 0 : i32
    %c0_i32_1 = arith.constant 0 : i32
    %c0_i32_2 = arith.constant 0 : i32
    return %c0_i32, %c0_i32_0, %c0_i32_1 : i32, i32, i32
  }
  func.func @transform_5(%arg0: i32) -> (i32, i32) {
    %c0_i32 = arith.constant 0 : i32
    %c0_i32_0 = arith.constant 0 : i32
    %c0_i32_1 = arith.constant 0 : i32
    return %c0_i32, %c0_i32_0 : i32, i32
  }
  func.func @transform_6(%arg0: i32) -> (i32, i32) {
    %c0_i32 = arith.constant 0 : i32
    %c0_i32_0 = arith.constant 0 : i32
    %c0_i32_1 = arith.constant 0 : i32
    return %c0_i32, %c0_i32_0 : i32, i32
  }
  func.func @transform_7(%arg0: i32) -> (i32, i32) {
    %c0_i32 = arith.constant 0 : i32
    %c0_i32_0 = arith.constant 0 : i32
    %c0_i32_1 = arith.constant 0 : i32
    return %c0_i32, %c0_i32_0 : i32, i32
  }
  func.func @transform_8(%arg0: i32) -> (i32, i32, i32) {
    %c0_i32 = arith.constant 0 : i32
    %c0_i32_0 = arith.constant 0 : i32
    %c0_i32_1 = arith.constant 0 : i32
    %c0_i32_2 = arith.constant 0 : i32
    return %c0_i32, %c0_i32_0, %c0_i32_1 : i32, i32, i32
  }
  func.func @transform_9(%arg0: i32) -> (i32, i32, i32) {
    %c0_i32 = arith.constant 0 : i32
    %c0_i32_0 = arith.constant 0 : i32
    %c0_i32_1 = arith.constant 0 : i32
    return %arg0, %c0_i32, %c0_i32_0 : i32, i32, i32
  }
}

module attributes {stable_mosaic.version = 11 : i64} {
  func.func @_mlp_block_kernel(%arg0: i32, %arg1: memref<1x72x32xf32, #tpu.memory_space<vmem>>, %arg2: memref<1x32xf32, #tpu.memory_space<vmem>>, %arg3: memref<1x32xf32, #tpu.memory_space<vmem>>, %arg4: memref<32x128xf32, #tpu.memory_space<vmem>>, %arg5: memref<1x128xf32, #tpu.memory_space<vmem>>, %arg6: memref<9x1x128xf32, #tpu.memory_space<vmem>>, %arg7: memref<1x128xf32, #tpu.memory_space<vmem>>, %arg8: memref<1x128xf32, #tpu.memory_space<vmem>>, %arg9: memref<128x32xf32, #tpu.memory_space<vmem>>, %arg10: memref<1x32xf32, #tpu.memory_space<vmem>>, %arg11: memref<9x72x72xf32, #tpu.memory_space<vmem>>, %arg12: memref<1x72x32xf32, #tpu.memory_space<vmem>>) attributes {dimension_semantics = [#tpu.dimension_semantics<parallel>], iteration_bounds = array<i64: 2>, scalar_prefetch = 0 : i64, scratch_operands = 0 : i64, tpu.core_type = #tpu.core_type<tc>, window_params = [{transform_indices = @transform_0, window_bounds = array<i64: 1, 72, 32>}, {pipeline_mode = #tpu.pipeline_mode<synchronous>, transform_indices = @transform_1, window_bounds = array<i64: 1, 32>}, {pipeline_mode = #tpu.pipeline_mode<synchronous>, transform_indices = @transform_2, window_bounds = array<i64: 1, 32>}, {pipeline_mode = #tpu.pipeline_mode<synchronous>, transform_indices = @transform_3, window_bounds = array<i64: 32, 128>}, {pipeline_mode = #tpu.pipeline_mode<synchronous>, transform_indices = @transform_4, window_bounds = array<i64: 1, 128>}, {pipeline_mode = #tpu.pipeline_mode<synchronous>, transform_indices = @transform_5, window_bounds = array<i64: 9, 1, 128>}, {pipeline_mode = #tpu.pipeline_mode<synchronous>, transform_indices = @transform_6, window_bounds = array<i64: 1, 128>}, {pipeline_mode = #tpu.pipeline_mode<synchronous>, transform_indices = @transform_7, window_bounds = array<i64: 1, 128>}, {pipeline_mode = #tpu.pipeline_mode<synchronous>, transform_indices = @transform_8, window_bounds = array<i64: 128, 32>}, {pipeline_mode = #tpu.pipeline_mode<synchronous>, transform_indices = @transform_9, window_bounds = array<i64: 1, 32>}, {pipeline_mode = #tpu.pipeline_mode<synchronous>, transform_indices = @transform_10, window_bounds = array<i64: 9, 72, 72>}, {transform_indices = @transform_11, window_bounds = array<i64: 1, 72, 32>}]} {
    %c0 = arith.constant 0 : index
    %c0_0 = arith.constant 0 : index
    %c0_1 = arith.constant 0 : index
    %0 = vector.load %arg1[%c0, %c0_0, %c0_1] : memref<1x72x32xf32, #tpu.memory_space<vmem>>, vector<1x72x32xf32>
    %1 = vector.shape_cast %0 : vector<1x72x32xf32> to vector<72x32xf32>
    %cst = arith.constant dense<0.000000e+00> : vector<72xf32>
    %2 = vector.multi_reduction <add>, %1, %cst [1] : vector<72x32xf32> to vector<72xf32>
    %3 = vector.shape_cast %2 : vector<72xf32> to vector<72x1xf32>
    %cst_2 = arith.constant 3.200000e+01 : f32
    %4 = vector.broadcast %cst_2 : f32 to vector<72x1xf32>
    %5 = arith.divf %3, %4 : vector<72x1xf32>
    %6 = vector.broadcast %5 : vector<72x1xf32> to vector<72x32xf32>
    %7 = arith.subf %1, %6 : vector<72x32xf32>
    %8 = arith.mulf %7, %7 : vector<72x32xf32>
    %cst_3 = arith.constant dense<0.000000e+00> : vector<72xf32>
    %9 = vector.multi_reduction <add>, %8, %cst_3 [1] : vector<72x32xf32> to vector<72xf32>
    %10 = vector.shape_cast %9 : vector<72xf32> to vector<72x1xf32>
    %cst_4 = arith.constant 3.200000e+01 : f32
    %11 = vector.broadcast %cst_4 : f32 to vector<72x1xf32>
    %12 = arith.divf %10, %11 : vector<72x1xf32>
    %13 = vector.broadcast %5 : vector<72x1xf32> to vector<72x32xf32>
    %14 = arith.subf %1, %13 : vector<72x32xf32>
    %cst_5 = arith.constant 9.99999974E-6 : f32
    %15 = vector.broadcast %cst_5 : f32 to vector<72x1xf32>
    %16 = arith.addf %12, %15 : vector<72x1xf32>
    %17 = math.rsqrt %16 : vector<72x1xf32>
    %18 = vector.broadcast %17 : vector<72x1xf32> to vector<72x32xf32>
    %19 = arith.mulf %14, %18 : vector<72x32xf32>
    %c0_6 = arith.constant 0 : index
    %c0_7 = arith.constant 0 : index
    %20 = vector.load %arg2[%c0_6, %c0_7] : memref<1x32xf32, #tpu.memory_space<vmem>>, vector<1x32xf32>
    %21 = vector.broadcast %20 : vector<1x32xf32> to vector<72x32xf32>
    %22 = arith.mulf %19, %21 : vector<72x32xf32>
    %c0_8 = arith.constant 0 : index
    %c0_9 = arith.constant 0 : index
    %23 = vector.load %arg3[%c0_8, %c0_9] : memref<1x32xf32, #tpu.memory_space<vmem>>, vector<1x32xf32>
    %24 = vector.broadcast %23 : vector<1x32xf32> to vector<72x32xf32>
    %25 = arith.addf %22, %24 : vector<72x32xf32>
    %c0_10 = arith.constant 0 : index
    %c0_11 = arith.constant 0 : index
    %26 = vector.load %arg4[%c0_10, %c0_11] : memref<32x128xf32, #tpu.memory_space<vmem>>, vector<32x128xf32>
    %cst_12 = arith.constant dense<0.000000e+00> : vector<72x128xf32>
    %27 = tpu.matmul %25, %26, %cst_12 {dimension_numbers = #tpu.dot_dimension_numbers<[1], [0], [0], [1], [0, 0, 1, 1], [], []>} : vector<72x32xf32>, vector<32x128xf32>, vector<72x128xf32> -> vector<72x128xf32>
    %c0_13 = arith.constant 0 : index
    %c0_14 = arith.constant 0 : index
    %28 = vector.load %arg5[%c0_13, %c0_14] : memref<1x128xf32, #tpu.memory_space<vmem>>, vector<1x128xf32>
    %29 = vector.broadcast %28 : vector<1x128xf32> to vector<72x128xf32>
    %30 = arith.addf %27, %29 : vector<72x128xf32>
    %cst_15 = arith.constant 0.000000e+00 : f32
    %31 = vector.broadcast %cst_15 : f32 to vector<72x128xf32>
    %c0_16 = arith.constant 0 : index
    %c0_17 = arith.constant 0 : index
    %c0_18 = arith.constant 0 : index
    %32 = vector.load %arg11[%c0_16, %c0_17, %c0_18] : memref<9x72x72xf32, #tpu.memory_space<vmem>>, vector<1x72x72xf32>
    %33 = vector.shape_cast %32 : vector<1x72x72xf32> to vector<72x72xf32>
    %cst_19 = arith.constant dense<0.000000e+00> : vector<72x128xf32>
    %34 = tpu.matmul %33, %30, %cst_19 {dimension_numbers = #tpu.dot_dimension_numbers<[1], [0], [0], [1], [0, 0, 1, 1], [], []>} : vector<72x72xf32>, vector<72x128xf32>, vector<72x128xf32> -> vector<72x128xf32>
    %c0_20 = arith.constant 0 : index
    %c0_21 = arith.constant 0 : index
    %c0_22 = arith.constant 0 : index
    %35 = vector.load %arg6[%c0_20, %c0_21, %c0_22] : memref<9x1x128xf32, #tpu.memory_space<vmem>>, vector<1x1x128xf32>
    %36 = vector.shape_cast %35 : vector<1x1x128xf32> to vector<1x128xf32>
    %37 = vector.broadcast %36 : vector<1x128xf32> to vector<72x128xf32>
    %38 = arith.mulf %34, %37 : vector<72x128xf32>
    %39 = arith.addf %31, %38 : vector<72x128xf32>
    %c1 = arith.constant 1 : index
    %c0_23 = arith.constant 0 : index
    %c0_24 = arith.constant 0 : index
    %40 = vector.load %arg11[%c1, %c0_23, %c0_24] : memref<9x72x72xf32, #tpu.memory_space<vmem>>, vector<1x72x72xf32>
    %41 = vector.shape_cast %40 : vector<1x72x72xf32> to vector<72x72xf32>
    %cst_25 = arith.constant dense<0.000000e+00> : vector<72x128xf32>
    %42 = tpu.matmul %41, %30, %cst_25 {dimension_numbers = #tpu.dot_dimension_numbers<[1], [0], [0], [1], [0, 0, 1, 1], [], []>} : vector<72x72xf32>, vector<72x128xf32>, vector<72x128xf32> -> vector<72x128xf32>
    %c1_26 = arith.constant 1 : index
    %c0_27 = arith.constant 0 : index
    %c0_28 = arith.constant 0 : index
    %43 = vector.load %arg6[%c1_26, %c0_27, %c0_28] : memref<9x1x128xf32, #tpu.memory_space<vmem>>, vector<1x1x128xf32>
    %44 = vector.shape_cast %43 : vector<1x1x128xf32> to vector<1x128xf32>
    %45 = vector.broadcast %44 : vector<1x128xf32> to vector<72x128xf32>
    %46 = arith.mulf %42, %45 : vector<72x128xf32>
    %47 = arith.addf %39, %46 : vector<72x128xf32>
    %c2 = arith.constant 2 : index
    %c0_29 = arith.constant 0 : index
    %c0_30 = arith.constant 0 : index
    %48 = vector.load %arg11[%c2, %c0_29, %c0_30] : memref<9x72x72xf32, #tpu.memory_space<vmem>>, vector<1x72x72xf32>
    %49 = vector.shape_cast %48 : vector<1x72x72xf32> to vector<72x72xf32>
    %cst_31 = arith.constant dense<0.000000e+00> : vector<72x128xf32>
    %50 = tpu.matmul %49, %30, %cst_31 {dimension_numbers = #tpu.dot_dimension_numbers<[1], [0], [0], [1], [0, 0, 1, 1], [], []>} : vector<72x72xf32>, vector<72x128xf32>, vector<72x128xf32> -> vector<72x128xf32>
    %c2_32 = arith.constant 2 : index
    %c0_33 = arith.constant 0 : index
    %c0_34 = arith.constant 0 : index
    %51 = vector.load %arg6[%c2_32, %c0_33, %c0_34] : memref<9x1x128xf32, #tpu.memory_space<vmem>>, vector<1x1x128xf32>
    %52 = vector.shape_cast %51 : vector<1x1x128xf32> to vector<1x128xf32>
    %53 = vector.broadcast %52 : vector<1x128xf32> to vector<72x128xf32>
    %54 = arith.mulf %50, %53 : vector<72x128xf32>
    %55 = arith.addf %47, %54 : vector<72x128xf32>
    %c3 = arith.constant 3 : index
    %c0_35 = arith.constant 0 : index
    %c0_36 = arith.constant 0 : index
    %56 = vector.load %arg11[%c3, %c0_35, %c0_36] : memref<9x72x72xf32, #tpu.memory_space<vmem>>, vector<1x72x72xf32>
    %57 = vector.shape_cast %56 : vector<1x72x72xf32> to vector<72x72xf32>
    %cst_37 = arith.constant dense<0.000000e+00> : vector<72x128xf32>
    %58 = tpu.matmul %57, %30, %cst_37 {dimension_numbers = #tpu.dot_dimension_numbers<[1], [0], [0], [1], [0, 0, 1, 1], [], []>} : vector<72x72xf32>, vector<72x128xf32>, vector<72x128xf32> -> vector<72x128xf32>
    %c3_38 = arith.constant 3 : index
    %c0_39 = arith.constant 0 : index
    %c0_40 = arith.constant 0 : index
    %59 = vector.load %arg6[%c3_38, %c0_39, %c0_40] : memref<9x1x128xf32, #tpu.memory_space<vmem>>, vector<1x1x128xf32>
    %60 = vector.shape_cast %59 : vector<1x1x128xf32> to vector<1x128xf32>
    %61 = vector.broadcast %60 : vector<1x128xf32> to vector<72x128xf32>
    %62 = arith.mulf %58, %61 : vector<72x128xf32>
    %63 = arith.addf %55, %62 : vector<72x128xf32>
    %c4 = arith.constant 4 : index
    %c0_41 = arith.constant 0 : index
    %c0_42 = arith.constant 0 : index
    %64 = vector.load %arg11[%c4, %c0_41, %c0_42] : memref<9x72x72xf32, #tpu.memory_space<vmem>>, vector<1x72x72xf32>
    %65 = vector.shape_cast %64 : vector<1x72x72xf32> to vector<72x72xf32>
    %cst_43 = arith.constant dense<0.000000e+00> : vector<72x128xf32>
    %66 = tpu.matmul %65, %30, %cst_43 {dimension_numbers = #tpu.dot_dimension_numbers<[1], [0], [0], [1], [0, 0, 1, 1], [], []>} : vector<72x72xf32>, vector<72x128xf32>, vector<72x128xf32> -> vector<72x128xf32>
    %c4_44 = arith.constant 4 : index
    %c0_45 = arith.constant 0 : index
    %c0_46 = arith.constant 0 : index
    %67 = vector.load %arg6[%c4_44, %c0_45, %c0_46] : memref<9x1x128xf32, #tpu.memory_space<vmem>>, vector<1x1x128xf32>
    %68 = vector.shape_cast %67 : vector<1x1x128xf32> to vector<1x128xf32>
    %69 = vector.broadcast %68 : vector<1x128xf32> to vector<72x128xf32>
    %70 = arith.mulf %66, %69 : vector<72x128xf32>
    %71 = arith.addf %63, %70 : vector<72x128xf32>
    %c5 = arith.constant 5 : index
    %c0_47 = arith.constant 0 : index
    %c0_48 = arith.constant 0 : index
    %72 = vector.load %arg11[%c5, %c0_47, %c0_48] : memref<9x72x72xf32, #tpu.memory_space<vmem>>, vector<1x72x72xf32>
    %73 = vector.shape_cast %72 : vector<1x72x72xf32> to vector<72x72xf32>
    %cst_49 = arith.constant dense<0.000000e+00> : vector<72x128xf32>
    %74 = tpu.matmul %73, %30, %cst_49 {dimension_numbers = #tpu.dot_dimension_numbers<[1], [0], [0], [1], [0, 0, 1, 1], [], []>} : vector<72x72xf32>, vector<72x128xf32>, vector<72x128xf32> -> vector<72x128xf32>
    %c5_50 = arith.constant 5 : index
    %c0_51 = arith.constant 0 : index
    %c0_52 = arith.constant 0 : index
    %75 = vector.load %arg6[%c5_50, %c0_51, %c0_52] : memref<9x1x128xf32, #tpu.memory_space<vmem>>, vector<1x1x128xf32>
    %76 = vector.shape_cast %75 : vector<1x1x128xf32> to vector<1x128xf32>
    %77 = vector.broadcast %76 : vector<1x128xf32> to vector<72x128xf32>
    %78 = arith.mulf %74, %77 : vector<72x128xf32>
    %79 = arith.addf %71, %78 : vector<72x128xf32>
    %c6 = arith.constant 6 : index
    %c0_53 = arith.constant 0 : index
    %c0_54 = arith.constant 0 : index
    %80 = vector.load %arg11[%c6, %c0_53, %c0_54] : memref<9x72x72xf32, #tpu.memory_space<vmem>>, vector<1x72x72xf32>
    %81 = vector.shape_cast %80 : vector<1x72x72xf32> to vector<72x72xf32>
    %cst_55 = arith.constant dense<0.000000e+00> : vector<72x128xf32>
    %82 = tpu.matmul %81, %30, %cst_55 {dimension_numbers = #tpu.dot_dimension_numbers<[1], [0], [0], [1], [0, 0, 1, 1], [], []>} : vector<72x72xf32>, vector<72x128xf32>, vector<72x128xf32> -> vector<72x128xf32>
    %c6_56 = arith.constant 6 : index
    %c0_57 = arith.constant 0 : index
    %c0_58 = arith.constant 0 : index
    %83 = vector.load %arg6[%c6_56, %c0_57, %c0_58] : memref<9x1x128xf32, #tpu.memory_space<vmem>>, vector<1x1x128xf32>
    %84 = vector.shape_cast %83 : vector<1x1x128xf32> to vector<1x128xf32>
    %85 = vector.broadcast %84 : vector<1x128xf32> to vector<72x128xf32>
    %86 = arith.mulf %82, %85 : vector<72x128xf32>
    %87 = arith.addf %79, %86 : vector<72x128xf32>
    %c7 = arith.constant 7 : index
    %c0_59 = arith.constant 0 : index
    %c0_60 = arith.constant 0 : index
    %88 = vector.load %arg11[%c7, %c0_59, %c0_60] : memref<9x72x72xf32, #tpu.memory_space<vmem>>, vector<1x72x72xf32>
    %89 = vector.shape_cast %88 : vector<1x72x72xf32> to vector<72x72xf32>
    %cst_61 = arith.constant dense<0.000000e+00> : vector<72x128xf32>
    %90 = tpu.matmul %89, %30, %cst_61 {dimension_numbers = #tpu.dot_dimension_numbers<[1], [0], [0], [1], [0, 0, 1, 1], [], []>} : vector<72x72xf32>, vector<72x128xf32>, vector<72x128xf32> -> vector<72x128xf32>
    %c7_62 = arith.constant 7 : index
    %c0_63 = arith.constant 0 : index
    %c0_64 = arith.constant 0 : index
    %91 = vector.load %arg6[%c7_62, %c0_63, %c0_64] : memref<9x1x128xf32, #tpu.memory_space<vmem>>, vector<1x1x128xf32>
    %92 = vector.shape_cast %91 : vector<1x1x128xf32> to vector<1x128xf32>
    %93 = vector.broadcast %92 : vector<1x128xf32> to vector<72x128xf32>
    %94 = arith.mulf %90, %93 : vector<72x128xf32>
    %95 = arith.addf %87, %94 : vector<72x128xf32>
    %c8 = arith.constant 8 : index
    %c0_65 = arith.constant 0 : index
    %c0_66 = arith.constant 0 : index
    %96 = vector.load %arg11[%c8, %c0_65, %c0_66] : memref<9x72x72xf32, #tpu.memory_space<vmem>>, vector<1x72x72xf32>
    %97 = vector.shape_cast %96 : vector<1x72x72xf32> to vector<72x72xf32>
    %cst_67 = arith.constant dense<0.000000e+00> : vector<72x128xf32>
    %98 = tpu.matmul %97, %30, %cst_67 {dimension_numbers = #tpu.dot_dimension_numbers<[1], [0], [0], [1], [0, 0, 1, 1], [], []>} : vector<72x72xf32>, vector<72x128xf32>, vector<72x128xf32> -> vector<72x128xf32>
    %c8_68 = arith.constant 8 : index
    %c0_69 = arith.constant 0 : index
    %c0_70 = arith.constant 0 : index
    %99 = vector.load %arg6[%c8_68, %c0_69, %c0_70] : memref<9x1x128xf32, #tpu.memory_space<vmem>>, vector<1x1x128xf32>
    %100 = vector.shape_cast %99 : vector<1x1x128xf32> to vector<1x128xf32>
    %101 = vector.broadcast %100 : vector<1x128xf32> to vector<72x128xf32>
    %102 = arith.mulf %98, %101 : vector<72x128xf32>
    %103 = arith.addf %95, %102 : vector<72x128xf32>
    %104 = tpu.iota {dimensions = array<i32: 0>} : vector<72x1xi32>
    %c0_71 = arith.constant 0 : index
    %c0_72 = arith.constant 0 : index
    %105 = vector.load %arg7[%c0_71, %c0_72] : memref<1x128xf32, #tpu.memory_space<vmem>>, vector<1x128xf32>
    %106 = vector.broadcast %105 : vector<1x128xf32> to vector<72x128xf32>
    %107 = arith.addf %30, %106 : vector<72x128xf32>
    %c64_i32 = arith.constant 64 : i32
    %108 = vector.broadcast %c64_i32 : i32 to vector<72x1xi32>
    %109 = arith.cmpi slt, %104, %108 : vector<72x1xi32>
    %c0_73 = arith.constant 0 : index
    %c0_74 = arith.constant 0 : index
    %110 = vector.load %arg8[%c0_73, %c0_74] : memref<1x128xf32, #tpu.memory_space<vmem>>, vector<1x128xf32>
    %111 = vector.broadcast %110 : vector<1x128xf32> to vector<72x128xf32>
    %112 = arith.mulf %30, %111 : vector<72x128xf32>
    %113 = vector.shape_cast %109 : vector<72x1xi1> to vector<72x1xi1>
    %114 = vector.broadcast %113 : vector<72x1xi1> to vector<72x128xi1>
    %115 = arith.select %114, %103, %112 : vector<72x128xi1>, vector<72x128xf32>
    %116 = arith.addf %107, %115 : vector<72x128xf32>
    %cst_75 = arith.constant 0.707106769 : f32
    %117 = vector.broadcast %cst_75 : f32 to vector<72x128xf32>
    %118 = arith.mulf %116, %117 : vector<72x128xf32>
    %119 = math.absf %118 : vector<72x128xf32>
    %cst_76 = arith.constant 0.327591091 : f32
    %120 = vector.broadcast %cst_76 : f32 to vector<72x128xf32>
    %121 = arith.mulf %120, %119 : vector<72x128xf32>
    %cst_77 = arith.constant 1.000000e+00 : f32
    %122 = vector.broadcast %cst_77 : f32 to vector<72x128xf32>
    %123 = arith.addf %122, %121 : vector<72x128xf32>
    %cst_78 = arith.constant 1.000000e+00 : f32
    %124 = vector.broadcast %cst_78 : f32 to vector<72x128xf32>
    %125 = arith.divf %124, %123 : vector<72x128xf32>
    %cst_79 = arith.constant 1.06140542 : f32
    %126 = vector.broadcast %cst_79 : f32 to vector<72x128xf32>
    %127 = arith.mulf %126, %125 : vector<72x128xf32>
    %cst_80 = arith.constant 1.45315206 : f32
    %128 = vector.broadcast %cst_80 : f32 to vector<72x128xf32>
    %129 = arith.subf %127, %128 : vector<72x128xf32>
    %130 = arith.mulf %129, %125 : vector<72x128xf32>
    %cst_81 = arith.constant 1.42141378 : f32
    %131 = vector.broadcast %cst_81 : f32 to vector<72x128xf32>
    %132 = arith.addf %130, %131 : vector<72x128xf32>
    %133 = arith.mulf %132, %125 : vector<72x128xf32>
    %cst_82 = arith.constant 0.284496725 : f32
    %134 = vector.broadcast %cst_82 : f32 to vector<72x128xf32>
    %135 = arith.subf %133, %134 : vector<72x128xf32>
    %136 = arith.mulf %135, %125 : vector<72x128xf32>
    %cst_83 = arith.constant 0.254829586 : f32
    %137 = vector.broadcast %cst_83 : f32 to vector<72x128xf32>
    %138 = arith.addf %136, %137 : vector<72x128xf32>
    %139 = arith.mulf %138, %125 : vector<72x128xf32>
    %cst_84 = arith.constant 0.000000e+00 : f32
    %140 = vector.broadcast %cst_84 : f32 to vector<72x128xf32>
    %141 = arith.subf %140, %119 : vector<72x128xf32>
    %142 = arith.mulf %141, %119 : vector<72x128xf32>
    %143 = math.exp %142 : vector<72x128xf32>
    %144 = arith.mulf %139, %143 : vector<72x128xf32>
    %cst_85 = arith.constant 1.000000e+00 : f32
    %145 = vector.broadcast %cst_85 : f32 to vector<72x128xf32>
    %146 = arith.subf %145, %144 : vector<72x128xf32>
    %cst_86 = arith.constant 0.000000e+00 : f32
    %147 = vector.broadcast %cst_86 : f32 to vector<72x128xf32>
    %148 = arith.cmpf oge, %118, %147 : vector<72x128xf32>
    %cst_87 = arith.constant 0.000000e+00 : f32
    %149 = vector.broadcast %cst_87 : f32 to vector<72x128xf32>
    %150 = arith.subf %149, %146 : vector<72x128xf32>
    %151 = arith.select %148, %146, %150 : vector<72x128xi1>, vector<72x128xf32>
    %cst_88 = arith.constant 5.000000e-01 : f32
    %152 = vector.broadcast %cst_88 : f32 to vector<72x128xf32>
    %153 = arith.mulf %152, %116 : vector<72x128xf32>
    %cst_89 = arith.constant 1.000000e+00 : f32
    %154 = vector.broadcast %cst_89 : f32 to vector<72x128xf32>
    %155 = arith.addf %154, %151 : vector<72x128xf32>
    %156 = arith.mulf %153, %155 : vector<72x128xf32>
    %c0_90 = arith.constant 0 : index
    %c0_91 = arith.constant 0 : index
    %157 = vector.load %arg9[%c0_90, %c0_91] : memref<128x32xf32, #tpu.memory_space<vmem>>, vector<128x32xf32>
    %cst_92 = arith.constant dense<0.000000e+00> : vector<72x32xf32>
    %158 = tpu.matmul %156, %157, %cst_92 {dimension_numbers = #tpu.dot_dimension_numbers<[1], [0], [0], [1], [0, 0, 1, 1], [], []>} : vector<72x128xf32>, vector<128x32xf32>, vector<72x32xf32> -> vector<72x32xf32>
    %c0_93 = arith.constant 0 : index
    %c0_94 = arith.constant 0 : index
    %159 = vector.load %arg10[%c0_93, %c0_94] : memref<1x32xf32, #tpu.memory_space<vmem>>, vector<1x32xf32>
    %160 = vector.broadcast %159 : vector<1x32xf32> to vector<72x32xf32>
    %161 = arith.addf %158, %160 : vector<72x32xf32>
    %162 = arith.addf %1, %161 : vector<72x32xf32>
    %c0_95 = arith.constant 0 : index
    %c0_96 = arith.constant 0 : index
    %c0_97 = arith.constant 0 : index
    %163 = vector.load %arg12[%c0_95, %c0_96, %c0_97] : memref<1x72x32xf32, #tpu.memory_space<vmem>>, vector<1x72x32xf32>
    %164 = vector.shape_cast %163 : vector<1x72x32xf32> to vector<72x32xf32>
    %165 = vector.shape_cast %162 : vector<72x32xf32> to vector<1x72x32xf32>
    tpu.vector_store %arg12[%c0_95, %c0_96, %c0_97], %165 {strides = array<i32>} : memref<1x72x32xf32, #tpu.memory_space<vmem>>, vector<1x72x32xf32>,
    return
  }
  func.func @transform_0(%arg0: i32) -> (i32, i32, i32) {
    %c0_i32 = arith.constant 0 : i32
    %c0_i32_0 = arith.constant 0 : i32
    %c0_i32_1 = arith.constant 0 : i32
    return %arg0, %c0_i32, %c0_i32_0 : i32, i32, i32
  }
  func.func @transform_1(%arg0: i32) -> (i32, i32) {
    %c0_i32 = arith.constant 0 : i32
    %c0_i32_0 = arith.constant 0 : i32
    %c0_i32_1 = arith.constant 0 : i32
    return %c0_i32, %c0_i32_0 : i32, i32
  }
  func.func @transform_2(%arg0: i32) -> (i32, i32) {
    %c0_i32 = arith.constant 0 : i32
    %c0_i32_0 = arith.constant 0 : i32
    %c0_i32_1 = arith.constant 0 : i32
    return %c0_i32, %c0_i32_0 : i32, i32
  }
  func.func @transform_3(%arg0: i32) -> (i32, i32) {
    %c0_i32 = arith.constant 0 : i32
    %c0_i32_0 = arith.constant 0 : i32
    %c0_i32_1 = arith.constant 0 : i32
    return %c0_i32, %c0_i32_0 : i32, i32
  }
  func.func @transform_4(%arg0: i32) -> (i32, i32) {
    %c0_i32 = arith.constant 0 : i32
    %c0_i32_0 = arith.constant 0 : i32
    %c0_i32_1 = arith.constant 0 : i32
    return %c0_i32, %c0_i32_0 : i32, i32
  }
  func.func @transform_5(%arg0: i32) -> (i32, i32, i32) {
    %c0_i32 = arith.constant 0 : i32
    %c0_i32_0 = arith.constant 0 : i32
    %c0_i32_1 = arith.constant 0 : i32
    %c0_i32_2 = arith.constant 0 : i32
    return %c0_i32, %c0_i32_0, %c0_i32_1 : i32, i32, i32
  }
  func.func @transform_6(%arg0: i32) -> (i32, i32) {
    %c0_i32 = arith.constant 0 : i32
    %c0_i32_0 = arith.constant 0 : i32
    %c0_i32_1 = arith.constant 0 : i32
    return %c0_i32, %c0_i32_0 : i32, i32
  }
  func.func @transform_7(%arg0: i32) -> (i32, i32) {
    %c0_i32 = arith.constant 0 : i32
    %c0_i32_0 = arith.constant 0 : i32
    %c0_i32_1 = arith.constant 0 : i32
    return %c0_i32, %c0_i32_0 : i32, i32
  }
  func.func @transform_8(%arg0: i32) -> (i32, i32) {
    %c0_i32 = arith.constant 0 : i32
    %c0_i32_0 = arith.constant 0 : i32
    %c0_i32_1 = arith.constant 0 : i32
    return %c0_i32, %c0_i32_0 : i32, i32
  }
  func.func @transform_9(%arg0: i32) -> (i32, i32) {
    %c0_i32 = arith.constant 0 : i32
    %c0_i32_0 = arith.constant 0 : i32
    %c0_i32_1 = arith.constant 0 : i32
    return %c0_i32, %c0_i32_0 : i32, i32
  }
  func.func @transform_10(%arg0: i32) -> (i32, i32, i32) {
    %c0_i32 = arith.constant 0 : i32
    %c0_i32_0 = arith.constant 0 : i32
    %c0_i32_1 = arith.constant 0 : i32
    %c0_i32_2 = arith.constant 0 : i32
    return %c0_i32, %c0_i32_0, %c0_i32_1 : i32, i32, i32
  }
  func.func @transform_11(%arg0: i32) -> (i32, i32, i32) {
    %c0_i32 = arith.constant 0 : i32
    %c0_i32_0 = arith.constant 0 : i32
    %c0_i32_1 = arith.constant 0 : i32
    return %arg0, %c0_i32, %c0_i32_0 : i32, i32, i32
  }
}

</mosaic_0001>

<llo_original>
// kernel: _lambda_.3
$region0: #{_lambda_.3}
  #allocation0 [shape = 'u32[]', space=smem, size = 0x4, offset = 0x4, fixed_abs, tag = 'smem constant byte address 0x4 - core index']
  #allocation1 [shape = 'u32[144,128]{1,0:T(1,128)}', space=vmem, size = 0x12000, scoped, tag = 'internal scratch']
  %s0 = inlined_call_operand.vmem [shape: f32[2,72,32], index: 0, kind: input, shape index: {}]
  %s1 = inlined_call_operand.vmem [shape: f32[1,32], index: 1, kind: input, shape index: {}]
  %s2 = inlined_call_operand.vmem [shape: f32[1,32], index: 2, kind: input, shape index: {}]
  %s3 = inlined_call_operand.vmem [shape: f32[32,128], index: 3, kind: input, shape index: {}]
  %s4 = inlined_call_operand.vmem [shape: f32[1,128], index: 4, kind: input, shape index: {}]
  %s5 = inlined_call_operand.vmem [shape: f32[9,1,128], index: 5, kind: input, shape index: {}]
  %s6 = inlined_call_operand.vmem [shape: f32[1,128], index: 6, kind: input, shape index: {}]
  %s7 = inlined_call_operand.vmem [shape: f32[1,128], index: 7, kind: input, shape index: {}]
  %s8 = inlined_call_operand.vmem [shape: f32[128,32], index: 8, kind: input, shape index: {}]
  %s9 = inlined_call_operand.vmem [shape: f32[1,32], index: 9, kind: input, shape index: {}]
  %s10 = inlined_call_operand.vmem [shape: f32[9,72,72], index: 10, kind: input, shape index: {}]
  %s11 = inlined_call_operand.vmem [shape: f32[2,72,32], index: 11, kind: output, shape index: {}]
  %s12 = sld [smem:[#allocation0]]
  $region77: #{_lambda_.3} parent=0
    _
  %s14 = ssub.s32 1, %s12
  %s15 = scalar_select 0, %s14, %s12
  loop: start=0, step=1, limit=4
  $region2: #{_lambda_.3} parent=0 // loop_pre_header
    _
  $region3: #{_lambda_.3} parent=0 // loop_header
    %s17 = sphi 0, %s21
    %p18 = scmp.ge.s32.totalorder %s17, 4
    %s27 = sphi 0, %s29
    %s30 = sphi 0, %s27
    %s31 = sphi 0, %s30
    %s47 = sphi 0, %s31
    %s51 = sphi 0, %s51
    %s53 = sphi 0, %s51
    %s54 = sphi 0, %s53
    %s68 = sphi 0, %s54
    %s72 = sphi 0, %s72
    %s74 = sphi 0, %s72
    %s75 = sphi 0, %s74
    %s89 = sphi 0, %s75
    %s93 = sphi 0, %s93
    %s95 = sphi 0, %s93
    %s96 = sphi 0, %s95
    %s110 = sphi 0, %s96
    %s114 = sphi 0, %s114
    %s116 = sphi 0, %s114
    %s117 = sphi 0, %s116
    %s131 = sphi 0, %s117
    %s135 = sphi 0, %s135
    %s137 = sphi 0, %s135
    %s138 = sphi 0, %s137
    %s152 = sphi 0, %s138
    %s156 = sphi 0, %s156
    %s158 = sphi 0, %s156
    %s159 = sphi 0, %s158
    %s173 = sphi 0, %s159
    %s177 = sphi 0, %s177
    %s179 = sphi 0, %s177
    %s180 = sphi 0, %s179
    %s194 = sphi 0, %s180
    %s198 = sphi 0, %s198
    %s200 = sphi 0, %s198
    %s201 = sphi 0, %s200
    %s215 = sphi 0, %s201
    %s219 = sphi 0, %s219
    %s221 = sphi 0, %s219
    %s222 = sphi 0, %s221
    %s236 = sphi 0, %s222
    %s240 = sphi 0, %s240
    %s242 = sphi 0, %s240
    %s243 = sphi 0, %s242
    %s257 = sphi 0, %s243
    %s263 = sphi 0, %s265
    %s266 = sphi 0, %s263
    %s267 = sphi 0, %s266
    %s283 = sphi 0, %s267
  $region4: #{_lambda_.3} parent=0 // loop_header_branch
    %20 = sbr.rel (%p18) target = $region8
  $region5: #{_lambda_.3} parent=0 // loop_body
    %s22 = ssub.s32 %s17, 1
    %s23 = ssub.s32 %s17, 2
    %s24 = sadd.s32 %s17, 1
    %s25 = ssub.s32 %s17, %s24
    %p26 = scmp.eq.s32.totalorder %s25, 0
    %s28 = sadd.s32 %s27, 1
    %s29 = scalar_select %p26, %s27, %s28
    %p32 = pneg %p26
    %p33 = scmp.eq.s32.totalorder %s17, 1
    %p34 = por %p32, %p33
    %p35 = scmp.ne.s32.totalorder %s27, %s30
    %p36 = scmp.eq.s32.totalorder %s17, 0
    %p37 = por %p35, %p36
    %p38 = scmp.ne.s32.totalorder %s27, %s30
    %p39 = scmp.eq.s32.totalorder %s22, 1
    %p40 = por %p38, %p39
    %p41 = scmp.ne.s32.totalorder %s30, %s31
    %p42 = scmp.eq.s32.totalorder %s22, 0
    %p43 = por %p41, %p42
    %p44 = scmp.ne.s32.totalorder %s30, %s31
    %p45 = scmp.eq.s32.totalorder %s23, 1
    %p46 = por %p44, %p45
    %p48 = scmp.ne.s32.totalorder %s31, %s47
    %p49 = scmp.eq.s32.totalorder %s23, 0
    %p50 = por %p48, %p49
    %s52 = sadd.s32 %s51, 1
    %p55 = scmp.eq.s32.totalorder %s17, 1
    %p56 = scmp.ne.s32.totalorder %s51, %s53
    %p57 = scmp.eq.s32.totalorder %s17, 0
    %p58 = por %p56, %p57
    %p59 = scmp.ne.s32.totalorder %s51, %s53
    %p60 = scmp.eq.s32.totalorder %s22, 1
    %p61 = por %p59, %p60
    %p62 = scmp.ne.s32.totalorder %s53, %s54
    %p63 = scmp.eq.s32.totalorder %s22, 0
    %p64 = por %p62, %p63
    %p65 = scmp.ne.s32.totalorder %s53, %s54
    %p66 = scmp.eq.s32.totalorder %s23, 1
    %p67 = por %p65, %p66
    %p69 = scmp.ne.s32.totalorder %s54, %s68
    %p70 = scmp.eq.s32.totalorder %s23, 0
    %p71 = por %p69, %p70
    %s73 = sadd.s32 %s72, 1
    %p76 = scmp.eq.s32.totalorder %s17, 1
    %p77 = scmp.ne.s32.totalorder %s72, %s74
    %p78 = scmp.eq.s32.totalorder %s17, 0
    %p79 = por %p77, %p78
    %p80 = scmp.ne.s32.totalorder %s72, %s74
    %p81 = scmp.eq.s32.totalorder %s22, 1
    %p82 = por %p80, %p81
    %p83 = scmp.ne.s32.totalorder %s74, %s75
    %p84 = scmp.eq.s32.totalorder %s22, 0
    %p85 = por %p83, %p84
    %p86 = scmp.ne.s32.totalorder %s74, %s75
    %p87 = scmp.eq.s32.totalorder %s23, 1
    %p88 = por %p86, %p87
    %p90 = scmp.ne.s32.totalorder %s75, %s89
    %p91 = scmp.eq.s32.totalorder %s23, 0
    %p92 = por %p90, %p91
    %s94 = sadd.s32 %s93, 1
    %p97 = scmp.eq.s32.totalorder %s17, 1
    %p98 = scmp.ne.s32.totalorder %s93, %s95
    %p99 = scmp.eq.s32.totalorder %s17, 0
    %p100 = por %p98, %p99
    %p101 = scmp.ne.s32.totalorder %s93, %s95
    %p102 = scmp.eq.s32.totalorder %s22, 1
    %p103 = por %p101, %p102
    %p104 = scmp.ne.s32.totalorder %s95, %s96
    %p105 = scmp.eq.s32.totalorder %s22, 0
    %p106 = por %p104, %p105
    %p107 = scmp.ne.s32.totalorder %s95, %s96
    %p108 = scmp.eq.s32.totalorder %s23, 1
    %p109 = por %p107, %p108
    %p111 = scmp.ne.s32.totalorder %s96, %s110
    %p112 = scmp.eq.s32.totalorder %s23, 0
    %p113 = por %p111, %p112
    %s115 = sadd.s32 %s114, 1
    %p118 = scmp.eq.s32.totalorder %s17, 1
    %p119 = scmp.ne.s32.totalorder %s114, %s116
    %p120 = scmp.eq.s32.totalorder %s17, 0
    %p121 = por %p119, %p120
    %p122 = scmp.ne.s32.totalorder %s114, %s116
    %p123 = scmp.eq.s32.totalorder %s22, 1
    %p124 = por %p122, %p123
    %p125 = scmp.ne.s32.totalorder %s116, %s117
    %p126 = scmp.eq.s32.totalorder %s22, 0
    %p127 = por %p125, %p126
    %p128 = scmp.ne.s32.totalorder %s116, %s117
    %p129 = scmp.eq.s32.totalorder %s23, 1
    %p130 = por %p128, %p129
    %p132 = scmp.ne.s32.totalorder %s117, %s131
    %p133 = scmp.eq.s32.totalorder %s23, 0
    %p134 = por %p132, %p133
    %s136 = sadd.s32 %s135, 1
    %p139 = scmp.eq.s32.totalorder %s17, 1
    %p140 = scmp.ne.s32.totalorder %s135, %s137
    %p141 = scmp.eq.s32.totalorder %s17, 0
    %p142 = por %p140, %p141
    %p143 = scmp.ne.s32.totalorder %s135, %s137
    %p144 = scmp.eq.s32.totalorder %s22, 1
    %p145 = por %p143, %p144
    %p146 = scmp.ne.s32.totalorder %s137, %s138
    %p147 = scmp.eq.s32.totalorder %s22, 0
    %p148 = por %p146, %p147
    %p149 = scmp.ne.s32.totalorder %s137, %s138
    %p150 = scmp.eq.s32.totalorder %s23, 1
    %p151 = por %p149, %p150
    %p153 = scmp.ne.s32.totalorder %s138, %s152
    %p154 = scmp.eq.s32.totalorder %s23, 0
    %p155 = por %p153, %p154
    %s157 = sadd.s32 %s156, 1
    %p160 = scmp.eq.s32.totalorder %s17, 1
    %p161 = scmp.ne.s32.totalorder %s156, %s158
    %p162 = scmp.eq.s32.totalorder %s17, 0
    %p163 = por %p161, %p162
    %p164 = scmp.ne.s32.totalorder %s156, %s158
    %p165 = scmp.eq.s32.totalorder %s22, 1
    %p166 = por %p164, %p165
    %p167 = scmp.ne.s32.totalorder %s158, %s159
    %p168 = scmp.eq.s32.totalorder %s22, 0
    %p169 = por %p167, %p168
    %p170 = scmp.ne.s32.totalorder %s158, %s159
    %p171 = scmp.eq.s32.totalorder %s23, 1
    %p172 = por %p170, %p171
    %p174 = scmp.ne.s32.totalorder %s159, %s173
    %p175 = scmp.eq.s32.totalorder %s23, 0
    %p176 = por %p174, %p175
    %s178 = sadd.s32 %s177, 1
    %p181 = scmp.eq.s32.totalorder %s17, 1
    %p182 = scmp.ne.s32.totalorder %s177, %s179
    %p183 = scmp.eq.s32.totalorder %s17, 0
    %p184 = por %p182, %p183
    %p185 = scmp.ne.s32.totalorder %s177, %s179
    %p186 = scmp.eq.s32.totalorder %s22, 1
    %p187 = por %p185, %p186
    %p188 = scmp.ne.s32.totalorder %s179, %s180
    %p189 = scmp.eq.s32.totalorder %s22, 0
    %p190 = por %p188, %p189
    %p191 = scmp.ne.s32.totalorder %s179, %s180
    %p192 = scmp.eq.s32.totalorder %s23, 1
    %p193 = por %p191, %p192
    %p195 = scmp.ne.s32.totalorder %s180, %s194
    %p196 = scmp.eq.s32.totalorder %s23, 0
    %p197 = por %p195, %p196
    %s199 = sadd.s32 %s198, 1
    %p202 = scmp.eq.s32.totalorder %s17, 1
    %p203 = scmp.ne.s32.totalorder %s198, %s200
    %p204 = scmp.eq.s32.totalorder %s17, 0
    %p205 = por %p203, %p204
    %p206 = scmp.ne.s32.totalorder %s198, %s200
    %p207 = scmp.eq.s32.totalorder %s22, 1
    %p208 = por %p206, %p207
    %p209 = scmp.ne.s32.totalorder %s200, %s201
    %p210 = scmp.eq.s32.totalorder %s22, 0
    %p211 = por %p209, %p210
    %p212 = scmp.ne.s32.totalorder %s200, %s201
    %p213 = scmp.eq.s32.totalorder %s23, 1
    %p214 = por %p212, %p213
    %p216 = scmp.ne.s32.totalorder %s201, %s215
    %p217 = scmp.eq.s32.totalorder %s23, 0
    %p218 = por %p216, %p217
    %s220 = sadd.s32 %s219, 1
    %p223 = scmp.eq.s32.totalorder %s17, 1
    %p224 = scmp.ne.s32.totalorder %s219, %s221
    %p225 = scmp.eq.s32.totalorder %s17, 0
    %p226 = por %p224, %p225
    %p227 = scmp.ne.s32.totalorder %s219, %s221
    %p228 = scmp.eq.s32.totalorder %s22, 1
    %p229 = por %p227, %p228
    %p230 = scmp.ne.s32.totalorder %s221, %s222
    %p231 = scmp.eq.s32.totalorder %s22, 0
    %p232 = por %p230, %p231
    %p233 = scmp.ne.s32.totalorder %s221, %s222
    %p234 = scmp.eq.s32.totalorder %s23, 1
    %p235 = por %p233, %p234
    %p237 = scmp.ne.s32.totalorder %s222, %s236
    %p238 = scmp.eq.s32.totalorder %s23, 0
    %p239 = por %p237, %p238
    %s241 = sadd.s32 %s240, 1
    %p244 = scmp.eq.s32.totalorder %s17, 1
    %p245 = scmp.ne.s32.totalorder %s240, %s242
    %p246 = scmp.eq.s32.totalorder %s17, 0
    %p247 = por %p245, %p246
    %p248 = scmp.ne.s32.totalorder %s240, %s242
    %p249 = scmp.eq.s32.totalorder %s22, 1
    %p250 = por %p248, %p249
    %p251 = scmp.ne.s32.totalorder %s242, %s243
    %p252 = scmp.eq.s32.totalorder %s22, 0
    %p253 = por %p251, %p252
    %p254 = scmp.ne.s32.totalorder %s242, %s243
    %p255 = scmp.eq.s32.totalorder %s23, 1
    %p256 = por %p254, %p255
    %p258 = scmp.ne.s32.totalorder %s243, %s257
    %p259 = scmp.eq.s32.totalorder %s23, 0
    %p260 = por %p258, %p259
    %s261 = ssub.s32 %s17, %s24
    %p262 = scmp.eq.s32.totalorder %s261, 0
    %s264 = sadd.s32 %s263, 1
    %s265 = scalar_select %p262, %s263, %s264
    %p268 = pneg %p262
    %p269 = scmp.eq.s32.totalorder %s17, 1
    %p270 = por %p268, %p269
    %p271 = scmp.ne.s32.totalorder %s263, %s266
    %p272 = scmp.eq.s32.totalorder %s17, 0
    %p273 = por %p271, %p272
    %p274 = scmp.ne.s32.totalorder %s263, %s266
    %p275 = scmp.eq.s32.totalorder %s22, 1
    %p276 = por %p274, %p275
    %p277 = scmp.ne.s32.totalorder %s266, %s267
    %p278 = scmp.eq.s32.totalorder %s22, 0
    %p279 = por %p277, %p278
    %p280 = scmp.ne.s32.totalorder %s266, %s267
    %p281 = scmp.eq.s32.totalorder %s23, 1
    %p282 = por %p280, %p281
    %p284 = scmp.ne.s32.totalorder %s267, %s283
    %p285 = scmp.eq.s32.totalorder %s23, 0
    %p286 = por %p284, %p285
    %p287 = scmp.le.s32.totalorder 1, %s17
    %p288 = scmp.lt.s32.totalorder %s17, 3
    %p289 = pnand %p287, %p288
    %p290 = pneg %p289
    // Predicated region
    $region9: #{_lambda_.3} parent=5 // pred_check
      _
    $region10: #{_lambda_.3} parent=5 // pred_check_branch
      %292 = sbr.rel (%p289) target = $region12
    $region11: #{_lambda_.3} parent=5 // pred_region
      %s293 = ssub.s32 %s17, 1
      // Predicated region
      $region13: #{_lambda_.3} parent=11 // pred_check
        %p294 = pneg %p64
      $region14: #{_lambda_.3} parent=11 // pred_check_branch
        %296 = sbr.rel (%p294) target = $region16
      $region15: #{_lambda_.3} parent=11 // pred_region
        _
      $region16: #{_lambda_.3} parent=11 // pred_fallthru
        _
      // Predicated region
      $region17: #{_lambda_.3} parent=11 // pred_check
        %p297 = pneg %p85
      $region18: #{_lambda_.3} parent=11 // pred_check_branch
        %299 = sbr.rel (%p297) target = $region20
      $region19: #{_lambda_.3} parent=11 // pred_region
        _
      $region20: #{_lambda_.3} parent=11 // pred_fallthru
        _
      // Predicated region
      $region21: #{_lambda_.3} parent=11 // pred_check
        %p300 = pneg %p106
      $region22: #{_lambda_.3} parent=11 // pred_check_branch
        %302 = sbr.rel (%p300) target = $region24
      $region23: #{_lambda_.3} parent=11 // pred_region
        _
      $region24: #{_lambda_.3} parent=11 // pred_fallthru
        _
      // Predicated region
      $region25: #{_lambda_.3} parent=11 // pred_check
        %p303 = pneg %p127
      $region26: #{_lambda_.3} parent=11 // pred_check_branch
        %305 = sbr.rel (%p303) target = $region28
      $region27: #{_lambda_.3} parent=11 // pred_region
        _
      $region28: #{_lambda_.3} parent=11 // pred_fallthru
        _
      // Predicated region
      $region29: #{_lambda_.3} parent=11 // pred_check
        %p306 = pneg %p148
      $region30: #{_lambda_.3} parent=11 // pred_check_branch
        %308 = sbr.rel (%p306) target = $region32
      $region31: #{_lambda_.3} parent=11 // pred_region
        _
      $region32: #{_lambda_.3} parent=11 // pred_fallthru
        _
      // Predicated region
      $region33: #{_lambda_.3} parent=11 // pred_check
        %p309 = pneg %p169
      $region34: #{_lambda_.3} parent=11 // pred_check_branch
        %311 = sbr.rel (%p309) target = $region36
      $region35: #{_lambda_.3} parent=11 // pred_region
        _
      $region36: #{_lambda_.3} parent=11 // pred_fallthru
        _
      // Predicated region
      $region37: #{_lambda_.3} parent=11 // pred_check
        %p312 = pneg %p190
      $region38: #{_lambda_.3} parent=11 // pred_check_branch
        %314 = sbr.rel (%p312) target = $region40
      $region39: #{_lambda_.3} parent=11 // pred_region
        _
      $region40: #{_lambda_.3} parent=11 // pred_fallthru
        _
      // Predicated region
      $region41: #{_lambda_.3} parent=11 // pred_check
        %p315 = pneg %p211
      $region42: #{_lambda_.3} parent=11 // pred_check_branch
        %317 = sbr.rel (%p315) target = $region44
      $region43: #{_lambda_.3} parent=11 // pred_region
        _
      $region44: #{_lambda_.3} parent=11 // pred_fallthru
        _
      // Predicated region
      $region45: #{_lambda_.3} parent=11 // pred_check
        %p318 = pneg %p232
      $region46: #{_lambda_.3} parent=11 // pred_check_branch
        %320 = sbr.rel (%p318) target = $region48
      $region47: #{_lambda_.3} parent=11 // pred_region
        _
      $region48: #{_lambda_.3} parent=11 // pred_fallthru
        _
      // Predicated region
      $region49: #{_lambda_.3} parent=11 // pred_check
        %p321 = pneg %p253
      $region50: #{_lambda_.3} parent=11 // pred_check_branch
        %323 = sbr.rel (%p321) target = $region52
      $region51: #{_lambda_.3} parent=11 // pred_region
        _
      $region52: #{_lambda_.3} parent=11 // pred_fallthru
        _
    $region12: #{_lambda_.3} parent=5 // pred_fallthru
      _
    %p324 = scmp.lt.s32.totalorder %s17, 2
    // Predicated region
    $region53: #{_lambda_.3} parent=5 // pred_check
      %p325 = pneg %p324
    $region54: #{_lambda_.3} parent=5 // pred_check_branch
      %327 = sbr.rel (%p325) target = $region56
    $region55: #{_lambda_.3} parent=5 // pred_region
      // Predicated region
      $region57: #{_lambda_.3} parent=55 // pred_check
        %p328 = pneg %p37
      $region58: #{_lambda_.3} parent=55 // pred_check_branch
        %330 = sbr.rel (%p328) target = $region60
      $region59: #{_lambda_.3} parent=55 // pred_region
        %p331 = scmp.lt.s32.totalorder %s17, 1
        %s332 = scalar_select %p331, %s17, 1
        %s333 = smul.addr %s332, 9
        %s334 = smul.addr %s333, 8
        %s335 = scalar_lea.vmem %s0, %s334
      $region60: #{_lambda_.3} parent=55 // pred_fallthru
        _
    $region56: #{_lambda_.3} parent=5 // pred_fallthru
      _
    %p336 = scmp.le.s32.totalorder 1, %s17
    %p337 = scmp.lt.s32.totalorder %s17, 3
    %p338 = pnand %p336, %p337
    %p339 = pneg %p338
    // Predicated region
    $region61: #{_lambda_.3} parent=5 // pred_check
      _
    $region62: #{_lambda_.3} parent=5 // pred_check_branch
      %341 = sbr.rel (%p338) target = $region64
    $region63: #{_lambda_.3} parent=5 // pred_region
      %s342 = ssub.s32 %s17, 1
      %p343 = scmp.lt.s32.totalorder %s22, 1
      %s344 = scalar_select %p343, %s22, 1
      %s345 = smul.addr %s344, 9
      %s346 = smul.addr %s345, 8
      %s347 = scalar_lea.vmem %s0, %s346
      %p348 = pneg %p43
      %p349 = pneg %p40
      %p350 = pneg %p64
      %p351 = pneg %p61
      %p352 = pneg %p85
      %p353 = pneg %p82
      %p354 = pneg %p106
      %p355 = pneg %p103
      %p356 = pneg %p127
      %p357 = pneg %p124
      %p358 = pneg %p148
      %p359 = pneg %p145
      %p360 = pneg %p169
      %p361 = pneg %p166
      %p362 = pneg %p190
      %p363 = pneg %p187
      %p364 = pneg %p211
      %p365 = pneg %p208
      %p366 = pneg %p232
      %p367 = pneg %p229
      %p368 = pneg %p253
      %p369 = pneg %p250
      %p370 = pneg %p279
      %p371 = pneg %p276
      %p372 = scmp.lt.s32.totalorder %s22, 1
      %s373 = scalar_select %p372, %s22, 1
      %s374 = smul.addr %s373, 9
      %s375 = smul.addr %s374, 8
      %s376 = scalar_lea.vmem %s11, %s375
      %p377 = scmp.lt.s32.totalorder %s22, 1
      %s378 = scalar_select %p377, %s22, 1
      %s379 = smul.addr %s378, 9
      %s380 = smul.addr %s379, 8
      %s381 = scalar_lea.vmem %s0, %s380
      %p382 = scmp.lt.s32.totalorder %s22, 1
      %s383 = scalar_select %p382, %s22, 1
      %s384 = smul.addr %s383, 9
      %s385 = smul.addr %s384, 8
      %s386 = scalar_lea.vmem %s11, %s385
      %v387 = vld [vmem:[%s381] sm:$0xff]
      %v388 = vld [vmem:[%s381 + $0x8] sm:$0xff]
      %v389 = vld [vmem:[%s381 + $0x10] sm:$0xff]
      %v390 = vld [vmem:[%s381 + $0x18] sm:$0xff]
      %v391 = vld [vmem:[%s381 + $0x20] sm:$0xff]
      %v392 = vld [vmem:[%s381 + $0x28] sm:$0xff]
      %v393 = vld [vmem:[%s381 + $0x30] sm:$0xff]
      %v394 = vld [vmem:[%s381 + $0x38] sm:$0xff]
      %v395 = vld [vmem:[%s381 + $0x40] sm:$0xff]
      %vm396 = vcmask 261120
      %v397 = vsel %vm396, %v387, 0.0
      %398 = vadd.xlane.f32.xlu0 %v397
      %v399 = vpop.xlane.xlu0 %398
      %v400 = vsel %vm396, %v388, 0.0
      %401 = vadd.xlane.f32.xlu0 %v400
      %v402 = vpop.xlane.xlu0 %401
      %v403 = vsel %vm396, %v389, 0.0
      %404 = vadd.xlane.f32.xlu0 %v403
      %v405 = vpop.xlane.xlu0 %404
      %v406 = vsel %vm396, %v390, 0.0
      %407 = vadd.xlane.f32.xlu0 %v406
      %v408 = vpop.xlane.xlu0 %407
      %v409 = vsel %vm396, %v391, 0.0
      %410 = vadd.xlane.f32.xlu0 %v409
      %v411 = vpop.xlane.xlu0 %410
      %v412 = vsel %vm396, %v392, 0.0
      %413 = vadd.xlane.f32.xlu0 %v412
      %v414 = vpop.xlane.xlu0 %413
      %v415 = vsel %vm396, %v393, 0.0
      %416 = vadd.xlane.f32.xlu0 %v415
      %v417 = vpop.xlane.xlu0 %416
      %v418 = vsel %vm396, %v394, 0.0
      %419 = vadd.xlane.f32.xlu0 %v418
      %v420 = vpop.xlane.xlu0 %419
      %v421 = vsel %vm396, %v395, 0.0
      %422 = vadd.xlane.f32.xlu0 %v421
      %v423 = vpop.xlane.xlu0 %422
      %v424 = vrcp.pop 32.0
      %v425 = vmul.f32 %v399, %v424
      %v426 = vmul.f32 %v402, %v424
      %v427 = vmul.f32 %v405, %v424
      %v428 = vmul.f32 %v408, %v424
      %v429 = vmul.f32 %v411, %v424
      %v430 = vmul.f32 %v414, %v424
      %v431 = vmul.f32 %v417, %v424
      %v432 = vmul.f32 %v420, %v424
      %v433 = vmul.f32 %v423, %v424
      %v434 = vsub.f32 %v387, %v425
      %v435 = vsub.f32 %v388, %v426
      %v436 = vsub.f32 %v389, %v427
      %v437 = vsub.f32 %v390, %v428
      %v438 = vsub.f32 %v391, %v429
      %v439 = vsub.f32 %v392, %v430
      %v440 = vsub.f32 %v393, %v431
      %v441 = vsub.f32 %v394, %v432
      %v442 = vsub.f32 %v395, %v433
      %v443 = vmul.f32 %v434, %v434
      %v444 = vmul.f32 %v435, %v435
      %v445 = vmul.f32 %v436, %v436
      %v446 = vmul.f32 %v437, %v437
      %v447 = vmul.f32 %v438, %v438
      %v448 = vmul.f32 %v439, %v439
      %v449 = vmul.f32 %v440, %v440
      %v450 = vmul.f32 %v441, %v441
      %v451 = vmul.f32 %v442, %v442
      %v452 = vsel %vm396, %v443, 0.0
      %453 = vadd.xlane.f32.xlu0 %v452
      %v454 = vpop.xlane.xlu0 %453
      %v455 = vsel %vm396, %v444, 0.0
      %456 = vadd.xlane.f32.xlu0 %v455
      %v457 = vpop.xlane.xlu0 %456
      %v458 = vsel %vm396, %v445, 0.0
      %459 = vadd.xlane.f32.xlu0 %v458
      %v460 = vpop.xlane.xlu0 %459
      %v461 = vsel %vm396, %v446, 0.0
      %462 = vadd.xlane.f32.xlu0 %v461
      %v463 = vpop.xlane.xlu0 %462
      %v464 = vsel %vm396, %v447, 0.0
      %465 = vadd.xlane.f32.xlu0 %v464
      %v466 = vpop.xlane.xlu0 %465
      %v467 = vsel %vm396, %v448, 0.0
      %468 = vadd.xlane.f32.xlu0 %v467
      %v469 = vpop.xlane.xlu0 %468
      %v470 = vsel %vm396, %v449, 0.0
      %471 = vadd.xlane.f32.xlu0 %v470
      %v472 = vpop.xlane.xlu0 %471
      %v473 = vsel %vm396, %v450, 0.0
      %474 = vadd.xlane.f32.xlu0 %v473
      %v475 = vpop.xlane.xlu0 %474
      %v476 = vsel %vm396, %v451, 0.0
      %477 = vadd.xlane.f32.xlu0 %v476
      %v478 = vpop.xlane.xlu0 %477
      %v479 = vmul.f32 %v454, %v424
      %v480 = vmul.f32 %v457, %v424
      %v481 = vmul.f32 %v460, %v424
      %v482 = vmul.f32 %v463, %v424
      %v483 = vmul.f32 %v466, %v424
      %v484 = vmul.f32 %v469, %v424
      %v485 = vmul.f32 %v472, %v424
      %v486 = vmul.f32 %v475, %v424
      %v487 = vmul.f32 %v478, %v424
      %v488 = vadd.f32 %v479, 1e-05
      %v489 = vadd.f32 %v480, 1e-05
      %v490 = vadd.f32 %v481, 1e-05
      %v491 = vadd.f32 %v482, 1e-05
      %v492 = vadd.f32 %v483, 1e-05
      %v493 = vadd.f32 %v484, 1e-05
      %v494 = vadd.f32 %v485, 1e-05
      %v495 = vadd.f32 %v486, 1e-05
      %v496 = vadd.f32 %v487, 1e-05
      %v497 = vrsqrt.pop %v488
      %v498 = vrsqrt.pop %v489
      %v499 = vrsqrt.pop %v490
      %v500 = vrsqrt.pop %v491
      %v501 = vrsqrt.pop %v492
      %v502 = vrsqrt.pop %v493
      %v503 = vrsqrt.pop %v494
      %v504 = vrsqrt.pop %v495
      %v505 = vrsqrt.pop %v496
      %v506 = vmul.f32 %v434, %v497
      %v507 = vmul.f32 %v435, %v498
      %v508 = vmul.f32 %v436, %v499
      %v509 = vmul.f32 %v437, %v500
      %v510 = vmul.f32 %v438, %v501
      %v511 = vmul.f32 %v439, %v502
      %v512 = vmul.f32 %v440, %v503
      %v513 = vmul.f32 %v441, %v504
      %v514 = vmul.f32 %v442, %v505
      %v515 = vld [vmem:[%s1] sm:$0x1]
      %v517 = vlaneseq
      %v518 = vshrl.u32 %v517, 7
      %v519 = vsub.s32 0, %v518
      %v520 = vrot.slane %v515, %v519
      %v522 = vmul.f32 %v506, %v520
      %v523 = vmul.f32 %v507, %v520
      %v524 = vmul.f32 %v508, %v520
      %v525 = vmul.f32 %v509, %v520
      %v526 = vmul.f32 %v510, %v520
      %v527 = vmul.f32 %v511, %v520
      %v528 = vmul.f32 %v512, %v520
      %v529 = vmul.f32 %v513, %v520
      %v530 = vmul.f32 %v514, %v520
      %v531 = vld [vmem:[%s2] sm:$0x1]
      %v533 = vlaneseq
      %v534 = vshrl.u32 %v533, 7
      %v535 = vsub.s32 0, %v534
      %v536 = vrot.slane %v531, %v535
      %v538 = vadd.f32 %v522, %v536
      %v539 = vadd.f32 %v523, %v536
      %v540 = vadd.f32 %v524, %v536
      %v541 = vadd.f32 %v525, %v536
      %v542 = vadd.f32 %v526, %v536
      %v543 = vadd.f32 %v527, %v536
      %v544 = vadd.f32 %v528, %v536
      %v545 = vadd.f32 %v529, %v536
      %v546 = vadd.f32 %v530, %v536
      %v547 = vld [vmem:[%s3] sm:$0xff]
      %v548 = vld [vmem:[%s3 + $0x8] sm:$0xff]
      %v549 = vld [vmem:[%s3 + $0x10] sm:$0xff]
      %v550 = vld [vmem:[%s3 + $0x18] sm:$0xff]
      %v551 = vld [vmem:[%s4] sm:$0x1]
      %v553 = vlaneseq
      %v554 = vshrl.u32 %v553, 7
      %v555 = vsub.s32 0, %v554
      %v556 = vrot.slane %v551, %v555
      %v559 = vsel %vm396, %v538, 0
      %v562 = vsel %vm396, %v539, 0
      %v565 = vsel %vm396, %v540, 0
      %v568 = vsel %vm396, %v541, 0
      %v571 = vsel %vm396, %v542, 0
      %v574 = vsel %vm396, %v543, 0
      %v577 = vsel %vm396, %v544, 0
      %v580 = vsel %vm396, %v545, 0
      %v583 = vsel %vm396, %v546, 0
      %585 = vmatprep.subr.mxu0 0.0
      %586 = vmatpush1.msra.mxu0 %v547
      %587 = vmatprep.subr.mxu0 0.0
      %588 = vmatpush1.msra.mxu0 %v548
      %589 = vmatprep.subr.mxu0 0.0
      %590 = vmatpush1.msra.mxu0 %v549
      %591 = vmatprep.subr.mxu0 0.0
      %592 = vmatpush1.msra.mxu0 %v550
      %593 = vmatprep.subr.mxu0 0.0
      %594 = vmatpush1.msra.mxu0 0.0
      %595 = vmatprep.subr.mxu0 0.0
      %596 = vmatpush1.msra.mxu0 0.0
      %597 = vmatprep.subr.mxu0 0.0
      %598 = vmatpush1.msra.mxu0 0.0
      %599 = vmatprep.subr.mxu0 0.0
      %600 = vmatpush1.msra.mxu0 0.0
      %601 = vmatprep.subr.mxu0 0.0
      %602 = vmatpush1.msra.mxu0 0.0
      %603 = vmatprep.subr.mxu0 0.0
      %604 = vmatpush1.msra.mxu0 0.0
      %605 = vmatprep.subr.mxu0 0.0
      %606 = vmatpush1.msra.mxu0 0.0
      %607 = vmatprep.subr.mxu0 0.0
      %608 = vmatpush1.msra.mxu0 0.0
      %609 = vmatprep.subr.mxu0 0.0
      %610 = vmatpush1.msra.mxu0 0.0
      %611 = vmatprep.subr.mxu0 0.0
      %612 = vmatpush1.msra.mxu0 0.0
      %613 = vmatprep.subr.mxu0 0.0
      %614 = vmatpush1.msra.mxu0 0.0
      %615 = vmatprep.subr.mxu0 0.0
      %616 = vmatpush1.msra.mxu0 0.0
      %617 = vmatprep.subr.mxu0 0.0
      %618 = vmatpush1.msra.mxu0 0.0
      %619 = vmatprep.subr.mxu0 0.0
      %620 = vmatpush1.msra.mxu0 0.0
      %621 = vmatprep.subr.mxu0 0.0
      %622 = vmatpush1.msra.mxu0 0.0
      %623 = vmatprep.subr.mxu0 0.0
      %624 = vmatpush1.msra.mxu0 0.0
      %625 = vmatprep.subr.mxu0 0.0
      %626 = vmatpush1.msra.mxu0 0.0
      %627 = vmatprep.subr.mxu0 0.0
      %628 = vmatpush1.msra.mxu0 0.0
      %629 = vmatprep.subr.mxu0 0.0
      %630 = vmatpush1.msra.mxu0 0.0
      %631 = vmatprep.subr.mxu0 0.0
      %632 = vmatpush1.msra.mxu0 0.0
      %633 = vmatprep.subr.mxu0 0.0
      %634 = vmatpush1.msra.mxu0 0.0
      %635 = vmatprep.subr.mxu0 0.0
      %636 = vmatpush1.msra.mxu0 0.0
      %637 = vmatprep.subr.mxu0 0.0
      %638 = vmatpush1.msra.mxu0 0.0
      %639 = vmatprep.subr.mxu0 0.0
      %640 = vmatpush1.msra.mxu0 0.0
      %641 = vmatprep.subr.mxu0 0.0
      %642 = vmatpush1.msra.mxu0 0.0
      %643 = vmatprep.subr.mxu0 0.0
      %644 = vmatpush1.msra.mxu0 0.0
      %645 = vmatprep.subr.mxu0 0.0
      %646 = vmatpush1.msra.mxu0 0.0
      %647 = vmatprep.subr.mxu0 0.0
      %648 = vmatpush1.msra.mxu0 0.0
      %649 = vmatprep.mubr.f32.mxu0 0.0
      %650 = vmatmul.mubr.f32.gmra.mrb[0].mxu0 %v559
      %v651 = vpop.f32.mrb[0].mxu0
      %v652 = vadd.f32 %v556, %v651
      %v653 = vpop.f32.mrb[0].mxu0
      %654 = vmatprep.mubr.f32.mxu0 0.0
      %655 = vmatmul.mubr.f32.gmra.mrb[0].mxu0 %v562
      %v656 = vpop.f32.mrb[0].mxu0
      %v657 = vadd.f32 %v556, %v656
      %v658 = vpop.f32.mrb[0].mxu0
      %659 = vmatprep.mubr.f32.mxu0 0.0
      %660 = vmatmul.mubr.f32.gmra.mrb[0].mxu0 %v565
      %v661 = vpop.f32.mrb[0].mxu0
      %v662 = vadd.f32 %v556, %v661
      %v663 = vpop.f32.mrb[0].mxu0
      %664 = vmatprep.mubr.f32.mxu0 0.0
      %665 = vmatmul.mubr.f32.gmra.mrb[0].mxu0 %v568
      %v666 = vpop.f32.mrb[0].mxu0
      %v667 = vadd.f32 %v556, %v666
      %v668 = vpop.f32.mrb[0].mxu0
      %669 = vmatprep.mubr.f32.mxu0 0.0
      %670 = vmatmul.mubr.f32.gmra.mrb[0].mxu0 %v571
      %v671 = vpop.f32.mrb[0].mxu0
      %v672 = vadd.f32 %v556, %v671
      %v673 = vpop.f32.mrb[0].mxu0
      %674 = vmatprep.mubr.f32.mxu0 0.0
      %675 = vmatmul.mubr.f32.gmra.mrb[0].mxu0 %v574
      %v676 = vpop.f32.mrb[0].mxu0
      %v677 = vadd.f32 %v556, %v676
      %v678 = vpop.f32.mrb[0].mxu0
      %679 = vmatprep.mubr.f32.mxu0 0.0
      %680 = vmatmul.mubr.f32.gmra.mrb[0].mxu0 %v577
      %v681 = vpop.f32.mrb[0].mxu0
      %v682 = vadd.f32 %v556, %v681
      %v683 = vpop.f32.mrb[0].mxu0
      %684 = vmatprep.mubr.f32.mxu0 0.0
      %685 = vmatmul.mubr.f32.gmra.mrb[0].mxu0 %v580
      %v686 = vpop.f32.mrb[0].mxu0
      %v687 = vadd.f32 %v556, %v686
      %v688 = vpop.f32.mrb[0].mxu0
      %689 = vmatprep.mubr.f32.mxu0 0.0
      %690 = vmatmul.mubr.f32.gmra.mrb[0].mxu0 %v583
      %v691 = vpop.f32.mrb[0].mxu0
      %v692 = vadd.f32 %v556, %v691
      %v693 = vpop.f32.mrb[0].mxu0
      %694 = vdwg.mxu0
      %v695 = vld [vmem:[%s10] sm:$0xff]
      %v696 = vld [vmem:[%s10 + $0x8] sm:$0xff]
      %v697 = vld [vmem:[%s10 + $0x10] sm:$0xff]
      %v698 = vld [vmem:[%s10 + $0x18] sm:$0xff]
      %v699 = vld [vmem:[%s10 + $0x20] sm:$0xff]
      %v700 = vld [vmem:[%s10 + $0x28] sm:$0xff]
      %v701 = vld [vmem:[%s10 + $0x30] sm:$0xff]
      %v702 = vld [vmem:[%s10 + $0x38] sm:$0xff]
      %v703 = vld [vmem:[%s10 + $0x40] sm:$0xff]
      %vm704 = vcmask 588800
      %v706 = vsel %vm704, %v695, 0
      %v709 = vsel %vm704, %v696, 0
      %v712 = vsel %vm704, %v697, 0
      %v715 = vsel %vm704, %v698, 0
      %v718 = vsel %vm704, %v699, 0
      %v721 = vsel %vm704, %v700, 0
      %v724 = vsel %vm704, %v701, 0
      %v727 = vsel %vm704, %v702, 0
      %v730 = vsel %vm704, %v703, 0
      %732 = vmatprep.subr.mxu0 0.0
      %733 = vmatpush1.msra.mxu0 %v652
      %734 = vmatprep.subr.mxu0 0.0
      %735 = vmatpush1.msra.mxu0 %v657
      %736 = vmatprep.subr.mxu0 0.0
      %737 = vmatpush1.msra.mxu0 %v662
      %738 = vmatprep.subr.mxu0 0.0
      %739 = vmatpush1.msra.mxu0 %v667
      %740 = vmatprep.subr.mxu0 0.0
      %741 = vmatpush1.msra.mxu0 %v672
      %742 = vmatprep.subr.mxu0 0.0
      %743 = vmatpush1.msra.mxu0 %v677
      %744 = vmatprep.subr.mxu0 0.0
      %745 = vmatpush1.msra.mxu0 %v682
      %746 = vmatprep.subr.mxu0 0.0
      %747 = vmatpush1.msra.mxu0 %v687
      %748 = vmatprep.subr.mxu0 0.0
      %749 = vmatpush1.msra.mxu0 %v692
      %750 = vmatprep.subr.mxu0 0.0
      %751 = vmatpush1.msra.mxu0 0.0
      %752 = vmatprep.subr.mxu0 0.0
      %753 = vmatpush1.msra.mxu0 0.0
      %754 = vmatprep.subr.mxu0 0.0
      %755 = vmatpush1.msra.mxu0 0.0
      %756 = vmatprep.subr.mxu0 0.0
      %757 = vmatpush1.msra.mxu0 0.0
      %758 = vmatprep.subr.mxu0 0.0
      %759 = vmatpush1.msra.mxu0 0.0
      %760 = vmatprep.subr.mxu0 0.0
      %761 = vmatpush1.msra.mxu0 0.0
      %762 = vmatprep.subr.mxu0 0.0
      %763 = vmatpush1.msra.mxu0 0.0
      %764 = vmatprep.subr.mxu0 0.0
      %765 = vmatpush1.msra.mxu0 0.0
      %766 = vmatprep.subr.mxu0 0.0
      %767 = vmatpush1.msra.mxu0 0.0
      %768 = vmatprep.subr.mxu0 0.0
      %769 = vmatpush1.msra.mxu0 0.0
      %770 = vmatprep.subr.mxu0 0.0
      %771 = vmatpush1.msra.mxu0 0.0
      %772 = vmatprep.subr.mxu0 0.0
      %773 = vmatpush1.msra.mxu0 0.0
      %774 = vmatprep.subr.mxu0 0.0
      %775 = vmatpush1.msra.mxu0 0.0
      %776 = vmatprep.subr.mxu0 0.0
      %777 = vmatpush1.msra.mxu0 0.0
      %778 = vmatprep.subr.mxu0 0.0
      %779 = vmatpush1.msra.mxu0 0.0
      %780 = vmatprep.subr.mxu0 0.0
      %781 = vmatpush1.msra.mxu0 0.0
      %782 = vmatprep.subr.mxu0 0.0
      %783 = vmatpush1.msra.mxu0 0.0
      %784 = vmatprep.subr.mxu0 0.0
      %785 = vmatpush1.msra.mxu0 0.0
      %786 = vmatprep.subr.mxu0 0.0
      %787 = vmatpush1.msra.mxu0 0.0
      %788 = vmatprep.subr.mxu0 0.0
      %789 = vmatpush1.msra.mxu0 0.0
      %790 = vmatprep.subr.mxu0 0.0
      %791 = vmatpush1.msra.mxu0 0.0
      %792 = vmatprep.subr.mxu0 0.0
      %793 = vmatpush1.msra.mxu0 0.0
      %794 = vmatprep.subr.mxu0 0.0
      %795 = vmatpush1.msra.mxu0 0.0
      %796 = vmatprep.mubr.f32.mxu0 0.0
      %797 = vmatmul.mubr.f32.gmra.mrb[0].mxu0 %v706
      %v798 = vpop.f32.mrb[0].mxu0
      %v799 = vadd.f32 0.0, %v798
      %v800 = vpop.f32.mrb[0].mxu0
      %801 = vmatprep.mubr.f32.mxu0 0.0
      %802 = vmatmul.mubr.f32.gmra.mrb[0].mxu0 %v709
      %v803 = vpop.f32.mrb[0].mxu0
      %v804 = vadd.f32 0.0, %v803
      %v805 = vpop.f32.mrb[0].mxu0
      %806 = vmatprep.mubr.f32.mxu0 0.0
      %807 = vmatmul.mubr.f32.gmra.mrb[0].mxu0 %v712
      %v808 = vpop.f32.mrb[0].mxu0
      %v809 = vadd.f32 0.0, %v808
      %v810 = vpop.f32.mrb[0].mxu0
      %811 = vmatprep.mubr.f32.mxu0 0.0
      %812 = vmatmul.mubr.f32.gmra.mrb[0].mxu0 %v715
      %v813 = vpop.f32.mrb[0].mxu0
      %v814 = vadd.f32 0.0, %v813
      %v815 = vpop.f32.mrb[0].mxu0
      %816 = vmatprep.mubr.f32.mxu0 0.0
      %817 = vmatmul.mubr.f32.gmra.mrb[0].mxu0 %v718
      %v818 = vpop.f32.mrb[0].mxu0
      %v819 = vadd.f32 0.0, %v818
      %v820 = vpop.f32.mrb[0].mxu0
      %821 = vmatprep.mubr.f32.mxu0 0.0
      %822 = vmatmul.mubr.f32.gmra.mrb[0].mxu0 %v721
      %v823 = vpop.f32.mrb[0].mxu0
      %v824 = vadd.f32 0.0, %v823
      %v825 = vpop.f32.mrb[0].mxu0
      %826 = vmatprep.mubr.f32.mxu0 0.0
      %827 = vmatmul.mubr.f32.gmra.mrb[0].mxu0 %v724
      %v828 = vpop.f32.mrb[0].mxu0
      %v829 = vadd.f32 0.0, %v828
      %v830 = vpop.f32.mrb[0].mxu0
      %831 = vmatprep.mubr.f32.mxu0 0.0
      %832 = vmatmul.mubr.f32.gmra.mrb[0].mxu0 %v727
      %v833 = vpop.f32.mrb[0].mxu0
      %v834 = vadd.f32 0.0, %v833
      %v835 = vpop.f32.mrb[0].mxu0
      %836 = vmatprep.mubr.f32.mxu0 0.0
      %837 = vmatmul.mubr.f32.gmra.mrb[0].mxu0 %v730
      %v838 = vpop.f32.mrb[0].mxu0
      %v839 = vadd.f32 0.0, %v838
      %v840 = vpop.f32.mrb[0].mxu0
      %841 = vdwg.mxu0
      %v842 = vld [vmem:[%s5] sm:$0x1]
      %v844 = vlaneseq
      %v845 = vshrl.u32 %v844, 7
      %v846 = vsub.s32 0, %v845
      %v847 = vrot.slane %v842, %v846
      %v849 = vmul.f32 %v799, %v847
      %v850 = vmul.f32 %v804, %v847
      %v851 = vmul.f32 %v809, %v847
      %v852 = vmul.f32 %v814, %v847
      %v853 = vmul.f32 %v819, %v847
      %v854 = vmul.f32 %v824, %v847
      %v855 = vmul.f32 %v829, %v847
      %v856 = vmul.f32 %v834, %v847
      %v857 = vmul.f32 %v839, %v847
      %v858 = vadd.f32 %v849, 0.0
      %v859 = vadd.f32 %v850, 0.0
      %v860 = vadd.f32 %v851, 0.0
      %v861 = vadd.f32 %v852, 0.0
      %v862 = vadd.f32 %v853, 0.0
      %v863 = vadd.f32 %v854, 0.0
      %v864 = vadd.f32 %v855, 0.0
      %v865 = vadd.f32 %v856, 0.0
      %v866 = vadd.f32 %v857, 0.0
      %s867 = scalar_lea.vmem %s10, 72
      %v868 = vld [vmem:[%s867] sm:$0xff]
      %v869 = vld [vmem:[%s867 + $0x8] sm:$0xff]
      %v870 = vld [vmem:[%s867 + $0x10] sm:$0xff]
      %v871 = vld [vmem:[%s867 + $0x18] sm:$0xff]
      %v872 = vld [vmem:[%s867 + $0x20] sm:$0xff]
      %v873 = vld [vmem:[%s867 + $0x28] sm:$0xff]
      %v874 = vld [vmem:[%s867 + $0x30] sm:$0xff]
      %v875 = vld [vmem:[%s867 + $0x38] sm:$0xff]
      %v876 = vld [vmem:[%s867 + $0x40] sm:$0xff]
      %v878 = vsel %vm704, %v868, 0
      %v881 = vsel %vm704, %v869, 0
      %v884 = vsel %vm704, %v870, 0
      %v887 = vsel %vm704, %v871, 0
      %v890 = vsel %vm704, %v872, 0
      %v893 = vsel %vm704, %v873, 0
      %v896 = vsel %vm704, %v874, 0
      %v899 = vsel %vm704, %v875, 0
      %v902 = vsel %vm704, %v876, 0
      %904 = vmatprep.subr.mxu0 0.0
      %905 = vmatpush1.msra.mxu0 %v652
      %906 = vmatprep.subr.mxu0 0.0
      %907 = vmatpush1.msra.mxu0 %v657
      %908 = vmatprep.subr.mxu0 0.0
      %909 = vmatpush1.msra.mxu0 %v662
      %910 = vmatprep.subr.mxu0 0.0
      %911 = vmatpush1.msra.mxu0 %v667
      %912 = vmatprep.subr.mxu0 0.0
      %913 = vmatpush1.msra.mxu0 %v672
      %914 = vmatprep.subr.mxu0 0.0
      %915 = vmatpush1.msra.mxu0 %v677
      %916 = vmatprep.subr.mxu0 0.0
      %917 = vmatpush1.msra.mxu0 %v682
      %918 = vmatprep.subr.mxu0 0.0
      %919 = vmatpush1.msra.mxu0 %v687
      %920 = vmatprep.subr.mxu0 0.0
      %921 = vmatpush1.msra.mxu0 %v692
      %922 = vmatprep.subr.mxu0 0.0
      %923 = vmatpush1.msra.mxu0 0.0
      %924 = vmatprep.subr.mxu0 0.0
      %925 = vmatpush1.msra.mxu0 0.0
      %926 = vmatprep.subr.mxu0 0.0
      %927 = vmatpush1.msra.mxu0 0.0
      %928 = vmatprep.subr.mxu0 0.0
      %929 = vmatpush1.msra.mxu0 0.0
      %930 = vmatprep.subr.mxu0 0.0
      %931 = vmatpush1.msra.mxu0 0.0
      %932 = vmatprep.subr.mxu0 0.0
      %933 = vmatpush1.msra.mxu0 0.0
      %934 = vmatprep.subr.mxu0 0.0
      %935 = vmatpush1.msra.mxu0 0.0
      %936 = vmatprep.subr.mxu0 0.0
      %937 = vmatpush1.msra.mxu0 0.0
      %938 = vmatprep.subr.mxu0 0.0
      %939 = vmatpush1.msra.mxu0 0.0
      %940 = vmatprep.subr.mxu0 0.0
      %941 = vmatpush1.msra.mxu0 0.0
      %942 = vmatprep.subr.mxu0 0.0
      %943 = vmatpush1.msra.mxu0 0.0
      %944 = vmatprep.subr.mxu0 0.0
      %945 = vmatpush1.msra.mxu0 0.0
      %946 = vmatprep.subr.mxu0 0.0
      %947 = vmatpush1.msra.mxu0 0.0
      %948 = vmatprep.subr.mxu0 0.0
      %949 = vmatpush1.msra.mxu0 0.0
      %950 = vmatprep.subr.mxu0 0.0
      %951 = vmatpush1.msra.mxu0 0.0
      %952 = vmatprep.subr.mxu0 0.0
      %953 = vmatpush1.msra.mxu0 0.0
      %954 = vmatprep.subr.mxu0 0.0
      %955 = vmatpush1.msra.mxu0 0.0
      %956 = vmatprep.subr.mxu0 0.0
      %957 = vmatpush1.msra.mxu0 0.0
      %958 = vmatprep.subr.mxu0 0.0
      %959 = vmatpush1.msra.mxu0 0.0
      %960 = vmatprep.subr.mxu0 0.0
      %961 = vmatpush1.msra.mxu0 0.0
      %962 = vmatprep.subr.mxu0 0.0
      %963 = vmatpush1.msra.mxu0 0.0
      %964 = vmatprep.subr.mxu0 0.0
      %965 = vmatpush1.msra.mxu0 0.0
      %966 = vmatprep.subr.mxu0 0.0
      %967 = vmatpush1.msra.mxu0 0.0
      %968 = vmatprep.mubr.f32.mxu0 0.0
      %969 = vmatmul.mubr.f32.gmra.mrb[0].mxu0 %v878
      %v970 = vpop.f32.mrb[0].mxu0
      %v971 = vadd.f32 0.0, %v970
      %v972 = vpop.f32.mrb[0].mxu0
      %973 = vmatprep.mubr.f32.mxu0 0.0
      %974 = vmatmul.mubr.f32.gmra.mrb[0].mxu0 %v881
      %v975 = vpop.f32.mrb[0].mxu0
      %v976 = vadd.f32 0.0, %v975
      %v977 = vpop.f32.mrb[0].mxu0
      %978 = vmatprep.mubr.f32.mxu0 0.0
      %979 = vmatmul.mubr.f32.gmra.mrb[0].mxu0 %v884
      %v980 = vpop.f32.mrb[0].mxu0
      %v981 = vadd.f32 0.0, %v980
      %v982 = vpop.f32.mrb[0].mxu0
      %983 = vmatprep.mubr.f32.mxu0 0.0
      %984 = vmatmul.mubr.f32.gmra.mrb[0].mxu0 %v887
      %v985 = vpop.f32.mrb[0].mxu0
      %v986 = vadd.f32 0.0, %v985
      %v987 = vpop.f32.mrb[0].mxu0
      %988 = vmatprep.mubr.f32.mxu0 0.0
      %989 = vmatmul.mubr.f32.gmra.mrb[0].mxu0 %v890
      %v990 = vpop.f32.mrb[0].mxu0
      %v991 = vadd.f32 0.0, %v990
      %v992 = vpop.f32.mrb[0].mxu0
      %993 = vmatprep.mubr.f32.mxu0 0.0
      %994 = vmatmul.mubr.f32.gmra.mrb[0].mxu0 %v893
      %v995 = vpop.f32.mrb[0].mxu0
      %v996 = vadd.f32 0.0, %v995
      %v997 = vpop.f32.mrb[0].mxu0
      %998 = vmatprep.mubr.f32.mxu0 0.0
      %999 = vmatmul.mubr.f32.gmra.mrb[0].mxu0 %v896
      %v1000 = vpop.f32.mrb[0].mxu0
      %v1001 = vadd.f32 0.0, %v1000
      %v1002 = vpop.f32.mrb[0].mxu0
      %1003 = vmatprep.mubr.f32.mxu0 0.0
      %1004 = vmatmul.mubr.f32.gmra.mrb[0].mxu0 %v899
      %v1005 = vpop.f32.mrb[0].mxu0
      %v1006 = vadd.f32 0.0, %v1005
      %v1007 = vpop.f32.mrb[0].mxu0
      %1008 = vmatprep.mubr.f32.mxu0 0.0
      %1009 = vmatmul.mubr.f32.gmra.mrb[0].mxu0 %v902
      %v1010 = vpop.f32.mrb[0].mxu0
      %v1011 = vadd.f32 0.0, %v1010
      %v1012 = vpop.f32.mrb[0].mxu0
      %1013 = vdwg.mxu0
      %s1014 = scalar_lea.vmem %s5, 1
      %v1015 = vld [vmem:[%s1014] sm:$0x1]
      %v1017 = vlaneseq
      %v1018 = vshrl.u32 %v1017, 7
      %v1019 = vsub.s32 0, %v1018
      %v1020 = vrot.slane %v1015, %v1019
      %v1022 = vmul.f32 %v971, %v1020
      %v1023 = vmul.f32 %v976, %v1020
      %v1024 = vmul.f32 %v981, %v1020
      %v1025 = vmul.f32 %v986, %v1020
      %v1026 = vmul.f32 %v991, %v1020
      %v1027 = vmul.f32 %v996, %v1020
      %v1028 = vmul.f32 %v1001, %v1020
      %v1029 = vmul.f32 %v1006, %v1020
      %v1030 = vmul.f32 %v1011, %v1020
      %v1031 = vadd.f32 %v858, %v1022
      %v1032 = vadd.f32 %v859, %v1023
      %v1033 = vadd.f32 %v860, %v1024
      %v1034 = vadd.f32 %v861, %v1025
      %v1035 = vadd.f32 %v862, %v1026
      %v1036 = vadd.f32 %v863, %v1027
      %v1037 = vadd.f32 %v864, %v1028
      %v1038 = vadd.f32 %v865, %v1029
      %v1039 = vadd.f32 %v866, %v1030
      %s1040 = scalar_lea.vmem %s10, 144
      %v1041 = vld [vmem:[%s1040] sm:$0xff]
      %v1042 = vld [vmem:[%s1040 + $0x8] sm:$0xff]
      %v1043 = vld [vmem:[%s1040 + $0x10] sm:$0xff]
      %v1044 = vld [vmem:[%s1040 + $0x18] sm:$0xff]
      %v1045 = vld [vmem:[%s1040 + $0x20] sm:$0xff]
      %v1046 = vld [vmem:[%s1040 + $0x28] sm:$0xff]
      %v1047 = vld [vmem:[%s1040 + $0x30] sm:$0xff]
      %v1048 = vld [vmem:[%s1040 + $0x38] sm:$0xff]
      %v1049 = vld [vmem:[%s1040 + $0x40] sm:$0xff]
      %v1051 = vsel %vm704, %v1041, 0
      %v1054 = vsel %vm704, %v1042, 0
      %v1057 = vsel %vm704, %v1043, 0
      %v1060 = vsel %vm704, %v1044, 0
      %v1063 = vsel %vm704, %v1045, 0
      %v1066 = vsel %vm704, %v1046, 0
      %v1069 = vsel %vm704, %v1047, 0
      %v1072 = vsel %vm704, %v1048, 0
      %v1075 = vsel %vm704, %v1049, 0
      %1077 = vmatprep.subr.mxu0 0.0
      %1078 = vmatpush1.msra.mxu0 %v652
      %1079 = vmatprep.subr.mxu0 0.0
      %1080 = vmatpush1.msra.mxu0 %v657
      %1081 = vmatprep.subr.mxu0 0.0
      %1082 = vmatpush1.msra.mxu0 %v662
      %1083 = vmatprep.subr.mxu0 0.0
      %1084 = vmatpush1.msra.mxu0 %v667
      %1085 = vmatprep.subr.mxu0 0.0
      %1086 = vmatpush1.msra.mxu0 %v672
      %1087 = vmatprep.subr.mxu0 0.0
      %1088 = vmatpush1.msra.mxu0 %v677
      %1089 = vmatprep.subr.mxu0 0.0
      %1090 = vmatpush1.msra.mxu0 %v682
      %1091 = vmatprep.subr.mxu0 0.0
      %1092 = vmatpush1.msra.mxu0 %v687
      %1093 = vmatprep.subr.mxu0 0.0
      %1094 = vmatpush1.msra.mxu0 %v692
      %1095 = vmatprep.subr.mxu0 0.0
      %1096 = vmatpush1.msra.mxu0 0.0
      %1097 = vmatprep.subr.mxu0 0.0
      %1098 = vmatpush1.msra.mxu0 0.0
      %1099 = vmatprep.subr.mxu0 0.0
      %1100 = vmatpush1.msra.mxu0 0.0
      %1101 = vmatprep.subr.mxu0 0.0
      %1102 = vmatpush1.msra.mxu0 0.0
      %1103 = vmatprep.subr.mxu0 0.0
      %1104 = vmatpush1.msra.mxu0 0.0
      %1105 = vmatprep.subr.mxu0 0.0
      %1106 = vmatpush1.msra.mxu0 0.0
      %1107 = vmatprep.subr.mxu0 0.0
      %1108 = vmatpush1.msra.mxu0 0.0
      %1109 = vmatprep.subr.mxu0 0.0
      %1110 = vmatpush1.msra.mxu0 0.0
      %1111 = vmatprep.subr.mxu0 0.0
      %1112 = vmatpush1.msra.mxu0 0.0
      %1113 = vmatprep.subr.mxu0 0.0
      %1114 = vmatpush1.msra.mxu0 0.0
      %1115 = vmatprep.subr.mxu0 0.0
      %1116 = vmatpush1.msra.mxu0 0.0
      %1117 = vmatprep.subr.mxu0 0.0
      %1118 = vmatpush1.msra.mxu0 0.0
      %1119 = vmatprep.subr.mxu0 0.0
      %1120 = vmatpush1.msra.mxu0 0.0
      %1121 = vmatprep.subr.mxu0 0.0
      %1122 = vmatpush1.msra.mxu0 0.0
      %1123 = vmatprep.subr.mxu0 0.0
      %1124 = vmatpush1.msra.mxu0 0.0
      %1125 = vmatprep.subr.mxu0 0.0
      %1126 = vmatpush1.msra.mxu0 0.0
      %1127 = vmatprep.subr.mxu0 0.0
      %1128 = vmatpush1.msra.mxu0 0.0
      %1129 = vmatprep.subr.mxu0 0.0
      %1130 = vmatpush1.msra.mxu0 0.0
      %1131 = vmatprep.subr.mxu0 0.0
      %1132 = vmatpush1.msra.mxu0 0.0
      %1133 = vmatprep.subr.mxu0 0.0
      %1134 = vmatpush1.msra.mxu0 0.0
      %1135 = vmatprep.subr.mxu0 0.0
      %1136 = vmatpush1.msra.mxu0 0.0
      %1137 = vmatprep.subr.mxu0 0.0
      %1138 = vmatpush1.msra.mxu0 0.0
      %1139 = vmatprep.subr.mxu0 0.0
      %1140 = vmatpush1.msra.mxu0 0.0
      %1141 = vmatprep.mubr.f32.mxu0 0.0
      %1142 = vmatmul.mubr.f32.gmra.mrb[0].mxu0 %v1051
      %v1143 = vpop.f32.mrb[0].mxu0
      %v1144 = vadd.f32 0.0, %v1143
      %v1145 = vpop.f32.mrb[0].mxu0
      %1146 = vmatprep.mubr.f32.mxu0 0.0
      %1147 = vmatmul.mubr.f32.gmra.mrb[0].mxu0 %v1054
      %v1148 = vpop.f32.mrb[0].mxu0
      %v1149 = vadd.f32 0.0, %v1148
      %v1150 = vpop.f32.mrb[0].mxu0
      %1151 = vmatprep.mubr.f32.mxu0 0.0
      %1152 = vmatmul.mubr.f32.gmra.mrb[0].mxu0 %v1057
      %v1153 = vpop.f32.mrb[0].mxu0
      %v1154 = vadd.f32 0.0, %v1153
      %v1155 = vpop.f32.mrb[0].mxu0
      %1156 = vmatprep.mubr.f32.mxu0 0.0
      %1157 = vmatmul.mubr.f32.gmra.mrb[0].mxu0 %v1060
      %v1158 = vpop.f32.mrb[0].mxu0
      %v1159 = vadd.f32 0.0, %v1158
      %v1160 = vpop.f32.mrb[0].mxu0
      %1161 = vmatprep.mubr.f32.mxu0 0.0
      %1162 = vmatmul.mubr.f32.gmra.mrb[0].mxu0 %v1063
      %v1163 = vpop.f32.mrb[0].mxu0
      %v1164 = vadd.f32 0.0, %v1163
      %v1165 = vpop.f32.mrb[0].mxu0
      %1166 = vmatprep.mubr.f32.mxu0 0.0
      %1167 = vmatmul.mubr.f32.gmra.mrb[0].mxu0 %v1066
      %v1168 = vpop.f32.mrb[0].mxu0
      %v1169 = vadd.f32 0.0, %v1168
      %v1170 = vpop.f32.mrb[0].mxu0
      %1171 = vmatprep.mubr.f32.mxu0 0.0
      %1172 = vmatmul.mubr.f32.gmra.mrb[0].mxu0 %v1069
      %v1173 = vpop.f32.mrb[0].mxu0
      %v1174 = vadd.f32 0.0, %v1173
      %v1175 = vpop.f32.mrb[0].mxu0
      %1176 = vmatprep.mubr.f32.mxu0 0.0
      %1177 = vmatmul.mubr.f32.gmra.mrb[0].mxu0 %v1072
      %v1178 = vpop.f32.mrb[0].mxu0
      %v1179 = vadd.f32 0.0, %v1178
      %v1180 = vpop.f32.mrb[0].mxu0
      %1181 = vmatprep.mubr.f32.mxu0 0.0
      %1182 = vmatmul.mubr.f32.gmra.mrb[0].mxu0 %v1075
      %v1183 = vpop.f32.mrb[0].mxu0
      %v1184 = vadd.f32 0.0, %v1183
      %v1185 = vpop.f32.mrb[0].mxu0
      %1186 = vdwg.mxu0
      %s1187 = scalar_lea.vmem %s5, 2
      %v1188 = vld [vmem:[%s1187] sm:$0x1]
      %v1190 = vlaneseq
      %v1191 = vshrl.u32 %v1190, 7
      %v1192 = vsub.s32 0, %v1191
      %v1193 = vrot.slane %v1188, %v1192
      %v1195 = vmul.f32 %v1144, %v1193
      %v1196 = vmul.f32 %v1149, %v1193
      %v1197 = vmul.f32 %v1154, %v1193
      %v1198 = vmul.f32 %v1159, %v1193
      %v1199 = vmul.f32 %v1164, %v1193
      %v1200 = vmul.f32 %v1169, %v1193
      %v1201 = vmul.f32 %v1174, %v1193
      %v1202 = vmul.f32 %v1179, %v1193
      %v1203 = vmul.f32 %v1184, %v1193
      %v1204 = vadd.f32 %v1031, %v1195
      %v1205 = vadd.f32 %v1032, %v1196
      %v1206 = vadd.f32 %v1033, %v1197
      %v1207 = vadd.f32 %v1034, %v1198
      %v1208 = vadd.f32 %v1035, %v1199
      %v1209 = vadd.f32 %v1036, %v1200
      %v1210 = vadd.f32 %v1037, %v1201
      %v1211 = vadd.f32 %v1038, %v1202
      %v1212 = vadd.f32 %v1039, %v1203
      %s1213 = scalar_lea.vmem %s10, 216
      %v1214 = vld [vmem:[%s1213] sm:$0xff]
      %v1215 = vld [vmem:[%s1213 + $0x8] sm:$0xff]
      %v1216 = vld [vmem:[%s1213 + $0x10] sm:$0xff]
      %v1217 = vld [vmem:[%s1213 + $0x18] sm:$0xff]
      %v1218 = vld [vmem:[%s1213 + $0x20] sm:$0xff]
      %v1219 = vld [vmem:[%s1213 + $0x28] sm:$0xff]
      %v1220 = vld [vmem:[%s1213 + $0x30] sm:$0xff]
      %v1221 = vld [vmem:[%s1213 + $0x38] sm:$0xff]
      %v1222 = vld [vmem:[%s1213 + $0x40] sm:$0xff]
      %v1224 = vsel %vm704, %v1214, 0
      %v1227 = vsel %vm704, %v1215, 0
      %v1230 = vsel %vm704, %v1216, 0
      %v1233 = vsel %vm704, %v1217, 0
      %v1236 = vsel %vm704, %v1218, 0
      %v1239 = vsel %vm704, %v1219, 0
      %v1242 = vsel %vm704, %v1220, 0
      %v1245 = vsel %vm704, %v1221, 0
      %v1248 = vsel %vm704, %v1222, 0
      %1250 = vmatprep.subr.mxu0 0.0
      %1251 = vmatpush1.msra.mxu0 %v652
      %1252 = vmatprep.subr.mxu0 0.0
      %1253 = vmatpush1.msra.mxu0 %v657
      %1254 = vmatprep.subr.mxu0 0.0
      %1255 = vmatpush1.msra.mxu0 %v662
      %1256 = vmatprep.subr.mxu0 0.0
      %1257 = vmatpush1.msra.mxu0 %v667
      %1258 = vmatprep.subr.mxu0 0.0
      %1259 = vmatpush1.msra.mxu0 %v672
      %1260 = vmatprep.subr.mxu0 0.0
      %1261 = vmatpush1.msra.mxu0 %v677
      %1262 = vmatprep.subr.mxu0 0.0
      %1263 = vmatpush1.msra.mxu0 %v682
      %1264 = vmatprep.subr.mxu0 0.0
      %1265 = vmatpush1.msra.mxu0 %v687
      %1266 = vmatprep.subr.mxu0 0.0
      %1267 = vmatpush1.msra.mxu0 %v692
      %1268 = vmatprep.subr.mxu0 0.0
      %1269 = vmatpush1.msra.mxu0 0.0
      %1270 = vmatprep.subr.mxu0 0.0
      %1271 = vmatpush1.msra.mxu0 0.0
      %1272 = vmatprep.subr.mxu0 0.0
      %1273 = vmatpush1.msra.mxu0 0.0
      %1274 = vmatprep.subr.mxu0 0.0
      %1275 = vmatpush1.msra.mxu0 0.0
      %1276 = vmatprep.subr.mxu0 0.0
      %1277 = vmatpush1.msra.mxu0 0.0
      %1278 = vmatprep.subr.mxu0 0.0
      %1279 = vmatpush1.msra.mxu0 0.0
      %1280 = vmatprep.subr.mxu0 0.0
      %1281 = vmatpush1.msra.mxu0 0.0
      %1282 = vmatprep.subr.mxu0 0.0
      %1283 = vmatpush1.msra.mxu0 0.0
      %1284 = vmatprep.subr.mxu0 0.0
      %1285 = vmatpush1.msra.mxu0 0.0
      %1286 = vmatprep.subr.mxu0 0.0
      %1287 = vmatpush1.msra.mxu0 0.0
      %1288 = vmatprep.subr.mxu0 0.0
      %1289 = vmatpush1.msra.mxu0 0.0
      %1290 = vmatprep.subr.mxu0 0.0
      %1291 = vmatpush1.msra.mxu0 0.0
      %1292 = vmatprep.subr.mxu0 0.0
      %1293 = vmatpush1.msra.mxu0 0.0
      %1294 = vmatprep.subr.mxu0 0.0
      %1295 = vmatpush1.msra.mxu0 0.0
      %1296 = vmatprep.subr.mxu0 0.0
      %1297 = vmatpush1.msra.mxu0 0.0
      %1298 = vmatprep.subr.mxu0 0.0
      %1299 = vmatpush1.msra.mxu0 0.0
      %1300 = vmatprep.subr.mxu0 0.0
      %1301 = vmatpush1.msra.mxu0 0.0
      %1302 = vmatprep.subr.mxu0 0.0
      %1303 = vmatpush1.msra.mxu0 0.0
      %1304 = vmatprep.subr.mxu0 0.0
      %1305 = vmatpush1.msra.mxu0 0.0
      %1306 = vmatprep.subr.mxu0 0.0
      %1307 = vmatpush1.msra.mxu0 0.0
      %1308 = vmatprep.subr.mxu0 0.0
      %1309 = vmatpush1.msra.mxu0 0.0
      %1310 = vmatprep.subr.mxu0 0.0
      %1311 = vmatpush1.msra.mxu0 0.0
      %1312 = vmatprep.subr.mxu0 0.0
      %1313 = vmatpush1.msra.mxu0 0.0
      %1314 = vmatprep.mubr.f32.mxu0 0.0
      %1315 = vmatmul.mubr.f32.gmra.mrb[0].mxu0 %v1224
      %v1316 = vpop.f32.mrb[0].mxu0
      %v1317 = vadd.f32 0.0, %v1316
      %v1318 = vpop.f32.mrb[0].mxu0
      %1319 = vmatprep.mubr.f32.mxu0 0.0
      %1320 = vmatmul.mubr.f32.gmra.mrb[0].mxu0 %v1227
      %v1321 = vpop.f32.mrb[0].mxu0
      %v1322 = vadd.f32 0.0, %v1321
      %v1323 = vpop.f32.mrb[0].mxu0
      %1324 = vmatprep.mubr.f32.mxu0 0.0
      %1325 = vmatmul.mubr.f32.gmra.mrb[0].mxu0 %v1230
      %v1326 = vpop.f32.mrb[0].mxu0
      %v1327 = vadd.f32 0.0, %v1326
      %v1328 = vpop.f32.mrb[0].mxu0
      %1329 = vmatprep.mubr.f32.mxu0 0.0
      %1330 = vmatmul.mubr.f32.gmra.mrb[0].mxu0 %v1233
      %v1331 = vpop.f32.mrb[0].mxu0
      %v1332 = vadd.f32 0.0, %v1331
      %v1333 = vpop.f32.mrb[0].mxu0
      %1334 = vmatprep.mubr.f32.mxu0 0.0
      %1335 = vmatmul.mubr.f32.gmra.mrb[0].mxu0 %v1236
      %v1336 = vpop.f32.mrb[0].mxu0
      %v1337 = vadd.f32 0.0, %v1336
      %v1338 = vpop.f32.mrb[0].mxu0
      %1339 = vmatprep.mubr.f32.mxu0 0.0
      %1340 = vmatmul.mubr.f32.gmra.mrb[0].mxu0 %v1239
      %v1341 = vpop.f32.mrb[0].mxu0
      %v1342 = vadd.f32 0.0, %v1341
      %v1343 = vpop.f32.mrb[0].mxu0
      %1344 = vmatprep.mubr.f32.mxu0 0.0
      %1345 = vmatmul.mubr.f32.gmra.mrb[0].mxu0 %v1242
      %v1346 = vpop.f32.mrb[0].mxu0
      %v1347 = vadd.f32 0.0, %v1346
      %v1348 = vpop.f32.mrb[0].mxu0
      %1349 = vmatprep.mubr.f32.mxu0 0.0
      %1350 = vmatmul.mubr.f32.gmra.mrb[0].mxu0 %v1245
      %v1351 = vpop.f32.mrb[0].mxu0
      %v1352 = vadd.f32 0.0, %v1351
      %v1353 = vpop.f32.mrb[0].mxu0
      %1354 = vmatprep.mubr.f32.mxu0 0.0
      %1355 = vmatmul.mubr.f32.gmra.mrb[0].mxu0 %v1248
      %v1356 = vpop.f32.mrb[0].mxu0
      %v1357 = vadd.f32 0.0, %v1356
      %v1358 = vpop.f32.mrb[0].mxu0
      %1359 = vdwg.mxu0
      %s1360 = scalar_lea.vmem %s5, 3
      %v1361 = vld [vmem:[%s1360] sm:$0x1]
      %v1363 = vlaneseq
      %v1364 = vshrl.u32 %v1363, 7
      %v1365 = vsub.s32 0, %v1364
      %v1366 = vrot.slane %v1361, %v1365
      %v1368 = vmul.f32 %v1317, %v1366
      %v1369 = vmul.f32 %v1322, %v1366
      %v1370 = vmul.f32 %v1327, %v1366
      %v1371 = vmul.f32 %v1332, %v1366
      %v1372 = vmul.f32 %v1337, %v1366
      %v1373 = vmul.f32 %v1342, %v1366
      %v1374 = vmul.f32 %v1347, %v1366
      %v1375 = vmul.f32 %v1352, %v1366
      %v1376 = vmul.f32 %v1357, %v1366
      %v1377 = vadd.f32 %v1204, %v1368
      %v1378 = vadd.f32 %v1205, %v1369
      %v1379 = vadd.f32 %v1206, %v1370
      %v1380 = vadd.f32 %v1207, %v1371
      %v1381 = vadd.f32 %v1208, %v1372
      %v1382 = vadd.f32 %v1209, %v1373
      %v1383 = vadd.f32 %v1210, %v1374
      %v1384 = vadd.f32 %v1211, %v1375
      %v1385 = vadd.f32 %v1212, %v1376
      %s1386 = scalar_lea.vmem %s10, 288
      %v1387 = vld [vmem:[%s1386] sm:$0xff]
      %v1388 = vld [vmem:[%s1386 + $0x8] sm:$0xff]
      %v1389 = vld [vmem:[%s1386 + $0x10] sm:$0xff]
      %v1390 = vld [vmem:[%s1386 + $0x18] sm:$0xff]
      %v1391 = vld [vmem:[%s1386 + $0x20] sm:$0xff]
      %v1392 = vld [vmem:[%s1386 + $0x28] sm:$0xff]
      %v1393 = vld [vmem:[%s1386 + $0x30] sm:$0xff]
      %v1394 = vld [vmem:[%s1386 + $0x38] sm:$0xff]
      %v1395 = vld [vmem:[%s1386 + $0x40] sm:$0xff]
      %v1397 = vsel %vm704, %v1387, 0
      %v1400 = vsel %vm704, %v1388, 0
      %v1403 = vsel %vm704, %v1389, 0
      %v1406 = vsel %vm704, %v1390, 0
      %v1409 = vsel %vm704, %v1391, 0
      %v1412 = vsel %vm704, %v1392, 0
      %v1415 = vsel %vm704, %v1393, 0
      %v1418 = vsel %vm704, %v1394, 0
      %v1421 = vsel %vm704, %v1395, 0
      %1423 = vmatprep.subr.mxu0 0.0
      %1424 = vmatpush1.msra.mxu0 %v652
      %1425 = vmatprep.subr.mxu0 0.0
      %1426 = vmatpush1.msra.mxu0 %v657
      %1427 = vmatprep.subr.mxu0 0.0
      %1428 = vmatpush1.msra.mxu0 %v662
      %1429 = vmatprep.subr.mxu0 0.0
      %1430 = vmatpush1.msra.mxu0 %v667
      %1431 = vmatprep.subr.mxu0 0.0
      %1432 = vmatpush1.msra.mxu0 %v672
      %1433 = vmatprep.subr.mxu0 0.0
      %1434 = vmatpush1.msra.mxu0 %v677
      %1435 = vmatprep.subr.mxu0 0.0
      %1436 = vmatpush1.msra.mxu0 %v682
      %1437 = vmatprep.subr.mxu0 0.0
      %1438 = vmatpush1.msra.mxu0 %v687
      %1439 = vmatprep.subr.mxu0 0.0
      %1440 = vmatpush1.msra.mxu0 %v692
      %1441 = vmatprep.subr.mxu0 0.0
      %1442 = vmatpush1.msra.mxu0 0.0
      %1443 = vmatprep.subr.mxu0 0.0
      %1444 = vmatpush1.msra.mxu0 0.0
      %1445 = vmatprep.subr.mxu0 0.0
      %1446 = vmatpush1.msra.mxu0 0.0
      %1447 = vmatprep.subr.mxu0 0.0
      %1448 = vmatpush1.msra.mxu0 0.0
      %1449 = vmatprep.subr.mxu0 0.0
      %1450 = vmatpush1.msra.mxu0 0.0
      %1451 = vmatprep.subr.mxu0 0.0
      %1452 = vmatpush1.msra.mxu0 0.0
      %1453 = vmatprep.subr.mxu0 0.0
      %1454 = vmatpush1.msra.mxu0 0.0
      %1455 = vmatprep.subr.mxu0 0.0
      %1456 = vmatpush1.msra.mxu0 0.0
      %1457 = vmatprep.subr.mxu0 0.0
      %1458 = vmatpush1.msra.mxu0 0.0
      %1459 = vmatprep.subr.mxu0 0.0
      %1460 = vmatpush1.msra.mxu0 0.0
      %1461 = vmatprep.subr.mxu0 0.0
      %1462 = vmatpush1.msra.mxu0 0.0
      %1463 = vmatprep.subr.mxu0 0.0
      %1464 = vmatpush1.msra.mxu0 0.0
      %1465 = vmatprep.subr.mxu0 0.0
      %1466 = vmatpush1.msra.mxu0 0.0
      %1467 = vmatprep.subr.mxu0 0.0
      %1468 = vmatpush1.msra.mxu0 0.0
      %1469 = vmatprep.subr.mxu0 0.0
      %1470 = vmatpush1.msra.mxu0 0.0
      %1471 = vmatprep.subr.mxu0 0.0
      %1472 = vmatpush1.msra.mxu0 0.0
      %1473 = vmatprep.subr.mxu0 0.0
      %1474 = vmatpush1.msra.mxu0 0.0
      %1475 = vmatprep.subr.mxu0 0.0
      %1476 = vmatpush1.msra.mxu0 0.0
      %1477 = vmatprep.subr.mxu0 0.0
      %1478 = vmatpush1.msra.mxu0 0.0
      %1479 = vmatprep.subr.mxu0 0.0
      %1480 = vmatpush1.msra.mxu0 0.0
      %1481 = vmatprep.subr.mxu0 0.0
      %1482 = vmatpush1.msra.mxu0 0.0
      %1483 = vmatprep.subr.mxu0 0.0
      %1484 = vmatpush1.msra.mxu0 0.0
      %1485 = vmatprep.subr.mxu0 0.0
      %1486 = vmatpush1.msra.mxu0 0.0
      %1487 = vmatprep.mubr.f32.mxu0 0.0
      %1488 = vmatmul.mubr.f32.gmra.mrb[0].mxu0 %v1397
      %v1489 = vpop.f32.mrb[0].mxu0
      %v1490 = vadd.f32 0.0, %v1489
      %v1491 = vpop.f32.mrb[0].mxu0
      %1492 = vmatprep.mubr.f32.mxu0 0.0
      %1493 = vmatmul.mubr.f32.gmra.mrb[0].mxu0 %v1400
      %v1494 = vpop.f32.mrb[0].mxu0
      %v1495 = vadd.f32 0.0, %v1494
      %v1496 = vpop.f32.mrb[0].mxu0
      %1497 = vmatprep.mubr.f32.mxu0 0.0
      %1498 = vmatmul.mubr.f32.gmra.mrb[0].mxu0 %v1403
      %v1499 = vpop.f32.mrb[0].mxu0
      %v1500 = vadd.f32 0.0, %v1499
      %v1501 = vpop.f32.mrb[0].mxu0
      %1502 = vmatprep.mubr.f32.mxu0 0.0
      %1503 = vmatmul.mubr.f32.gmra.mrb[0].mxu0 %v1406
      %v1504 = vpop.f32.mrb[0].mxu0
      %v1505 = vadd.f32 0.0, %v1504
      %v1506 = vpop.f32.mrb[0].mxu0
      %1507 = vmatprep.mubr.f32.mxu0 0.0
      %1508 = vmatmul.mubr.f32.gmra.mrb[0].mxu0 %v1409
      %v1509 = vpop.f32.mrb[0].mxu0
      %v1510 = vadd.f32 0.0, %v1509
      %v1511 = vpop.f32.mrb[0].mxu0
      %1512 = vmatprep.mubr.f32.mxu0 0.0
      %1513 = vmatmul.mubr.f32.gmra.mrb[0].mxu0 %v1412
      %v1514 = vpop.f32.mrb[0].mxu0
      %v1515 = vadd.f32 0.0, %v1514
      %v1516 = vpop.f32.mrb[0].mxu0
      %1517 = vmatprep.mubr.f32.mxu0 0.0
      %1518 = vmatmul.mubr.f32.gmra.mrb[0].mxu0 %v1415
      %v1519 = vpop.f32.mrb[0].mxu0
      %v1520 = vadd.f32 0.0, %v1519
      %v1521 = vpop.f32.mrb[0].mxu0
      %1522 = vmatprep.mubr.f32.mxu0 0.0
      %1523 = vmatmul.mubr.f32.gmra.mrb[0].mxu0 %v1418
      %v1524 = vpop.f32.mrb[0].mxu0
      %v1525 = vadd.f32 0.0, %v1524
      %v1526 = vpop.f32.mrb[0].mxu0
      %1527 = vmatprep.mubr.f32.mxu0 0.0
      %1528 = vmatmul.mubr.f32.gmra.mrb[0].mxu0 %v1421
      %v1529 = vpop.f32.mrb[0].mxu0
      %v1530 = vadd.f32 0.0, %v1529
      %v1531 = vpop.f32.mrb[0].mxu0
      %1532 = vdwg.mxu0
      %s1533 = scalar_lea.vmem %s5, 4
      %v1534 = vld [vmem:[%s1533] sm:$0x1]
      %v1536 = vlaneseq
      %v1537 = vshrl.u32 %v1536, 7
      %v1538 = vsub.s32 0, %v1537
      %v1539 = vrot.slane %v1534, %v1538
      %v1541 = vmul.f32 %v1490, %v1539
      %v1542 = vmul.f32 %v1495, %v1539
      %v1543 = vmul.f32 %v1500, %v1539
      %v1544 = vmul.f32 %v1505, %v1539
      %v1545 = vmul.f32 %v1510, %v1539
      %v1546 = vmul.f32 %v1515, %v1539
      %v1547 = vmul.f32 %v1520, %v1539
      %v1548 = vmul.f32 %v1525, %v1539
      %v1549 = vmul.f32 %v1530, %v1539
      %v1550 = vadd.f32 %v1377, %v1541
      %v1551 = vadd.f32 %v1378, %v1542
      %v1552 = vadd.f32 %v1379, %v1543
      %v1553 = vadd.f32 %v1380, %v1544
      %v1554 = vadd.f32 %v1381, %v1545
      %v1555 = vadd.f32 %v1382, %v1546
      %v1556 = vadd.f32 %v1383, %v1547
      %v1557 = vadd.f32 %v1384, %v1548
      %v1558 = vadd.f32 %v1385, %v1549
      %s1559 = scalar_lea.vmem %s10, 360
      %v1560 = vld [vmem:[%s1559] sm:$0xff]
      %v1561 = vld [vmem:[%s1559 + $0x8] sm:$0xff]
      %v1562 = vld [vmem:[%s1559 + $0x10] sm:$0xff]
      %v1563 = vld [vmem:[%s1559 + $0x18] sm:$0xff]
      %v1564 = vld [vmem:[%s1559 + $0x20] sm:$0xff]
      %v1565 = vld [vmem:[%s1559 + $0x28] sm:$0xff]
      %v1566 = vld [vmem:[%s1559 + $0x30] sm:$0xff]
      %v1567 = vld [vmem:[%s1559 + $0x38] sm:$0xff]
      %v1568 = vld [vmem:[%s1559 + $0x40] sm:$0xff]
      %v1570 = vsel %vm704, %v1560, 0
      %v1573 = vsel %vm704, %v1561, 0
      %v1576 = vsel %vm704, %v1562, 0
      %v1579 = vsel %vm704, %v1563, 0
      %v1582 = vsel %vm704, %v1564, 0
      %v1585 = vsel %vm704, %v1565, 0
      %v1588 = vsel %vm704, %v1566, 0
      %v1591 = vsel %vm704, %v1567, 0
      %v1594 = vsel %vm704, %v1568, 0
      %1596 = vmatprep.subr.mxu0 0.0
      %1597 = vmatpush1.msra.mxu0 %v652
      %1598 = vmatprep.subr.mxu0 0.0
      %1599 = vmatpush1.msra.mxu0 %v657
      %1600 = vmatprep.subr.mxu0 0.0
      %1601 = vmatpush1.msra.mxu0 %v662
      %1602 = vmatprep.subr.mxu0 0.0
      %1603 = vmatpush1.msra.mxu0 %v667
      %1604 = vmatprep.subr.mxu0 0.0
      %1605 = vmatpush1.msra.mxu0 %v672
      %1606 = vmatprep.subr.mxu0 0.0
      %1607 = vmatpush1.msra.mxu0 %v677
      %1608 = vmatprep.subr.mxu0 0.0
      %1609 = vmatpush1.msra.mxu0 %v682
      %1610 = vmatprep.subr.mxu0 0.0
      %1611 = vmatpush1.msra.mxu0 %v687
      %1612 = vmatprep.subr.mxu0 0.0
      %1613 = vmatpush1.msra.mxu0 %v692
      %1614 = vmatprep.subr.mxu0 0.0
      %1615 = vmatpush1.msra.mxu0 0.0
      %1616 = vmatprep.subr.mxu0 0.0
      %1617 = vmatpush1.msra.mxu0 0.0
      %1618 = vmatprep.subr.mxu0 0.0
      %1619 = vmatpush1.msra.mxu0 0.0
      %1620 = vmatprep.subr.mxu0 0.0
      %1621 = vmatpush1.msra.mxu0 0.0
      %1622 = vmatprep.subr.mxu0 0.0
      %1623 = vmatpush1.msra.mxu0 0.0
      %1624 = vmatprep.subr.mxu0 0.0
      %1625 = vmatpush1.msra.mxu0 0.0
      %1626 = vmatprep.subr.mxu0 0.0
      %1627 = vmatpush1.msra.mxu0 0.0
      %1628 = vmatprep.subr.mxu0 0.0
      %1629 = vmatpush1.msra.mxu0 0.0
      %1630 = vmatprep.subr.mxu0 0.0
      %1631 = vmatpush1.msra.mxu0 0.0
      %1632 = vmatprep.subr.mxu0 0.0
      %1633 = vmatpush1.msra.mxu0 0.0
      %1634 = vmatprep.subr.mxu0 0.0
      %1635 = vmatpush1.msra.mxu0 0.0
      %1636 = vmatprep.subr.mxu0 0.0
      %1637 = vmatpush1.msra.mxu0 0.0
      %1638 = vmatprep.subr.mxu0 0.0
      %1639 = vmatpush1.msra.mxu0 0.0
      %1640 = vmatprep.subr.mxu0 0.0
      %1641 = vmatpush1.msra.mxu0 0.0
      %1642 = vmatprep.subr.mxu0 0.0
      %1643 = vmatpush1.msra.mxu0 0.0
      %1644 = vmatprep.subr.mxu0 0.0
      %1645 = vmatpush1.msra.mxu0 0.0
      %1646 = vmatprep.subr.mxu0 0.0
      %1647 = vmatpush1.msra.mxu0 0.0
      %1648 = vmatprep.subr.mxu0 0.0
      %1649 = vmatpush1.msra.mxu0 0.0
      %1650 = vmatprep.subr.mxu0 0.0
      %1651 = vmatpush1.msra.mxu0 0.0
      %1652 = vmatprep.subr.mxu0 0.0
      %1653 = vmatpush1.msra.mxu0 0.0
      %1654 = vmatprep.subr.mxu0 0.0
      %1655 = vmatpush1.msra.mxu0 0.0
      %1656 = vmatprep.subr.mxu0 0.0
      %1657 = vmatpush1.msra.mxu0 0.0
      %1658 = vmatprep.subr.mxu0 0.0
      %1659 = vmatpush1.msra.mxu0 0.0
      %1660 = vmatprep.mubr.f32.mxu0 0.0
      %1661 = vmatmul.mubr.f32.gmra.mrb[0].mxu0 %v1570
      %v1662 = vpop.f32.mrb[0].mxu0
      %v1663 = vadd.f32 0.0, %v1662
      %v1664 = vpop.f32.mrb[0].mxu0
      %1665 = vmatprep.mubr.f32.mxu0 0.0
      %1666 = vmatmul.mubr.f32.gmra.mrb[0].mxu0 %v1573
      %v1667 = vpop.f32.mrb[0].mxu0
      %v1668 = vadd.f32 0.0, %v1667
      %v1669 = vpop.f32.mrb[0].mxu0
      %1670 = vmatprep.mubr.f32.mxu0 0.0
      %1671 = vmatmul.mubr.f32.gmra.mrb[0].mxu0 %v1576
      %v1672 = vpop.f32.mrb[0].mxu0
      %v1673 = vadd.f32 0.0, %v1672
      %v1674 = vpop.f32.mrb[0].mxu0
      %1675 = vmatprep.mubr.f32.mxu0 0.0
      %1676 = vmatmul.mubr.f32.gmra.mrb[0].mxu0 %v1579
      %v1677 = vpop.f32.mrb[0].mxu0
      %v1678 = vadd.f32 0.0, %v1677
      %v1679 = vpop.f32.mrb[0].mxu0
      %1680 = vmatprep.mubr.f32.mxu0 0.0
      %1681 = vmatmul.mubr.f32.gmra.mrb[0].mxu0 %v1582
      %v1682 = vpop.f32.mrb[0].mxu0
      %v1683 = vadd.f32 0.0, %v1682
      %v1684 = vpop.f32.mrb[0].mxu0
      %1685 = vmatprep.mubr.f32.mxu0 0.0
      %1686 = vmatmul.mubr.f32.gmra.mrb[0].mxu0 %v1585
      %v1687 = vpop.f32.mrb[0].mxu0
      %v1688 = vadd.f32 0.0, %v1687
      %v1689 = vpop.f32.mrb[0].mxu0
      %1690 = vmatprep.mubr.f32.mxu0 0.0
      %1691 = vmatmul.mubr.f32.gmra.mrb[0].mxu0 %v1588
      %v1692 = vpop.f32.mrb[0].mxu0
      %v1693 = vadd.f32 0.0, %v1692
      %v1694 = vpop.f32.mrb[0].mxu0
      %1695 = vmatprep.mubr.f32.mxu0 0.0
      %1696 = vmatmul.mubr.f32.gmra.mrb[0].mxu0 %v1591
      %v1697 = vpop.f32.mrb[0].mxu0
      %v1698 = vadd.f32 0.0, %v1697
      %v1699 = vpop.f32.mrb[0].mxu0
      %1700 = vmatprep.mubr.f32.mxu0 0.0
      %1701 = vmatmul.mubr.f32.gmra.mrb[0].mxu0 %v1594
      %v1702 = vpop.f32.mrb[0].mxu0
      %v1703 = vadd.f32 0.0, %v1702
      %v1704 = vpop.f32.mrb[0].mxu0
      %1705 = vdwg.mxu0
      %s1706 = scalar_lea.vmem %s5, 5
      %v1707 = vld [vmem:[%s1706] sm:$0x1]
      %v1709 = vlaneseq
      %v1710 = vshrl.u32 %v1709, 7
      %v1711 = vsub.s32 0, %v1710
      %v1712 = vrot.slane %v1707, %v1711
      %v1714 = vmul.f32 %v1663, %v1712
      %v1715 = vmul.f32 %v1668, %v1712
      %v1716 = vmul.f32 %v1673, %v1712
      %v1717 = vmul.f32 %v1678, %v1712
      %v1718 = vmul.f32 %v1683, %v1712
      %v1719 = vmul.f32 %v1688, %v1712
      %v1720 = vmul.f32 %v1693, %v1712
      %v1721 = vmul.f32 %v1698, %v1712
      %v1722 = vmul.f32 %v1703, %v1712
      %v1723 = vadd.f32 %v1550, %v1714
      %v1724 = vadd.f32 %v1551, %v1715
      %v1725 = vadd.f32 %v1552, %v1716
      %v1726 = vadd.f32 %v1553, %v1717
      %v1727 = vadd.f32 %v1554, %v1718
      %v1728 = vadd.f32 %v1555, %v1719
      %v1729 = vadd.f32 %v1556, %v1720
      %v1730 = vadd.f32 %v1557, %v1721
      %v1731 = vadd.f32 %v1558, %v1722
      %s1732 = scalar_lea.vmem %s10, 432
      %v1733 = vld [vmem:[%s1732] sm:$0xff]
      %v1734 = vld [vmem:[%s1732 + $0x8] sm:$0xff]
      %v1735 = vld [vmem:[%s1732 + $0x10] sm:$0xff]
      %v1736 = vld [vmem:[%s1732 + $0x18] sm:$0xff]
      %v1737 = vld [vmem:[%s1732 + $0x20] sm:$0xff]
      %v1738 = vld [vmem:[%s1732 + $0x28] sm:$0xff]
      %v1739 = vld [vmem:[%s1732 + $0x30] sm:$0xff]
      %v1740 = vld [vmem:[%s1732 + $0x38] sm:$0xff]
      %v1741 = vld [vmem:[%s1732 + $0x40] sm:$0xff]
      %v1743 = vsel %vm704, %v1733, 0
      %v1746 = vsel %vm704, %v1734, 0
      %v1749 = vsel %vm704, %v1735, 0
      %v1752 = vsel %vm704, %v1736, 0
      %v1755 = vsel %vm704, %v1737, 0
      %v1758 = vsel %vm704, %v1738, 0
      %v1761 = vsel %vm704, %v1739, 0
      %v1764 = vsel %vm704, %v1740, 0
      %v1767 = vsel %vm704, %v1741, 0
      %1769 = vmatprep.subr.mxu0 0.0
      %1770 = vmatpush1.msra.mxu0 %v652
      %1771 = vmatprep.subr.mxu0 0.0
      %1772 = vmatpush1.msra.mxu0 %v657
      %1773 = vmatprep.subr.mxu0 0.0
      %1774 = vmatpush1.msra.mxu0 %v662
      %1775 = vmatprep.subr.mxu0 0.0
      %1776 = vmatpush1.msra.mxu0 %v667
      %1777 = vmatprep.subr.mxu0 0.0
      %1778 = vmatpush1.msra.mxu0 %v672
      %1779 = vmatprep.subr.mxu0 0.0
      %1780 = vmatpush1.msra.mxu0 %v677
      %1781 = vmatprep.subr.mxu0 0.0
      %1782 = vmatpush1.msra.mxu0 %v682
      %1783 = vmatprep.subr.mxu0 0.0
      %1784 = vmatpush1.msra.mxu0 %v687
      %1785 = vmatprep.subr.mxu0 0.0
      %1786 = vmatpush1.msra.mxu0 %v692
      %1787 = vmatprep.subr.mxu0 0.0
      %1788 = vmatpush1.msra.mxu0 0.0
      %1789 = vmatprep.subr.mxu0 0.0
      %1790 = vmatpush1.msra.mxu0 0.0
      %1791 = vmatprep.subr.mxu0 0.0
      %1792 = vmatpush1.msra.mxu0 0.0
      %1793 = vmatprep.subr.mxu0 0.0
      %1794 = vmatpush1.msra.mxu0 0.0
      %1795 = vmatprep.subr.mxu0 0.0
      %1796 = vmatpush1.msra.mxu0 0.0
      %1797 = vmatprep.subr.mxu0 0.0
      %1798 = vmatpush1.msra.mxu0 0.0
      %1799 = vmatprep.subr.mxu0 0.0
      %1800 = vmatpush1.msra.mxu0 0.0
      %1801 = vmatprep.subr.mxu0 0.0
      %1802 = vmatpush1.msra.mxu0 0.0
      %1803 = vmatprep.subr.mxu0 0.0
      %1804 = vmatpush1.msra.mxu0 0.0
      %1805 = vmatprep.subr.mxu0 0.0
      %1806 = vmatpush1.msra.mxu0 0.0
      %1807 = vmatprep.subr.mxu0 0.0
      %1808 = vmatpush1.msra.mxu0 0.0
      %1809 = vmatprep.subr.mxu0 0.0
      %1810 = vmatpush1.msra.mxu0 0.0
      %1811 = vmatprep.subr.mxu0 0.0
      %1812 = vmatpush1.msra.mxu0 0.0
      %1813 = vmatprep.subr.mxu0 0.0
      %1814 = vmatpush1.msra.mxu0 0.0
      %1815 = vmatprep.subr.mxu0 0.0
      %1816 = vmatpush1.msra.mxu0 0.0
      %1817 = vmatprep.subr.mxu0 0.0
      %1818 = vmatpush1.msra.mxu0 0.0
      %1819 = vmatprep.subr.mxu0 0.0
      %1820 = vmatpush1.msra.mxu0 0.0
      %1821 = vmatprep.subr.mxu0 0.0
      %1822 = vmatpush1.msra.mxu0 0.0
      %1823 = vmatprep.subr.mxu0 0.0
      %1824 = vmatpush1.msra.mxu0 0.0
      %1825 = vmatprep.subr.mxu0 0.0
      %1826 = vmatpush1.msra.mxu0 0.0
      %1827 = vmatprep.subr.mxu0 0.0
      %1828 = vmatpush1.msra.mxu0 0.0
      %1829 = vmatprep.subr.mxu0 0.0
      %1830 = vmatpush1.msra.mxu0 0.0
      %1831 = vmatprep.subr.mxu0 0.0
      %1832 = vmatpush1.msra.mxu0 0.0
      %1833 = vmatprep.mubr.f32.mxu0 0.0
      %1834 = vmatmul.mubr.f32.gmra.mrb[0].mxu0 %v1743
      %v1835 = vpop.f32.mrb[0].mxu0
      %v1836 = vadd.f32 0.0, %v1835
      %v1837 = vpop.f32.mrb[0].mxu0
      %1838 = vmatprep.mubr.f32.mxu0 0.0
      %1839 = vmatmul.mubr.f32.gmra.mrb[0].mxu0 %v1746
      %v1840 = vpop.f32.mrb[0].mxu0
      %v1841 = vadd.f32 0.0, %v1840
      %v1842 = vpop.f32.mrb[0].mxu0
      %1843 = vmatprep.mubr.f32.mxu0 0.0
      %1844 = vmatmul.mubr.f32.gmra.mrb[0].mxu0 %v1749
      %v1845 = vpop.f32.mrb[0].mxu0
      %v1846 = vadd.f32 0.0, %v1845
      %v1847 = vpop.f32.mrb[0].mxu0
      %1848 = vmatprep.mubr.f32.mxu0 0.0
      %1849 = vmatmul.mubr.f32.gmra.mrb[0].mxu0 %v1752
      %v1850 = vpop.f32.mrb[0].mxu0
      %v1851 = vadd.f32 0.0, %v1850
      %v1852 = vpop.f32.mrb[0].mxu0
      %1853 = vmatprep.mubr.f32.mxu0 0.0
      %1854 = vmatmul.mubr.f32.gmra.mrb[0].mxu0 %v1755
      %v1855 = vpop.f32.mrb[0].mxu0
      %v1856 = vadd.f32 0.0, %v1855
      %v1857 = vpop.f32.mrb[0].mxu0
      %1858 = vmatprep.mubr.f32.mxu0 0.0
      %1859 = vmatmul.mubr.f32.gmra.mrb[0].mxu0 %v1758
      %v1860 = vpop.f32.mrb[0].mxu0
      %v1861 = vadd.f32 0.0, %v1860
      %v1862 = vpop.f32.mrb[0].mxu0
      %1863 = vmatprep.mubr.f32.mxu0 0.0
      %1864 = vmatmul.mubr.f32.gmra.mrb[0].mxu0 %v1761
      %v1865 = vpop.f32.mrb[0].mxu0
      %v1866 = vadd.f32 0.0, %v1865
      %v1867 = vpop.f32.mrb[0].mxu0
      %1868 = vmatprep.mubr.f32.mxu0 0.0
      %1869 = vmatmul.mubr.f32.gmra.mrb[0].mxu0 %v1764
      %v1870 = vpop.f32.mrb[0].mxu0
      %v1871 = vadd.f32 0.0, %v1870
      %v1872 = vpop.f32.mrb[0].mxu0
      %1873 = vmatprep.mubr.f32.mxu0 0.0
      %1874 = vmatmul.mubr.f32.gmra.mrb[0].mxu0 %v1767
      %v1875 = vpop.f32.mrb[0].mxu0
      %v1876 = vadd.f32 0.0, %v1875
      %v1877 = vpop.f32.mrb[0].mxu0
      %1878 = vdwg.mxu0
      %s1879 = scalar_lea.vmem %s5, 6
      %v1880 = vld [vmem:[%s1879] sm:$0x1]
      %v1882 = vlaneseq
      %v1883 = vshrl.u32 %v1882, 7
      %v1884 = vsub.s32 0, %v1883
      %v1885 = vrot.slane %v1880, %v1884
      %v1887 = vmul.f32 %v1836, %v1885
      %v1888 = vmul.f32 %v1841, %v1885
      %v1889 = vmul.f32 %v1846, %v1885
      %v1890 = vmul.f32 %v1851, %v1885
      %v1891 = vmul.f32 %v1856, %v1885
      %v1892 = vmul.f32 %v1861, %v1885
      %v1893 = vmul.f32 %v1866, %v1885
      %v1894 = vmul.f32 %v1871, %v1885
      %v1895 = vmul.f32 %v1876, %v1885
      %v1896 = vadd.f32 %v1723, %v1887
      %v1897 = vadd.f32 %v1724, %v1888
      %v1898 = vadd.f32 %v1725, %v1889
      %v1899 = vadd.f32 %v1726, %v1890
      %v1900 = vadd.f32 %v1727, %v1891
      %v1901 = vadd.f32 %v1728, %v1892
      %v1902 = vadd.f32 %v1729, %v1893
      %v1903 = vadd.f32 %v1730, %v1894
      %v1904 = vadd.f32 %v1731, %v1895
      %s1905 = scalar_lea.vmem %s10, 504
      %v1906 = vld [vmem:[%s1905] sm:$0xff]
      %v1907 = vld [vmem:[%s1905 + $0x8] sm:$0xff]
      %v1908 = vld [vmem:[%s1905 + $0x10] sm:$0xff]
      %v1909 = vld [vmem:[%s1905 + $0x18] sm:$0xff]
      %v1910 = vld [vmem:[%s1905 + $0x20] sm:$0xff]
      %v1911 = vld [vmem:[%s1905 + $0x28] sm:$0xff]
      %v1912 = vld [vmem:[%s1905 + $0x30] sm:$0xff]
      %v1913 = vld [vmem:[%s1905 + $0x38] sm:$0xff]
      %v1914 = vld [vmem:[%s1905 + $0x40] sm:$0xff]
      %v1916 = vsel %vm704, %v1906, 0
      %v1919 = vsel %vm704, %v1907, 0
      %v1922 = vsel %vm704, %v1908, 0
      %v1925 = vsel %vm704, %v1909, 0
      %v1928 = vsel %vm704, %v1910, 0
      %v1931 = vsel %vm704, %v1911, 0
      %v1934 = vsel %vm704, %v1912, 0
      %v1937 = vsel %vm704, %v1913, 0
      %v1940 = vsel %vm704, %v1914, 0
      %1942 = vmatprep.subr.mxu0 0.0
      %1943 = vmatpush1.msra.mxu0 %v652
      %1944 = vmatprep.subr.mxu0 0.0
      %1945 = vmatpush1.msra.mxu0 %v657
      %1946 = vmatprep.subr.mxu0 0.0
      %1947 = vmatpush1.msra.mxu0 %v662
      %1948 = vmatprep.subr.mxu0 0.0
      %1949 = vmatpush1.msra.mxu0 %v667
      %1950 = vmatprep.subr.mxu0 0.0
      %1951 = vmatpush1.msra.mxu0 %v672
      %1952 = vmatprep.subr.mxu0 0.0
      %1953 = vmatpush1.msra.mxu0 %v677
      %1954 = vmatprep.subr.mxu0 0.0
      %1955 = vmatpush1.msra.mxu0 %v682
      %1956 = vmatprep.subr.mxu0 0.0
      %1957 = vmatpush1.msra.mxu0 %v687
      %1958 = vmatprep.subr.mxu0 0.0
      %1959 = vmatpush1.msra.mxu0 %v692
      %1960 = vmatprep.subr.mxu0 0.0
      %1961 = vmatpush1.msra.mxu0 0.0
      %1962 = vmatprep.subr.mxu0 0.0
      %1963 = vmatpush1.msra.mxu0 0.0
      %1964 = vmatprep.subr.mxu0 0.0
      %1965 = vmatpush1.msra.mxu0 0.0
      %1966 = vmatprep.subr.mxu0 0.0
      %1967 = vmatpush1.msra.mxu0 0.0
      %1968 = vmatprep.subr.mxu0 0.0
      %1969 = vmatpush1.msra.mxu0 0.0
      %1970 = vmatprep.subr.mxu0 0.0
      %1971 = vmatpush1.msra.mxu0 0.0
      %1972 = vmatprep.subr.mxu0 0.0
      %1973 = vmatpush1.msra.mxu0 0.0
      %1974 = vmatprep.subr.mxu0 0.0
      %1975 = vmatpush1.msra.mxu0 0.0
      %1976 = vmatprep.subr.mxu0 0.0
      %1977 = vmatpush1.msra.mxu0 0.0
      %1978 = vmatprep.subr.mxu0 0.0
      %1979 = vmatpush1.msra.mxu0 0.0
      %1980 = vmatprep.subr.mxu0 0.0
      %1981 = vmatpush1.msra.mxu0 0.0
      %1982 = vmatprep.subr.mxu0 0.0
      %1983 = vmatpush1.msra.mxu0 0.0
      %1984 = vmatprep.subr.mxu0 0.0
      %1985 = vmatpush1.msra.mxu0 0.0
      %1986 = vmatprep.subr.mxu0 0.0
      %1987 = vmatpush1.msra.mxu0 0.0
      %1988 = vmatprep.subr.mxu0 0.0
      %1989 = vmatpush1.msra.mxu0 0.0
      %1990 = vmatprep.subr.mxu0 0.0
      %1991 = vmatpush1.msra.mxu0 0.0
      %1992 = vmatprep.subr.mxu0 0.0
      %1993 = vmatpush1.msra.mxu0 0.0
      %1994 = vmatprep.subr.mxu0 0.0
      %1995 = vmatpush1.msra.mxu0 0.0
      %1996 = vmatprep.subr.mxu0 0.0
      %1997 = vmatpush1.msra.mxu0 0.0
      %1998 = vmatprep.subr.mxu0 0.0
      %1999 = vmatpush1.msra.mxu0 0.0
      %2000 = vmatprep.subr.mxu0 0.0
      %2001 = vmatpush1.msra.mxu0 0.0
      %2002 = vmatprep.subr.mxu0 0.0
      %2003 = vmatpush1.msra.mxu0 0.0
      %2004 = vmatprep.subr.mxu0 0.0
      %2005 = vmatpush1.msra.mxu0 0.0
      %2006 = vmatprep.mubr.f32.mxu0 0.0
      %2007 = vmatmul.mubr.f32.gmra.mrb[0].mxu0 %v1916
      %v2008 = vpop.f32.mrb[0].mxu0
      %v2009 = vadd.f32 0.0, %v2008
      %v2010 = vpop.f32.mrb[0].mxu0
      %2011 = vmatprep.mubr.f32.mxu0 0.0
      %2012 = vmatmul.mubr.f32.gmra.mrb[0].mxu0 %v1919
      %v2013 = vpop.f32.mrb[0].mxu0
      %v2014 = vadd.f32 0.0, %v2013
      %v2015 = vpop.f32.mrb[0].mxu0
      %2016 = vmatprep.mubr.f32.mxu0 0.0
      %2017 = vmatmul.mubr.f32.gmra.mrb[0].mxu0 %v1922
      %v2018 = vpop.f32.mrb[0].mxu0
      %v2019 = vadd.f32 0.0, %v2018
      %v2020 = vpop.f32.mrb[0].mxu0
      %2021 = vmatprep.mubr.f32.mxu0 0.0
      %2022 = vmatmul.mubr.f32.gmra.mrb[0].mxu0 %v1925
      %v2023 = vpop.f32.mrb[0].mxu0
      %v2024 = vadd.f32 0.0, %v2023
      %v2025 = vpop.f32.mrb[0].mxu0
      %2026 = vmatprep.mubr.f32.mxu0 0.0
      %2027 = vmatmul.mubr.f32.gmra.mrb[0].mxu0 %v1928
      %v2028 = vpop.f32.mrb[0].mxu0
      %v2029 = vadd.f32 0.0, %v2028
      %v2030 = vpop.f32.mrb[0].mxu0
      %2031 = vmatprep.mubr.f32.mxu0 0.0
      %2032 = vmatmul.mubr.f32.gmra.mrb[0].mxu0 %v1931
      %v2033 = vpop.f32.mrb[0].mxu0
      %v2034 = vadd.f32 0.0, %v2033
      %v2035 = vpop.f32.mrb[0].mxu0
      %2036 = vmatprep.mubr.f32.mxu0 0.0
      %2037 = vmatmul.mubr.f32.gmra.mrb[0].mxu0 %v1934
      %v2038 = vpop.f32.mrb[0].mxu0
      %v2039 = vadd.f32 0.0, %v2038
      %v2040 = vpop.f32.mrb[0].mxu0
      %2041 = vmatprep.mubr.f32.mxu0 0.0
      %2042 = vmatmul.mubr.f32.gmra.mrb[0].mxu0 %v1937
      %v2043 = vpop.f32.mrb[0].mxu0
      %v2044 = vadd.f32 0.0, %v2043
      %v2045 = vpop.f32.mrb[0].mxu0
      %2046 = vmatprep.mubr.f32.mxu0 0.0
      %2047 = vmatmul.mubr.f32.gmra.mrb[0].mxu0 %v1940
      %v2048 = vpop.f32.mrb[0].mxu0
      %v2049 = vadd.f32 0.0, %v2048
      %v2050 = vpop.f32.mrb[0].mxu0
      %2051 = vdwg.mxu0
      %s2052 = scalar_lea.vmem %s5, 7
      %v2053 = vld [vmem:[%s2052] sm:$0x1]
      %v2055 = vlaneseq
      %v2056 = vshrl.u32 %v2055, 7
      %v2057 = vsub.s32 0, %v2056
      %v2058 = vrot.slane %v2053, %v2057
      %v2060 = vmul.f32 %v2009, %v2058
      %v2061 = vmul.f32 %v2014, %v2058
      %v2062 = vmul.f32 %v2019, %v2058
      %v2063 = vmul.f32 %v2024, %v2058
      %v2064 = vmul.f32 %v2029, %v2058
      %v2065 = vmul.f32 %v2034, %v2058
      %v2066 = vmul.f32 %v2039, %v2058
      %v2067 = vmul.f32 %v2044, %v2058
      %v2068 = vmul.f32 %v2049, %v2058
      %v2069 = vadd.f32 %v1896, %v2060
      %v2070 = vadd.f32 %v1897, %v2061
      %v2071 = vadd.f32 %v1898, %v2062
      %v2072 = vadd.f32 %v1899, %v2063
      %v2073 = vadd.f32 %v1900, %v2064
      %v2074 = vadd.f32 %v1901, %v2065
      %v2075 = vadd.f32 %v1902, %v2066
      %v2076 = vadd.f32 %v1903, %v2067
      %v2077 = vadd.f32 %v1904, %v2068
      %s2078 = scalar_lea.vmem %s10, 576
      %v2079 = vld [vmem:[%s2078] sm:$0xff]
      %v2080 = vld [vmem:[%s2078 + $0x8] sm:$0xff]
      %v2081 = vld [vmem:[%s2078 + $0x10] sm:$0xff]
      %v2082 = vld [vmem:[%s2078 + $0x18] sm:$0xff]
      %v2083 = vld [vmem:[%s2078 + $0x20] sm:$0xff]
      %v2084 = vld [vmem:[%s2078 + $0x28] sm:$0xff]
      %v2085 = vld [vmem:[%s2078 + $0x30] sm:$0xff]
      %v2086 = vld [vmem:[%s2078 + $0x38] sm:$0xff]
      %v2087 = vld [vmem:[%s2078 + $0x40] sm:$0xff]
      %v2089 = vsel %vm704, %v2079, 0
      %v2092 = vsel %vm704, %v2080, 0
      %v2095 = vsel %vm704, %v2081, 0
      %v2098 = vsel %vm704, %v2082, 0
      %v2101 = vsel %vm704, %v2083, 0
      %v2104 = vsel %vm704, %v2084, 0
      %v2107 = vsel %vm704, %v2085, 0
      %v2110 = vsel %vm704, %v2086, 0
      %v2113 = vsel %vm704, %v2087, 0
      %2115 = vmatprep.subr.mxu0 0.0
      %2116 = vmatpush1.msra.mxu0 %v652
      %2117 = vmatprep.subr.mxu0 0.0
      %2118 = vmatpush1.msra.mxu0 %v657
      %2119 = vmatprep.subr.mxu0 0.0
      %2120 = vmatpush1.msra.mxu0 %v662
      %2121 = vmatprep.subr.mxu0 0.0
      %2122 = vmatpush1.msra.mxu0 %v667
      %2123 = vmatprep.subr.mxu0 0.0
      %2124 = vmatpush1.msra.mxu0 %v672
      %2125 = vmatprep.subr.mxu0 0.0
      %2126 = vmatpush1.msra.mxu0 %v677
      %2127 = vmatprep.subr.mxu0 0.0
      %2128 = vmatpush1.msra.mxu0 %v682
      %2129 = vmatprep.subr.mxu0 0.0
      %2130 = vmatpush1.msra.mxu0 %v687
      %2131 = vmatprep.subr.mxu0 0.0
      %2132 = vmatpush1.msra.mxu0 %v692
      %2133 = vmatprep.subr.mxu0 0.0
      %2134 = vmatpush1.msra.mxu0 0.0
      %2135 = vmatprep.subr.mxu0 0.0
      %2136 = vmatpush1.msra.mxu0 0.0
      %2137 = vmatprep.subr.mxu0 0.0
      %2138 = vmatpush1.msra.mxu0 0.0
      %2139 = vmatprep.subr.mxu0 0.0
      %2140 = vmatpush1.msra.mxu0 0.0
      %2141 = vmatprep.subr.mxu0 0.0
      %2142 = vmatpush1.msra.mxu0 0.0
      %2143 = vmatprep.subr.mxu0 0.0
      %2144 = vmatpush1.msra.mxu0 0.0
      %2145 = vmatprep.subr.mxu0 0.0
      %2146 = vmatpush1.msra.mxu0 0.0
      %2147 = vmatprep.subr.mxu0 0.0
      %2148 = vmatpush1.msra.mxu0 0.0
      %2149 = vmatprep.subr.mxu0 0.0
      %2150 = vmatpush1.msra.mxu0 0.0
      %2151 = vmatprep.subr.mxu0 0.0
      %2152 = vmatpush1.msra.mxu0 0.0
      %2153 = vmatprep.subr.mxu0 0.0
      %2154 = vmatpush1.msra.mxu0 0.0
      %2155 = vmatprep.subr.mxu0 0.0
      %2156 = vmatpush1.msra.mxu0 0.0
      %2157 = vmatprep.subr.mxu0 0.0
      %2158 = vmatpush1.msra.mxu0 0.0
      %2159 = vmatprep.subr.mxu0 0.0
      %2160 = vmatpush1.msra.mxu0 0.0
      %2161 = vmatprep.subr.mxu0 0.0
      %2162 = vmatpush1.msra.mxu0 0.0
      %2163 = vmatprep.subr.mxu0 0.0
      %2164 = vmatpush1.msra.mxu0 0.0
      %2165 = vmatprep.subr.mxu0 0.0
      %2166 = vmatpush1.msra.mxu0 0.0
      %2167 = vmatprep.subr.mxu0 0.0
      %2168 = vmatpush1.msra.mxu0 0.0
      %2169 = vmatprep.subr.mxu0 0.0
      %2170 = vmatpush1.msra.mxu0 0.0
      %2171 = vmatprep.subr.mxu0 0.0
      %2172 = vmatpush1.msra.mxu0 0.0
      %2173 = vmatprep.subr.mxu0 0.0
      %2174 = vmatpush1.msra.mxu0 0.0
      %2175 = vmatprep.subr.mxu0 0.0
      %2176 = vmatpush1.msra.mxu0 0.0
      %2177 = vmatprep.subr.mxu0 0.0
      %2178 = vmatpush1.msra.mxu0 0.0
      %2179 = vmatprep.mubr.f32.mxu0 0.0
      %2180 = vmatmul.mubr.f32.gmra.mrb[0].mxu0 %v2089
      %v2181 = vpop.f32.mrb[0].mxu0
      %v2182 = vadd.f32 0.0, %v2181
      %v2183 = vpop.f32.mrb[0].mxu0
      %2184 = vmatprep.mubr.f32.mxu0 0.0
      %2185 = vmatmul.mubr.f32.gmra.mrb[0].mxu0 %v2092
      %v2186 = vpop.f32.mrb[0].mxu0
      %v2187 = vadd.f32 0.0, %v2186
      %v2188 = vpop.f32.mrb[0].mxu0
      %2189 = vmatprep.mubr.f32.mxu0 0.0
      %2190 = vmatmul.mubr.f32.gmra.mrb[0].mxu0 %v2095
      %v2191 = vpop.f32.mrb[0].mxu0
      %v2192 = vadd.f32 0.0, %v2191
      %v2193 = vpop.f32.mrb[0].mxu0
      %2194 = vmatprep.mubr.f32.mxu0 0.0
      %2195 = vmatmul.mubr.f32.gmra.mrb[0].mxu0 %v2098
      %v2196 = vpop.f32.mrb[0].mxu0
      %v2197 = vadd.f32 0.0, %v2196
      %v2198 = vpop.f32.mrb[0].mxu0
      %2199 = vmatprep.mubr.f32.mxu0 0.0
      %2200 = vmatmul.mubr.f32.gmra.mrb[0].mxu0 %v2101
      %v2201 = vpop.f32.mrb[0].mxu0
      %v2202 = vadd.f32 0.0, %v2201
      %v2203 = vpop.f32.mrb[0].mxu0
      %2204 = vmatprep.mubr.f32.mxu0 0.0
      %2205 = vmatmul.mubr.f32.gmra.mrb[0].mxu0 %v2104
      %v2206 = vpop.f32.mrb[0].mxu0
      %v2207 = vadd.f32 0.0, %v2206
      %v2208 = vpop.f32.mrb[0].mxu0
      %2209 = vmatprep.mubr.f32.mxu0 0.0
      %2210 = vmatmul.mubr.f32.gmra.mrb[0].mxu0 %v2107
      %v2211 = vpop.f32.mrb[0].mxu0
      %v2212 = vadd.f32 0.0, %v2211
      %v2213 = vpop.f32.mrb[0].mxu0
      %2214 = vmatprep.mubr.f32.mxu0 0.0
      %2215 = vmatmul.mubr.f32.gmra.mrb[0].mxu0 %v2110
      %v2216 = vpop.f32.mrb[0].mxu0
      %v2217 = vadd.f32 0.0, %v2216
      %v2218 = vpop.f32.mrb[0].mxu0
      %2219 = vmatprep.mubr.f32.mxu0 0.0
      %2220 = vmatmul.mubr.f32.gmra.mrb[0].mxu0 %v2113
      %v2221 = vpop.f32.mrb[0].mxu0
      %v2222 = vadd.f32 0.0, %v2221
      %v2223 = vpop.f32.mrb[0].mxu0
      %2224 = vdwg.mxu0
      %s2225 = scalar_lea.vmem %s5, 8
      %v2226 = vld [vmem:[%s2225] sm:$0x1]
      %v2228 = vlaneseq
      %v2229 = vshrl.u32 %v2228, 7
      %v2230 = vsub.s32 0, %v2229
      %v2231 = vrot.slane %v2226, %v2230
      %v2233 = vmul.f32 %v2182, %v2231
      %v2234 = vmul.f32 %v2187, %v2231
      %v2235 = vmul.f32 %v2192, %v2231
      %v2236 = vmul.f32 %v2197, %v2231
      %v2237 = vmul.f32 %v2202, %v2231
      %v2238 = vmul.f32 %v2207, %v2231
      %v2239 = vmul.f32 %v2212, %v2231
      %v2240 = vmul.f32 %v2217, %v2231
      %v2241 = vmul.f32 %v2222, %v2231
      %v2242 = vadd.f32 %v2069, %v2233
      %v2243 = vadd.f32 %v2070, %v2234
      %v2244 = vadd.f32 %v2071, %v2235
      %v2245 = vadd.f32 %v2072, %v2236
      %v2246 = vadd.f32 %v2073, %v2237
      %v2247 = vadd.f32 %v2074, %v2238
      %v2248 = vadd.f32 %v2075, %v2239
      %v2249 = vadd.f32 %v2076, %v2240
      %v2250 = vadd.f32 %v2077, %v2241
      %v2251 = vlaneseq
      %v2252 = vshrl.u32 %v2251, 7
      %v2253 = vadd.s32 %v2252, 8
      %v2254 = vadd.s32 %v2252, 16
      %v2255 = vadd.s32 %v2252, 24
      %v2256 = vadd.s32 %v2252, 32
      %v2257 = vadd.s32 %v2252, 40
      %v2258 = vadd.s32 %v2252, 48
      %v2259 = vadd.s32 %v2252, 56
      %v2260 = vadd.s32 %v2252, 64
      %v2261 = vld [vmem:[%s6] sm:$0x1]
      %v2263 = vlaneseq
      %v2264 = vshrl.u32 %v2263, 7
      %v2265 = vsub.s32 0, %v2264
      %v2266 = vrot.slane %v2261, %v2265
      %v2268 = vadd.f32 %v652, %v2266
      %v2269 = vadd.f32 %v657, %v2266
      %v2270 = vadd.f32 %v662, %v2266
      %v2271 = vadd.f32 %v667, %v2266
      %v2272 = vadd.f32 %v672, %v2266
      %v2273 = vadd.f32 %v677, %v2266
      %v2274 = vadd.f32 %v682, %v2266
      %v2275 = vadd.f32 %v687, %v2266
      %v2276 = vadd.f32 %v692, %v2266
      %vm2277 = vcmp.lt.s32.totalorder %v2252, 64
      %vm2278 = vcmp.lt.s32.totalorder %v2253, 64
      %vm2279 = vcmp.lt.s32.totalorder %v2254, 64
      %vm2280 = vcmp.lt.s32.totalorder %v2255, 64
      %vm2281 = vcmp.lt.s32.totalorder %v2256, 64
      %vm2282 = vcmp.lt.s32.totalorder %v2257, 64
      %vm2283 = vcmp.lt.s32.totalorder %v2258, 64
      %vm2284 = vcmp.lt.s32.totalorder %v2259, 64
      %vm2285 = vcmp.lt.s32.totalorder %v2260, 64
      %v2286 = vld [vmem:[%s7] sm:$0x1]
      %v2288 = vlaneseq
      %v2289 = vshrl.u32 %v2288, 7
      %v2290 = vsub.s32 0, %v2289
      %v2291 = vrot.slane %v2286, %v2290
      %v2293 = vmul.f32 %v652, %v2291
      %v2294 = vmul.f32 %v657, %v2291
      %v2295 = vmul.f32 %v662, %v2291
      %v2296 = vmul.f32 %v667, %v2291
      %v2297 = vmul.f32 %v672, %v2291
      %v2298 = vmul.f32 %v677, %v2291
      %v2299 = vmul.f32 %v682, %v2291
      %v2300 = vmul.f32 %v687, %v2291
      %v2301 = vmul.f32 %v692, %v2291
      %v2302 = vsel %vm2277, 1, 0
      %v2303 = vsel %vm2278, 1, 0
      %v2304 = vsel %vm2279, 1, 0
      %v2305 = vsel %vm2280, 1, 0
      %v2306 = vsel %vm2281, 1, 0
      %v2307 = vsel %vm2282, 1, 0
      %v2308 = vsel %vm2283, 1, 0
      %v2309 = vsel %vm2284, 1, 0
      %v2310 = vsel %vm2285, 1, 0
      %vm2311 = vcmp.eq.s32.totalorder %v2302, 1
      %vm2312 = vcmp.eq.s32.totalorder %v2303, 1
      %vm2313 = vcmp.eq.s32.totalorder %v2304, 1
      %vm2314 = vcmp.eq.s32.totalorder %v2305, 1
      %vm2315 = vcmp.eq.s32.totalorder %v2306, 1
      %vm2316 = vcmp.eq.s32.totalorder %v2307, 1
      %vm2317 = vcmp.eq.s32.totalorder %v2308, 1
      %vm2318 = vcmp.eq.s32.totalorder %v2309, 1
      %vm2319 = vcmp.eq.s32.totalorder %v2310, 1
      %v2320 = vsel %vm2311, %v2242, %v2293
      %v2321 = vsel %vm2312, %v2243, %v2294
      %v2322 = vsel %vm2313, %v2244, %v2295
      %v2323 = vsel %vm2314, %v2245, %v2296
      %v2324 = vsel %vm2315, %v2246, %v2297
      %v2325 = vsel %vm2316, %v2247, %v2298
      %v2326 = vsel %vm2317, %v2248, %v2299
      %v2327 = vsel %vm2318, %v2249, %v2300
      %v2328 = vsel %vm2319, %v2250, %v2301
      %v2329 = vadd.f32 %v2268, %v2320
      %v2330 = vadd.f32 %v2269, %v2321
      %v2331 = vadd.f32 %v2270, %v2322
      %v2332 = vadd.f32 %v2271, %v2323
      %v2333 = vadd.f32 %v2272, %v2324
      %v2334 = vadd.f32 %v2273, %v2325
      %v2335 = vadd.f32 %v2274, %v2326
      %v2336 = vadd.f32 %v2275, %v2327
      %v2337 = vadd.f32 %v2276, %v2328
      %v2338 = vmul.f32 %v2329, 0.70710677
      %v2339 = vmul.f32 %v2330, 0.70710677
      %v2340 = vmul.f32 %v2331, 0.70710677
      %v2341 = vmul.f32 %v2332, 0.70710677
      %v2342 = vmul.f32 %v2333, 0.70710677
      %v2343 = vmul.f32 %v2334, 0.70710677
      %v2344 = vmul.f32 %v2335, 0.70710677
      %v2345 = vmul.f32 %v2336, 0.70710677
      %v2346 = vmul.f32 %v2337, 0.70710677
      %v2347 = vand.u32 2147483647, %v2338
      %v2348 = vand.u32 2147483647, %v2339
      %v2349 = vand.u32 2147483647, %v2340
      %v2350 = vand.u32 2147483647, %v2341
      %v2351 = vand.u32 2147483647, %v2342
      %v2352 = vand.u32 2147483647, %v2343
      %v2353 = vand.u32 2147483647, %v2344
      %v2354 = vand.u32 2147483647, %v2345
      %v2355 = vand.u32 2147483647, %v2346
      %v2356 = vmul.f32 %v2347, 0.3275911
      %v2357 = vmul.f32 %v2348, 0.3275911
      %v2358 = vmul.f32 %v2349, 0.3275911
      %v2359 = vmul.f32 %v2350, 0.3275911
      %v2360 = vmul.f32 %v2351, 0.3275911
      %v2361 = vmul.f32 %v2352, 0.3275911
      %v2362 = vmul.f32 %v2353, 0.3275911
      %v2363 = vmul.f32 %v2354, 0.3275911
      %v2364 = vmul.f32 %v2355, 0.3275911
      %v2365 = vadd.f32 %v2356, 1.0
      %v2366 = vadd.f32 %v2357, 1.0
      %v2367 = vadd.f32 %v2358, 1.0
      %v2368 = vadd.f32 %v2359, 1.0
      %v2369 = vadd.f32 %v2360, 1.0
      %v2370 = vadd.f32 %v2361, 1.0
      %v2371 = vadd.f32 %v2362, 1.0
      %v2372 = vadd.f32 %v2363, 1.0
      %v2373 = vadd.f32 %v2364, 1.0
      %v2374 = vrcp.pop %v2365
      %v2375 = vmul.f32 1.0, %v2374
      %v2376 = vrcp.pop %v2366
      %v2377 = vmul.f32 1.0, %v2376
      %v2378 = vrcp.pop %v2367
      %v2379 = vmul.f32 1.0, %v2378
      %v2380 = vrcp.pop %v2368
      %v2381 = vmul.f32 1.0, %v2380
      %v2382 = vrcp.pop %v2369
      %v2383 = vmul.f32 1.0, %v2382
      %v2384 = vrcp.pop %v2370
      %v2385 = vmul.f32 1.0, %v2384
      %v2386 = vrcp.pop %v2371
      %v2387 = vmul.f32 1.0, %v2386
      %v2388 = vrcp.pop %v2372
      %v2389 = vmul.f32 1.0, %v2388
      %v2390 = vrcp.pop %v2373
      %v2391 = vmul.f32 1.0, %v2390
      %v2392 = vmul.f32 %v2375, 1.0614054
      %v2393 = vmul.f32 %v2377, 1.0614054
      %v2394 = vmul.f32 %v2379, 1.0614054
      %v2395 = vmul.f32 %v2381, 1.0614054
      %v2396 = vmul.f32 %v2383, 1.0614054
      %v2397 = vmul.f32 %v2385, 1.0614054
      %v2398 = vmul.f32 %v2387, 1.0614054
      %v2399 = vmul.f32 %v2389, 1.0614054
      %v2400 = vmul.f32 %v2391, 1.0614054
      %v2401 = vsub.f32 %v2392, 1.4531521
      %v2402 = vsub.f32 %v2393, 1.4531521
      %v2403 = vsub.f32 %v2394, 1.4531521
      %v2404 = vsub.f32 %v2395, 1.4531521
      %v2405 = vsub.f32 %v2396, 1.4531521
      %v2406 = vsub.f32 %v2397, 1.4531521
      %v2407 = vsub.f32 %v2398, 1.4531521
      %v2408 = vsub.f32 %v2399, 1.4531521
      %v2409 = vsub.f32 %v2400, 1.4531521
      %v2410 = vmul.f32 %v2401, %v2375
      %v2411 = vmul.f32 %v2402, %v2377
      %v2412 = vmul.f32 %v2403, %v2379
      %v2413 = vmul.f32 %v2404, %v2381
      %v2414 = vmul.f32 %v2405, %v2383
      %v2415 = vmul.f32 %v2406, %v2385
      %v2416 = vmul.f32 %v2407, %v2387
      %v2417 = vmul.f32 %v2408, %v2389
      %v2418 = vmul.f32 %v2409, %v2391
      %v2419 = vadd.f32 %v2410, 1.4214138
      %v2420 = vadd.f32 %v2411, 1.4214138
      %v2421 = vadd.f32 %v2412, 1.4214138
      %v2422 = vadd.f32 %v2413, 1.4214138
      %v2423 = vadd.f32 %v2414, 1.4214138
      %v2424 = vadd.f32 %v2415, 1.4214138
      %v2425 = vadd.f32 %v2416, 1.4214138
      %v2426 = vadd.f32 %v2417, 1.4214138
      %v2427 = vadd.f32 %v2418, 1.4214138
      %v2428 = vmul.f32 %v2419, %v2375
      %v2429 = vmul.f32 %v2420, %v2377
      %v2430 = vmul.f32 %v2421, %v2379
      %v2431 = vmul.f32 %v2422, %v2381
      %v2432 = vmul.f32 %v2423, %v2383
      %v2433 = vmul.f32 %v2424, %v2385
      %v2434 = vmul.f32 %v2425, %v2387
      %v2435 = vmul.f32 %v2426, %v2389
      %v2436 = vmul.f32 %v2427, %v2391
      %v2437 = vsub.f32 %v2428, 0.28449672
      %v2438 = vsub.f32 %v2429, 0.28449672
      %v2439 = vsub.f32 %v2430, 0.28449672
      %v2440 = vsub.f32 %v2431, 0.28449672
      %v2441 = vsub.f32 %v2432, 0.28449672
      %v2442 = vsub.f32 %v2433, 0.28449672
      %v2443 = vsub.f32 %v2434, 0.28449672
      %v2444 = vsub.f32 %v2435, 0.28449672
      %v2445 = vsub.f32 %v2436, 0.28449672
      %v2446 = vmul.f32 %v2437, %v2375
      %v2447 = vmul.f32 %v2438, %v2377
      %v2448 = vmul.f32 %v2439, %v2379
      %v2449 = vmul.f32 %v2440, %v2381
      %v2450 = vmul.f32 %v2441, %v2383
      %v2451 = vmul.f32 %v2442, %v2385
      %v2452 = vmul.f32 %v2443, %v2387
      %v2453 = vmul.f32 %v2444, %v2389
      %v2454 = vmul.f32 %v2445, %v2391
      %v2455 = vadd.f32 %v2446, 0.2548296
      %v2456 = vadd.f32 %v2447, 0.2548296
      %v2457 = vadd.f32 %v2448, 0.2548296
      %v2458 = vadd.f32 %v2449, 0.2548296
      %v2459 = vadd.f32 %v2450, 0.2548296
      %v2460 = vadd.f32 %v2451, 0.2548296
      %v2461 = vadd.f32 %v2452, 0.2548296
      %v2462 = vadd.f32 %v2453, 0.2548296
      %v2463 = vadd.f32 %v2454, 0.2548296
      %v2464 = vmul.f32 %v2455, %v2375
      %v2465 = vmul.f32 %v2456, %v2377
      %v2466 = vmul.f32 %v2457, %v2379
      %v2467 = vmul.f32 %v2458, %v2381
      %v2468 = vmul.f32 %v2459, %v2383
      %v2469 = vmul.f32 %v2460, %v2385
      %v2470 = vmul.f32 %v2461, %v2387
      %v2471 = vmul.f32 %v2462, %v2389
      %v2472 = vmul.f32 %v2463, %v2391
      %v2473 = vsub.f32 0.0, %v2347
      %v2474 = vsub.f32 0.0, %v2348
      %v2475 = vsub.f32 0.0, %v2349
      %v2476 = vsub.f32 0.0, %v2350
      %v2477 = vsub.f32 0.0, %v2351
      %v2478 = vsub.f32 0.0, %v2352
      %v2479 = vsub.f32 0.0, %v2353
      %v2480 = vsub.f32 0.0, %v2354
      %v2481 = vsub.f32 0.0, %v2355
      %v2482 = vmul.f32 %v2473, %v2347
      %v2483 = vmul.f32 %v2474, %v2348
      %v2484 = vmul.f32 %v2475, %v2349
      %v2485 = vmul.f32 %v2476, %v2350
      %v2486 = vmul.f32 %v2477, %v2351
      %v2487 = vmul.f32 %v2478, %v2352
      %v2488 = vmul.f32 %v2479, %v2353
      %v2489 = vmul.f32 %v2480, %v2354
      %v2490 = vmul.f32 %v2481, %v2355
      %v2491 = vmul.f32 %v2482, 1.442695
      %v2492 = vpow.pop %v2491
      %v2493 = vmul.f32 %v2483, 1.442695
      %v2494 = vpow.pop %v2493
      %v2495 = vmul.f32 %v2484, 1.442695
      %v2496 = vpow.pop %v2495
      %v2497 = vmul.f32 %v2485, 1.442695
      %v2498 = vpow.pop %v2497
      %v2499 = vmul.f32 %v2486, 1.442695
      %v2500 = vpow.pop %v2499
      %v2501 = vmul.f32 %v2487, 1.442695
      %v2502 = vpow.pop %v2501
      %v2503 = vmul.f32 %v2488, 1.442695
      %v2504 = vpow.pop %v2503
      %v2505 = vmul.f32 %v2489, 1.442695
      %v2506 = vpow.pop %v2505
      %v2507 = vmul.f32 %v2490, 1.442695
      %v2508 = vpow.pop %v2507
      %v2509 = vmul.f32 %v2464, %v2492
      %v2510 = vmul.f32 %v2465, %v2494
      %v2511 = vmul.f32 %v2466, %v2496
      %v2512 = vmul.f32 %v2467, %v2498
      %v2513 = vmul.f32 %v2468, %v2500
      %v2514 = vmul.f32 %v2469, %v2502
      %v2515 = vmul.f32 %v2470, %v2504
      %v2516 = vmul.f32 %v2471, %v2506
      %v2517 = vmul.f32 %v2472, %v2508
      %v2518 = vsub.f32 1.0, %v2509
      %v2519 = vsub.f32 1.0, %v2510
      %v2520 = vsub.f32 1.0, %v2511
      %v2521 = vsub.f32 1.0, %v2512
      %v2522 = vsub.f32 1.0, %v2513
      %v2523 = vsub.f32 1.0, %v2514
      %v2524 = vsub.f32 1.0, %v2515
      %v2525 = vsub.f32 1.0, %v2516
      %v2526 = vsub.f32 1.0, %v2517
      %vm2527 = vcmp.ge.f32.partialorder %v2338, 0.0
      %vm2528 = vcmp.ge.f32.partialorder %v2339, 0.0
      %vm2529 = vcmp.ge.f32.partialorder %v2340, 0.0
      %vm2530 = vcmp.ge.f32.partialorder %v2341, 0.0
      %vm2531 = vcmp.ge.f32.partialorder %v2342, 0.0
      %vm2532 = vcmp.ge.f32.partialorder %v2343, 0.0
      %vm2533 = vcmp.ge.f32.partialorder %v2344, 0.0
      %vm2534 = vcmp.ge.f32.partialorder %v2345, 0.0
      %vm2535 = vcmp.ge.f32.partialorder %v2346, 0.0
      %v2536 = vsub.f32 0.0, %v2518
      %v2537 = vsub.f32 0.0, %v2519
      %v2538 = vsub.f32 0.0, %v2520
      %v2539 = vsub.f32 0.0, %v2521
      %v2540 = vsub.f32 0.0, %v2522
      %v2541 = vsub.f32 0.0, %v2523
      %v2542 = vsub.f32 0.0, %v2524
      %v2543 = vsub.f32 0.0, %v2525
      %v2544 = vsub.f32 0.0, %v2526
      %v2545 = vsel %vm2527, %v2518, %v2536
      %v2546 = vsel %vm2528, %v2519, %v2537
      %v2547 = vsel %vm2529, %v2520, %v2538
      %v2548 = vsel %vm2530, %v2521, %v2539
      %v2549 = vsel %vm2531, %v2522, %v2540
      %v2550 = vsel %vm2532, %v2523, %v2541
      %v2551 = vsel %vm2533, %v2524, %v2542
      %v2552 = vsel %vm2534, %v2525, %v2543
      %v2553 = vsel %vm2535, %v2526, %v2544
      %v2554 = vmul.f32 %v2329, 0.5
      %v2555 = vmul.f32 %v2330, 0.5
      %v2556 = vmul.f32 %v2331, 0.5
      %v2557 = vmul.f32 %v2332, 0.5
      %v2558 = vmul.f32 %v2333, 0.5
      %v2559 = vmul.f32 %v2334, 0.5
      %v2560 = vmul.f32 %v2335, 0.5
      %v2561 = vmul.f32 %v2336, 0.5
      %v2562 = vmul.f32 %v2337, 0.5
      %v2563 = vadd.f32 %v2545, 1.0
      %v2564 = vadd.f32 %v2546, 1.0
      %v2565 = vadd.f32 %v2547, 1.0
      %v2566 = vadd.f32 %v2548, 1.0
      %v2567 = vadd.f32 %v2549, 1.0
      %v2568 = vadd.f32 %v2550, 1.0
      %v2569 = vadd.f32 %v2551, 1.0
      %v2570 = vadd.f32 %v2552, 1.0
      %v2571 = vadd.f32 %v2553, 1.0
      %v2572 = vmul.f32 %v2554, %v2563
      %v2573 = vmul.f32 %v2555, %v2564
      %v2574 = vmul.f32 %v2556, %v2565
      %v2575 = vmul.f32 %v2557, %v2566
      %v2576 = vmul.f32 %v2558, %v2567
      %v2577 = vmul.f32 %v2559, %v2568
      %v2578 = vmul.f32 %v2560, %v2569
      %v2579 = vmul.f32 %v2561, %v2570
      %v2580 = vmul.f32 %v2562, %v2571
      %v2581 = vld [vmem:[%s8] sm:$0xff]
      %v2582 = vld [vmem:[%s8 + $0x8] sm:$0xff]
      %v2583 = vld [vmem:[%s8 + $0x10] sm:$0xff]
      %v2584 = vld [vmem:[%s8 + $0x18] sm:$0xff]
      %v2585 = vld [vmem:[%s8 + $0x20] sm:$0xff]
      %v2586 = vld [vmem:[%s8 + $0x28] sm:$0xff]
      %v2587 = vld [vmem:[%s8 + $0x30] sm:$0xff]
      %v2588 = vld [vmem:[%s8 + $0x38] sm:$0xff]
      %v2589 = vld [vmem:[%s8 + $0x40] sm:$0xff]
      %v2590 = vld [vmem:[%s8 + $0x48] sm:$0xff]
      %v2591 = vld [vmem:[%s8 + $0x50] sm:$0xff]
      %v2592 = vld [vmem:[%s8 + $0x58] sm:$0xff]
      %v2593 = vld [vmem:[%s8 + $0x60] sm:$0xff]
      %v2594 = vld [vmem:[%s8 + $0x68] sm:$0xff]
      %v2595 = vld [vmem:[%s8 + $0x70] sm:$0xff]
      %v2596 = vld [vmem:[%s8 + $0x78] sm:$0xff]
      %v2597 = vld [vmem:[%s9] sm:$0x1]
      %v2599 = vlaneseq
      %v2600 = vshrl.u32 %v2599, 7
      %v2601 = vsub.s32 0, %v2600
      %v2602 = vrot.slane %v2597, %v2601
      %2604 = vmatprep.subr.mxu0 0.0
      %2605 = vmatpush1.msra.mxu0 %v2581
      %2606 = vmatprep.subr.mxu0 0.0
      %2607 = vmatpush1.msra.mxu0 %v2582
      %2608 = vmatprep.subr.mxu0 0.0
      %2609 = vmatpush1.msra.mxu0 %v2583
      %2610 = vmatprep.subr.mxu0 0.0
      %2611 = vmatpush1.msra.mxu0 %v2584
      %2612 = vmatprep.subr.mxu0 0.0
      %2613 = vmatpush1.msra.mxu0 %v2585
      %2614 = vmatprep.subr.mxu0 0.0
      %2615 = vmatpush1.msra.mxu0 %v2586
      %2616 = vmatprep.subr.mxu0 0.0
      %2617 = vmatpush1.msra.mxu0 %v2587
      %2618 = vmatprep.subr.mxu0 0.0
      %2619 = vmatpush1.msra.mxu0 %v2588
      %2620 = vmatprep.subr.mxu0 0.0
      %2621 = vmatpush1.msra.mxu0 %v2589
      %2622 = vmatprep.subr.mxu0 0.0
      %2623 = vmatpush1.msra.mxu0 %v2590
      %2624 = vmatprep.subr.mxu0 0.0
      %2625 = vmatpush1.msra.mxu0 %v2591
      %2626 = vmatprep.subr.mxu0 0.0
      %2627 = vmatpush1.msra.mxu0 %v2592
      %2628 = vmatprep.subr.mxu0 0.0
      %2629 = vmatpush1.msra.mxu0 %v2593
      %2630 = vmatprep.subr.mxu0 0.0
      %2631 = vmatpush1.msra.mxu0 %v2594
      %2632 = vmatprep.subr.mxu0 0.0
      %2633 = vmatpush1.msra.mxu0 %v2595
      %2634 = vmatprep.subr.mxu0 0.0
      %2635 = vmatpush1.msra.mxu0 %v2596
      %2636 = vmatprep.subr.mxu0 0.0
      %2637 = vmatpush1.msra.mxu0 0.0
      %2638 = vmatprep.subr.mxu0 0.0
      %2639 = vmatpush1.msra.mxu0 0.0
      %2640 = vmatprep.subr.mxu0 0.0
      %2641 = vmatpush1.msra.mxu0 0.0
      %2642 = vmatprep.subr.mxu0 0.0
      %2643 = vmatpush1.msra.mxu0 0.0
      %2644 = vmatprep.subr.mxu0 0.0
      %2645 = vmatpush1.msra.mxu0 0.0
      %2646 = vmatprep.subr.mxu0 0.0
      %2647 = vmatpush1.msra.mxu0 0.0
      %2648 = vmatprep.subr.mxu0 0.0
      %2649 = vmatpush1.msra.mxu0 0.0
      %2650 = vmatprep.subr.mxu0 0.0
      %2651 = vmatpush1.msra.mxu0 0.0
      %2652 = vmatprep.subr.mxu0 0.0
      %2653 = vmatpush1.msra.mxu0 0.0
      %2654 = vmatprep.subr.mxu0 0.0
      %2655 = vmatpush1.msra.mxu0 0.0
      %2656 = vmatprep.subr.mxu0 0.0
      %2657 = vmatpush1.msra.mxu0 0.0
      %2658 = vmatprep.subr.mxu0 0.0
      %2659 = vmatpush1.msra.mxu0 0.0
      %2660 = vmatprep.subr.mxu0 0.0
      %2661 = vmatpush1.msra.mxu0 0.0
      %2662 = vmatprep.subr.mxu0 0.0
      %2663 = vmatpush1.msra.mxu0 0.0
      %2664 = vmatprep.subr.mxu0 0.0
      %2665 = vmatpush1.msra.mxu0 0.0
      %2666 = vmatprep.subr.mxu0 0.0
      %2667 = vmatpush1.msra.mxu0 0.0
      %2668 = vmatprep.mubr.f32.mxu0 0.0
      %2669 = vmatmul.mubr.f32.gmra.mrb[0].mxu0 %v2572
      %v2670 = vpop.f32.mrb[0].mxu0
      %v2671 = vadd.f32 %v2602, %v2670
      %v2672 = vpop.f32.mrb[0].mxu0
      %2673 = vmatprep.mubr.f32.mxu0 0.0
      %2674 = vmatmul.mubr.f32.gmra.mrb[0].mxu0 %v2573
      %v2675 = vpop.f32.mrb[0].mxu0
      %v2676 = vadd.f32 %v2602, %v2675
      %v2677 = vpop.f32.mrb[0].mxu0
      %2678 = vmatprep.mubr.f32.mxu0 0.0
      %2679 = vmatmul.mubr.f32.gmra.mrb[0].mxu0 %v2574
      %v2680 = vpop.f32.mrb[0].mxu0
      %v2681 = vadd.f32 %v2602, %v2680
      %v2682 = vpop.f32.mrb[0].mxu0
      %2683 = vmatprep.mubr.f32.mxu0 0.0
      %2684 = vmatmul.mubr.f32.gmra.mrb[0].mxu0 %v2575
      %v2685 = vpop.f32.mrb[0].mxu0
      %v2686 = vadd.f32 %v2602, %v2685
      %v2687 = vpop.f32.mrb[0].mxu0
      %2688 = vmatprep.mubr.f32.mxu0 0.0
      %2689 = vmatmul.mubr.f32.gmra.mrb[0].mxu0 %v2576
      %v2690 = vpop.f32.mrb[0].mxu0
      %v2691 = vadd.f32 %v2602, %v2690
      %v2692 = vpop.f32.mrb[0].mxu0
      %2693 = vmatprep.mubr.f32.mxu0 0.0
      %2694 = vmatmul.mubr.f32.gmra.mrb[0].mxu0 %v2577
      %v2695 = vpop.f32.mrb[0].mxu0
      %v2696 = vadd.f32 %v2602, %v2695
      %v2697 = vpop.f32.mrb[0].mxu0
      %2698 = vmatprep.mubr.f32.mxu0 0.0
      %2699 = vmatmul.mubr.f32.gmra.mrb[0].mxu0 %v2578
      %v2700 = vpop.f32.mrb[0].mxu0
      %v2701 = vadd.f32 %v2602, %v2700
      %v2702 = vpop.f32.mrb[0].mxu0
      %2703 = vmatprep.mubr.f32.mxu0 0.0
      %2704 = vmatmul.mubr.f32.gmra.mrb[0].mxu0 %v2579
      %v2705 = vpop.f32.mrb[0].mxu0
      %v2706 = vadd.f32 %v2602, %v2705
      %v2707 = vpop.f32.mrb[0].mxu0
      %2708 = vmatprep.mubr.f32.mxu0 0.0
      %2709 = vmatmul.mubr.f32.gmra.mrb[0].mxu0 %v2580
      %v2710 = vpop.f32.mrb[0].mxu0
      %v2711 = vadd.f32 %v2602, %v2710
      %v2712 = vpop.f32.mrb[0].mxu0
      %2713 = vdwg.mxu0
      %v2714 = vadd.f32 %v387, %v2671
      %v2715 = vadd.f32 %v388, %v2676
      %v2716 = vadd.f32 %v389, %v2681
      %v2717 = vadd.f32 %v390, %v2686
      %v2718 = vadd.f32 %v391, %v2691
      %v2719 = vadd.f32 %v392, %v2696
      %v2720 = vadd.f32 %v393, %v2701
      %v2721 = vadd.f32 %v394, %v2706
      %v2722 = vadd.f32 %v395, %v2711
      %2723 = vst.msk [vmem:[%s386] sm:$0xff] %vm396, %v2714
      %2724 = vst.msk [vmem:[%s386 + $0x8] sm:$0xff] %vm396, %v2715
      %2725 = vst.msk [vmem:[%s386 + $0x10] sm:$0xff] %vm396, %v2716
      %2726 = vst.msk [vmem:[%s386 + $0x18] sm:$0xff] %vm396, %v2717
      %2727 = vst.msk [vmem:[%s386 + $0x20] sm:$0xff] %vm396, %v2718
      %2728 = vst.msk [vmem:[%s386 + $0x28] sm:$0xff] %vm396, %v2719
      %2729 = vst.msk [vmem:[%s386 + $0x30] sm:$0xff] %vm396, %v2720
      %2730 = vst.msk [vmem:[%s386 + $0x38] sm:$0xff] %vm396, %v2721
      %2731 = vst.msk [vmem:[%s386 + $0x40] sm:$0xff] %vm396, %v2722
      %p2732 = scmp.lt.s32.totalorder %s22, 1
      %s2733 = scalar_select %p2732, %s22, 1
      %s2734 = smul.addr %s2733, 9
      %s2735 = smul.addr %s2734, 8
      %s2736 = scalar_lea.vmem %s11, %s2735
      // Predicated region
      $region65: #{_lambda_.3} parent=63 // pred_check
        %p2737 = pneg %p276
      $region66: #{_lambda_.3} parent=63 // pred_check_branch
        %2739 = sbr.rel (%p2737) target = $region68
      $region67: #{_lambda_.3} parent=63 // pred_region
        _
      $region68: #{_lambda_.3} parent=63 // pred_fallthru
        _
    $region64: #{_lambda_.3} parent=5 // pred_fallthru
      _
    %p2740 = scmp.le.s32.totalorder 2, %s17
    // Predicated region
    $region69: #{_lambda_.3} parent=5 // pred_check
      %p2741 = pneg %p2740
    $region70: #{_lambda_.3} parent=5 // pred_check_branch
      %2743 = sbr.rel (%p2741) target = $region72
    $region71: #{_lambda_.3} parent=5 // pred_region
      %s2744 = ssub.s32 %s17, 2
      // Predicated region
      $region73: #{_lambda_.3} parent=71 // pred_check
        %p2745 = pneg %p282
      $region74: #{_lambda_.3} parent=71 // pred_check_branch
        %2747 = sbr.rel (%p2745) target = $region76
      $region75: #{_lambda_.3} parent=71 // pred_region
        %p2748 = scmp.lt.s32.totalorder %s23, 1
        %s2749 = scalar_select %p2748, %s23, 1
        %s2750 = smul.addr %s2749, 9
        %s2751 = smul.addr %s2750, 8
        %s2752 = scalar_lea.vmem %s11, %s2751
      $region76: #{_lambda_.3} parent=71 // pred_fallthru
        _
    $region72: #{_lambda_.3} parent=5 // pred_fallthru
      _
  $region6: #{_lambda_.3} parent=0 // loop_footer
    %s21 = sadd.s32 1, %s17
  $region7: #{_lambda_.3} parent=0 // loop_footer_branch
    %16 = sbr.rel target = $region3
  $region8: #{_lambda_.3} parent=0 // loop_exit
    _

// kernel: _lambda_.2
$region0: #{_lambda_.2}
  #allocation0 [shape = 'u32[]', space=smem, size = 0x4, offset = 0x4, fixed_abs, tag = 'smem constant byte address 0x4 - core index']
  #allocation1 [shape = 'u32[144,128]{1,0:T(1,128)}', space=vmem, size = 0x12000, scoped, tag = 'internal scratch']
  %s0 = inlined_call_operand.vmem [shape: f32[2,72,32], index: 0, kind: input, shape index: {}]
  %s1 = inlined_call_operand.vmem [shape: f32[1,32], index: 1, kind: input, shape index: {}]
  %s2 = inlined_call_operand.vmem [shape: f32[1,32], index: 2, kind: input, shape index: {}]
  %s3 = inlined_call_operand.vmem [shape: f32[32,96], index: 3, kind: input, shape index: {}]
  %s4 = inlined_call_operand.vmem [shape: f32[9,1,32], index: 4, kind: input, shape index: {}]
  %s5 = inlined_call_operand.vmem [shape: f32[1,32], index: 5, kind: input, shape index: {}]
  %s6 = inlined_call_operand.vmem [shape: f32[32,32], index: 6, kind: input, shape index: {}]
  %s7 = inlined_call_operand.vmem [shape: f32[1,32], index: 7, kind: input, shape index: {}]
  %s8 = inlined_call_operand.vmem [shape: f32[9,72,72], index: 8, kind: input, shape index: {}]
  %s9 = inlined_call_operand.vmem [shape: f32[2,72,32], index: 9, kind: output, shape index: {}]
  %s10 = sld [smem:[#allocation0]]
  $region69: #{_lambda_.2} parent=0
    _
  %s12 = ssub.s32 1, %s10
  %s13 = scalar_select 0, %s12, %s10
  loop: start=0, step=1, limit=4
  $region2: #{_lambda_.2} parent=0 // loop_pre_header
    _
  $region3: #{_lambda_.2} parent=0 // loop_header
    %s15 = sphi 0, %s19
    %p16 = scmp.ge.s32.totalorder %s15, 4
    %s25 = sphi 0, %s27
    %s28 = sphi 0, %s25
    %s29 = sphi 0, %s28
    %s45 = sphi 0, %s29
    %s49 = sphi 0, %s49
    %s51 = sphi 0, %s49
    %s52 = sphi 0, %s51
    %s66 = sphi 0, %s52
    %s70 = sphi 0, %s70
    %s72 = sphi 0, %s70
    %s73 = sphi 0, %s72
    %s87 = sphi 0, %s73
    %s91 = sphi 0, %s91
    %s93 = sphi 0, %s91
    %s94 = sphi 0, %s93
    %s108 = sphi 0, %s94
    %s112 = sphi 0, %s112
    %s114 = sphi 0, %s112
    %s115 = sphi 0, %s114
    %s129 = sphi 0, %s115
    %s133 = sphi 0, %s133
    %s135 = sphi 0, %s133
    %s136 = sphi 0, %s135
    %s150 = sphi 0, %s136
    %s154 = sphi 0, %s154
    %s156 = sphi 0, %s154
    %s157 = sphi 0, %s156
    %s171 = sphi 0, %s157
    %s175 = sphi 0, %s175
    %s177 = sphi 0, %s175
    %s178 = sphi 0, %s177
    %s192 = sphi 0, %s178
    %s196 = sphi 0, %s196
    %s198 = sphi 0, %s196
    %s199 = sphi 0, %s198
    %s213 = sphi 0, %s199
    %s219 = sphi 0, %s221
    %s222 = sphi 0, %s219
    %s223 = sphi 0, %s222
    %s239 = sphi 0, %s223
  $region4: #{_lambda_.2} parent=0 // loop_header_branch
    %18 = sbr.rel (%p16) target = $region8
  $region5: #{_lambda_.2} parent=0 // loop_body
    %s20 = ssub.s32 %s15, 1
    %s21 = ssub.s32 %s15, 2
    %s22 = sadd.s32 %s15, 1
    %s23 = ssub.s32 %s15, %s22
    %p24 = scmp.eq.s32.totalorder %s23, 0
    %s26 = sadd.s32 %s25, 1
    %s27 = scalar_select %p24, %s25, %s26
    %p30 = pneg %p24
    %p31 = scmp.eq.s32.totalorder %s15, 1
    %p32 = por %p30, %p31
    %p33 = scmp.ne.s32.totalorder %s25, %s28
    %p34 = scmp.eq.s32.totalorder %s15, 0
    %p35 = por %p33, %p34
    %p36 = scmp.ne.s32.totalorder %s25, %s28
    %p37 = scmp.eq.s32.totalorder %s20, 1
    %p38 = por %p36, %p37
    %p39 = scmp.ne.s32.totalorder %s28, %s29
    %p40 = scmp.eq.s32.totalorder %s20, 0
    %p41 = por %p39, %p40
    %p42 = scmp.ne.s32.totalorder %s28, %s29
    %p43 = scmp.eq.s32.totalorder %s21, 1
    %p44 = por %p42, %p43
    %p46 = scmp.ne.s32.totalorder %s29, %s45
    %p47 = scmp.eq.s32.totalorder %s21, 0
    %p48 = por %p46, %p47
    %s50 = sadd.s32 %s49, 1
    %p53 = scmp.eq.s32.totalorder %s15, 1
    %p54 = scmp.ne.s32.totalorder %s49, %s51
    %p55 = scmp.eq.s32.totalorder %s15, 0
    %p56 = por %p54, %p55
    %p57 = scmp.ne.s32.totalorder %s49, %s51
    %p58 = scmp.eq.s32.totalorder %s20, 1
    %p59 = por %p57, %p58
    %p60 = scmp.ne.s32.totalorder %s51, %s52
    %p61 = scmp.eq.s32.totalorder %s20, 0
    %p62 = por %p60, %p61
    %p63 = scmp.ne.s32.totalorder %s51, %s52
    %p64 = scmp.eq.s32.totalorder %s21, 1
    %p65 = por %p63, %p64
    %p67 = scmp.ne.s32.totalorder %s52, %s66
    %p68 = scmp.eq.s32.totalorder %s21, 0
    %p69 = por %p67, %p68
    %s71 = sadd.s32 %s70, 1
    %p74 = scmp.eq.s32.totalorder %s15, 1
    %p75 = scmp.ne.s32.totalorder %s70, %s72
    %p76 = scmp.eq.s32.totalorder %s15, 0
    %p77 = por %p75, %p76
    %p78 = scmp.ne.s32.totalorder %s70, %s72
    %p79 = scmp.eq.s32.totalorder %s20, 1
    %p80 = por %p78, %p79
    %p81 = scmp.ne.s32.totalorder %s72, %s73
    %p82 = scmp.eq.s32.totalorder %s20, 0
    %p83 = por %p81, %p82
    %p84 = scmp.ne.s32.totalorder %s72, %s73
    %p85 = scmp.eq.s32.totalorder %s21, 1
    %p86 = por %p84, %p85
    %p88 = scmp.ne.s32.totalorder %s73, %s87
    %p89 = scmp.eq.s32.totalorder %s21, 0
    %p90 = por %p88, %p89
    %s92 = sadd.s32 %s91, 1
    %p95 = scmp.eq.s32.totalorder %s15, 1
    %p96 = scmp.ne.s32.totalorder %s91, %s93
    %p97 = scmp.eq.s32.totalorder %s15, 0
    %p98 = por %p96, %p97
    %p99 = scmp.ne.s32.totalorder %s91, %s93
    %p100 = scmp.eq.s32.totalorder %s20, 1
    %p101 = por %p99, %p100
    %p102 = scmp.ne.s32.totalorder %s93, %s94
    %p103 = scmp.eq.s32.totalorder %s20, 0
    %p104 = por %p102, %p103
    %p105 = scmp.ne.s32.totalorder %s93, %s94
    %p106 = scmp.eq.s32.totalorder %s21, 1
    %p107 = por %p105, %p106
    %p109 = scmp.ne.s32.totalorder %s94, %s108
    %p110 = scmp.eq.s32.totalorder %s21, 0
    %p111 = por %p109, %p110
    %s113 = sadd.s32 %s112, 1
    %p116 = scmp.eq.s32.totalorder %s15, 1
    %p117 = scmp.ne.s32.totalorder %s112, %s114
    %p118 = scmp.eq.s32.totalorder %s15, 0
    %p119 = por %p117, %p118
    %p120 = scmp.ne.s32.totalorder %s112, %s114
    %p121 = scmp.eq.s32.totalorder %s20, 1
    %p122 = por %p120, %p121
    %p123 = scmp.ne.s32.totalorder %s114, %s115
    %p124 = scmp.eq.s32.totalorder %s20, 0
    %p125 = por %p123, %p124
    %p126 = scmp.ne.s32.totalorder %s114, %s115
    %p127 = scmp.eq.s32.totalorder %s21, 1
    %p128 = por %p126, %p127
    %p130 = scmp.ne.s32.totalorder %s115, %s129
    %p131 = scmp.eq.s32.totalorder %s21, 0
    %p132 = por %p130, %p131
    %s134 = sadd.s32 %s133, 1
    %p137 = scmp.eq.s32.totalorder %s15, 1
    %p138 = scmp.ne.s32.totalorder %s133, %s135
    %p139 = scmp.eq.s32.totalorder %s15, 0
    %p140 = por %p138, %p139
    %p141 = scmp.ne.s32.totalorder %s133, %s135
    %p142 = scmp.eq.s32.totalorder %s20, 1
    %p143 = por %p141, %p142
    %p144 = scmp.ne.s32.totalorder %s135, %s136
    %p145 = scmp.eq.s32.totalorder %s20, 0
    %p146 = por %p144, %p145
    %p147 = scmp.ne.s32.totalorder %s135, %s136
    %p148 = scmp.eq.s32.totalorder %s21, 1
    %p149 = por %p147, %p148
    %p151 = scmp.ne.s32.totalorder %s136, %s150
    %p152 = scmp.eq.s32.totalorder %s21, 0
    %p153 = por %p151, %p152
    %s155 = sadd.s32 %s154, 1
    %p158 = scmp.eq.s32.totalorder %s15, 1
    %p159 = scmp.ne.s32.totalorder %s154, %s156
    %p160 = scmp.eq.s32.totalorder %s15, 0
    %p161 = por %p159, %p160
    %p162 = scmp.ne.s32.totalorder %s154, %s156
    %p163 = scmp.eq.s32.totalorder %s20, 1
    %p164 = por %p162, %p163
    %p165 = scmp.ne.s32.totalorder %s156, %s157
    %p166 = scmp.eq.s32.totalorder %s20, 0
    %p167 = por %p165, %p166
    %p168 = scmp.ne.s32.totalorder %s156, %s157
    %p169 = scmp.eq.s32.totalorder %s21, 1
    %p170 = por %p168, %p169
    %p172 = scmp.ne.s32.totalorder %s157, %s171
    %p173 = scmp.eq.s32.totalorder %s21, 0
    %p174 = por %p172, %p173
    %s176 = sadd.s32 %s175, 1
    %p179 = scmp.eq.s32.totalorder %s15, 1
    %p180 = scmp.ne.s32.totalorder %s175, %s177
    %p181 = scmp.eq.s32.totalorder %s15, 0
    %p182 = por %p180, %p181
    %p183 = scmp.ne.s32.totalorder %s175, %s177
    %p184 = scmp.eq.s32.totalorder %s20, 1
    %p185 = por %p183, %p184
    %p186 = scmp.ne.s32.totalorder %s177, %s178
    %p187 = scmp.eq.s32.totalorder %s20, 0
    %p188 = por %p186, %p187
    %p189 = scmp.ne.s32.totalorder %s177, %s178
    %p190 = scmp.eq.s32.totalorder %s21, 1
    %p191 = por %p189, %p190
    %p193 = scmp.ne.s32.totalorder %s178, %s192
    %p194 = scmp.eq.s32.totalorder %s21, 0
    %p195 = por %p193, %p194
    %s197 = sadd.s32 %s196, 1
    %p200 = scmp.eq.s32.totalorder %s15, 1
    %p201 = scmp.ne.s32.totalorder %s196, %s198
    %p202 = scmp.eq.s32.totalorder %s15, 0
    %p203 = por %p201, %p202
    %p204 = scmp.ne.s32.totalorder %s196, %s198
    %p205 = scmp.eq.s32.totalorder %s20, 1
    %p206 = por %p204, %p205
    %p207 = scmp.ne.s32.totalorder %s198, %s199
    %p208 = scmp.eq.s32.totalorder %s20, 0
    %p209 = por %p207, %p208
    %p210 = scmp.ne.s32.totalorder %s198, %s199
    %p211 = scmp.eq.s32.totalorder %s21, 1
    %p212 = por %p210, %p211
    %p214 = scmp.ne.s32.totalorder %s199, %s213
    %p215 = scmp.eq.s32.totalorder %s21, 0
    %p216 = por %p214, %p215
    %s217 = ssub.s32 %s15, %s22
    %p218 = scmp.eq.s32.totalorder %s217, 0
    %s220 = sadd.s32 %s219, 1
    %s221 = scalar_select %p218, %s219, %s220
    %p224 = pneg %p218
    %p225 = scmp.eq.s32.totalorder %s15, 1
    %p226 = por %p224, %p225
    %p227 = scmp.ne.s32.totalorder %s219, %s222
    %p228 = scmp.eq.s32.totalorder %s15, 0
    %p229 = por %p227, %p228
    %p230 = scmp.ne.s32.totalorder %s219, %s222
    %p231 = scmp.eq.s32.totalorder %s20, 1
    %p232 = por %p230, %p231
    %p233 = scmp.ne.s32.totalorder %s222, %s223
    %p234 = scmp.eq.s32.totalorder %s20, 0
    %p235 = por %p233, %p234
    %p236 = scmp.ne.s32.totalorder %s222, %s223
    %p237 = scmp.eq.s32.totalorder %s21, 1
    %p238 = por %p236, %p237
    %p240 = scmp.ne.s32.totalorder %s223, %s239
    %p241 = scmp.eq.s32.totalorder %s21, 0
    %p242 = por %p240, %p241
    %p243 = scmp.le.s32.totalorder 1, %s15
    %p244 = scmp.lt.s32.totalorder %s15, 3
    %p245 = pnand %p243, %p244
    %p246 = pneg %p245
    // Predicated region
    $region9: #{_lambda_.2} parent=5 // pred_check
      _
    $region10: #{_lambda_.2} parent=5 // pred_check_branch
      %248 = sbr.rel (%p245) target = $region12
    $region11: #{_lambda_.2} parent=5 // pred_region
      %s249 = ssub.s32 %s15, 1
      // Predicated region
      $region13: #{_lambda_.2} parent=11 // pred_check
        %p250 = pneg %p62
      $region14: #{_lambda_.2} parent=11 // pred_check_branch
        %252 = sbr.rel (%p250) target = $region16
      $region15: #{_lambda_.2} parent=11 // pred_region
        _
      $region16: #{_lambda_.2} parent=11 // pred_fallthru
        _
      // Predicated region
      $region17: #{_lambda_.2} parent=11 // pred_check
        %p253 = pneg %p83
      $region18: #{_lambda_.2} parent=11 // pred_check_branch
        %255 = sbr.rel (%p253) target = $region20
      $region19: #{_lambda_.2} parent=11 // pred_region
        _
      $region20: #{_lambda_.2} parent=11 // pred_fallthru
        _
      // Predicated region
      $region21: #{_lambda_.2} parent=11 // pred_check
        %p256 = pneg %p104
      $region22: #{_lambda_.2} parent=11 // pred_check_branch
        %258 = sbr.rel (%p256) target = $region24
      $region23: #{_lambda_.2} parent=11 // pred_region
        _
      $region24: #{_lambda_.2} parent=11 // pred_fallthru
        _
      // Predicated region
      $region25: #{_lambda_.2} parent=11 // pred_check
        %p259 = pneg %p125
      $region26: #{_lambda_.2} parent=11 // pred_check_branch
        %261 = sbr.rel (%p259) target = $region28
      $region27: #{_lambda_.2} parent=11 // pred_region
        _
      $region28: #{_lambda_.2} parent=11 // pred_fallthru
        _
      // Predicated region
      $region29: #{_lambda_.2} parent=11 // pred_check
        %p262 = pneg %p146
      $region30: #{_lambda_.2} parent=11 // pred_check_branch
        %264 = sbr.rel (%p262) target = $region32
      $region31: #{_lambda_.2} parent=11 // pred_region
        _
      $region32: #{_lambda_.2} parent=11 // pred_fallthru
        _
      // Predicated region
      $region33: #{_lambda_.2} parent=11 // pred_check
        %p265 = pneg %p167
      $region34: #{_lambda_.2} parent=11 // pred_check_branch
        %267 = sbr.rel (%p265) target = $region36
      $region35: #{_lambda_.2} parent=11 // pred_region
        _
      $region36: #{_lambda_.2} parent=11 // pred_fallthru
        _
      // Predicated region
      $region37: #{_lambda_.2} parent=11 // pred_check
        %p268 = pneg %p188
      $region38: #{_lambda_.2} parent=11 // pred_check_branch
        %270 = sbr.rel (%p268) target = $region40
      $region39: #{_lambda_.2} parent=11 // pred_region
        _
      $region40: #{_lambda_.2} parent=11 // pred_fallthru
        _
      // Predicated region
      $region41: #{_lambda_.2} parent=11 // pred_check
        %p271 = pneg %p209
      $region42: #{_lambda_.2} parent=11 // pred_check_branch
        %273 = sbr.rel (%p271) target = $region44
      $region43: #{_lambda_.2} parent=11 // pred_region
        _
      $region44: #{_lambda_.2} parent=11 // pred_fallthru
        _
    $region12: #{_lambda_.2} parent=5 // pred_fallthru
      _
    %p274 = scmp.lt.s32.totalorder %s15, 2
    // Predicated region
    $region45: #{_lambda_.2} parent=5 // pred_check
      %p275 = pneg %p274
    $region46: #{_lambda_.2} parent=5 // pred_check_branch
      %277 = sbr.rel (%p275) target = $region48
    $region47: #{_lambda_.2} parent=5 // pred_region
      // Predicated region
      $region49: #{_lambda_.2} parent=47 // pred_check
        %p278 = pneg %p35
      $region50: #{_lambda_.2} parent=47 // pred_check_branch
        %280 = sbr.rel (%p278) target = $region52
      $region51: #{_lambda_.2} parent=47 // pred_region
        %p281 = scmp.lt.s32.totalorder %s15, 1
        %s282 = scalar_select %p281, %s15, 1
        %s283 = smul.addr %s282, 9
        %s284 = smul.addr %s283, 8
        %s285 = scalar_lea.vmem %s0, %s284
      $region52: #{_lambda_.2} parent=47 // pred_fallthru
        _
    $region48: #{_lambda_.2} parent=5 // pred_fallthru
      _
    %p286 = scmp.le.s32.totalorder 1, %s15
    %p287 = scmp.lt.s32.totalorder %s15, 3
    %p288 = pnand %p286, %p287
    %p289 = pneg %p288
    // Predicated region
    $region53: #{_lambda_.2} parent=5 // pred_check
      _
    $region54: #{_lambda_.2} parent=5 // pred_check_branch
      %291 = sbr.rel (%p288) target = $region56
    $region55: #{_lambda_.2} parent=5 // pred_region
      %s292 = ssub.s32 %s15, 1
      %p293 = scmp.lt.s32.totalorder %s20, 1
      %s294 = scalar_select %p293, %s20, 1
      %s295 = smul.addr %s294, 9
      %s296 = smul.addr %s295, 8
      %s297 = scalar_lea.vmem %s0, %s296
      %p298 = pneg %p41
      %p299 = pneg %p38
      %p300 = pneg %p62
      %p301 = pneg %p59
      %p302 = pneg %p83
      %p303 = pneg %p80
      %p304 = pneg %p104
      %p305 = pneg %p101
      %p306 = pneg %p125
      %p307 = pneg %p122
      %p308 = pneg %p146
      %p309 = pneg %p143
      %p310 = pneg %p167
      %p311 = pneg %p164
      %p312 = pneg %p188
      %p313 = pneg %p185
      %p314 = pneg %p209
      %p315 = pneg %p206
      %p316 = pneg %p235
      %p317 = pneg %p232
      %p318 = scmp.lt.s32.totalorder %s20, 1
      %s319 = scalar_select %p318, %s20, 1
      %s320 = smul.addr %s319, 9
      %s321 = smul.addr %s320, 8
      %s322 = scalar_lea.vmem %s9, %s321
      %p323 = scmp.lt.s32.totalorder %s20, 1
      %s324 = scalar_select %p323, %s20, 1
      %s325 = smul.addr %s324, 9
      %s326 = smul.addr %s325, 8
      %s327 = scalar_lea.vmem %s0, %s326
      %p328 = scmp.lt.s32.totalorder %s20, 1
      %s329 = scalar_select %p328, %s20, 1
      %s330 = smul.addr %s329, 9
      %s331 = smul.addr %s330, 8
      %s332 = scalar_lea.vmem %s9, %s331
      %v333 = vld [vmem:[%s327] sm:$0xff]
      %v334 = vld [vmem:[%s327 + $0x8] sm:$0xff]
      %v335 = vld [vmem:[%s327 + $0x10] sm:$0xff]
      %v336 = vld [vmem:[%s327 + $0x18] sm:$0xff]
      %v337 = vld [vmem:[%s327 + $0x20] sm:$0xff]
      %v338 = vld [vmem:[%s327 + $0x28] sm:$0xff]
      %v339 = vld [vmem:[%s327 + $0x30] sm:$0xff]
      %v340 = vld [vmem:[%s327 + $0x38] sm:$0xff]
      %v341 = vld [vmem:[%s327 + $0x40] sm:$0xff]
      %vm342 = vcmask 261120
      %v343 = vsel %vm342, %v333, 0.0
      %344 = vadd.xlane.f32.xlu0 %v343
      %v345 = vpop.xlane.xlu0 %344
      %v346 = vsel %vm342, %v334, 0.0
      %347 = vadd.xlane.f32.xlu0 %v346
      %v348 = vpop.xlane.xlu0 %347
      %v349 = vsel %vm342, %v335, 0.0
      %350 = vadd.xlane.f32.xlu0 %v349
      %v351 = vpop.xlane.xlu0 %350
      %v352 = vsel %vm342, %v336, 0.0
      %353 = vadd.xlane.f32.xlu0 %v352
      %v354 = vpop.xlane.xlu0 %353
      %v355 = vsel %vm342, %v337, 0.0
      %356 = vadd.xlane.f32.xlu0 %v355
      %v357 = vpop.xlane.xlu0 %356
      %v358 = vsel %vm342, %v338, 0.0
      %359 = vadd.xlane.f32.xlu0 %v358
      %v360 = vpop.xlane.xlu0 %359
      %v361 = vsel %vm342, %v339, 0.0
      %362 = vadd.xlane.f32.xlu0 %v361
      %v363 = vpop.xlane.xlu0 %362
      %v364 = vsel %vm342, %v340, 0.0
      %365 = vadd.xlane.f32.xlu0 %v364
      %v366 = vpop.xlane.xlu0 %365
      %v367 = vsel %vm342, %v341, 0.0
      %368 = vadd.xlane.f32.xlu0 %v367
      %v369 = vpop.xlane.xlu0 %368
      %v370 = vrcp.pop 32.0
      %v371 = vmul.f32 %v345, %v370
      %v372 = vmul.f32 %v348, %v370
      %v373 = vmul.f32 %v351, %v370
      %v374 = vmul.f32 %v354, %v370
      %v375 = vmul.f32 %v357, %v370
      %v376 = vmul.f32 %v360, %v370
      %v377 = vmul.f32 %v363, %v370
      %v378 = vmul.f32 %v366, %v370
      %v379 = vmul.f32 %v369, %v370
      %v380 = vsub.f32 %v333, %v371
      %v381 = vsub.f32 %v334, %v372
      %v382 = vsub.f32 %v335, %v373
      %v383 = vsub.f32 %v336, %v374
      %v384 = vsub.f32 %v337, %v375
      %v385 = vsub.f32 %v338, %v376
      %v386 = vsub.f32 %v339, %v377
      %v387 = vsub.f32 %v340, %v378
      %v388 = vsub.f32 %v341, %v379
      %v389 = vmul.f32 %v380, %v380
      %v390 = vmul.f32 %v381, %v381
      %v391 = vmul.f32 %v382, %v382
      %v392 = vmul.f32 %v383, %v383
      %v393 = vmul.f32 %v384, %v384
      %v394 = vmul.f32 %v385, %v385
      %v395 = vmul.f32 %v386, %v386
      %v396 = vmul.f32 %v387, %v387
      %v397 = vmul.f32 %v388, %v388
      %v398 = vsel %vm342, %v389, 0.0
      %399 = vadd.xlane.f32.xlu0 %v398
      %v400 = vpop.xlane.xlu0 %399
      %v401 = vsel %vm342, %v390, 0.0
      %402 = vadd.xlane.f32.xlu0 %v401
      %v403 = vpop.xlane.xlu0 %402
      %v404 = vsel %vm342, %v391, 0.0
      %405 = vadd.xlane.f32.xlu0 %v404
      %v406 = vpop.xlane.xlu0 %405
      %v407 = vsel %vm342, %v392, 0.0
      %408 = vadd.xlane.f32.xlu0 %v407
      %v409 = vpop.xlane.xlu0 %408
      %v410 = vsel %vm342, %v393, 0.0
      %411 = vadd.xlane.f32.xlu0 %v410
      %v412 = vpop.xlane.xlu0 %411
      %v413 = vsel %vm342, %v394, 0.0
      %414 = vadd.xlane.f32.xlu0 %v413
      %v415 = vpop.xlane.xlu0 %414
      %v416 = vsel %vm342, %v395, 0.0
      %417 = vadd.xlane.f32.xlu0 %v416
      %v418 = vpop.xlane.xlu0 %417
      %v419 = vsel %vm342, %v396, 0.0
      %420 = vadd.xlane.f32.xlu0 %v419
      %v421 = vpop.xlane.xlu0 %420
      %v422 = vsel %vm342, %v397, 0.0
      %423 = vadd.xlane.f32.xlu0 %v422
      %v424 = vpop.xlane.xlu0 %423
      %v425 = vmul.f32 %v400, %v370
      %v426 = vmul.f32 %v403, %v370
      %v427 = vmul.f32 %v406, %v370
      %v428 = vmul.f32 %v409, %v370
      %v429 = vmul.f32 %v412, %v370
      %v430 = vmul.f32 %v415, %v370
      %v431 = vmul.f32 %v418, %v370
      %v432 = vmul.f32 %v421, %v370
      %v433 = vmul.f32 %v424, %v370
      %v434 = vadd.f32 %v425, 1e-05
      %v435 = vadd.f32 %v426, 1e-05
      %v436 = vadd.f32 %v427, 1e-05
      %v437 = vadd.f32 %v428, 1e-05
      %v438 = vadd.f32 %v429, 1e-05
      %v439 = vadd.f32 %v430, 1e-05
      %v440 = vadd.f32 %v431, 1e-05
      %v441 = vadd.f32 %v432, 1e-05
      %v442 = vadd.f32 %v433, 1e-05
      %v443 = vrsqrt.pop %v434
      %v444 = vrsqrt.pop %v435
      %v445 = vrsqrt.pop %v436
      %v446 = vrsqrt.pop %v437
      %v447 = vrsqrt.pop %v438
      %v448 = vrsqrt.pop %v439
      %v449 = vrsqrt.pop %v440
      %v450 = vrsqrt.pop %v441
      %v451 = vrsqrt.pop %v442
      %v452 = vmul.f32 %v380, %v443
      %v453 = vmul.f32 %v381, %v444
      %v454 = vmul.f32 %v382, %v445
      %v455 = vmul.f32 %v383, %v446
      %v456 = vmul.f32 %v384, %v447
      %v457 = vmul.f32 %v385, %v448
      %v458 = vmul.f32 %v386, %v449
      %v459 = vmul.f32 %v387, %v450
      %v460 = vmul.f32 %v388, %v451
      %v461 = vld [vmem:[%s1] sm:$0x1]
      %v463 = vlaneseq
      %v464 = vshrl.u32 %v463, 7
      %v465 = vsub.s32 0, %v464
      %v466 = vrot.slane %v461, %v465
      %v468 = vmul.f32 %v452, %v466
      %v469 = vmul.f32 %v453, %v466
      %v470 = vmul.f32 %v454, %v466
      %v471 = vmul.f32 %v455, %v466
      %v472 = vmul.f32 %v456, %v466
      %v473 = vmul.f32 %v457, %v466
      %v474 = vmul.f32 %v458, %v466
      %v475 = vmul.f32 %v459, %v466
      %v476 = vmul.f32 %v460, %v466
      %v477 = vld [vmem:[%s2] sm:$0x1]
      %v479 = vlaneseq
      %v480 = vshrl.u32 %v479, 7
      %v481 = vsub.s32 0, %v480
      %v482 = vrot.slane %v477, %v481
      %v484 = vadd.f32 %v468, %v482
      %v485 = vadd.f32 %v469, %v482
      %v486 = vadd.f32 %v470, %v482
      %v487 = vadd.f32 %v471, %v482
      %v488 = vadd.f32 %v472, %v482
      %v489 = vadd.f32 %v473, %v482
      %v490 = vadd.f32 %v474, %v482
      %v491 = vadd.f32 %v475, %v482
      %v492 = vadd.f32 %v476, %v482
      %v493 = vld [vmem:[%s3] sm:$0xff]
      %v494 = vld [vmem:[%s3 + $0x8] sm:$0xff]
      %v495 = vld [vmem:[%s3 + $0x10] sm:$0xff]
      %v496 = vld [vmem:[%s3 + $0x18] sm:$0xff]
      %v498 = vsel %vm342, %v484, 0
      %v501 = vsel %vm342, %v485, 0
      %v504 = vsel %vm342, %v486, 0
      %v507 = vsel %vm342, %v487, 0
      %v510 = vsel %vm342, %v488, 0
      %v513 = vsel %vm342, %v489, 0
      %v516 = vsel %vm342, %v490, 0
      %v519 = vsel %vm342, %v491, 0
      %v522 = vsel %vm342, %v492, 0
      %524 = vmatprep.subr.mxu0 0.0
      %525 = vmatpush1.msra.mxu0 %v493
      %526 = vmatprep.subr.mxu0 0.0
      %527 = vmatpush1.msra.mxu0 %v494
      %528 = vmatprep.subr.mxu0 0.0
      %529 = vmatpush1.msra.mxu0 %v495
      %530 = vmatprep.subr.mxu0 0.0
      %531 = vmatpush1.msra.mxu0 %v496
      %532 = vmatprep.subr.mxu0 0.0
      %533 = vmatpush1.msra.mxu0 0.0
      %534 = vmatprep.subr.mxu0 0.0
      %535 = vmatpush1.msra.mxu0 0.0
      %536 = vmatprep.subr.mxu0 0.0
      %537 = vmatpush1.msra.mxu0 0.0
      %538 = vmatprep.subr.mxu0 0.0
      %539 = vmatpush1.msra.mxu0 0.0
      %540 = vmatprep.subr.mxu0 0.0
      %541 = vmatpush1.msra.mxu0 0.0
      %542 = vmatprep.subr.mxu0 0.0
      %543 = vmatpush1.msra.mxu0 0.0
      %544 = vmatprep.subr.mxu0 0.0
      %545 = vmatpush1.msra.mxu0 0.0
      %546 = vmatprep.subr.mxu0 0.0
      %547 = vmatpush1.msra.mxu0 0.0
      %548 = vmatprep.subr.mxu0 0.0
      %549 = vmatpush1.msra.mxu0 0.0
      %550 = vmatprep.subr.mxu0 0.0
      %551 = vmatpush1.msra.mxu0 0.0
      %552 = vmatprep.subr.mxu0 0.0
      %553 = vmatpush1.msra.mxu0 0.0
      %554 = vmatprep.subr.mxu0 0.0
      %555 = vmatpush1.msra.mxu0 0.0
      %556 = vmatprep.subr.mxu0 0.0
      %557 = vmatpush1.msra.mxu0 0.0
      %558 = vmatprep.subr.mxu0 0.0
      %559 = vmatpush1.msra.mxu0 0.0
      %560 = vmatprep.subr.mxu0 0.0
      %561 = vmatpush1.msra.mxu0 0.0
      %562 = vmatprep.subr.mxu0 0.0
      %563 = vmatpush1.msra.mxu0 0.0
      %564 = vmatprep.subr.mxu0 0.0
      %565 = vmatpush1.msra.mxu0 0.0
      %566 = vmatprep.subr.mxu0 0.0
      %567 = vmatpush1.msra.mxu0 0.0
      %568 = vmatprep.subr.mxu0 0.0
      %569 = vmatpush1.msra.mxu0 0.0
      %570 = vmatprep.subr.mxu0 0.0
      %571 = vmatpush1.msra.mxu0 0.0
      %572 = vmatprep.subr.mxu0 0.0
      %573 = vmatpush1.msra.mxu0 0.0
      %574 = vmatprep.subr.mxu0 0.0
      %575 = vmatpush1.msra.mxu0 0.0
      %576 = vmatprep.subr.mxu0 0.0
      %577 = vmatpush1.msra.mxu0 0.0
      %578 = vmatprep.subr.mxu0 0.0
      %579 = vmatpush1.msra.mxu0 0.0
      %580 = vmatprep.subr.mxu0 0.0
      %581 = vmatpush1.msra.mxu0 0.0
      %582 = vmatprep.subr.mxu0 0.0
      %583 = vmatpush1.msra.mxu0 0.0
      %584 = vmatprep.subr.mxu0 0.0
      %585 = vmatpush1.msra.mxu0 0.0
      %586 = vmatprep.subr.mxu0 0.0
      %587 = vmatpush1.msra.mxu0 0.0
      %588 = vmatprep.mubr.f32.mxu0 0.0
      %589 = vmatmul.mubr.f32.gmra.mrb[0].mxu0 %v498
      %v590 = vpop.f32.mrb[0].mxu0
      %v591 = vadd.f32 0.0, %v590
      %v592 = vpop.f32.mrb[0].mxu0
      %593 = vmatprep.mubr.f32.mxu0 0.0
      %594 = vmatmul.mubr.f32.gmra.mrb[0].mxu0 %v501
      %v595 = vpop.f32.mrb[0].mxu0
      %v596 = vadd.f32 0.0, %v595
      %v597 = vpop.f32.mrb[0].mxu0
      %598 = vmatprep.mubr.f32.mxu0 0.0
      %599 = vmatmul.mubr.f32.gmra.mrb[0].mxu0 %v504
      %v600 = vpop.f32.mrb[0].mxu0
      %v601 = vadd.f32 0.0, %v600
      %v602 = vpop.f32.mrb[0].mxu0
      %603 = vmatprep.mubr.f32.mxu0 0.0
      %604 = vmatmul.mubr.f32.gmra.mrb[0].mxu0 %v507
      %v605 = vpop.f32.mrb[0].mxu0
      %v606 = vadd.f32 0.0, %v605
      %v607 = vpop.f32.mrb[0].mxu0
      %608 = vmatprep.mubr.f32.mxu0 0.0
      %609 = vmatmul.mubr.f32.gmra.mrb[0].mxu0 %v510
      %v610 = vpop.f32.mrb[0].mxu0
      %v611 = vadd.f32 0.0, %v610
      %v612 = vpop.f32.mrb[0].mxu0
      %613 = vmatprep.mubr.f32.mxu0 0.0
      %614 = vmatmul.mubr.f32.gmra.mrb[0].mxu0 %v513
      %v615 = vpop.f32.mrb[0].mxu0
      %v616 = vadd.f32 0.0, %v615
      %v617 = vpop.f32.mrb[0].mxu0
      %618 = vmatprep.mubr.f32.mxu0 0.0
      %619 = vmatmul.mubr.f32.gmra.mrb[0].mxu0 %v516
      %v620 = vpop.f32.mrb[0].mxu0
      %v621 = vadd.f32 0.0, %v620
      %v622 = vpop.f32.mrb[0].mxu0
      %623 = vmatprep.mubr.f32.mxu0 0.0
      %624 = vmatmul.mubr.f32.gmra.mrb[0].mxu0 %v519
      %v625 = vpop.f32.mrb[0].mxu0
      %v626 = vadd.f32 0.0, %v625
      %v627 = vpop.f32.mrb[0].mxu0
      %628 = vmatprep.mubr.f32.mxu0 0.0
      %629 = vmatmul.mubr.f32.gmra.mrb[0].mxu0 %v522
      %v630 = vpop.f32.mrb[0].mxu0
      %v631 = vadd.f32 0.0, %v630
      %v632 = vpop.f32.mrb[0].mxu0
      %633 = vdwg.mxu0
      %v634 = vlaneseq
      %v635 = vand.u32 %v634, 127
      %vm636 = vcmp.ge.s32.totalorder %v635, 0
      %vm637 = vcmp.lt.s32.totalorder %v635, 4
      %vm638 = vmand %vm636, %vm637
      %v639 = vsel %vm638, 1, 0
      %vm640 = vcmp.eq.s32.totalorder %v639, 1
      %v641 = vsel %vm640, %v591, 0.0
      %v642 = vsel %vm640, %v596, 0.0
      %v643 = vsel %vm640, %v601, 0.0
      %v644 = vsel %vm640, %v606, 0.0
      %v645 = vsel %vm640, %v611, 0.0
      %v646 = vsel %vm640, %v616, 0.0
      %v647 = vsel %vm640, %v621, 0.0
      %v648 = vsel %vm640, %v626, 0.0
      %v649 = vsel %vm640, %v631, 0.0
      %659 = vrot.lane.b32.xlu0 %v591, 96
      %v660 = vpop.permute.xlu0 %659
      %661 = vrot.lane.b32.xlu0 %v596, 96
      %v662 = vpop.permute.xlu0 %661
      %663 = vrot.lane.b32.xlu0 %v601, 96
      %v664 = vpop.permute.xlu0 %663
      %665 = vrot.lane.b32.xlu0 %v606, 96
      %v666 = vpop.permute.xlu0 %665
      %667 = vrot.lane.b32.xlu0 %v611, 96
      %v668 = vpop.permute.xlu0 %667
      %669 = vrot.lane.b32.xlu0 %v616, 96
      %v670 = vpop.permute.xlu0 %669
      %671 = vrot.lane.b32.xlu0 %v621, 96
      %v672 = vpop.permute.xlu0 %671
      %673 = vrot.lane.b32.xlu0 %v626, 96
      %v674 = vpop.permute.xlu0 %673
      %675 = vrot.lane.b32.xlu0 %v631, 96
      %v676 = vpop.permute.xlu0 %675
      %v686 = vsel %vm640, %v660, 0.0
      %v687 = vsel %vm640, %v662, 0.0
      %v688 = vsel %vm640, %v664, 0.0
      %v689 = vsel %vm640, %v666, 0.0
      %v690 = vsel %vm640, %v668, 0.0
      %v691 = vsel %vm640, %v670, 0.0
      %v692 = vsel %vm640, %v672, 0.0
      %v693 = vsel %vm640, %v674, 0.0
      %v694 = vsel %vm640, %v676, 0.0
      %695 = vrot.lane.b32.xlu0 %v591, 64
      %v696 = vpop.permute.xlu0 %695
      %697 = vrot.lane.b32.xlu0 %v596, 64
      %v698 = vpop.permute.xlu0 %697
      %699 = vrot.lane.b32.xlu0 %v601, 64
      %v700 = vpop.permute.xlu0 %699
      %701 = vrot.lane.b32.xlu0 %v606, 64
      %v702 = vpop.permute.xlu0 %701
      %703 = vrot.lane.b32.xlu0 %v611, 64
      %v704 = vpop.permute.xlu0 %703
      %705 = vrot.lane.b32.xlu0 %v616, 64
      %v706 = vpop.permute.xlu0 %705
      %707 = vrot.lane.b32.xlu0 %v621, 64
      %v708 = vpop.permute.xlu0 %707
      %709 = vrot.lane.b32.xlu0 %v626, 64
      %v710 = vpop.permute.xlu0 %709
      %711 = vrot.lane.b32.xlu0 %v631, 64
      %v712 = vpop.permute.xlu0 %711
      %v722 = vsel %vm640, %v696, 0.0
      %v723 = vsel %vm640, %v698, 0.0
      %v724 = vsel %vm640, %v700, 0.0
      %v725 = vsel %vm640, %v702, 0.0
      %v726 = vsel %vm640, %v704, 0.0
      %v727 = vsel %vm640, %v706, 0.0
      %v728 = vsel %vm640, %v708, 0.0
      %v729 = vsel %vm640, %v710, 0.0
      %v730 = vsel %vm640, %v712, 0.0
      %v732 = vsel %vm342, %v641, 0
      %v735 = vsel %vm342, %v642, 0
      %v738 = vsel %vm342, %v643, 0
      %v741 = vsel %vm342, %v644, 0
      %v744 = vsel %vm342, %v645, 0
      %v747 = vsel %vm342, %v646, 0
      %v750 = vsel %vm342, %v647, 0
      %v753 = vsel %vm342, %v648, 0
      %v756 = vsel %vm342, %v649, 0
      %v759 = vsel %vm342, %v686, 0
      %v762 = vsel %vm342, %v687, 0
      %v765 = vsel %vm342, %v688, 0
      %v768 = vsel %vm342, %v689, 0
      %v771 = vsel %vm342, %v690, 0
      %v774 = vsel %vm342, %v691, 0
      %v777 = vsel %vm342, %v692, 0
      %v780 = vsel %vm342, %v693, 0
      %v783 = vsel %vm342, %v694, 0
      %785 = vmatprep.subr.mxu0 0.0
      %786 = vmatpush1.xpose.msra.mxu0 %v759
      %787 = vmatprep.subr.mxu0 0.0
      %788 = vmatpush1.xpose.msra.mxu0 %v762
      %789 = vmatprep.subr.mxu0 0.0
      %790 = vmatpush1.xpose.msra.mxu0 %v765
      %791 = vmatprep.subr.mxu0 0.0
      %792 = vmatpush1.xpose.msra.mxu0 %v768
      %793 = vmatprep.subr.mxu0 0.0
      %794 = vmatpush1.xpose.msra.mxu0 %v771
      %795 = vmatprep.subr.mxu0 0.0
      %796 = vmatpush1.xpose.msra.mxu0 %v774
      %797 = vmatprep.subr.mxu0 0.0
      %798 = vmatpush1.xpose.msra.mxu0 %v777
      %799 = vmatprep.subr.mxu0 0.0
      %800 = vmatpush1.xpose.msra.mxu0 %v780
      %801 = vmatprep.subr.mxu0 0.0
      %802 = vmatpush1.xpose.msra.mxu0 %v783
      %803 = vmatprep.subr.mxu0 0.0
      %804 = vmatpush1.xpose.msra.mxu0 0.0
      %805 = vmatprep.subr.mxu0 0.0
      %806 = vmatpush1.xpose.msra.mxu0 0.0
      %807 = vmatprep.subr.mxu0 0.0
      %808 = vmatpush1.xpose.msra.mxu0 0.0
      %809 = vmatprep.subr.mxu0 0.0
      %810 = vmatpush1.xpose.msra.mxu0 0.0
      %811 = vmatprep.subr.mxu0 0.0
      %812 = vmatpush1.xpose.msra.mxu0 0.0
      %813 = vmatprep.subr.mxu0 0.0
      %814 = vmatpush1.xpose.msra.mxu0 0.0
      %815 = vmatprep.subr.mxu0 0.0
      %816 = vmatpush1.xpose.msra.mxu0 0.0
      %817 = vmatprep.subr.mxu0 0.0
      %818 = vmatpush1.xpose.msra.mxu0 0.0
      %819 = vmatprep.subr.mxu0 0.0
      %820 = vmatpush1.xpose.msra.mxu0 0.0
      %821 = vmatprep.subr.mxu0 0.0
      %822 = vmatpush1.xpose.msra.mxu0 0.0
      %823 = vmatprep.subr.mxu0 0.0
      %824 = vmatpush1.xpose.msra.mxu0 0.0
      %825 = vmatprep.subr.mxu0 0.0
      %826 = vmatpush1.xpose.msra.mxu0 0.0
      %827 = vmatprep.subr.mxu0 0.0
      %828 = vmatpush1.xpose.msra.mxu0 0.0
      %829 = vmatprep.subr.mxu0 0.0
      %830 = vmatpush1.xpose.msra.mxu0 0.0
      %831 = vmatprep.subr.mxu0 0.0
      %832 = vmatpush1.xpose.msra.mxu0 0.0
      %833 = vmatprep.subr.mxu0 0.0
      %834 = vmatpush1.xpose.msra.mxu0 0.0
      %835 = vmatprep.subr.mxu0 0.0
      %836 = vmatpush1.xpose.msra.mxu0 0.0
      %837 = vmatprep.subr.mxu0 0.0
      %838 = vmatpush1.xpose.msra.mxu0 0.0
      %839 = vmatprep.subr.mxu0 0.0
      %840 = vmatpush1.xpose.msra.mxu0 0.0
      %841 = vmatprep.subr.mxu0 0.0
      %842 = vmatpush1.xpose.msra.mxu0 0.0
      %843 = vmatprep.subr.mxu0 0.0
      %844 = vmatpush1.xpose.msra.mxu0 0.0
      %845 = vmatprep.subr.mxu0 0.0
      %846 = vmatpush1.xpose.msra.mxu0 0.0
      %847 = vmatprep.subr.mxu0 0.0
      %848 = vmatpush1.xpose.msra.mxu0 0.0
      %849 = vmatprep.mubr.f32.mxu0 0.0
      %850 = vmatmul.mubr.f32.gmra.mrb[0].mxu0 %v732
      %v851 = vpop.f32.mrb[0].mxu0
      %v852 = vadd.f32 0.0, %v851
      %v853 = vpop.f32.mrb[0].mxu0
      %854 = vmatprep.mubr.f32.mxu0 0.0
      %855 = vmatmul.mubr.f32.gmra.mrb[0].mxu0 %v735
      %v856 = vpop.f32.mrb[0].mxu0
      %v857 = vadd.f32 0.0, %v856
      %v858 = vpop.f32.mrb[0].mxu0
      %859 = vmatprep.mubr.f32.mxu0 0.0
      %860 = vmatmul.mubr.f32.gmra.mrb[0].mxu0 %v738
      %v861 = vpop.f32.mrb[0].mxu0
      %v862 = vadd.f32 0.0, %v861
      %v863 = vpop.f32.mrb[0].mxu0
      %864 = vmatprep.mubr.f32.mxu0 0.0
      %865 = vmatmul.mubr.f32.gmra.mrb[0].mxu0 %v741
      %v866 = vpop.f32.mrb[0].mxu0
      %v867 = vadd.f32 0.0, %v866
      %v868 = vpop.f32.mrb[0].mxu0
      %869 = vmatprep.mubr.f32.mxu0 0.0
      %870 = vmatmul.mubr.f32.gmra.mrb[0].mxu0 %v744
      %v871 = vpop.f32.mrb[0].mxu0
      %v872 = vadd.f32 0.0, %v871
      %v873 = vpop.f32.mrb[0].mxu0
      %874 = vmatprep.mubr.f32.mxu0 0.0
      %875 = vmatmul.mubr.f32.gmra.mrb[0].mxu0 %v747
      %v876 = vpop.f32.mrb[0].mxu0
      %v877 = vadd.f32 0.0, %v876
      %v878 = vpop.f32.mrb[0].mxu0
      %879 = vmatprep.mubr.f32.mxu0 0.0
      %880 = vmatmul.mubr.f32.gmra.mrb[0].mxu0 %v750
      %v881 = vpop.f32.mrb[0].mxu0
      %v882 = vadd.f32 0.0, %v881
      %v883 = vpop.f32.mrb[0].mxu0
      %884 = vmatprep.mubr.f32.mxu0 0.0
      %885 = vmatmul.mubr.f32.gmra.mrb[0].mxu0 %v753
      %v886 = vpop.f32.mrb[0].mxu0
      %v887 = vadd.f32 0.0, %v886
      %v888 = vpop.f32.mrb[0].mxu0
      %889 = vmatprep.mubr.f32.mxu0 0.0
      %890 = vmatmul.mubr.f32.gmra.mrb[0].mxu0 %v756
      %v891 = vpop.f32.mrb[0].mxu0
      %v892 = vadd.f32 0.0, %v891
      %v893 = vpop.f32.mrb[0].mxu0
      %894 = vdwg.mxu0
      %v895 = vmul.f32 %v852, 0.5
      %v896 = vmul.f32 %v857, 0.5
      %v897 = vmul.f32 %v862, 0.5
      %v898 = vmul.f32 %v867, 0.5
      %v899 = vmul.f32 %v872, 0.5
      %v900 = vmul.f32 %v877, 0.5
      %v901 = vmul.f32 %v882, 0.5
      %v902 = vmul.f32 %v887, 0.5
      %v903 = vmul.f32 %v892, 0.5
      %vm904 = vcmask 588800
      %v905 = vsel %vm904, %v895, -inf
      %906 = vmax.xlane.f32.xlu0 %v905
      %v907 = vpop.xlane.xlu0 %906
      %v908 = vsel %vm904, %v896, -inf
      %909 = vmax.xlane.f32.xlu0 %v908
      %v910 = vpop.xlane.xlu0 %909
      %v911 = vsel %vm904, %v897, -inf
      %912 = vmax.xlane.f32.xlu0 %v911
      %v913 = vpop.xlane.xlu0 %912
      %v914 = vsel %vm904, %v898, -inf
      %915 = vmax.xlane.f32.xlu0 %v914
      %v916 = vpop.xlane.xlu0 %915
      %v917 = vsel %vm904, %v899, -inf
      %918 = vmax.xlane.f32.xlu0 %v917
      %v919 = vpop.xlane.xlu0 %918
      %v920 = vsel %vm904, %v900, -inf
      %921 = vmax.xlane.f32.xlu0 %v920
      %v922 = vpop.xlane.xlu0 %921
      %v923 = vsel %vm904, %v901, -inf
      %924 = vmax.xlane.f32.xlu0 %v923
      %v925 = vpop.xlane.xlu0 %924
      %v926 = vsel %vm904, %v902, -inf
      %927 = vmax.xlane.f32.xlu0 %v926
      %v928 = vpop.xlane.xlu0 %927
      %v929 = vsel %vm904, %v903, -inf
      %930 = vmax.xlane.f32.xlu0 %v929
      %v931 = vpop.xlane.xlu0 %930
      %v932 = vsub.f32 %v895, %v907
      %v933 = vsub.f32 %v896, %v910
      %v934 = vsub.f32 %v897, %v913
      %v935 = vsub.f32 %v898, %v916
      %v936 = vsub.f32 %v899, %v919
      %v937 = vsub.f32 %v900, %v922
      %v938 = vsub.f32 %v901, %v925
      %v939 = vsub.f32 %v902, %v928
      %v940 = vsub.f32 %v903, %v931
      %v941 = vmul.f32 %v932, 1.442695
      %v942 = vpow.pop %v941
      %v943 = vmul.f32 %v933, 1.442695
      %v944 = vpow.pop %v943
      %v945 = vmul.f32 %v934, 1.442695
      %v946 = vpow.pop %v945
      %v947 = vmul.f32 %v935, 1.442695
      %v948 = vpow.pop %v947
      %v949 = vmul.f32 %v936, 1.442695
      %v950 = vpow.pop %v949
      %v951 = vmul.f32 %v937, 1.442695
      %v952 = vpow.pop %v951
      %v953 = vmul.f32 %v938, 1.442695
      %v954 = vpow.pop %v953
      %v955 = vmul.f32 %v939, 1.442695
      %v956 = vpow.pop %v955
      %v957 = vmul.f32 %v940, 1.442695
      %v958 = vpow.pop %v957
      %v959 = vsel %vm904, %v942, 0.0
      %960 = vadd.xlane.f32.xlu0 %v959
      %v961 = vpop.xlane.xlu0 %960
      %v962 = vsel %vm904, %v944, 0.0
      %963 = vadd.xlane.f32.xlu0 %v962
      %v964 = vpop.xlane.xlu0 %963
      %v965 = vsel %vm904, %v946, 0.0
      %966 = vadd.xlane.f32.xlu0 %v965
      %v967 = vpop.xlane.xlu0 %966
      %v968 = vsel %vm904, %v948, 0.0
      %969 = vadd.xlane.f32.xlu0 %v968
      %v970 = vpop.xlane.xlu0 %969
      %v971 = vsel %vm904, %v950, 0.0
      %972 = vadd.xlane.f32.xlu0 %v971
      %v973 = vpop.xlane.xlu0 %972
      %v974 = vsel %vm904, %v952, 0.0
      %975 = vadd.xlane.f32.xlu0 %v974
      %v976 = vpop.xlane.xlu0 %975
      %v977 = vsel %vm904, %v954, 0.0
      %978 = vadd.xlane.f32.xlu0 %v977
      %v979 = vpop.xlane.xlu0 %978
      %v980 = vsel %vm904, %v956, 0.0
      %981 = vadd.xlane.f32.xlu0 %v980
      %v982 = vpop.xlane.xlu0 %981
      %v983 = vsel %vm904, %v958, 0.0
      %984 = vadd.xlane.f32.xlu0 %v983
      %v985 = vpop.xlane.xlu0 %984
      %v986 = vrcp.pop %v961
      %v987 = vrcp.pop %v964
      %v988 = vrcp.pop %v967
      %v989 = vrcp.pop %v970
      %v990 = vrcp.pop %v973
      %v991 = vrcp.pop %v976
      %v992 = vrcp.pop %v979
      %v993 = vrcp.pop %v982
      %v994 = vrcp.pop %v985
      %v995 = vmul.f32 %v942, %v986
      %v996 = vmul.f32 %v944, %v987
      %v997 = vmul.f32 %v946, %v988
      %v998 = vmul.f32 %v948, %v989
      %v999 = vmul.f32 %v950, %v990
      %v1000 = vmul.f32 %v952, %v991
      %v1001 = vmul.f32 %v954, %v992
      %v1002 = vmul.f32 %v956, %v993
      %v1003 = vmul.f32 %v958, %v994
      %vm1004 = vcmp.ge.s32.totalorder %v635, 4
      %vm1005 = vcmp.lt.s32.totalorder %v635, 8
      %vm1006 = vmand %vm1004, %vm1005
      %v1007 = vsel %vm1006, 1, 0
      %vm1008 = vcmp.eq.s32.totalorder %v1007, 1
      %v1009 = vsel %vm1008, %v591, 0.0
      %v1010 = vsel %vm1008, %v596, 0.0
      %v1011 = vsel %vm1008, %v601, 0.0
      %v1012 = vsel %vm1008, %v606, 0.0
      %v1013 = vsel %vm1008, %v611, 0.0
      %v1014 = vsel %vm1008, %v616, 0.0
      %v1015 = vsel %vm1008, %v621, 0.0
      %v1016 = vsel %vm1008, %v626, 0.0
      %v1017 = vsel %vm1008, %v631, 0.0
      %v1018 = vsel %vm1008, %v660, 0.0
      %v1019 = vsel %vm1008, %v662, 0.0
      %v1020 = vsel %vm1008, %v664, 0.0
      %v1021 = vsel %vm1008, %v666, 0.0
      %v1022 = vsel %vm1008, %v668, 0.0
      %v1023 = vsel %vm1008, %v670, 0.0
      %v1024 = vsel %vm1008, %v672, 0.0
      %v1025 = vsel %vm1008, %v674, 0.0
      %v1026 = vsel %vm1008, %v676, 0.0
      %v1027 = vsel %vm1008, %v696, 0.0
      %v1028 = vsel %vm1008, %v698, 0.0
      %v1029 = vsel %vm1008, %v700, 0.0
      %v1030 = vsel %vm1008, %v702, 0.0
      %v1031 = vsel %vm1008, %v704, 0.0
      %v1032 = vsel %vm1008, %v706, 0.0
      %v1033 = vsel %vm1008, %v708, 0.0
      %v1034 = vsel %vm1008, %v710, 0.0
      %v1035 = vsel %vm1008, %v712, 0.0
      %v1037 = vsel %vm342, %v1009, 0
      %v1040 = vsel %vm342, %v1010, 0
      %v1043 = vsel %vm342, %v1011, 0
      %v1046 = vsel %vm342, %v1012, 0
      %v1049 = vsel %vm342, %v1013, 0
      %v1052 = vsel %vm342, %v1014, 0
      %v1055 = vsel %vm342, %v1015, 0
      %v1058 = vsel %vm342, %v1016, 0
      %v1061 = vsel %vm342, %v1017, 0
      %v1064 = vsel %vm342, %v1018, 0
      %v1067 = vsel %vm342, %v1019, 0
      %v1070 = vsel %vm342, %v1020, 0
      %v1073 = vsel %vm342, %v1021, 0
      %v1076 = vsel %vm342, %v1022, 0
      %v1079 = vsel %vm342, %v1023, 0
      %v1082 = vsel %vm342, %v1024, 0
      %v1085 = vsel %vm342, %v1025, 0
      %v1088 = vsel %vm342, %v1026, 0
      %1090 = vmatprep.subr.mxu0 0.0
      %1091 = vmatpush1.xpose.msra.mxu0 %v1064
      %1092 = vmatprep.subr.mxu0 0.0
      %1093 = vmatpush1.xpose.msra.mxu0 %v1067
      %1094 = vmatprep.subr.mxu0 0.0
      %1095 = vmatpush1.xpose.msra.mxu0 %v1070
      %1096 = vmatprep.subr.mxu0 0.0
      %1097 = vmatpush1.xpose.msra.mxu0 %v1073
      %1098 = vmatprep.subr.mxu0 0.0
      %1099 = vmatpush1.xpose.msra.mxu0 %v1076
      %1100 = vmatprep.subr.mxu0 0.0
      %1101 = vmatpush1.xpose.msra.mxu0 %v1079
      %1102 = vmatprep.subr.mxu0 0.0
      %1103 = vmatpush1.xpose.msra.mxu0 %v1082
      %1104 = vmatprep.subr.mxu0 0.0
      %1105 = vmatpush1.xpose.msra.mxu0 %v1085
      %1106 = vmatprep.subr.mxu0 0.0
      %1107 = vmatpush1.xpose.msra.mxu0 %v1088
      %1108 = vmatprep.subr.mxu0 0.0
      %1109 = vmatpush1.xpose.msra.mxu0 0.0
      %1110 = vmatprep.subr.mxu0 0.0
      %1111 = vmatpush1.xpose.msra.mxu0 0.0
      %1112 = vmatprep.subr.mxu0 0.0
      %1113 = vmatpush1.xpose.msra.mxu0 0.0
      %1114 = vmatprep.subr.mxu0 0.0
      %1115 = vmatpush1.xpose.msra.mxu0 0.0
      %1116 = vmatprep.subr.mxu0 0.0
      %1117 = vmatpush1.xpose.msra.mxu0 0.0
      %1118 = vmatprep.subr.mxu0 0.0
      %1119 = vmatpush1.xpose.msra.mxu0 0.0
      %1120 = vmatprep.subr.mxu0 0.0
      %1121 = vmatpush1.xpose.msra.mxu0 0.0
      %1122 = vmatprep.subr.mxu0 0.0
      %1123 = vmatpush1.xpose.msra.mxu0 0.0
      %1124 = vmatprep.subr.mxu0 0.0
      %1125 = vmatpush1.xpose.msra.mxu0 0.0
      %1126 = vmatprep.subr.mxu0 0.0
      %1127 = vmatpush1.xpose.msra.mxu0 0.0
      %1128 = vmatprep.subr.mxu0 0.0
      %1129 = vmatpush1.xpose.msra.mxu0 0.0
      %1130 = vmatprep.subr.mxu0 0.0
      %1131 = vmatpush1.xpose.msra.mxu0 0.0
      %1132 = vmatprep.subr.mxu0 0.0
      %1133 = vmatpush1.xpose.msra.mxu0 0.0
      %1134 = vmatprep.subr.mxu0 0.0
      %1135 = vmatpush1.xpose.msra.mxu0 0.0
      %1136 = vmatprep.subr.mxu0 0.0
      %1137 = vmatpush1.xpose.msra.mxu0 0.0
      %1138 = vmatprep.subr.mxu0 0.0
      %1139 = vmatpush1.xpose.msra.mxu0 0.0
      %1140 = vmatprep.subr.mxu0 0.0
      %1141 = vmatpush1.xpose.msra.mxu0 0.0
      %1142 = vmatprep.subr.mxu0 0.0
      %1143 = vmatpush1.xpose.msra.mxu0 0.0
      %1144 = vmatprep.subr.mxu0 0.0
      %1145 = vmatpush1.xpose.msra.mxu0 0.0
      %1146 = vmatprep.subr.mxu0 0.0
      %1147 = vmatpush1.xpose.msra.mxu0 0.0
      %1148 = vmatprep.subr.mxu0 0.0
      %1149 = vmatpush1.xpose.msra.mxu0 0.0
      %1150 = vmatprep.subr.mxu0 0.0
      %1151 = vmatpush1.xpose.msra.mxu0 0.0
      %1152 = vmatprep.subr.mxu0 0.0
      %1153 = vmatpush1.xpose.msra.mxu0 0.0
      %1154 = vmatprep.mubr.f32.mxu0 0.0
      %1155 = vmatmul.mubr.f32.gmra.mrb[0].mxu0 %v1037
      %v1156 = vpop.f32.mrb[0].mxu0
      %v1157 = vadd.f32 0.0, %v1156
      %v1158 = vpop.f32.mrb[0].mxu0
      %1159 = vmatprep.mubr.f32.mxu0 0.0
      %1160 = vmatmul.mubr.f32.gmra.mrb[0].mxu0 %v1040
      %v1161 = vpop.f32.mrb[0].mxu0
      %v1162 = vadd.f32 0.0, %v1161
      %v1163 = vpop.f32.mrb[0].mxu0
      %1164 = vmatprep.mubr.f32.mxu0 0.0
      %1165 = vmatmul.mubr.f32.gmra.mrb[0].mxu0 %v1043
      %v1166 = vpop.f32.mrb[0].mxu0
      %v1167 = vadd.f32 0.0, %v1166
      %v1168 = vpop.f32.mrb[0].mxu0
      %1169 = vmatprep.mubr.f32.mxu0 0.0
      %1170 = vmatmul.mubr.f32.gmra.mrb[0].mxu0 %v1046
      %v1171 = vpop.f32.mrb[0].mxu0
      %v1172 = vadd.f32 0.0, %v1171
      %v1173 = vpop.f32.mrb[0].mxu0
      %1174 = vmatprep.mubr.f32.mxu0 0.0
      %1175 = vmatmul.mubr.f32.gmra.mrb[0].mxu0 %v1049
      %v1176 = vpop.f32.mrb[0].mxu0
      %v1177 = vadd.f32 0.0, %v1176
      %v1178 = vpop.f32.mrb[0].mxu0
      %1179 = vmatprep.mubr.f32.mxu0 0.0
      %1180 = vmatmul.mubr.f32.gmra.mrb[0].mxu0 %v1052
      %v1181 = vpop.f32.mrb[0].mxu0
      %v1182 = vadd.f32 0.0, %v1181
      %v1183 = vpop.f32.mrb[0].mxu0
      %1184 = vmatprep.mubr.f32.mxu0 0.0
      %1185 = vmatmul.mubr.f32.gmra.mrb[0].mxu0 %v1055
      %v1186 = vpop.f32.mrb[0].mxu0
      %v1187 = vadd.f32 0.0, %v1186
      %v1188 = vpop.f32.mrb[0].mxu0
      %1189 = vmatprep.mubr.f32.mxu0 0.0
      %1190 = vmatmul.mubr.f32.gmra.mrb[0].mxu0 %v1058
      %v1191 = vpop.f32.mrb[0].mxu0
      %v1192 = vadd.f32 0.0, %v1191
      %v1193 = vpop.f32.mrb[0].mxu0
      %1194 = vmatprep.mubr.f32.mxu0 0.0
      %1195 = vmatmul.mubr.f32.gmra.mrb[0].mxu0 %v1061
      %v1196 = vpop.f32.mrb[0].mxu0
      %v1197 = vadd.f32 0.0, %v1196
      %v1198 = vpop.f32.mrb[0].mxu0
      %1199 = vdwg.mxu0
      %v1200 = vmul.f32 %v1157, 0.5
      %v1201 = vmul.f32 %v1162, 0.5
      %v1202 = vmul.f32 %v1167, 0.5
      %v1203 = vmul.f32 %v1172, 0.5
      %v1204 = vmul.f32 %v1177, 0.5
      %v1205 = vmul.f32 %v1182, 0.5
      %v1206 = vmul.f32 %v1187, 0.5
      %v1207 = vmul.f32 %v1192, 0.5
      %v1208 = vmul.f32 %v1197, 0.5
      %v1209 = vsel %vm904, %v1200, -inf
      %1210 = vmax.xlane.f32.xlu0 %v1209
      %v1211 = vpop.xlane.xlu0 %1210
      %v1212 = vsel %vm904, %v1201, -inf
      %1213 = vmax.xlane.f32.xlu0 %v1212
      %v1214 = vpop.xlane.xlu0 %1213
      %v1215 = vsel %vm904, %v1202, -inf
      %1216 = vmax.xlane.f32.xlu0 %v1215
      %v1217 = vpop.xlane.xlu0 %1216
      %v1218 = vsel %vm904, %v1203, -inf
      %1219 = vmax.xlane.f32.xlu0 %v1218
      %v1220 = vpop.xlane.xlu0 %1219
      %v1221 = vsel %vm904, %v1204, -inf
      %1222 = vmax.xlane.f32.xlu0 %v1221
      %v1223 = vpop.xlane.xlu0 %1222
      %v1224 = vsel %vm904, %v1205, -inf
      %1225 = vmax.xlane.f32.xlu0 %v1224
      %v1226 = vpop.xlane.xlu0 %1225
      %v1227 = vsel %vm904, %v1206, -inf
      %1228 = vmax.xlane.f32.xlu0 %v1227
      %v1229 = vpop.xlane.xlu0 %1228
      %v1230 = vsel %vm904, %v1207, -inf
      %1231 = vmax.xlane.f32.xlu0 %v1230
      %v1232 = vpop.xlane.xlu0 %1231
      %v1233 = vsel %vm904, %v1208, -inf
      %1234 = vmax.xlane.f32.xlu0 %v1233
      %v1235 = vpop.xlane.xlu0 %1234
      %v1236 = vsub.f32 %v1200, %v1211
      %v1237 = vsub.f32 %v1201, %v1214
      %v1238 = vsub.f32 %v1202, %v1217
      %v1239 = vsub.f32 %v1203, %v1220
      %v1240 = vsub.f32 %v1204, %v1223
      %v1241 = vsub.f32 %v1205, %v1226
      %v1242 = vsub.f32 %v1206, %v1229
      %v1243 = vsub.f32 %v1207, %v1232
      %v1244 = vsub.f32 %v1208, %v1235
      %v1245 = vmul.f32 %v1236, 1.442695
      %v1246 = vpow.pop %v1245
      %v1247 = vmul.f32 %v1237, 1.442695
      %v1248 = vpow.pop %v1247
      %v1249 = vmul.f32 %v1238, 1.442695
      %v1250 = vpow.pop %v1249
      %v1251 = vmul.f32 %v1239, 1.442695
      %v1252 = vpow.pop %v1251
      %v1253 = vmul.f32 %v1240, 1.442695
      %v1254 = vpow.pop %v1253
      %v1255 = vmul.f32 %v1241, 1.442695
      %v1256 = vpow.pop %v1255
      %v1257 = vmul.f32 %v1242, 1.442695
      %v1258 = vpow.pop %v1257
      %v1259 = vmul.f32 %v1243, 1.442695
      %v1260 = vpow.pop %v1259
      %v1261 = vmul.f32 %v1244, 1.442695
      %v1262 = vpow.pop %v1261
      %v1263 = vsel %vm904, %v1246, 0.0
      %1264 = vadd.xlane.f32.xlu0 %v1263
      %v1265 = vpop.xlane.xlu0 %1264
      %v1266 = vsel %vm904, %v1248, 0.0
      %1267 = vadd.xlane.f32.xlu0 %v1266
      %v1268 = vpop.xlane.xlu0 %1267
      %v1269 = vsel %vm904, %v1250, 0.0
      %1270 = vadd.xlane.f32.xlu0 %v1269
      %v1271 = vpop.xlane.xlu0 %1270
      %v1272 = vsel %vm904, %v1252, 0.0
      %1273 = vadd.xlane.f32.xlu0 %v1272
      %v1274 = vpop.xlane.xlu0 %1273
      %v1275 = vsel %vm904, %v1254, 0.0
      %1276 = vadd.xlane.f32.xlu0 %v1275
      %v1277 = vpop.xlane.xlu0 %1276
      %v1278 = vsel %vm904, %v1256, 0.0
      %1279 = vadd.xlane.f32.xlu0 %v1278
      %v1280 = vpop.xlane.xlu0 %1279
      %v1281 = vsel %vm904, %v1258, 0.0
      %1282 = vadd.xlane.f32.xlu0 %v1281
      %v1283 = vpop.xlane.xlu0 %1282
      %v1284 = vsel %vm904, %v1260, 0.0
      %1285 = vadd.xlane.f32.xlu0 %v1284
      %v1286 = vpop.xlane.xlu0 %1285
      %v1287 = vsel %vm904, %v1262, 0.0
      %1288 = vadd.xlane.f32.xlu0 %v1287
      %v1289 = vpop.xlane.xlu0 %1288
      %v1290 = vrcp.pop %v1265
      %v1291 = vrcp.pop %v1268
      %v1292 = vrcp.pop %v1271
      %v1293 = vrcp.pop %v1274
      %v1294 = vrcp.pop %v1277
      %v1295 = vrcp.pop %v1280
      %v1296 = vrcp.pop %v1283
      %v1297 = vrcp.pop %v1286
      %v1298 = vrcp.pop %v1289
      %v1299 = vmul.f32 %v1246, %v1290
      %v1300 = vmul.f32 %v1248, %v1291
      %v1301 = vmul.f32 %v1250, %v1292
      %v1302 = vmul.f32 %v1252, %v1293
      %v1303 = vmul.f32 %v1254, %v1294
      %v1304 = vmul.f32 %v1256, %v1295
      %v1305 = vmul.f32 %v1258, %v1296
      %v1306 = vmul.f32 %v1260, %v1297
      %v1307 = vmul.f32 %v1262, %v1298
      %v1309 = vsel %vm904, %v1299, 0
      %v1312 = vsel %vm904, %v1300, 0
      %v1315 = vsel %vm904, %v1301, 0
      %v1318 = vsel %vm904, %v1302, 0
      %v1321 = vsel %vm904, %v1303, 0
      %v1324 = vsel %vm904, %v1304, 0
      %v1327 = vsel %vm904, %v1305, 0
      %v1330 = vsel %vm904, %v1306, 0
      %v1333 = vsel %vm904, %v1307, 0
      %1335 = vmatprep.subr.mxu0 0.0
      %1336 = vmatpush1.msra.mxu0 %v1027
      %1337 = vmatprep.subr.mxu0 0.0
      %1338 = vmatpush1.msra.mxu0 %v1028
      %1339 = vmatprep.subr.mxu0 0.0
      %1340 = vmatpush1.msra.mxu0 %v1029
      %1341 = vmatprep.subr.mxu0 0.0
      %1342 = vmatpush1.msra.mxu0 %v1030
      %1343 = vmatprep.subr.mxu0 0.0
      %1344 = vmatpush1.msra.mxu0 %v1031
      %1345 = vmatprep.subr.mxu0 0.0
      %1346 = vmatpush1.msra.mxu0 %v1032
      %1347 = vmatprep.subr.mxu0 0.0
      %1348 = vmatpush1.msra.mxu0 %v1033
      %1349 = vmatprep.subr.mxu0 0.0
      %1350 = vmatpush1.msra.mxu0 %v1034
      %1351 = vmatprep.subr.mxu0 0.0
      %1352 = vmatpush1.msra.mxu0 %v1035
      %1353 = vmatprep.subr.mxu0 0.0
      %1354 = vmatpush1.msra.mxu0 0.0
      %1355 = vmatprep.subr.mxu0 0.0
      %1356 = vmatpush1.msra.mxu0 0.0
      %1357 = vmatprep.subr.mxu0 0.0
      %1358 = vmatpush1.msra.mxu0 0.0
      %1359 = vmatprep.subr.mxu0 0.0
      %1360 = vmatpush1.msra.mxu0 0.0
      %1361 = vmatprep.subr.mxu0 0.0
      %1362 = vmatpush1.msra.mxu0 0.0
      %1363 = vmatprep.subr.mxu0 0.0
      %1364 = vmatpush1.msra.mxu0 0.0
      %1365 = vmatprep.subr.mxu0 0.0
      %1366 = vmatpush1.msra.mxu0 0.0
      %1367 = vmatprep.subr.mxu0 0.0
      %1368 = vmatpush1.msra.mxu0 0.0
      %1369 = vmatprep.subr.mxu0 0.0
      %1370 = vmatpush1.msra.mxu0 0.0
      %1371 = vmatprep.subr.mxu0 0.0
      %1372 = vmatpush1.msra.mxu0 0.0
      %1373 = vmatprep.subr.mxu0 0.0
      %1374 = vmatpush1.msra.mxu0 0.0
      %1375 = vmatprep.subr.mxu0 0.0
      %1376 = vmatpush1.msra.mxu0 0.0
      %1377 = vmatprep.subr.mxu0 0.0
      %1378 = vmatpush1.msra.mxu0 0.0
      %1379 = vmatprep.subr.mxu0 0.0
      %1380 = vmatpush1.msra.mxu0 0.0
      %1381 = vmatprep.subr.mxu0 0.0
      %1382 = vmatpush1.msra.mxu0 0.0
      %1383 = vmatprep.subr.mxu0 0.0
      %1384 = vmatpush1.msra.mxu0 0.0
      %1385 = vmatprep.subr.mxu0 0.0
      %1386 = vmatpush1.msra.mxu0 0.0
      %1387 = vmatprep.subr.mxu0 0.0
      %1388 = vmatpush1.msra.mxu0 0.0
      %1389 = vmatprep.subr.mxu0 0.0
      %1390 = vmatpush1.msra.mxu0 0.0
      %1391 = vmatprep.subr.mxu0 0.0
      %1392 = vmatpush1.msra.mxu0 0.0
      %1393 = vmatprep.subr.mxu0 0.0
      %1394 = vmatpush1.msra.mxu0 0.0
      %1395 = vmatprep.subr.mxu0 0.0
      %1396 = vmatpush1.msra.mxu0 0.0
      %1397 = vmatprep.subr.mxu0 0.0
      %1398 = vmatpush1.msra.mxu0 0.0
      %1399 = vmatprep.mubr.f32.mxu0 0.0
      %1400 = vmatmul.mubr.f32.gmra.mrb[0].mxu0 %v1309
      %v1401 = vpop.f32.mrb[0].mxu0
      %v1402 = vadd.f32 0.0, %v1401
      %v1403 = vpop.f32.mrb[0].mxu0
      %1404 = vmatprep.mubr.f32.mxu0 0.0
      %1405 = vmatmul.mubr.f32.gmra.mrb[0].mxu0 %v1312
      %v1406 = vpop.f32.mrb[0].mxu0
      %v1407 = vadd.f32 0.0, %v1406
      %v1408 = vpop.f32.mrb[0].mxu0
      %1409 = vmatprep.mubr.f32.mxu0 0.0
      %1410 = vmatmul.mubr.f32.gmra.mrb[0].mxu0 %v1315
      %v1411 = vpop.f32.mrb[0].mxu0
      %v1412 = vadd.f32 0.0, %v1411
      %v1413 = vpop.f32.mrb[0].mxu0
      %1414 = vmatprep.mubr.f32.mxu0 0.0
      %1415 = vmatmul.mubr.f32.gmra.mrb[0].mxu0 %v1318
      %v1416 = vpop.f32.mrb[0].mxu0
      %v1417 = vadd.f32 0.0, %v1416
      %v1418 = vpop.f32.mrb[0].mxu0
      %1419 = vmatprep.mubr.f32.mxu0 0.0
      %1420 = vmatmul.mubr.f32.gmra.mrb[0].mxu0 %v1321
      %v1421 = vpop.f32.mrb[0].mxu0
      %v1422 = vadd.f32 0.0, %v1421
      %v1423 = vpop.f32.mrb[0].mxu0
      %1424 = vmatprep.mubr.f32.mxu0 0.0
      %1425 = vmatmul.mubr.f32.gmra.mrb[0].mxu0 %v1324
      %v1426 = vpop.f32.mrb[0].mxu0
      %v1427 = vadd.f32 0.0, %v1426
      %v1428 = vpop.f32.mrb[0].mxu0
      %1429 = vmatprep.mubr.f32.mxu0 0.0
      %1430 = vmatmul.mubr.f32.gmra.mrb[0].mxu0 %v1327
      %v1431 = vpop.f32.mrb[0].mxu0
      %v1432 = vadd.f32 0.0, %v1431
      %v1433 = vpop.f32.mrb[0].mxu0
      %1434 = vmatprep.mubr.f32.mxu0 0.0
      %1435 = vmatmul.mubr.f32.gmra.mrb[0].mxu0 %v1330
      %v1436 = vpop.f32.mrb[0].mxu0
      %v1437 = vadd.f32 0.0, %v1436
      %v1438 = vpop.f32.mrb[0].mxu0
      %1439 = vmatprep.mubr.f32.mxu0 0.0
      %1440 = vmatmul.mubr.f32.gmra.mrb[0].mxu0 %v1333
      %v1441 = vpop.f32.mrb[0].mxu0
      %v1442 = vadd.f32 0.0, %v1441
      %v1443 = vpop.f32.mrb[0].mxu0
      %1444 = vdwg.mxu0
      %v1446 = vsel %vm904, %v995, 0
      %v1449 = vsel %vm904, %v996, 0
      %v1452 = vsel %vm904, %v997, 0
      %v1455 = vsel %vm904, %v998, 0
      %v1458 = vsel %vm904, %v999, 0
      %v1461 = vsel %vm904, %v1000, 0
      %v1464 = vsel %vm904, %v1001, 0
      %v1467 = vsel %vm904, %v1002, 0
      %v1470 = vsel %vm904, %v1003, 0
      %1472 = vmatprep.subr.mxu0 0.0
      %1473 = vmatpush1.msra.mxu0 %v722
      %1474 = vmatprep.subr.mxu0 0.0
      %1475 = vmatpush1.msra.mxu0 %v723
      %1476 = vmatprep.subr.mxu0 0.0
      %1477 = vmatpush1.msra.mxu0 %v724
      %1478 = vmatprep.subr.mxu0 0.0
      %1479 = vmatpush1.msra.mxu0 %v725
      %1480 = vmatprep.subr.mxu0 0.0
      %1481 = vmatpush1.msra.mxu0 %v726
      %1482 = vmatprep.subr.mxu0 0.0
      %1483 = vmatpush1.msra.mxu0 %v727
      %1484 = vmatprep.subr.mxu0 0.0
      %1485 = vmatpush1.msra.mxu0 %v728
      %1486 = vmatprep.subr.mxu0 0.0
      %1487 = vmatpush1.msra.mxu0 %v729
      %1488 = vmatprep.subr.mxu0 0.0
      %1489 = vmatpush1.msra.mxu0 %v730
      %1490 = vmatprep.subr.mxu0 0.0
      %1491 = vmatpush1.msra.mxu0 0.0
      %1492 = vmatprep.subr.mxu0 0.0
      %1493 = vmatpush1.msra.mxu0 0.0
      %1494 = vmatprep.subr.mxu0 0.0
      %1495 = vmatpush1.msra.mxu0 0.0
      %1496 = vmatprep.subr.mxu0 0.0
      %1497 = vmatpush1.msra.mxu0 0.0
      %1498 = vmatprep.subr.mxu0 0.0
      %1499 = vmatpush1.msra.mxu0 0.0
      %1500 = vmatprep.subr.mxu0 0.0
      %1501 = vmatpush1.msra.mxu0 0.0
      %1502 = vmatprep.subr.mxu0 0.0
      %1503 = vmatpush1.msra.mxu0 0.0
      %1504 = vmatprep.subr.mxu0 0.0
      %1505 = vmatpush1.msra.mxu0 0.0
      %1506 = vmatprep.subr.mxu0 0.0
      %1507 = vmatpush1.msra.mxu0 0.0
      %1508 = vmatprep.subr.mxu0 0.0
      %1509 = vmatpush1.msra.mxu0 0.0
      %1510 = vmatprep.subr.mxu0 0.0
      %1511 = vmatpush1.msra.mxu0 0.0
      %1512 = vmatprep.subr.mxu0 0.0
      %1513 = vmatpush1.msra.mxu0 0.0
      %1514 = vmatprep.subr.mxu0 0.0
      %1515 = vmatpush1.msra.mxu0 0.0
      %1516 = vmatprep.subr.mxu0 0.0
      %1517 = vmatpush1.msra.mxu0 0.0
      %1518 = vmatprep.subr.mxu0 0.0
      %1519 = vmatpush1.msra.mxu0 0.0
      %1520 = vmatprep.subr.mxu0 0.0
      %1521 = vmatpush1.msra.mxu0 0.0
      %1522 = vmatprep.subr.mxu0 0.0
      %1523 = vmatpush1.msra.mxu0 0.0
      %1524 = vmatprep.subr.mxu0 0.0
      %1525 = vmatpush1.msra.mxu0 0.0
      %1526 = vmatprep.subr.mxu0 0.0
      %1527 = vmatpush1.msra.mxu0 0.0
      %1528 = vmatprep.subr.mxu0 0.0
      %1529 = vmatpush1.msra.mxu0 0.0
      %1530 = vmatprep.subr.mxu0 0.0
      %1531 = vmatpush1.msra.mxu0 0.0
      %1532 = vmatprep.subr.mxu0 0.0
      %1533 = vmatpush1.msra.mxu0 0.0
      %1534 = vmatprep.subr.mxu0 0.0
      %1535 = vmatpush1.msra.mxu0 0.0
      %1536 = vmatprep.mubr.f32.mxu0 0.0
      %1537 = vmatmul.mubr.f32.gmra.mrb[0].mxu0 %v1446
      %v1538 = vpop.f32.mrb[0].mxu0
      %v1539 = vadd.f32 %v1402, %v1538
      %v1540 = vpop.f32.mrb[0].mxu0
      %1541 = vmatprep.mubr.f32.mxu0 0.0
      %1542 = vmatmul.mubr.f32.gmra.mrb[0].mxu0 %v1449
      %v1543 = vpop.f32.mrb[0].mxu0
      %v1544 = vadd.f32 %v1407, %v1543
      %v1545 = vpop.f32.mrb[0].mxu0
      %1546 = vmatprep.mubr.f32.mxu0 0.0
      %1547 = vmatmul.mubr.f32.gmra.mrb[0].mxu0 %v1452
      %v1548 = vpop.f32.mrb[0].mxu0
      %v1549 = vadd.f32 %v1412, %v1548
      %v1550 = vpop.f32.mrb[0].mxu0
      %1551 = vmatprep.mubr.f32.mxu0 0.0
      %1552 = vmatmul.mubr.f32.gmra.mrb[0].mxu0 %v1455
      %v1553 = vpop.f32.mrb[0].mxu0
      %v1554 = vadd.f32 %v1417, %v1553
      %v1555 = vpop.f32.mrb[0].mxu0
      %1556 = vmatprep.mubr.f32.mxu0 0.0
      %1557 = vmatmul.mubr.f32.gmra.mrb[0].mxu0 %v1458
      %v1558 = vpop.f32.mrb[0].mxu0
      %v1559 = vadd.f32 %v1422, %v1558
      %v1560 = vpop.f32.mrb[0].mxu0
      %1561 = vmatprep.mubr.f32.mxu0 0.0
      %1562 = vmatmul.mubr.f32.gmra.mrb[0].mxu0 %v1461
      %v1563 = vpop.f32.mrb[0].mxu0
      %v1564 = vadd.f32 %v1427, %v1563
      %v1565 = vpop.f32.mrb[0].mxu0
      %1566 = vmatprep.mubr.f32.mxu0 0.0
      %1567 = vmatmul.mubr.f32.gmra.mrb[0].mxu0 %v1464
      %v1568 = vpop.f32.mrb[0].mxu0
      %v1569 = vadd.f32 %v1432, %v1568
      %v1570 = vpop.f32.mrb[0].mxu0
      %1571 = vmatprep.mubr.f32.mxu0 0.0
      %1572 = vmatmul.mubr.f32.gmra.mrb[0].mxu0 %v1467
      %v1573 = vpop.f32.mrb[0].mxu0
      %v1574 = vadd.f32 %v1437, %v1573
      %v1575 = vpop.f32.mrb[0].mxu0
      %1576 = vmatprep.mubr.f32.mxu0 0.0
      %1577 = vmatmul.mubr.f32.gmra.mrb[0].mxu0 %v1470
      %v1578 = vpop.f32.mrb[0].mxu0
      %v1579 = vadd.f32 %v1442, %v1578
      %v1580 = vpop.f32.mrb[0].mxu0
      %1581 = vdwg.mxu0
      %vm1582 = vcmp.ge.s32.totalorder %v635, 8
      %vm1583 = vcmp.lt.s32.totalorder %v635, 12
      %vm1584 = vmand %vm1582, %vm1583
      %v1585 = vsel %vm1584, 1, 0
      %vm1586 = vcmp.eq.s32.totalorder %v1585, 1
      %v1587 = vsel %vm1586, %v591, 0.0
      %v1588 = vsel %vm1586, %v596, 0.0
      %v1589 = vsel %vm1586, %v601, 0.0
      %v1590 = vsel %vm1586, %v606, 0.0
      %v1591 = vsel %vm1586, %v611, 0.0
      %v1592 = vsel %vm1586, %v616, 0.0
      %v1593 = vsel %vm1586, %v621, 0.0
      %v1594 = vsel %vm1586, %v626, 0.0
      %v1595 = vsel %vm1586, %v631, 0.0
      %v1596 = vsel %vm1586, %v660, 0.0
      %v1597 = vsel %vm1586, %v662, 0.0
      %v1598 = vsel %vm1586, %v664, 0.0
      %v1599 = vsel %vm1586, %v666, 0.0
      %v1600 = vsel %vm1586, %v668, 0.0
      %v1601 = vsel %vm1586, %v670, 0.0
      %v1602 = vsel %vm1586, %v672, 0.0
      %v1603 = vsel %vm1586, %v674, 0.0
      %v1604 = vsel %vm1586, %v676, 0.0
      %v1605 = vsel %vm1586, %v696, 0.0
      %v1606 = vsel %vm1586, %v698, 0.0
      %v1607 = vsel %vm1586, %v700, 0.0
      %v1608 = vsel %vm1586, %v702, 0.0
      %v1609 = vsel %vm1586, %v704, 0.0
      %v1610 = vsel %vm1586, %v706, 0.0
      %v1611 = vsel %vm1586, %v708, 0.0
      %v1612 = vsel %vm1586, %v710, 0.0
      %v1613 = vsel %vm1586, %v712, 0.0
      %v1615 = vsel %vm342, %v1587, 0
      %v1618 = vsel %vm342, %v1588, 0
      %v1621 = vsel %vm342, %v1589, 0
      %v1624 = vsel %vm342, %v1590, 0
      %v1627 = vsel %vm342, %v1591, 0
      %v1630 = vsel %vm342, %v1592, 0
      %v1633 = vsel %vm342, %v1593, 0
      %v1636 = vsel %vm342, %v1594, 0
      %v1639 = vsel %vm342, %v1595, 0
      %v1642 = vsel %vm342, %v1596, 0
      %v1645 = vsel %vm342, %v1597, 0
      %v1648 = vsel %vm342, %v1598, 0
      %v1651 = vsel %vm342, %v1599, 0
      %v1654 = vsel %vm342, %v1600, 0
      %v1657 = vsel %vm342, %v1601, 0
      %v1660 = vsel %vm342, %v1602, 0
      %v1663 = vsel %vm342, %v1603, 0
      %v1666 = vsel %vm342, %v1604, 0
      %1668 = vmatprep.subr.mxu0 0.0
      %1669 = vmatpush1.xpose.msra.mxu0 %v1642
      %1670 = vmatprep.subr.mxu0 0.0
      %1671 = vmatpush1.xpose.msra.mxu0 %v1645
      %1672 = vmatprep.subr.mxu0 0.0
      %1673 = vmatpush1.xpose.msra.mxu0 %v1648
      %1674 = vmatprep.subr.mxu0 0.0
      %1675 = vmatpush1.xpose.msra.mxu0 %v1651
      %1676 = vmatprep.subr.mxu0 0.0
      %1677 = vmatpush1.xpose.msra.mxu0 %v1654
      %1678 = vmatprep.subr.mxu0 0.0
      %1679 = vmatpush1.xpose.msra.mxu0 %v1657
      %1680 = vmatprep.subr.mxu0 0.0
      %1681 = vmatpush1.xpose.msra.mxu0 %v1660
      %1682 = vmatprep.subr.mxu0 0.0
      %1683 = vmatpush1.xpose.msra.mxu0 %v1663
      %1684 = vmatprep.subr.mxu0 0.0
      %1685 = vmatpush1.xpose.msra.mxu0 %v1666
      %1686 = vmatprep.subr.mxu0 0.0
      %1687 = vmatpush1.xpose.msra.mxu0 0.0
      %1688 = vmatprep.subr.mxu0 0.0
      %1689 = vmatpush1.xpose.msra.mxu0 0.0
      %1690 = vmatprep.subr.mxu0 0.0
      %1691 = vmatpush1.xpose.msra.mxu0 0.0
      %1692 = vmatprep.subr.mxu0 0.0
      %1693 = vmatpush1.xpose.msra.mxu0 0.0
      %1694 = vmatprep.subr.mxu0 0.0
      %1695 = vmatpush1.xpose.msra.mxu0 0.0
      %1696 = vmatprep.subr.mxu0 0.0
      %1697 = vmatpush1.xpose.msra.mxu0 0.0
      %1698 = vmatprep.subr.mxu0 0.0
      %1699 = vmatpush1.xpose.msra.mxu0 0.0
      %1700 = vmatprep.subr.mxu0 0.0
      %1701 = vmatpush1.xpose.msra.mxu0 0.0
      %1702 = vmatprep.subr.mxu0 0.0
      %1703 = vmatpush1.xpose.msra.mxu0 0.0
      %1704 = vmatprep.subr.mxu0 0.0
      %1705 = vmatpush1.xpose.msra.mxu0 0.0
      %1706 = vmatprep.subr.mxu0 0.0
      %1707 = vmatpush1.xpose.msra.mxu0 0.0
      %1708 = vmatprep.subr.mxu0 0.0
      %1709 = vmatpush1.xpose.msra.mxu0 0.0
      %1710 = vmatprep.subr.mxu0 0.0
      %1711 = vmatpush1.xpose.msra.mxu0 0.0
      %1712 = vmatprep.subr.mxu0 0.0
      %1713 = vmatpush1.xpose.msra.mxu0 0.0
      %1714 = vmatprep.subr.mxu0 0.0
      %1715 = vmatpush1.xpose.msra.mxu0 0.0
      %1716 = vmatprep.subr.mxu0 0.0
      %1717 = vmatpush1.xpose.msra.mxu0 0.0
      %1718 = vmatprep.subr.mxu0 0.0
      %1719 = vmatpush1.xpose.msra.mxu0 0.0
      %1720 = vmatprep.subr.mxu0 0.0
      %1721 = vmatpush1.xpose.msra.mxu0 0.0
      %1722 = vmatprep.subr.mxu0 0.0
      %1723 = vmatpush1.xpose.msra.mxu0 0.0
      %1724 = vmatprep.subr.mxu0 0.0
      %1725 = vmatpush1.xpose.msra.mxu0 0.0
      %1726 = vmatprep.subr.mxu0 0.0
      %1727 = vmatpush1.xpose.msra.mxu0 0.0
      %1728 = vmatprep.subr.mxu0 0.0
      %1729 = vmatpush1.xpose.msra.mxu0 0.0
      %1730 = vmatprep.subr.mxu0 0.0
      %1731 = vmatpush1.xpose.msra.mxu0 0.0
      %1732 = vmatprep.mubr.f32.mxu0 0.0
      %1733 = vmatmul.mubr.f32.gmra.mrb[0].mxu0 %v1615
      %v1734 = vpop.f32.mrb[0].mxu0
      %v1735 = vadd.f32 0.0, %v1734
      %v1736 = vpop.f32.mrb[0].mxu0
      %1737 = vmatprep.mubr.f32.mxu0 0.0
      %1738 = vmatmul.mubr.f32.gmra.mrb[0].mxu0 %v1618
      %v1739 = vpop.f32.mrb[0].mxu0
      %v1740 = vadd.f32 0.0, %v1739
      %v1741 = vpop.f32.mrb[0].mxu0
      %1742 = vmatprep.mubr.f32.mxu0 0.0
      %1743 = vmatmul.mubr.f32.gmra.mrb[0].mxu0 %v1621
      %v1744 = vpop.f32.mrb[0].mxu0
      %v1745 = vadd.f32 0.0, %v1744
      %v1746 = vpop.f32.mrb[0].mxu0
      %1747 = vmatprep.mubr.f32.mxu0 0.0
      %1748 = vmatmul.mubr.f32.gmra.mrb[0].mxu0 %v1624
      %v1749 = vpop.f32.mrb[0].mxu0
      %v1750 = vadd.f32 0.0, %v1749
      %v1751 = vpop.f32.mrb[0].mxu0
      %1752 = vmatprep.mubr.f32.mxu0 0.0
      %1753 = vmatmul.mubr.f32.gmra.mrb[0].mxu0 %v1627
      %v1754 = vpop.f32.mrb[0].mxu0
      %v1755 = vadd.f32 0.0, %v1754
      %v1756 = vpop.f32.mrb[0].mxu0
      %1757 = vmatprep.mubr.f32.mxu0 0.0
      %1758 = vmatmul.mubr.f32.gmra.mrb[0].mxu0 %v1630
      %v1759 = vpop.f32.mrb[0].mxu0
      %v1760 = vadd.f32 0.0, %v1759
      %v1761 = vpop.f32.mrb[0].mxu0
      %1762 = vmatprep.mubr.f32.mxu0 0.0
      %1763 = vmatmul.mubr.f32.gmra.mrb[0].mxu0 %v1633
      %v1764 = vpop.f32.mrb[0].mxu0
      %v1765 = vadd.f32 0.0, %v1764
      %v1766 = vpop.f32.mrb[0].mxu0
      %1767 = vmatprep.mubr.f32.mxu0 0.0
      %1768 = vmatmul.mubr.f32.gmra.mrb[0].mxu0 %v1636
      %v1769 = vpop.f32.mrb[0].mxu0
      %v1770 = vadd.f32 0.0, %v1769
      %v1771 = vpop.f32.mrb[0].mxu0
      %1772 = vmatprep.mubr.f32.mxu0 0.0
      %1773 = vmatmul.mubr.f32.gmra.mrb[0].mxu0 %v1639
      %v1774 = vpop.f32.mrb[0].mxu0
      %v1775 = vadd.f32 0.0, %v1774
      %v1776 = vpop.f32.mrb[0].mxu0
      %1777 = vdwg.mxu0
      %v1778 = vmul.f32 %v1735, 0.5
      %v1779 = vmul.f32 %v1740, 0.5
      %v1780 = vmul.f32 %v1745, 0.5
      %v1781 = vmul.f32 %v1750, 0.5
      %v1782 = vmul.f32 %v1755, 0.5
      %v1783 = vmul.f32 %v1760, 0.5
      %v1784 = vmul.f32 %v1765, 0.5
      %v1785 = vmul.f32 %v1770, 0.5
      %v1786 = vmul.f32 %v1775, 0.5
      %v1787 = vsel %vm904, %v1778, -inf
      %1788 = vmax.xlane.f32.xlu0 %v1787
      %v1789 = vpop.xlane.xlu0 %1788
      %v1790 = vsel %vm904, %v1779, -inf
      %1791 = vmax.xlane.f32.xlu0 %v1790
      %v1792 = vpop.xlane.xlu0 %1791
      %v1793 = vsel %vm904, %v1780, -inf
      %1794 = vmax.xlane.f32.xlu0 %v1793
      %v1795 = vpop.xlane.xlu0 %1794
      %v1796 = vsel %vm904, %v1781, -inf
      %1797 = vmax.xlane.f32.xlu0 %v1796
      %v1798 = vpop.xlane.xlu0 %1797
      %v1799 = vsel %vm904, %v1782, -inf
      %1800 = vmax.xlane.f32.xlu0 %v1799
      %v1801 = vpop.xlane.xlu0 %1800
      %v1802 = vsel %vm904, %v1783, -inf
      %1803 = vmax.xlane.f32.xlu0 %v1802
      %v1804 = vpop.xlane.xlu0 %1803
      %v1805 = vsel %vm904, %v1784, -inf
      %1806 = vmax.xlane.f32.xlu0 %v1805
      %v1807 = vpop.xlane.xlu0 %1806
      %v1808 = vsel %vm904, %v1785, -inf
      %1809 = vmax.xlane.f32.xlu0 %v1808
      %v1810 = vpop.xlane.xlu0 %1809
      %v1811 = vsel %vm904, %v1786, -inf
      %1812 = vmax.xlane.f32.xlu0 %v1811
      %v1813 = vpop.xlane.xlu0 %1812
      %v1814 = vsub.f32 %v1778, %v1789
      %v1815 = vsub.f32 %v1779, %v1792
      %v1816 = vsub.f32 %v1780, %v1795
      %v1817 = vsub.f32 %v1781, %v1798
      %v1818 = vsub.f32 %v1782, %v1801
      %v1819 = vsub.f32 %v1783, %v1804
      %v1820 = vsub.f32 %v1784, %v1807
      %v1821 = vsub.f32 %v1785, %v1810
      %v1822 = vsub.f32 %v1786, %v1813
      %v1823 = vmul.f32 %v1814, 1.442695
      %v1824 = vpow.pop %v1823
      %v1825 = vmul.f32 %v1815, 1.442695
      %v1826 = vpow.pop %v1825
      %v1827 = vmul.f32 %v1816, 1.442695
      %v1828 = vpow.pop %v1827
      %v1829 = vmul.f32 %v1817, 1.442695
      %v1830 = vpow.pop %v1829
      %v1831 = vmul.f32 %v1818, 1.442695
      %v1832 = vpow.pop %v1831
      %v1833 = vmul.f32 %v1819, 1.442695
      %v1834 = vpow.pop %v1833
      %v1835 = vmul.f32 %v1820, 1.442695
      %v1836 = vpow.pop %v1835
      %v1837 = vmul.f32 %v1821, 1.442695
      %v1838 = vpow.pop %v1837
      %v1839 = vmul.f32 %v1822, 1.442695
      %v1840 = vpow.pop %v1839
      %v1841 = vsel %vm904, %v1824, 0.0
      %1842 = vadd.xlane.f32.xlu0 %v1841
      %v1843 = vpop.xlane.xlu0 %1842
      %v1844 = vsel %vm904, %v1826, 0.0
      %1845 = vadd.xlane.f32.xlu0 %v1844
      %v1846 = vpop.xlane.xlu0 %1845
      %v1847 = vsel %vm904, %v1828, 0.0
      %1848 = vadd.xlane.f32.xlu0 %v1847
      %v1849 = vpop.xlane.xlu0 %1848
      %v1850 = vsel %vm904, %v1830, 0.0
      %1851 = vadd.xlane.f32.xlu0 %v1850
      %v1852 = vpop.xlane.xlu0 %1851
      %v1853 = vsel %vm904, %v1832, 0.0
      %1854 = vadd.xlane.f32.xlu0 %v1853
      %v1855 = vpop.xlane.xlu0 %1854
      %v1856 = vsel %vm904, %v1834, 0.0
      %1857 = vadd.xlane.f32.xlu0 %v1856
      %v1858 = vpop.xlane.xlu0 %1857
      %v1859 = vsel %vm904, %v1836, 0.0
      %1860 = vadd.xlane.f32.xlu0 %v1859
      %v1861 = vpop.xlane.xlu0 %1860
      %v1862 = vsel %vm904, %v1838, 0.0
      %1863 = vadd.xlane.f32.xlu0 %v1862
      %v1864 = vpop.xlane.xlu0 %1863
      %v1865 = vsel %vm904, %v1840, 0.0
      %1866 = vadd.xlane.f32.xlu0 %v1865
      %v1867 = vpop.xlane.xlu0 %1866
      %v1868 = vrcp.pop %v1843
      %v1869 = vrcp.pop %v1846
      %v1870 = vrcp.pop %v1849
      %v1871 = vrcp.pop %v1852
      %v1872 = vrcp.pop %v1855
      %v1873 = vrcp.pop %v1858
      %v1874 = vrcp.pop %v1861
      %v1875 = vrcp.pop %v1864
      %v1876 = vrcp.pop %v1867
      %v1877 = vmul.f32 %v1824, %v1868
      %v1878 = vmul.f32 %v1826, %v1869
      %v1879 = vmul.f32 %v1828, %v1870
      %v1880 = vmul.f32 %v1830, %v1871
      %v1881 = vmul.f32 %v1832, %v1872
      %v1882 = vmul.f32 %v1834, %v1873
      %v1883 = vmul.f32 %v1836, %v1874
      %v1884 = vmul.f32 %v1838, %v1875
      %v1885 = vmul.f32 %v1840, %v1876
      %v1887 = vsel %vm904, %v1877, 0
      %v1890 = vsel %vm904, %v1878, 0
      %v1893 = vsel %vm904, %v1879, 0
      %v1896 = vsel %vm904, %v1880, 0
      %v1899 = vsel %vm904, %v1881, 0
      %v1902 = vsel %vm904, %v1882, 0
      %v1905 = vsel %vm904, %v1883, 0
      %v1908 = vsel %vm904, %v1884, 0
      %v1911 = vsel %vm904, %v1885, 0
      %1913 = vmatprep.subr.mxu0 0.0
      %1914 = vmatpush1.msra.mxu0 %v1605
      %1915 = vmatprep.subr.mxu0 0.0
      %1916 = vmatpush1.msra.mxu0 %v1606
      %1917 = vmatprep.subr.mxu0 0.0
      %1918 = vmatpush1.msra.mxu0 %v1607
      %1919 = vmatprep.subr.mxu0 0.0
      %1920 = vmatpush1.msra.mxu0 %v1608
      %1921 = vmatprep.subr.mxu0 0.0
      %1922 = vmatpush1.msra.mxu0 %v1609
      %1923 = vmatprep.subr.mxu0 0.0
      %1924 = vmatpush1.msra.mxu0 %v1610
      %1925 = vmatprep.subr.mxu0 0.0
      %1926 = vmatpush1.msra.mxu0 %v1611
      %1927 = vmatprep.subr.mxu0 0.0
      %1928 = vmatpush1.msra.mxu0 %v1612
      %1929 = vmatprep.subr.mxu0 0.0
      %1930 = vmatpush1.msra.mxu0 %v1613
      %1931 = vmatprep.subr.mxu0 0.0
      %1932 = vmatpush1.msra.mxu0 0.0
      %1933 = vmatprep.subr.mxu0 0.0
      %1934 = vmatpush1.msra.mxu0 0.0
      %1935 = vmatprep.subr.mxu0 0.0
      %1936 = vmatpush1.msra.mxu0 0.0
      %1937 = vmatprep.subr.mxu0 0.0
      %1938 = vmatpush1.msra.mxu0 0.0
      %1939 = vmatprep.subr.mxu0 0.0
      %1940 = vmatpush1.msra.mxu0 0.0
      %1941 = vmatprep.subr.mxu0 0.0
      %1942 = vmatpush1.msra.mxu0 0.0
      %1943 = vmatprep.subr.mxu0 0.0
      %1944 = vmatpush1.msra.mxu0 0.0
      %1945 = vmatprep.subr.mxu0 0.0
      %1946 = vmatpush1.msra.mxu0 0.0
      %1947 = vmatprep.subr.mxu0 0.0
      %1948 = vmatpush1.msra.mxu0 0.0
      %1949 = vmatprep.subr.mxu0 0.0
      %1950 = vmatpush1.msra.mxu0 0.0
      %1951 = vmatprep.subr.mxu0 0.0
      %1952 = vmatpush1.msra.mxu0 0.0
      %1953 = vmatprep.subr.mxu0 0.0
      %1954 = vmatpush1.msra.mxu0 0.0
      %1955 = vmatprep.subr.mxu0 0.0
      %1956 = vmatpush1.msra.mxu0 0.0
      %1957 = vmatprep.subr.mxu0 0.0
      %1958 = vmatpush1.msra.mxu0 0.0
      %1959 = vmatprep.subr.mxu0 0.0
      %1960 = vmatpush1.msra.mxu0 0.0
      %1961 = vmatprep.subr.mxu0 0.0
      %1962 = vmatpush1.msra.mxu0 0.0
      %1963 = vmatprep.subr.mxu0 0.0
      %1964 = vmatpush1.msra.mxu0 0.0
      %1965 = vmatprep.subr.mxu0 0.0
      %1966 = vmatpush1.msra.mxu0 0.0
      %1967 = vmatprep.subr.mxu0 0.0
      %1968 = vmatpush1.msra.mxu0 0.0
      %1969 = vmatprep.subr.mxu0 0.0
      %1970 = vmatpush1.msra.mxu0 0.0
      %1971 = vmatprep.subr.mxu0 0.0
      %1972 = vmatpush1.msra.mxu0 0.0
      %1973 = vmatprep.subr.mxu0 0.0
      %1974 = vmatpush1.msra.mxu0 0.0
      %1975 = vmatprep.subr.mxu0 0.0
      %1976 = vmatpush1.msra.mxu0 0.0
      %1977 = vmatprep.mubr.f32.mxu0 0.0
      %1978 = vmatmul.mubr.f32.gmra.mrb[0].mxu0 %v1887
      %v1979 = vpop.f32.mrb[0].mxu0
      %v1980 = vadd.f32 0.0, %v1979
      %v1981 = vpop.f32.mrb[0].mxu0
      %1982 = vmatprep.mubr.f32.mxu0 0.0
      %1983 = vmatmul.mubr.f32.gmra.mrb[0].mxu0 %v1890
      %v1984 = vpop.f32.mrb[0].mxu0
      %v1985 = vadd.f32 0.0, %v1984
      %v1986 = vpop.f32.mrb[0].mxu0
      %1987 = vmatprep.mubr.f32.mxu0 0.0
      %1988 = vmatmul.mubr.f32.gmra.mrb[0].mxu0 %v1893
      %v1989 = vpop.f32.mrb[0].mxu0
      %v1990 = vadd.f32 0.0, %v1989
      %v1991 = vpop.f32.mrb[0].mxu0
      %1992 = vmatprep.mubr.f32.mxu0 0.0
      %1993 = vmatmul.mubr.f32.gmra.mrb[0].mxu0 %v1896
      %v1994 = vpop.f32.mrb[0].mxu0
      %v1995 = vadd.f32 0.0, %v1994
      %v1996 = vpop.f32.mrb[0].mxu0
      %1997 = vmatprep.mubr.f32.mxu0 0.0
      %1998 = vmatmul.mubr.f32.gmra.mrb[0].mxu0 %v1899
      %v1999 = vpop.f32.mrb[0].mxu0
      %v2000 = vadd.f32 0.0, %v1999
      %v2001 = vpop.f32.mrb[0].mxu0
      %2002 = vmatprep.mubr.f32.mxu0 0.0
      %2003 = vmatmul.mubr.f32.gmra.mrb[0].mxu0 %v1902
      %v2004 = vpop.f32.mrb[0].mxu0
      %v2005 = vadd.f32 0.0, %v2004
      %v2006 = vpop.f32.mrb[0].mxu0
      %2007 = vmatprep.mubr.f32.mxu0 0.0
      %2008 = vmatmul.mubr.f32.gmra.mrb[0].mxu0 %v1905
      %v2009 = vpop.f32.mrb[0].mxu0
      %v2010 = vadd.f32 0.0, %v2009
      %v2011 = vpop.f32.mrb[0].mxu0
      %2012 = vmatprep.mubr.f32.mxu0 0.0
      %2013 = vmatmul.mubr.f32.gmra.mrb[0].mxu0 %v1908
      %v2014 = vpop.f32.mrb[0].mxu0
      %v2015 = vadd.f32 0.0, %v2014
      %v2016 = vpop.f32.mrb[0].mxu0
      %2017 = vmatprep.mubr.f32.mxu0 0.0
      %2018 = vmatmul.mubr.f32.gmra.mrb[0].mxu0 %v1911
      %v2019 = vpop.f32.mrb[0].mxu0
      %v2020 = vadd.f32 0.0, %v2019
      %v2021 = vpop.f32.mrb[0].mxu0
      %2022 = vdwg.mxu0
      %v2023 = vadd.f32 %v1539, %v1980
      %v2024 = vadd.f32 %v1544, %v1985
      %v2025 = vadd.f32 %v1549, %v1990
      %v2026 = vadd.f32 %v1554, %v1995
      %v2027 = vadd.f32 %v1559, %v2000
      %v2028 = vadd.f32 %v1564, %v2005
      %v2029 = vadd.f32 %v1569, %v2010
      %v2030 = vadd.f32 %v1574, %v2015
      %v2031 = vadd.f32 %v1579, %v2020
      %vm2032 = vcmp.ge.s32.totalorder %v635, 12
      %vm2033 = vcmp.lt.s32.totalorder %v635, 16
      %vm2034 = vmand %vm2032, %vm2033
      %v2035 = vsel %vm2034, 1, 0
      %vm2036 = vcmp.eq.s32.totalorder %v2035, 1
      %v2037 = vsel %vm2036, %v591, 0.0
      %v2038 = vsel %vm2036, %v596, 0.0
      %v2039 = vsel %vm2036, %v601, 0.0
      %v2040 = vsel %vm2036, %v606, 0.0
      %v2041 = vsel %vm2036, %v611, 0.0
      %v2042 = vsel %vm2036, %v616, 0.0
      %v2043 = vsel %vm2036, %v621, 0.0
      %v2044 = vsel %vm2036, %v626, 0.0
      %v2045 = vsel %vm2036, %v631, 0.0
      %v2046 = vsel %vm2036, %v660, 0.0
      %v2047 = vsel %vm2036, %v662, 0.0
      %v2048 = vsel %vm2036, %v664, 0.0
      %v2049 = vsel %vm2036, %v666, 0.0
      %v2050 = vsel %vm2036, %v668, 0.0
      %v2051 = vsel %vm2036, %v670, 0.0
      %v2052 = vsel %vm2036, %v672, 0.0
      %v2053 = vsel %vm2036, %v674, 0.0
      %v2054 = vsel %vm2036, %v676, 0.0
      %v2055 = vsel %vm2036, %v696, 0.0
      %v2056 = vsel %vm2036, %v698, 0.0
      %v2057 = vsel %vm2036, %v700, 0.0
      %v2058 = vsel %vm2036, %v702, 0.0
      %v2059 = vsel %vm2036, %v704, 0.0
      %v2060 = vsel %vm2036, %v706, 0.0
      %v2061 = vsel %vm2036, %v708, 0.0
      %v2062 = vsel %vm2036, %v710, 0.0
      %v2063 = vsel %vm2036, %v712, 0.0
      %v2065 = vsel %vm342, %v2037, 0
      %v2068 = vsel %vm342, %v2038, 0
      %v2071 = vsel %vm342, %v2039, 0
      %v2074 = vsel %vm342, %v2040, 0
      %v2077 = vsel %vm342, %v2041, 0
      %v2080 = vsel %vm342, %v2042, 0
      %v2083 = vsel %vm342, %v2043, 0
      %v2086 = vsel %vm342, %v2044, 0
      %v2089 = vsel %vm342, %v2045, 0
      %v2092 = vsel %vm342, %v2046, 0
      %v2095 = vsel %vm342, %v2047, 0
      %v2098 = vsel %vm342, %v2048, 0
      %v2101 = vsel %vm342, %v2049, 0
      %v2104 = vsel %vm342, %v2050, 0
      %v2107 = vsel %vm342, %v2051, 0
      %v2110 = vsel %vm342, %v2052, 0
      %v2113 = vsel %vm342, %v2053, 0
      %v2116 = vsel %vm342, %v2054, 0
      %2118 = vmatprep.subr.mxu0 0.0
      %2119 = vmatpush1.xpose.msra.mxu0 %v2092
      %2120 = vmatprep.subr.mxu0 0.0
      %2121 = vmatpush1.xpose.msra.mxu0 %v2095
      %2122 = vmatprep.subr.mxu0 0.0
      %2123 = vmatpush1.xpose.msra.mxu0 %v2098
      %2124 = vmatprep.subr.mxu0 0.0
      %2125 = vmatpush1.xpose.msra.mxu0 %v2101
      %2126 = vmatprep.subr.mxu0 0.0
      %2127 = vmatpush1.xpose.msra.mxu0 %v2104
      %2128 = vmatprep.subr.mxu0 0.0
      %2129 = vmatpush1.xpose.msra.mxu0 %v2107
      %2130 = vmatprep.subr.mxu0 0.0
      %2131 = vmatpush1.xpose.msra.mxu0 %v2110
      %2132 = vmatprep.subr.mxu0 0.0
      %2133 = vmatpush1.xpose.msra.mxu0 %v2113
      %2134 = vmatprep.subr.mxu0 0.0
      %2135 = vmatpush1.xpose.msra.mxu0 %v2116
      %2136 = vmatprep.subr.mxu0 0.0
      %2137 = vmatpush1.xpose.msra.mxu0 0.0
      %2138 = vmatprep.subr.mxu0 0.0
      %2139 = vmatpush1.xpose.msra.mxu0 0.0
      %2140 = vmatprep.subr.mxu0 0.0
      %2141 = vmatpush1.xpose.msra.mxu0 0.0
      %2142 = vmatprep.subr.mxu0 0.0
      %2143 = vmatpush1.xpose.msra.mxu0 0.0
      %2144 = vmatprep.subr.mxu0 0.0
      %2145 = vmatpush1.xpose.msra.mxu0 0.0
      %2146 = vmatprep.subr.mxu0 0.0
      %2147 = vmatpush1.xpose.msra.mxu0 0.0
      %2148 = vmatprep.subr.mxu0 0.0
      %2149 = vmatpush1.xpose.msra.mxu0 0.0
      %2150 = vmatprep.subr.mxu0 0.0
      %2151 = vmatpush1.xpose.msra.mxu0 0.0
      %2152 = vmatprep.subr.mxu0 0.0
      %2153 = vmatpush1.xpose.msra.mxu0 0.0
      %2154 = vmatprep.subr.mxu0 0.0
      %2155 = vmatpush1.xpose.msra.mxu0 0.0
      %2156 = vmatprep.subr.mxu0 0.0
      %2157 = vmatpush1.xpose.msra.mxu0 0.0
      %2158 = vmatprep.subr.mxu0 0.0
      %2159 = vmatpush1.xpose.msra.mxu0 0.0
      %2160 = vmatprep.subr.mxu0 0.0
      %2161 = vmatpush1.xpose.msra.mxu0 0.0
      %2162 = vmatprep.subr.mxu0 0.0
      %2163 = vmatpush1.xpose.msra.mxu0 0.0
      %2164 = vmatprep.subr.mxu0 0.0
      %2165 = vmatpush1.xpose.msra.mxu0 0.0
      %2166 = vmatprep.subr.mxu0 0.0
      %2167 = vmatpush1.xpose.msra.mxu0 0.0
      %2168 = vmatprep.subr.mxu0 0.0
      %2169 = vmatpush1.xpose.msra.mxu0 0.0
      %2170 = vmatprep.subr.mxu0 0.0
      %2171 = vmatpush1.xpose.msra.mxu0 0.0
      %2172 = vmatprep.subr.mxu0 0.0
      %2173 = vmatpush1.xpose.msra.mxu0 0.0
      %2174 = vmatprep.subr.mxu0 0.0
      %2175 = vmatpush1.xpose.msra.mxu0 0.0
      %2176 = vmatprep.subr.mxu0 0.0
      %2177 = vmatpush1.xpose.msra.mxu0 0.0
      %2178 = vmatprep.subr.mxu0 0.0
      %2179 = vmatpush1.xpose.msra.mxu0 0.0
      %2180 = vmatprep.subr.mxu0 0.0
      %2181 = vmatpush1.xpose.msra.mxu0 0.0
      %2182 = vmatprep.mubr.f32.mxu0 0.0
      %2183 = vmatmul.mubr.f32.gmra.mrb[0].mxu0 %v2065
      %v2184 = vpop.f32.mrb[0].mxu0
      %v2185 = vadd.f32 0.0, %v2184
      %v2186 = vpop.f32.mrb[0].mxu0
      %2187 = vmatprep.mubr.f32.mxu0 0.0
      %2188 = vmatmul.mubr.f32.gmra.mrb[0].mxu0 %v2068
      %v2189 = vpop.f32.mrb[0].mxu0
      %v2190 = vadd.f32 0.0, %v2189
      %v2191 = vpop.f32.mrb[0].mxu0
      %2192 = vmatprep.mubr.f32.mxu0 0.0
      %2193 = vmatmul.mubr.f32.gmra.mrb[0].mxu0 %v2071
      %v2194 = vpop.f32.mrb[0].mxu0
      %v2195 = vadd.f32 0.0, %v2194
      %v2196 = vpop.f32.mrb[0].mxu0
      %2197 = vmatprep.mubr.f32.mxu0 0.0
      %2198 = vmatmul.mubr.f32.gmra.mrb[0].mxu0 %v2074
      %v2199 = vpop.f32.mrb[0].mxu0
      %v2200 = vadd.f32 0.0, %v2199
      %v2201 = vpop.f32.mrb[0].mxu0
      %2202 = vmatprep.mubr.f32.mxu0 0.0
      %2203 = vmatmul.mubr.f32.gmra.mrb[0].mxu0 %v2077
      %v2204 = vpop.f32.mrb[0].mxu0
      %v2205 = vadd.f32 0.0, %v2204
      %v2206 = vpop.f32.mrb[0].mxu0
      %2207 = vmatprep.mubr.f32.mxu0 0.0
      %2208 = vmatmul.mubr.f32.gmra.mrb[0].mxu0 %v2080
      %v2209 = vpop.f32.mrb[0].mxu0
      %v2210 = vadd.f32 0.0, %v2209
      %v2211 = vpop.f32.mrb[0].mxu0
      %2212 = vmatprep.mubr.f32.mxu0 0.0
      %2213 = vmatmul.mubr.f32.gmra.mrb[0].mxu0 %v2083
      %v2214 = vpop.f32.mrb[0].mxu0
      %v2215 = vadd.f32 0.0, %v2214
      %v2216 = vpop.f32.mrb[0].mxu0
      %2217 = vmatprep.mubr.f32.mxu0 0.0
      %2218 = vmatmul.mubr.f32.gmra.mrb[0].mxu0 %v2086
      %v2219 = vpop.f32.mrb[0].mxu0
      %v2220 = vadd.f32 0.0, %v2219
      %v2221 = vpop.f32.mrb[0].mxu0
      %2222 = vmatprep.mubr.f32.mxu0 0.0
      %2223 = vmatmul.mubr.f32.gmra.mrb[0].mxu0 %v2089
      %v2224 = vpop.f32.mrb[0].mxu0
      %v2225 = vadd.f32 0.0, %v2224
      %v2226 = vpop.f32.mrb[0].mxu0
      %2227 = vdwg.mxu0
      %v2228 = vmul.f32 %v2185, 0.5
      %v2229 = vmul.f32 %v2190, 0.5
      %v2230 = vmul.f32 %v2195, 0.5
      %v2231 = vmul.f32 %v2200, 0.5
      %v2232 = vmul.f32 %v2205, 0.5
      %v2233 = vmul.f32 %v2210, 0.5
      %v2234 = vmul.f32 %v2215, 0.5
      %v2235 = vmul.f32 %v2220, 0.5
      %v2236 = vmul.f32 %v2225, 0.5
      %v2237 = vsel %vm904, %v2228, -inf
      %2238 = vmax.xlane.f32.xlu0 %v2237
      %v2239 = vpop.xlane.xlu0 %2238
      %v2240 = vsel %vm904, %v2229, -inf
      %2241 = vmax.xlane.f32.xlu0 %v2240
      %v2242 = vpop.xlane.xlu0 %2241
      %v2243 = vsel %vm904, %v2230, -inf
      %2244 = vmax.xlane.f32.xlu0 %v2243
      %v2245 = vpop.xlane.xlu0 %2244
      %v2246 = vsel %vm904, %v2231, -inf
      %2247 = vmax.xlane.f32.xlu0 %v2246
      %v2248 = vpop.xlane.xlu0 %2247
      %v2249 = vsel %vm904, %v2232, -inf
      %2250 = vmax.xlane.f32.xlu0 %v2249
      %v2251 = vpop.xlane.xlu0 %2250
      %v2252 = vsel %vm904, %v2233, -inf
      %2253 = vmax.xlane.f32.xlu0 %v2252
      %v2254 = vpop.xlane.xlu0 %2253
      %v2255 = vsel %vm904, %v2234, -inf
      %2256 = vmax.xlane.f32.xlu0 %v2255
      %v2257 = vpop.xlane.xlu0 %2256
      %v2258 = vsel %vm904, %v2235, -inf
      %2259 = vmax.xlane.f32.xlu0 %v2258
      %v2260 = vpop.xlane.xlu0 %2259
      %v2261 = vsel %vm904, %v2236, -inf
      %2262 = vmax.xlane.f32.xlu0 %v2261
      %v2263 = vpop.xlane.xlu0 %2262
      %v2264 = vsub.f32 %v2228, %v2239
      %v2265 = vsub.f32 %v2229, %v2242
      %v2266 = vsub.f32 %v2230, %v2245
      %v2267 = vsub.f32 %v2231, %v2248
      %v2268 = vsub.f32 %v2232, %v2251
      %v2269 = vsub.f32 %v2233, %v2254
      %v2270 = vsub.f32 %v2234, %v2257
      %v2271 = vsub.f32 %v2235, %v2260
      %v2272 = vsub.f32 %v2236, %v2263
      %v2273 = vmul.f32 %v2264, 1.442695
      %v2274 = vpow.pop %v2273
      %v2275 = vmul.f32 %v2265, 1.442695
      %v2276 = vpow.pop %v2275
      %v2277 = vmul.f32 %v2266, 1.442695
      %v2278 = vpow.pop %v2277
      %v2279 = vmul.f32 %v2267, 1.442695
      %v2280 = vpow.pop %v2279
      %v2281 = vmul.f32 %v2268, 1.442695
      %v2282 = vpow.pop %v2281
      %v2283 = vmul.f32 %v2269, 1.442695
      %v2284 = vpow.pop %v2283
      %v2285 = vmul.f32 %v2270, 1.442695
      %v2286 = vpow.pop %v2285
      %v2287 = vmul.f32 %v2271, 1.442695
      %v2288 = vpow.pop %v2287
      %v2289 = vmul.f32 %v2272, 1.442695
      %v2290 = vpow.pop %v2289
      %v2291 = vsel %vm904, %v2274, 0.0
      %2292 = vadd.xlane.f32.xlu0 %v2291
      %v2293 = vpop.xlane.xlu0 %2292
      %v2294 = vsel %vm904, %v2276, 0.0
      %2295 = vadd.xlane.f32.xlu0 %v2294
      %v2296 = vpop.xlane.xlu0 %2295
      %v2297 = vsel %vm904, %v2278, 0.0
      %2298 = vadd.xlane.f32.xlu0 %v2297
      %v2299 = vpop.xlane.xlu0 %2298
      %v2300 = vsel %vm904, %v2280, 0.0
      %2301 = vadd.xlane.f32.xlu0 %v2300
      %v2302 = vpop.xlane.xlu0 %2301
      %v2303 = vsel %vm904, %v2282, 0.0
      %2304 = vadd.xlane.f32.xlu0 %v2303
      %v2305 = vpop.xlane.xlu0 %2304
      %v2306 = vsel %vm904, %v2284, 0.0
      %2307 = vadd.xlane.f32.xlu0 %v2306
      %v2308 = vpop.xlane.xlu0 %2307
      %v2309 = vsel %vm904, %v2286, 0.0
      %2310 = vadd.xlane.f32.xlu0 %v2309
      %v2311 = vpop.xlane.xlu0 %2310
      %v2312 = vsel %vm904, %v2288, 0.0
      %2313 = vadd.xlane.f32.xlu0 %v2312
      %v2314 = vpop.xlane.xlu0 %2313
      %v2315 = vsel %vm904, %v2290, 0.0
      %2316 = vadd.xlane.f32.xlu0 %v2315
      %v2317 = vpop.xlane.xlu0 %2316
      %v2318 = vrcp.pop %v2293
      %v2319 = vrcp.pop %v2296
      %v2320 = vrcp.pop %v2299
      %v2321 = vrcp.pop %v2302
      %v2322 = vrcp.pop %v2305
      %v2323 = vrcp.pop %v2308
      %v2324 = vrcp.pop %v2311
      %v2325 = vrcp.pop %v2314
      %v2326 = vrcp.pop %v2317
      %v2327 = vmul.f32 %v2274, %v2318
      %v2328 = vmul.f32 %v2276, %v2319
      %v2329 = vmul.f32 %v2278, %v2320
      %v2330 = vmul.f32 %v2280, %v2321
      %v2331 = vmul.f32 %v2282, %v2322
      %v2332 = vmul.f32 %v2284, %v2323
      %v2333 = vmul.f32 %v2286, %v2324
      %v2334 = vmul.f32 %v2288, %v2325
      %v2335 = vmul.f32 %v2290, %v2326
      %v2337 = vsel %vm904, %v2327, 0
      %v2340 = vsel %vm904, %v2328, 0
      %v2343 = vsel %vm904, %v2329, 0
      %v2346 = vsel %vm904, %v2330, 0
      %v2349 = vsel %vm904, %v2331, 0
      %v2352 = vsel %vm904, %v2332, 0
      %v2355 = vsel %vm904, %v2333, 0
      %v2358 = vsel %vm904, %v2334, 0
      %v2361 = vsel %vm904, %v2335, 0
      %2363 = vmatprep.subr.mxu0 0.0
      %2364 = vmatpush1.msra.mxu0 %v2055
      %2365 = vmatprep.subr.mxu0 0.0
      %2366 = vmatpush1.msra.mxu0 %v2056
      %2367 = vmatprep.subr.mxu0 0.0
      %2368 = vmatpush1.msra.mxu0 %v2057
      %2369 = vmatprep.subr.mxu0 0.0
      %2370 = vmatpush1.msra.mxu0 %v2058
      %2371 = vmatprep.subr.mxu0 0.0
      %2372 = vmatpush1.msra.mxu0 %v2059
      %2373 = vmatprep.subr.mxu0 0.0
      %2374 = vmatpush1.msra.mxu0 %v2060
      %2375 = vmatprep.subr.mxu0 0.0
      %2376 = vmatpush1.msra.mxu0 %v2061
      %2377 = vmatprep.subr.mxu0 0.0
      %2378 = vmatpush1.msra.mxu0 %v2062
      %2379 = vmatprep.subr.mxu0 0.0
      %2380 = vmatpush1.msra.mxu0 %v2063
      %2381 = vmatprep.subr.mxu0 0.0
      %2382 = vmatpush1.msra.mxu0 0.0
      %2383 = vmatprep.subr.mxu0 0.0
      %2384 = vmatpush1.msra.mxu0 0.0
      %2385 = vmatprep.subr.mxu0 0.0
      %2386 = vmatpush1.msra.mxu0 0.0
      %2387 = vmatprep.subr.mxu0 0.0
      %2388 = vmatpush1.msra.mxu0 0.0
      %2389 = vmatprep.subr.mxu0 0.0
      %2390 = vmatpush1.msra.mxu0 0.0
      %2391 = vmatprep.subr.mxu0 0.0
      %2392 = vmatpush1.msra.mxu0 0.0
      %2393 = vmatprep.subr.mxu0 0.0
      %2394 = vmatpush1.msra.mxu0 0.0
      %2395 = vmatprep.subr.mxu0 0.0
      %2396 = vmatpush1.msra.mxu0 0.0
      %2397 = vmatprep.subr.mxu0 0.0
      %2398 = vmatpush1.msra.mxu0 0.0
      %2399 = vmatprep.subr.mxu0 0.0
      %2400 = vmatpush1.msra.mxu0 0.0
      %2401 = vmatprep.subr.mxu0 0.0
      %2402 = vmatpush1.msra.mxu0 0.0
      %2403 = vmatprep.subr.mxu0 0.0
      %2404 = vmatpush1.msra.mxu0 0.0
      %2405 = vmatprep.subr.mxu0 0.0
      %2406 = vmatpush1.msra.mxu0 0.0
      %2407 = vmatprep.subr.mxu0 0.0
      %2408 = vmatpush1.msra.mxu0 0.0
      %2409 = vmatprep.subr.mxu0 0.0
      %2410 = vmatpush1.msra.mxu0 0.0
      %2411 = vmatprep.subr.mxu0 0.0
      %2412 = vmatpush1.msra.mxu0 0.0
      %2413 = vmatprep.subr.mxu0 0.0
      %2414 = vmatpush1.msra.mxu0 0.0
      %2415 = vmatprep.subr.mxu0 0.0
      %2416 = vmatpush1.msra.mxu0 0.0
      %2417 = vmatprep.subr.mxu0 0.0
      %2418 = vmatpush1.msra.mxu0 0.0
      %2419 = vmatprep.subr.mxu0 0.0
      %2420 = vmatpush1.msra.mxu0 0.0
      %2421 = vmatprep.subr.mxu0 0.0
      %2422 = vmatpush1.msra.mxu0 0.0
      %2423 = vmatprep.subr.mxu0 0.0
      %2424 = vmatpush1.msra.mxu0 0.0
      %2425 = vmatprep.subr.mxu0 0.0
      %2426 = vmatpush1.msra.mxu0 0.0
      %2427 = vmatprep.mubr.f32.mxu0 0.0
      %2428 = vmatmul.mubr.f32.gmra.mrb[0].mxu0 %v2337
      %v2429 = vpop.f32.mrb[0].mxu0
      %v2430 = vadd.f32 0.0, %v2429
      %v2431 = vpop.f32.mrb[0].mxu0
      %2432 = vmatprep.mubr.f32.mxu0 0.0
      %2433 = vmatmul.mubr.f32.gmra.mrb[0].mxu0 %v2340
      %v2434 = vpop.f32.mrb[0].mxu0
      %v2435 = vadd.f32 0.0, %v2434
      %v2436 = vpop.f32.mrb[0].mxu0
      %2437 = vmatprep.mubr.f32.mxu0 0.0
      %2438 = vmatmul.mubr.f32.gmra.mrb[0].mxu0 %v2343
      %v2439 = vpop.f32.mrb[0].mxu0
      %v2440 = vadd.f32 0.0, %v2439
      %v2441 = vpop.f32.mrb[0].mxu0
      %2442 = vmatprep.mubr.f32.mxu0 0.0
      %2443 = vmatmul.mubr.f32.gmra.mrb[0].mxu0 %v2346
      %v2444 = vpop.f32.mrb[0].mxu0
      %v2445 = vadd.f32 0.0, %v2444
      %v2446 = vpop.f32.mrb[0].mxu0
      %2447 = vmatprep.mubr.f32.mxu0 0.0
      %2448 = vmatmul.mubr.f32.gmra.mrb[0].mxu0 %v2349
      %v2449 = vpop.f32.mrb[0].mxu0
      %v2450 = vadd.f32 0.0, %v2449
      %v2451 = vpop.f32.mrb[0].mxu0
      %2452 = vmatprep.mubr.f32.mxu0 0.0
      %2453 = vmatmul.mubr.f32.gmra.mrb[0].mxu0 %v2352
      %v2454 = vpop.f32.mrb[0].mxu0
      %v2455 = vadd.f32 0.0, %v2454
      %v2456 = vpop.f32.mrb[0].mxu0
      %2457 = vmatprep.mubr.f32.mxu0 0.0
      %2458 = vmatmul.mubr.f32.gmra.mrb[0].mxu0 %v2355
      %v2459 = vpop.f32.mrb[0].mxu0
      %v2460 = vadd.f32 0.0, %v2459
      %v2461 = vpop.f32.mrb[0].mxu0
      %2462 = vmatprep.mubr.f32.mxu0 0.0
      %2463 = vmatmul.mubr.f32.gmra.mrb[0].mxu0 %v2358
      %v2464 = vpop.f32.mrb[0].mxu0
      %v2465 = vadd.f32 0.0, %v2464
      %v2466 = vpop.f32.mrb[0].mxu0
      %2467 = vmatprep.mubr.f32.mxu0 0.0
      %2468 = vmatmul.mubr.f32.gmra.mrb[0].mxu0 %v2361
      %v2469 = vpop.f32.mrb[0].mxu0
      %v2470 = vadd.f32 0.0, %v2469
      %v2471 = vpop.f32.mrb[0].mxu0
      %2472 = vdwg.mxu0
      %v2473 = vadd.f32 %v2023, %v2430
      %v2474 = vadd.f32 %v2024, %v2435
      %v2475 = vadd.f32 %v2025, %v2440
      %v2476 = vadd.f32 %v2026, %v2445
      %v2477 = vadd.f32 %v2027, %v2450
      %v2478 = vadd.f32 %v2028, %v2455
      %v2479 = vadd.f32 %v2029, %v2460
      %v2480 = vadd.f32 %v2030, %v2465
      %v2481 = vadd.f32 %v2031, %v2470
      %vm2482 = vcmp.ge.s32.totalorder %v635, 16
      %vm2483 = vcmp.lt.s32.totalorder %v635, 20
      %vm2484 = vmand %vm2482, %vm2483
      %v2485 = vsel %vm2484, 1, 0
      %vm2486 = vcmp.eq.s32.totalorder %v2485, 1
      %v2487 = vsel %vm2486, %v591, 0.0
      %v2488 = vsel %vm2486, %v596, 0.0
      %v2489 = vsel %vm2486, %v601, 0.0
      %v2490 = vsel %vm2486, %v606, 0.0
      %v2491 = vsel %vm2486, %v611, 0.0
      %v2492 = vsel %vm2486, %v616, 0.0
      %v2493 = vsel %vm2486, %v621, 0.0
      %v2494 = vsel %vm2486, %v626, 0.0
      %v2495 = vsel %vm2486, %v631, 0.0
      %v2496 = vsel %vm2486, %v660, 0.0
      %v2497 = vsel %vm2486, %v662, 0.0
      %v2498 = vsel %vm2486, %v664, 0.0
      %v2499 = vsel %vm2486, %v666, 0.0
      %v2500 = vsel %vm2486, %v668, 0.0
      %v2501 = vsel %vm2486, %v670, 0.0
      %v2502 = vsel %vm2486, %v672, 0.0
      %v2503 = vsel %vm2486, %v674, 0.0
      %v2504 = vsel %vm2486, %v676, 0.0
      %v2505 = vsel %vm2486, %v696, 0.0
      %v2506 = vsel %vm2486, %v698, 0.0
      %v2507 = vsel %vm2486, %v700, 0.0
      %v2508 = vsel %vm2486, %v702, 0.0
      %v2509 = vsel %vm2486, %v704, 0.0
      %v2510 = vsel %vm2486, %v706, 0.0
      %v2511 = vsel %vm2486, %v708, 0.0
      %v2512 = vsel %vm2486, %v710, 0.0
      %v2513 = vsel %vm2486, %v712, 0.0
      %v2515 = vsel %vm342, %v2487, 0
      %v2518 = vsel %vm342, %v2488, 0
      %v2521 = vsel %vm342, %v2489, 0
      %v2524 = vsel %vm342, %v2490, 0
      %v2527 = vsel %vm342, %v2491, 0
      %v2530 = vsel %vm342, %v2492, 0
      %v2533 = vsel %vm342, %v2493, 0
      %v2536 = vsel %vm342, %v2494, 0
      %v2539 = vsel %vm342, %v2495, 0
      %v2542 = vsel %vm342, %v2496, 0
      %v2545 = vsel %vm342, %v2497, 0
      %v2548 = vsel %vm342, %v2498, 0
      %v2551 = vsel %vm342, %v2499, 0
      %v2554 = vsel %vm342, %v2500, 0
      %v2557 = vsel %vm342, %v2501, 0
      %v2560 = vsel %vm342, %v2502, 0
      %v2563 = vsel %vm342, %v2503, 0
      %v2566 = vsel %vm342, %v2504, 0
      %2568 = vmatprep.subr.mxu0 0.0
      %2569 = vmatpush1.xpose.msra.mxu0 %v2542
      %2570 = vmatprep.subr.mxu0 0.0
      %2571 = vmatpush1.xpose.msra.mxu0 %v2545
      %2572 = vmatprep.subr.mxu0 0.0
      %2573 = vmatpush1.xpose.msra.mxu0 %v2548
      %2574 = vmatprep.subr.mxu0 0.0
      %2575 = vmatpush1.xpose.msra.mxu0 %v2551
      %2576 = vmatprep.subr.mxu0 0.0
      %2577 = vmatpush1.xpose.msra.mxu0 %v2554
      %2578 = vmatprep.subr.mxu0 0.0
      %2579 = vmatpush1.xpose.msra.mxu0 %v2557
      %2580 = vmatprep.subr.mxu0 0.0
      %2581 = vmatpush1.xpose.msra.mxu0 %v2560
      %2582 = vmatprep.subr.mxu0 0.0
      %2583 = vmatpush1.xpose.msra.mxu0 %v2563
      %2584 = vmatprep.subr.mxu0 0.0
      %2585 = vmatpush1.xpose.msra.mxu0 %v2566
      %2586 = vmatprep.subr.mxu0 0.0
      %2587 = vmatpush1.xpose.msra.mxu0 0.0
      %2588 = vmatprep.subr.mxu0 0.0
      %2589 = vmatpush1.xpose.msra.mxu0 0.0
      %2590 = vmatprep.subr.mxu0 0.0
      %2591 = vmatpush1.xpose.msra.mxu0 0.0
      %2592 = vmatprep.subr.mxu0 0.0
      %2593 = vmatpush1.xpose.msra.mxu0 0.0
      %2594 = vmatprep.subr.mxu0 0.0
      %2595 = vmatpush1.xpose.msra.mxu0 0.0
      %2596 = vmatprep.subr.mxu0 0.0
      %2597 = vmatpush1.xpose.msra.mxu0 0.0
      %2598 = vmatprep.subr.mxu0 0.0
      %2599 = vmatpush1.xpose.msra.mxu0 0.0
      %2600 = vmatprep.subr.mxu0 0.0
      %2601 = vmatpush1.xpose.msra.mxu0 0.0
      %2602 = vmatprep.subr.mxu0 0.0
      %2603 = vmatpush1.xpose.msra.mxu0 0.0
      %2604 = vmatprep.subr.mxu0 0.0
      %2605 = vmatpush1.xpose.msra.mxu0 0.0
      %2606 = vmatprep.subr.mxu0 0.0
      %2607 = vmatpush1.xpose.msra.mxu0 0.0
      %2608 = vmatprep.subr.mxu0 0.0
      %2609 = vmatpush1.xpose.msra.mxu0 0.0
      %2610 = vmatprep.subr.mxu0 0.0
      %2611 = vmatpush1.xpose.msra.mxu0 0.0
      %2612 = vmatprep.subr.mxu0 0.0
      %2613 = vmatpush1.xpose.msra.mxu0 0.0
      %2614 = vmatprep.subr.mxu0 0.0
      %2615 = vmatpush1.xpose.msra.mxu0 0.0
      %2616 = vmatprep.subr.mxu0 0.0
      %2617 = vmatpush1.xpose.msra.mxu0 0.0
      %2618 = vmatprep.subr.mxu0 0.0
      %2619 = vmatpush1.xpose.msra.mxu0 0.0
      %2620 = vmatprep.subr.mxu0 0.0
      %2621 = vmatpush1.xpose.msra.mxu0 0.0
      %2622 = vmatprep.subr.mxu0 0.0
      %2623 = vmatpush1.xpose.msra.mxu0 0.0
      %2624 = vmatprep.subr.mxu0 0.0
      %2625 = vmatpush1.xpose.msra.mxu0 0.0
      %2626 = vmatprep.subr.mxu0 0.0
      %2627 = vmatpush1.xpose.msra.mxu0 0.0
      %2628 = vmatprep.subr.mxu0 0.0
      %2629 = vmatpush1.xpose.msra.mxu0 0.0
      %2630 = vmatprep.subr.mxu0 0.0
      %2631 = vmatpush1.xpose.msra.mxu0 0.0
      %2632 = vmatprep.mubr.f32.mxu0 0.0
      %2633 = vmatmul.mubr.f32.gmra.mrb[0].mxu0 %v2515
      %v2634 = vpop.f32.mrb[0].mxu0
      %v2635 = vadd.f32 0.0, %v2634
      %v2636 = vpop.f32.mrb[0].mxu0
      %2637 = vmatprep.mubr.f32.mxu0 0.0
      %2638 = vmatmul.mubr.f32.gmra.mrb[0].mxu0 %v2518
      %v2639 = vpop.f32.mrb[0].mxu0
      %v2640 = vadd.f32 0.0, %v2639
      %v2641 = vpop.f32.mrb[0].mxu0
      %2642 = vmatprep.mubr.f32.mxu0 0.0
      %2643 = vmatmul.mubr.f32.gmra.mrb[0].mxu0 %v2521
      %v2644 = vpop.f32.mrb[0].mxu0
      %v2645 = vadd.f32 0.0, %v2644
      %v2646 = vpop.f32.mrb[0].mxu0
      %2647 = vmatprep.mubr.f32.mxu0 0.0
      %2648 = vmatmul.mubr.f32.gmra.mrb[0].mxu0 %v2524
      %v2649 = vpop.f32.mrb[0].mxu0
      %v2650 = vadd.f32 0.0, %v2649
      %v2651 = vpop.f32.mrb[0].mxu0
      %2652 = vmatprep.mubr.f32.mxu0 0.0
      %2653 = vmatmul.mubr.f32.gmra.mrb[0].mxu0 %v2527
      %v2654 = vpop.f32.mrb[0].mxu0
      %v2655 = vadd.f32 0.0, %v2654
      %v2656 = vpop.f32.mrb[0].mxu0
      %2657 = vmatprep.mubr.f32.mxu0 0.0
      %2658 = vmatmul.mubr.f32.gmra.mrb[0].mxu0 %v2530
      %v2659 = vpop.f32.mrb[0].mxu0
      %v2660 = vadd.f32 0.0, %v2659
      %v2661 = vpop.f32.mrb[0].mxu0
      %2662 = vmatprep.mubr.f32.mxu0 0.0
      %2663 = vmatmul.mubr.f32.gmra.mrb[0].mxu0 %v2533
      %v2664 = vpop.f32.mrb[0].mxu0
      %v2665 = vadd.f32 0.0, %v2664
      %v2666 = vpop.f32.mrb[0].mxu0
      %2667 = vmatprep.mubr.f32.mxu0 0.0
      %2668 = vmatmul.mubr.f32.gmra.mrb[0].mxu0 %v2536
      %v2669 = vpop.f32.mrb[0].mxu0
      %v2670 = vadd.f32 0.0, %v2669
      %v2671 = vpop.f32.mrb[0].mxu0
      %2672 = vmatprep.mubr.f32.mxu0 0.0
      %2673 = vmatmul.mubr.f32.gmra.mrb[0].mxu0 %v2539
      %v2674 = vpop.f32.mrb[0].mxu0
      %v2675 = vadd.f32 0.0, %v2674
      %v2676 = vpop.f32.mrb[0].mxu0
      %2677 = vdwg.mxu0
      %v2678 = vmul.f32 %v2635, 0.5
      %v2679 = vmul.f32 %v2640, 0.5
      %v2680 = vmul.f32 %v2645, 0.5
      %v2681 = vmul.f32 %v2650, 0.5
      %v2682 = vmul.f32 %v2655, 0.5
      %v2683 = vmul.f32 %v2660, 0.5
      %v2684 = vmul.f32 %v2665, 0.5
      %v2685 = vmul.f32 %v2670, 0.5
      %v2686 = vmul.f32 %v2675, 0.5
      %v2687 = vsel %vm904, %v2678, -inf
      %2688 = vmax.xlane.f32.xlu0 %v2687
      %v2689 = vpop.xlane.xlu0 %2688
      %v2690 = vsel %vm904, %v2679, -inf
      %2691 = vmax.xlane.f32.xlu0 %v2690
      %v2692 = vpop.xlane.xlu0 %2691
      %v2693 = vsel %vm904, %v2680, -inf
      %2694 = vmax.xlane.f32.xlu0 %v2693
      %v2695 = vpop.xlane.xlu0 %2694
      %v2696 = vsel %vm904, %v2681, -inf
      %2697 = vmax.xlane.f32.xlu0 %v2696
      %v2698 = vpop.xlane.xlu0 %2697
      %v2699 = vsel %vm904, %v2682, -inf
      %2700 = vmax.xlane.f32.xlu0 %v2699
      %v2701 = vpop.xlane.xlu0 %2700
      %v2702 = vsel %vm904, %v2683, -inf
      %2703 = vmax.xlane.f32.xlu0 %v2702
      %v2704 = vpop.xlane.xlu0 %2703
      %v2705 = vsel %vm904, %v2684, -inf
      %2706 = vmax.xlane.f32.xlu0 %v2705
      %v2707 = vpop.xlane.xlu0 %2706
      %v2708 = vsel %vm904, %v2685, -inf
      %2709 = vmax.xlane.f32.xlu0 %v2708
      %v2710 = vpop.xlane.xlu0 %2709
      %v2711 = vsel %vm904, %v2686, -inf
      %2712 = vmax.xlane.f32.xlu0 %v2711
      %v2713 = vpop.xlane.xlu0 %2712
      %v2714 = vsub.f32 %v2678, %v2689
      %v2715 = vsub.f32 %v2679, %v2692
      %v2716 = vsub.f32 %v2680, %v2695
      %v2717 = vsub.f32 %v2681, %v2698
      %v2718 = vsub.f32 %v2682, %v2701
      %v2719 = vsub.f32 %v2683, %v2704
      %v2720 = vsub.f32 %v2684, %v2707
      %v2721 = vsub.f32 %v2685, %v2710
      %v2722 = vsub.f32 %v2686, %v2713
      %v2723 = vmul.f32 %v2714, 1.442695
      %v2724 = vpow.pop %v2723
      %v2725 = vmul.f32 %v2715, 1.442695
      %v2726 = vpow.pop %v2725
      %v2727 = vmul.f32 %v2716, 1.442695
      %v2728 = vpow.pop %v2727
      %v2729 = vmul.f32 %v2717, 1.442695
      %v2730 = vpow.pop %v2729
      %v2731 = vmul.f32 %v2718, 1.442695
      %v2732 = vpow.pop %v2731
      %v2733 = vmul.f32 %v2719, 1.442695
      %v2734 = vpow.pop %v2733
      %v2735 = vmul.f32 %v2720, 1.442695
      %v2736 = vpow.pop %v2735
      %v2737 = vmul.f32 %v2721, 1.442695
      %v2738 = vpow.pop %v2737
      %v2739 = vmul.f32 %v2722, 1.442695
      %v2740 = vpow.pop %v2739
      %v2741 = vsel %vm904, %v2724, 0.0
      %2742 = vadd.xlane.f32.xlu0 %v2741
      %v2743 = vpop.xlane.xlu0 %2742
      %v2744 = vsel %vm904, %v2726, 0.0
      %2745 = vadd.xlane.f32.xlu0 %v2744
      %v2746 = vpop.xlane.xlu0 %2745
      %v2747 = vsel %vm904, %v2728, 0.0
      %2748 = vadd.xlane.f32.xlu0 %v2747
      %v2749 = vpop.xlane.xlu0 %2748
      %v2750 = vsel %vm904, %v2730, 0.0
      %2751 = vadd.xlane.f32.xlu0 %v2750
      %v2752 = vpop.xlane.xlu0 %2751
      %v2753 = vsel %vm904, %v2732, 0.0
      %2754 = vadd.xlane.f32.xlu0 %v2753
      %v2755 = vpop.xlane.xlu0 %2754
      %v2756 = vsel %vm904, %v2734, 0.0
      %2757 = vadd.xlane.f32.xlu0 %v2756
      %v2758 = vpop.xlane.xlu0 %2757
      %v2759 = vsel %vm904, %v2736, 0.0
      %2760 = vadd.xlane.f32.xlu0 %v2759
      %v2761 = vpop.xlane.xlu0 %2760
      %v2762 = vsel %vm904, %v2738, 0.0
      %2763 = vadd.xlane.f32.xlu0 %v2762
      %v2764 = vpop.xlane.xlu0 %2763
      %v2765 = vsel %vm904, %v2740, 0.0
      %2766 = vadd.xlane.f32.xlu0 %v2765
      %v2767 = vpop.xlane.xlu0 %2766
      %v2768 = vrcp.pop %v2743
      %v2769 = vrcp.pop %v2746
      %v2770 = vrcp.pop %v2749
      %v2771 = vrcp.pop %v2752
      %v2772 = vrcp.pop %v2755
      %v2773 = vrcp.pop %v2758
      %v2774 = vrcp.pop %v2761
      %v2775 = vrcp.pop %v2764
      %v2776 = vrcp.pop %v2767
      %v2777 = vmul.f32 %v2724, %v2768
      %v2778 = vmul.f32 %v2726, %v2769
      %v2779 = vmul.f32 %v2728, %v2770
      %v2780 = vmul.f32 %v2730, %v2771
      %v2781 = vmul.f32 %v2732, %v2772
      %v2782 = vmul.f32 %v2734, %v2773
      %v2783 = vmul.f32 %v2736, %v2774
      %v2784 = vmul.f32 %v2738, %v2775
      %v2785 = vmul.f32 %v2740, %v2776
      %v2787 = vsel %vm904, %v2777, 0
      %v2790 = vsel %vm904, %v2778, 0
      %v2793 = vsel %vm904, %v2779, 0
      %v2796 = vsel %vm904, %v2780, 0
      %v2799 = vsel %vm904, %v2781, 0
      %v2802 = vsel %vm904, %v2782, 0
      %v2805 = vsel %vm904, %v2783, 0
      %v2808 = vsel %vm904, %v2784, 0
      %v2811 = vsel %vm904, %v2785, 0
      %2813 = vmatprep.subr.mxu0 0.0
      %2814 = vmatpush1.msra.mxu0 %v2505
      %2815 = vmatprep.subr.mxu0 0.0
      %2816 = vmatpush1.msra.mxu0 %v2506
      %2817 = vmatprep.subr.mxu0 0.0
      %2818 = vmatpush1.msra.mxu0 %v2507
      %2819 = vmatprep.subr.mxu0 0.0
      %2820 = vmatpush1.msra.mxu0 %v2508
      %2821 = vmatprep.subr.mxu0 0.0
      %2822 = vmatpush1.msra.mxu0 %v2509
      %2823 = vmatprep.subr.mxu0 0.0
      %2824 = vmatpush1.msra.mxu0 %v2510
      %2825 = vmatprep.subr.mxu0 0.0
      %2826 = vmatpush1.msra.mxu0 %v2511
      %2827 = vmatprep.subr.mxu0 0.0
      %2828 = vmatpush1.msra.mxu0 %v2512
      %2829 = vmatprep.subr.mxu0 0.0
      %2830 = vmatpush1.msra.mxu0 %v2513
      %2831 = vmatprep.subr.mxu0 0.0
      %2832 = vmatpush1.msra.mxu0 0.0
      %2833 = vmatprep.subr.mxu0 0.0
      %2834 = vmatpush1.msra.mxu0 0.0
      %2835 = vmatprep.subr.mxu0 0.0
      %2836 = vmatpush1.msra.mxu0 0.0
      %2837 = vmatprep.subr.mxu0 0.0
      %2838 = vmatpush1.msra.mxu0 0.0
      %2839 = vmatprep.subr.mxu0 0.0
      %2840 = vmatpush1.msra.mxu0 0.0
      %2841 = vmatprep.subr.mxu0 0.0
      %2842 = vmatpush1.msra.mxu0 0.0
      %2843 = vmatprep.subr.mxu0 0.0
      %2844 = vmatpush1.msra.mxu0 0.0
      %2845 = vmatprep.subr.mxu0 0.0
      %2846 = vmatpush1.msra.mxu0 0.0
      %2847 = vmatprep.subr.mxu0 0.0
      %2848 = vmatpush1.msra.mxu0 0.0
      %2849 = vmatprep.subr.mxu0 0.0
      %2850 = vmatpush1.msra.mxu0 0.0
      %2851 = vmatprep.subr.mxu0 0.0
      %2852 = vmatpush1.msra.mxu0 0.0
      %2853 = vmatprep.subr.mxu0 0.0
      %2854 = vmatpush1.msra.mxu0 0.0
      %2855 = vmatprep.subr.mxu0 0.0
      %2856 = vmatpush1.msra.mxu0 0.0
      %2857 = vmatprep.subr.mxu0 0.0
      %2858 = vmatpush1.msra.mxu0 0.0
      %2859 = vmatprep.subr.mxu0 0.0
      %2860 = vmatpush1.msra.mxu0 0.0
      %2861 = vmatprep.subr.mxu0 0.0
      %2862 = vmatpush1.msra.mxu0 0.0
      %2863 = vmatprep.subr.mxu0 0.0
      %2864 = vmatpush1.msra.mxu0 0.0
      %2865 = vmatprep.subr.mxu0 0.0
      %2866 = vmatpush1.msra.mxu0 0.0
      %2867 = vmatprep.subr.mxu0 0.0
      %2868 = vmatpush1.msra.mxu0 0.0
      %2869 = vmatprep.subr.mxu0 0.0
      %2870 = vmatpush1.msra.mxu0 0.0
      %2871 = vmatprep.subr.mxu0 0.0
      %2872 = vmatpush1.msra.mxu0 0.0
      %2873 = vmatprep.subr.mxu0 0.0
      %2874 = vmatpush1.msra.mxu0 0.0
      %2875 = vmatprep.subr.mxu0 0.0
      %2876 = vmatpush1.msra.mxu0 0.0
      %2877 = vmatprep.mubr.f32.mxu0 0.0
      %2878 = vmatmul.mubr.f32.gmra.mrb[0].mxu0 %v2787
      %v2879 = vpop.f32.mrb[0].mxu0
      %v2880 = vadd.f32 0.0, %v2879
      %v2881 = vpop.f32.mrb[0].mxu0
      %2882 = vmatprep.mubr.f32.mxu0 0.0
      %2883 = vmatmul.mubr.f32.gmra.mrb[0].mxu0 %v2790
      %v2884 = vpop.f32.mrb[0].mxu0
      %v2885 = vadd.f32 0.0, %v2884
      %v2886 = vpop.f32.mrb[0].mxu0
      %2887 = vmatprep.mubr.f32.mxu0 0.0
      %2888 = vmatmul.mubr.f32.gmra.mrb[0].mxu0 %v2793
      %v2889 = vpop.f32.mrb[0].mxu0
      %v2890 = vadd.f32 0.0, %v2889
      %v2891 = vpop.f32.mrb[0].mxu0
      %2892 = vmatprep.mubr.f32.mxu0 0.0
      %2893 = vmatmul.mubr.f32.gmra.mrb[0].mxu0 %v2796
      %v2894 = vpop.f32.mrb[0].mxu0
      %v2895 = vadd.f32 0.0, %v2894
      %v2896 = vpop.f32.mrb[0].mxu0
      %2897 = vmatprep.mubr.f32.mxu0 0.0
      %2898 = vmatmul.mubr.f32.gmra.mrb[0].mxu0 %v2799
      %v2899 = vpop.f32.mrb[0].mxu0
      %v2900 = vadd.f32 0.0, %v2899
      %v2901 = vpop.f32.mrb[0].mxu0
      %2902 = vmatprep.mubr.f32.mxu0 0.0
      %2903 = vmatmul.mubr.f32.gmra.mrb[0].mxu0 %v2802
      %v2904 = vpop.f32.mrb[0].mxu0
      %v2905 = vadd.f32 0.0, %v2904
      %v2906 = vpop.f32.mrb[0].mxu0
      %2907 = vmatprep.mubr.f32.mxu0 0.0
      %2908 = vmatmul.mubr.f32.gmra.mrb[0].mxu0 %v2805
      %v2909 = vpop.f32.mrb[0].mxu0
      %v2910 = vadd.f32 0.0, %v2909
      %v2911 = vpop.f32.mrb[0].mxu0
      %2912 = vmatprep.mubr.f32.mxu0 0.0
      %2913 = vmatmul.mubr.f32.gmra.mrb[0].mxu0 %v2808
      %v2914 = vpop.f32.mrb[0].mxu0
      %v2915 = vadd.f32 0.0, %v2914
      %v2916 = vpop.f32.mrb[0].mxu0
      %2917 = vmatprep.mubr.f32.mxu0 0.0
      %2918 = vmatmul.mubr.f32.gmra.mrb[0].mxu0 %v2811
      %v2919 = vpop.f32.mrb[0].mxu0
      %v2920 = vadd.f32 0.0, %v2919
      %v2921 = vpop.f32.mrb[0].mxu0
      %2922 = vdwg.mxu0
      %v2923 = vadd.f32 %v2473, %v2880
      %v2924 = vadd.f32 %v2474, %v2885
      %v2925 = vadd.f32 %v2475, %v2890
      %v2926 = vadd.f32 %v2476, %v2895
      %v2927 = vadd.f32 %v2477, %v2900
      %v2928 = vadd.f32 %v2478, %v2905
      %v2929 = vadd.f32 %v2479, %v2910
      %v2930 = vadd.f32 %v2480, %v2915
      %v2931 = vadd.f32 %v2481, %v2920
      %vm2932 = vcmp.ge.s32.totalorder %v635, 20
      %vm2933 = vcmp.lt.s32.totalorder %v635, 24
      %vm2934 = vmand %vm2932, %vm2933
      %v2935 = vsel %vm2934, 1, 0
      %vm2936 = vcmp.eq.s32.totalorder %v2935, 1
      %v2937 = vsel %vm2936, %v591, 0.0
      %v2938 = vsel %vm2936, %v596, 0.0
      %v2939 = vsel %vm2936, %v601, 0.0
      %v2940 = vsel %vm2936, %v606, 0.0
      %v2941 = vsel %vm2936, %v611, 0.0
      %v2942 = vsel %vm2936, %v616, 0.0
      %v2943 = vsel %vm2936, %v621, 0.0
      %v2944 = vsel %vm2936, %v626, 0.0
      %v2945 = vsel %vm2936, %v631, 0.0
      %v2946 = vsel %vm2936, %v660, 0.0
      %v2947 = vsel %vm2936, %v662, 0.0
      %v2948 = vsel %vm2936, %v664, 0.0
      %v2949 = vsel %vm2936, %v666, 0.0
      %v2950 = vsel %vm2936, %v668, 0.0
      %v2951 = vsel %vm2936, %v670, 0.0
      %v2952 = vsel %vm2936, %v672, 0.0
      %v2953 = vsel %vm2936, %v674, 0.0
      %v2954 = vsel %vm2936, %v676, 0.0
      %v2955 = vsel %vm2936, %v696, 0.0
      %v2956 = vsel %vm2936, %v698, 0.0
      %v2957 = vsel %vm2936, %v700, 0.0
      %v2958 = vsel %vm2936, %v702, 0.0
      %v2959 = vsel %vm2936, %v704, 0.0
      %v2960 = vsel %vm2936, %v706, 0.0
      %v2961 = vsel %vm2936, %v708, 0.0
      %v2962 = vsel %vm2936, %v710, 0.0
      %v2963 = vsel %vm2936, %v712, 0.0
      %v2965 = vsel %vm342, %v2937, 0
      %v2968 = vsel %vm342, %v2938, 0
      %v2971 = vsel %vm342, %v2939, 0
      %v2974 = vsel %vm342, %v2940, 0
      %v2977 = vsel %vm342, %v2941, 0
      %v2980 = vsel %vm342, %v2942, 0
      %v2983 = vsel %vm342, %v2943, 0
      %v2986 = vsel %vm342, %v2944, 0
      %v2989 = vsel %vm342, %v2945, 0
      %v2992 = vsel %vm342, %v2946, 0
      %v2995 = vsel %vm342, %v2947, 0
      %v2998 = vsel %vm342, %v2948, 0
      %v3001 = vsel %vm342, %v2949, 0
      %v3004 = vsel %vm342, %v2950, 0
      %v3007 = vsel %vm342, %v2951, 0
      %v3010 = vsel %vm342, %v2952, 0
      %v3013 = vsel %vm342, %v2953, 0
      %v3016 = vsel %vm342, %v2954, 0
      %3018 = vmatprep.subr.mxu0 0.0
      %3019 = vmatpush1.xpose.msra.mxu0 %v2992
      %3020 = vmatprep.subr.mxu0 0.0
      %3021 = vmatpush1.xpose.msra.mxu0 %v2995
      %3022 = vmatprep.subr.mxu0 0.0
      %3023 = vmatpush1.xpose.msra.mxu0 %v2998
      %3024 = vmatprep.subr.mxu0 0.0
      %3025 = vmatpush1.xpose.msra.mxu0 %v3001
      %3026 = vmatprep.subr.mxu0 0.0
      %3027 = vmatpush1.xpose.msra.mxu0 %v3004
      %3028 = vmatprep.subr.mxu0 0.0
      %3029 = vmatpush1.xpose.msra.mxu0 %v3007
      %3030 = vmatprep.subr.mxu0 0.0
      %3031 = vmatpush1.xpose.msra.mxu0 %v3010
      %3032 = vmatprep.subr.mxu0 0.0
      %3033 = vmatpush1.xpose.msra.mxu0 %v3013
      %3034 = vmatprep.subr.mxu0 0.0
      %3035 = vmatpush1.xpose.msra.mxu0 %v3016
      %3036 = vmatprep.subr.mxu0 0.0
      %3037 = vmatpush1.xpose.msra.mxu0 0.0
      %3038 = vmatprep.subr.mxu0 0.0
      %3039 = vmatpush1.xpose.msra.mxu0 0.0
      %3040 = vmatprep.subr.mxu0 0.0
      %3041 = vmatpush1.xpose.msra.mxu0 0.0
      %3042 = vmatprep.subr.mxu0 0.0
      %3043 = vmatpush1.xpose.msra.mxu0 0.0
      %3044 = vmatprep.subr.mxu0 0.0
      %3045 = vmatpush1.xpose.msra.mxu0 0.0
      %3046 = vmatprep.subr.mxu0 0.0
      %3047 = vmatpush1.xpose.msra.mxu0 0.0
      %3048 = vmatprep.subr.mxu0 0.0
      %3049 = vmatpush1.xpose.msra.mxu0 0.0
      %3050 = vmatprep.subr.mxu0 0.0
      %3051 = vmatpush1.xpose.msra.mxu0 0.0
      %3052 = vmatprep.subr.mxu0 0.0
      %3053 = vmatpush1.xpose.msra.mxu0 0.0
      %3054 = vmatprep.subr.mxu0 0.0
      %3055 = vmatpush1.xpose.msra.mxu0 0.0
      %3056 = vmatprep.subr.mxu0 0.0
      %3057 = vmatpush1.xpose.msra.mxu0 0.0
      %3058 = vmatprep.subr.mxu0 0.0
      %3059 = vmatpush1.xpose.msra.mxu0 0.0
      %3060 = vmatprep.subr.mxu0 0.0
      %3061 = vmatpush1.xpose.msra.mxu0 0.0
      %3062 = vmatprep.subr.mxu0 0.0
      %3063 = vmatpush1.xpose.msra.mxu0 0.0
      %3064 = vmatprep.subr.mxu0 0.0
      %3065 = vmatpush1.xpose.msra.mxu0 0.0
      %3066 = vmatprep.subr.mxu0 0.0
      %3067 = vmatpush1.xpose.msra.mxu0 0.0
      %3068 = vmatprep.subr.mxu0 0.0
      %3069 = vmatpush1.xpose.msra.mxu0 0.0
      %3070 = vmatprep.subr.mxu0 0.0
      %3071 = vmatpush1.xpose.msra.mxu0 0.0
      %3072 = vmatprep.subr.mxu0 0.0
      %3073 = vmatpush1.xpose.msra.mxu0 0.0
      %3074 = vmatprep.subr.mxu0 0.0
      %3075 = vmatpush1.xpose.msra.mxu0 0.0
      %3076 = vmatprep.subr.mxu0 0.0
      %3077 = vmatpush1.xpose.msra.mxu0 0.0
      %3078 = vmatprep.subr.mxu0 0.0
      %3079 = vmatpush1.xpose.msra.mxu0 0.0
      %3080 = vmatprep.subr.mxu0 0.0
      %3081 = vmatpush1.xpose.msra.mxu0 0.0
      %3082 = vmatprep.mubr.f32.mxu0 0.0
      %3083 = vmatmul.mubr.f32.gmra.mrb[0].mxu0 %v2965
      %v3084 = vpop.f32.mrb[0].mxu0
      %v3085 = vadd.f32 0.0, %v3084
      %v3086 = vpop.f32.mrb[0].mxu0
      %3087 = vmatprep.mubr.f32.mxu0 0.0
      %3088 = vmatmul.mubr.f32.gmra.mrb[0].mxu0 %v2968
      %v3089 = vpop.f32.mrb[0].mxu0
      %v3090 = vadd.f32 0.0, %v3089
      %v3091 = vpop.f32.mrb[0].mxu0
      %3092 = vmatprep.mubr.f32.mxu0 0.0
      %3093 = vmatmul.mubr.f32.gmra.mrb[0].mxu0 %v2971
      %v3094 = vpop.f32.mrb[0].mxu0
      %v3095 = vadd.f32 0.0, %v3094
      %v3096 = vpop.f32.mrb[0].mxu0
      %3097 = vmatprep.mubr.f32.mxu0 0.0
      %3098 = vmatmul.mubr.f32.gmra.mrb[0].mxu0 %v2974
      %v3099 = vpop.f32.mrb[0].mxu0
      %v3100 = vadd.f32 0.0, %v3099
      %v3101 = vpop.f32.mrb[0].mxu0
      %3102 = vmatprep.mubr.f32.mxu0 0.0
      %3103 = vmatmul.mubr.f32.gmra.mrb[0].mxu0 %v2977
      %v3104 = vpop.f32.mrb[0].mxu0
      %v3105 = vadd.f32 0.0, %v3104
      %v3106 = vpop.f32.mrb[0].mxu0
      %3107 = vmatprep.mubr.f32.mxu0 0.0
      %3108 = vmatmul.mubr.f32.gmra.mrb[0].mxu0 %v2980
      %v3109 = vpop.f32.mrb[0].mxu0
      %v3110 = vadd.f32 0.0, %v3109
      %v3111 = vpop.f32.mrb[0].mxu0
      %3112 = vmatprep.mubr.f32.mxu0 0.0
      %3113 = vmatmul.mubr.f32.gmra.mrb[0].mxu0 %v2983
      %v3114 = vpop.f32.mrb[0].mxu0
      %v3115 = vadd.f32 0.0, %v3114
      %v3116 = vpop.f32.mrb[0].mxu0
      %3117 = vmatprep.mubr.f32.mxu0 0.0
      %3118 = vmatmul.mubr.f32.gmra.mrb[0].mxu0 %v2986
      %v3119 = vpop.f32.mrb[0].mxu0
      %v3120 = vadd.f32 0.0, %v3119
      %v3121 = vpop.f32.mrb[0].mxu0
      %3122 = vmatprep.mubr.f32.mxu0 0.0
      %3123 = vmatmul.mubr.f32.gmra.mrb[0].mxu0 %v2989
      %v3124 = vpop.f32.mrb[0].mxu0
      %v3125 = vadd.f32 0.0, %v3124
      %v3126 = vpop.f32.mrb[0].mxu0
      %3127 = vdwg.mxu0
      %v3128 = vmul.f32 %v3085, 0.5
      %v3129 = vmul.f32 %v3090, 0.5
      %v3130 = vmul.f32 %v3095, 0.5
      %v3131 = vmul.f32 %v3100, 0.5
      %v3132 = vmul.f32 %v3105, 0.5
      %v3133 = vmul.f32 %v3110, 0.5
      %v3134 = vmul.f32 %v3115, 0.5
      %v3135 = vmul.f32 %v3120, 0.5
      %v3136 = vmul.f32 %v3125, 0.5
      %v3137 = vsel %vm904, %v3128, -inf
      %3138 = vmax.xlane.f32.xlu0 %v3137
      %v3139 = vpop.xlane.xlu0 %3138
      %v3140 = vsel %vm904, %v3129, -inf
      %3141 = vmax.xlane.f32.xlu0 %v3140
      %v3142 = vpop.xlane.xlu0 %3141
      %v3143 = vsel %vm904, %v3130, -inf
      %3144 = vmax.xlane.f32.xlu0 %v3143
      %v3145 = vpop.xlane.xlu0 %3144
      %v3146 = vsel %vm904, %v3131, -inf
      %3147 = vmax.xlane.f32.xlu0 %v3146
      %v3148 = vpop.xlane.xlu0 %3147
      %v3149 = vsel %vm904, %v3132, -inf
      %3150 = vmax.xlane.f32.xlu0 %v3149
      %v3151 = vpop.xlane.xlu0 %3150
      %v3152 = vsel %vm904, %v3133, -inf
      %3153 = vmax.xlane.f32.xlu0 %v3152
      %v3154 = vpop.xlane.xlu0 %3153
      %v3155 = vsel %vm904, %v3134, -inf
      %3156 = vmax.xlane.f32.xlu0 %v3155
      %v3157 = vpop.xlane.xlu0 %3156
      %v3158 = vsel %vm904, %v3135, -inf
      %3159 = vmax.xlane.f32.xlu0 %v3158
      %v3160 = vpop.xlane.xlu0 %3159
      %v3161 = vsel %vm904, %v3136, -inf
      %3162 = vmax.xlane.f32.xlu0 %v3161
      %v3163 = vpop.xlane.xlu0 %3162
      %v3164 = vsub.f32 %v3128, %v3139
      %v3165 = vsub.f32 %v3129, %v3142
      %v3166 = vsub.f32 %v3130, %v3145
      %v3167 = vsub.f32 %v3131, %v3148
      %v3168 = vsub.f32 %v3132, %v3151
      %v3169 = vsub.f32 %v3133, %v3154
      %v3170 = vsub.f32 %v3134, %v3157
      %v3171 = vsub.f32 %v3135, %v3160
      %v3172 = vsub.f32 %v3136, %v3163
      %v3173 = vmul.f32 %v3164, 1.442695
      %v3174 = vpow.pop %v3173
      %v3175 = vmul.f32 %v3165, 1.442695
      %v3176 = vpow.pop %v3175
      %v3177 = vmul.f32 %v3166, 1.442695
      %v3178 = vpow.pop %v3177
      %v3179 = vmul.f32 %v3167, 1.442695
      %v3180 = vpow.pop %v3179
      %v3181 = vmul.f32 %v3168, 1.442695
      %v3182 = vpow.pop %v3181
      %v3183 = vmul.f32 %v3169, 1.442695
      %v3184 = vpow.pop %v3183
      %v3185 = vmul.f32 %v3170, 1.442695
      %v3186 = vpow.pop %v3185
      %v3187 = vmul.f32 %v3171, 1.442695
      %v3188 = vpow.pop %v3187
      %v3189 = vmul.f32 %v3172, 1.442695
      %v3190 = vpow.pop %v3189
      %v3191 = vsel %vm904, %v3174, 0.0
      %3192 = vadd.xlane.f32.xlu0 %v3191
      %v3193 = vpop.xlane.xlu0 %3192
      %v3194 = vsel %vm904, %v3176, 0.0
      %3195 = vadd.xlane.f32.xlu0 %v3194
      %v3196 = vpop.xlane.xlu0 %3195
      %v3197 = vsel %vm904, %v3178, 0.0
      %3198 = vadd.xlane.f32.xlu0 %v3197
      %v3199 = vpop.xlane.xlu0 %3198
      %v3200 = vsel %vm904, %v3180, 0.0
      %3201 = vadd.xlane.f32.xlu0 %v3200
      %v3202 = vpop.xlane.xlu0 %3201
      %v3203 = vsel %vm904, %v3182, 0.0
      %3204 = vadd.xlane.f32.xlu0 %v3203
      %v3205 = vpop.xlane.xlu0 %3204
      %v3206 = vsel %vm904, %v3184, 0.0
      %3207 = vadd.xlane.f32.xlu0 %v3206
      %v3208 = vpop.xlane.xlu0 %3207
      %v3209 = vsel %vm904, %v3186, 0.0
      %3210 = vadd.xlane.f32.xlu0 %v3209
      %v3211 = vpop.xlane.xlu0 %3210
      %v3212 = vsel %vm904, %v3188, 0.0
      %3213 = vadd.xlane.f32.xlu0 %v3212
      %v3214 = vpop.xlane.xlu0 %3213
      %v3215 = vsel %vm904, %v3190, 0.0
      %3216 = vadd.xlane.f32.xlu0 %v3215
      %v3217 = vpop.xlane.xlu0 %3216
      %v3218 = vrcp.pop %v3193
      %v3219 = vrcp.pop %v3196
      %v3220 = vrcp.pop %v3199
      %v3221 = vrcp.pop %v3202
      %v3222 = vrcp.pop %v3205
      %v3223 = vrcp.pop %v3208
      %v3224 = vrcp.pop %v3211
      %v3225 = vrcp.pop %v3214
      %v3226 = vrcp.pop %v3217
      %v3227 = vmul.f32 %v3174, %v3218
      %v3228 = vmul.f32 %v3176, %v3219
      %v3229 = vmul.f32 %v3178, %v3220
      %v3230 = vmul.f32 %v3180, %v3221
      %v3231 = vmul.f32 %v3182, %v3222
      %v3232 = vmul.f32 %v3184, %v3223
      %v3233 = vmul.f32 %v3186, %v3224
      %v3234 = vmul.f32 %v3188, %v3225
      %v3235 = vmul.f32 %v3190, %v3226
      %v3237 = vsel %vm904, %v3227, 0
      %v3240 = vsel %vm904, %v3228, 0
      %v3243 = vsel %vm904, %v3229, 0
      %v3246 = vsel %vm904, %v3230, 0
      %v3249 = vsel %vm904, %v3231, 0
      %v3252 = vsel %vm904, %v3232, 0
      %v3255 = vsel %vm904, %v3233, 0
      %v3258 = vsel %vm904, %v3234, 0
      %v3261 = vsel %vm904, %v3235, 0
      %3263 = vmatprep.subr.mxu0 0.0
      %3264 = vmatpush1.msra.mxu0 %v2955
      %3265 = vmatprep.subr.mxu0 0.0
      %3266 = vmatpush1.msra.mxu0 %v2956
      %3267 = vmatprep.subr.mxu0 0.0
      %3268 = vmatpush1.msra.mxu0 %v2957
      %3269 = vmatprep.subr.mxu0 0.0
      %3270 = vmatpush1.msra.mxu0 %v2958
      %3271 = vmatprep.subr.mxu0 0.0
      %3272 = vmatpush1.msra.mxu0 %v2959
      %3273 = vmatprep.subr.mxu0 0.0
      %3274 = vmatpush1.msra.mxu0 %v2960
      %3275 = vmatprep.subr.mxu0 0.0
      %3276 = vmatpush1.msra.mxu0 %v2961
      %3277 = vmatprep.subr.mxu0 0.0
      %3278 = vmatpush1.msra.mxu0 %v2962
      %3279 = vmatprep.subr.mxu0 0.0
      %3280 = vmatpush1.msra.mxu0 %v2963
      %3281 = vmatprep.subr.mxu0 0.0
      %3282 = vmatpush1.msra.mxu0 0.0
      %3283 = vmatprep.subr.mxu0 0.0
      %3284 = vmatpush1.msra.mxu0 0.0
      %3285 = vmatprep.subr.mxu0 0.0
      %3286 = vmatpush1.msra.mxu0 0.0
      %3287 = vmatprep.subr.mxu0 0.0
      %3288 = vmatpush1.msra.mxu0 0.0
      %3289 = vmatprep.subr.mxu0 0.0
      %3290 = vmatpush1.msra.mxu0 0.0
      %3291 = vmatprep.subr.mxu0 0.0
      %3292 = vmatpush1.msra.mxu0 0.0
      %3293 = vmatprep.subr.mxu0 0.0
      %3294 = vmatpush1.msra.mxu0 0.0
      %3295 = vmatprep.subr.mxu0 0.0
      %3296 = vmatpush1.msra.mxu0 0.0
      %3297 = vmatprep.subr.mxu0 0.0
      %3298 = vmatpush1.msra.mxu0 0.0
      %3299 = vmatprep.subr.mxu0 0.0
      %3300 = vmatpush1.msra.mxu0 0.0
      %3301 = vmatprep.subr.mxu0 0.0
      %3302 = vmatpush1.msra.mxu0 0.0
      %3303 = vmatprep.subr.mxu0 0.0
      %3304 = vmatpush1.msra.mxu0 0.0
      %3305 = vmatprep.subr.mxu0 0.0
      %3306 = vmatpush1.msra.mxu0 0.0
      %3307 = vmatprep.subr.mxu0 0.0
      %3308 = vmatpush1.msra.mxu0 0.0
      %3309 = vmatprep.subr.mxu0 0.0
      %3310 = vmatpush1.msra.mxu0 0.0
      %3311 = vmatprep.subr.mxu0 0.0
      %3312 = vmatpush1.msra.mxu0 0.0
      %3313 = vmatprep.subr.mxu0 0.0
      %3314 = vmatpush1.msra.mxu0 0.0
      %3315 = vmatprep.subr.mxu0 0.0
      %3316 = vmatpush1.msra.mxu0 0.0
      %3317 = vmatprep.subr.mxu0 0.0
      %3318 = vmatpush1.msra.mxu0 0.0
      %3319 = vmatprep.subr.mxu0 0.0
      %3320 = vmatpush1.msra.mxu0 0.0
      %3321 = vmatprep.subr.mxu0 0.0
      %3322 = vmatpush1.msra.mxu0 0.0
      %3323 = vmatprep.subr.mxu0 0.0
      %3324 = vmatpush1.msra.mxu0 0.0
      %3325 = vmatprep.subr.mxu0 0.0
      %3326 = vmatpush1.msra.mxu0 0.0
      %3327 = vmatprep.mubr.f32.mxu0 0.0
      %3328 = vmatmul.mubr.f32.gmra.mrb[0].mxu0 %v3237
      %v3329 = vpop.f32.mrb[0].mxu0
      %v3330 = vadd.f32 0.0, %v3329
      %v3331 = vpop.f32.mrb[0].mxu0
      %3332 = vmatprep.mubr.f32.mxu0 0.0
      %3333 = vmatmul.mubr.f32.gmra.mrb[0].mxu0 %v3240
      %v3334 = vpop.f32.mrb[0].mxu0
      %v3335 = vadd.f32 0.0, %v3334
      %v3336 = vpop.f32.mrb[0].mxu0
      %3337 = vmatprep.mubr.f32.mxu0 0.0
      %3338 = vmatmul.mubr.f32.gmra.mrb[0].mxu0 %v3243
      %v3339 = vpop.f32.mrb[0].mxu0
      %v3340 = vadd.f32 0.0, %v3339
      %v3341 = vpop.f32.mrb[0].mxu0
      %3342 = vmatprep.mubr.f32.mxu0 0.0
      %3343 = vmatmul.mubr.f32.gmra.mrb[0].mxu0 %v3246
      %v3344 = vpop.f32.mrb[0].mxu0
      %v3345 = vadd.f32 0.0, %v3344
      %v3346 = vpop.f32.mrb[0].mxu0
      %3347 = vmatprep.mubr.f32.mxu0 0.0
      %3348 = vmatmul.mubr.f32.gmra.mrb[0].mxu0 %v3249
      %v3349 = vpop.f32.mrb[0].mxu0
      %v3350 = vadd.f32 0.0, %v3349
      %v3351 = vpop.f32.mrb[0].mxu0
      %3352 = vmatprep.mubr.f32.mxu0 0.0
      %3353 = vmatmul.mubr.f32.gmra.mrb[0].mxu0 %v3252
      %v3354 = vpop.f32.mrb[0].mxu0
      %v3355 = vadd.f32 0.0, %v3354
      %v3356 = vpop.f32.mrb[0].mxu0
      %3357 = vmatprep.mubr.f32.mxu0 0.0
      %3358 = vmatmul.mubr.f32.gmra.mrb[0].mxu0 %v3255
      %v3359 = vpop.f32.mrb[0].mxu0
      %v3360 = vadd.f32 0.0, %v3359
      %v3361 = vpop.f32.mrb[0].mxu0
      %3362 = vmatprep.mubr.f32.mxu0 0.0
      %3363 = vmatmul.mubr.f32.gmra.mrb[0].mxu0 %v3258
      %v3364 = vpop.f32.mrb[0].mxu0
      %v3365 = vadd.f32 0.0, %v3364
      %v3366 = vpop.f32.mrb[0].mxu0
      %3367 = vmatprep.mubr.f32.mxu0 0.0
      %3368 = vmatmul.mubr.f32.gmra.mrb[0].mxu0 %v3261
      %v3369 = vpop.f32.mrb[0].mxu0
      %v3370 = vadd.f32 0.0, %v3369
      %v3371 = vpop.f32.mrb[0].mxu0
      %3372 = vdwg.mxu0
      %v3373 = vadd.f32 %v2923, %v3330
      %v3374 = vadd.f32 %v2924, %v3335
      %v3375 = vadd.f32 %v2925, %v3340
      %v3376 = vadd.f32 %v2926, %v3345
      %v3377 = vadd.f32 %v2927, %v3350
      %v3378 = vadd.f32 %v2928, %v3355
      %v3379 = vadd.f32 %v2929, %v3360
      %v3380 = vadd.f32 %v2930, %v3365
      %v3381 = vadd.f32 %v2931, %v3370
      %vm3382 = vcmp.ge.s32.totalorder %v635, 24
      %vm3383 = vcmp.lt.s32.totalorder %v635, 28
      %vm3384 = vmand %vm3382, %vm3383
      %v3385 = vsel %vm3384, 1, 0
      %vm3386 = vcmp.eq.s32.totalorder %v3385, 1
      %v3387 = vsel %vm3386, %v591, 0.0
      %v3388 = vsel %vm3386, %v596, 0.0
      %v3389 = vsel %vm3386, %v601, 0.0
      %v3390 = vsel %vm3386, %v606, 0.0
      %v3391 = vsel %vm3386, %v611, 0.0
      %v3392 = vsel %vm3386, %v616, 0.0
      %v3393 = vsel %vm3386, %v621, 0.0
      %v3394 = vsel %vm3386, %v626, 0.0
      %v3395 = vsel %vm3386, %v631, 0.0
      %v3396 = vsel %vm3386, %v660, 0.0
      %v3397 = vsel %vm3386, %v662, 0.0
      %v3398 = vsel %vm3386, %v664, 0.0
      %v3399 = vsel %vm3386, %v666, 0.0
      %v3400 = vsel %vm3386, %v668, 0.0
      %v3401 = vsel %vm3386, %v670, 0.0
      %v3402 = vsel %vm3386, %v672, 0.0
      %v3403 = vsel %vm3386, %v674, 0.0
      %v3404 = vsel %vm3386, %v676, 0.0
      %v3405 = vsel %vm3386, %v696, 0.0
      %v3406 = vsel %vm3386, %v698, 0.0
      %v3407 = vsel %vm3386, %v700, 0.0
      %v3408 = vsel %vm3386, %v702, 0.0
      %v3409 = vsel %vm3386, %v704, 0.0
      %v3410 = vsel %vm3386, %v706, 0.0
      %v3411 = vsel %vm3386, %v708, 0.0
      %v3412 = vsel %vm3386, %v710, 0.0
      %v3413 = vsel %vm3386, %v712, 0.0
      %v3415 = vsel %vm342, %v3387, 0
      %v3418 = vsel %vm342, %v3388, 0
      %v3421 = vsel %vm342, %v3389, 0
      %v3424 = vsel %vm342, %v3390, 0
      %v3427 = vsel %vm342, %v3391, 0
      %v3430 = vsel %vm342, %v3392, 0
      %v3433 = vsel %vm342, %v3393, 0
      %v3436 = vsel %vm342, %v3394, 0
      %v3439 = vsel %vm342, %v3395, 0
      %v3442 = vsel %vm342, %v3396, 0
      %v3445 = vsel %vm342, %v3397, 0
      %v3448 = vsel %vm342, %v3398, 0
      %v3451 = vsel %vm342, %v3399, 0
      %v3454 = vsel %vm342, %v3400, 0
      %v3457 = vsel %vm342, %v3401, 0
      %v3460 = vsel %vm342, %v3402, 0
      %v3463 = vsel %vm342, %v3403, 0
      %v3466 = vsel %vm342, %v3404, 0
      %3468 = vmatprep.subr.mxu0 0.0
      %3469 = vmatpush1.xpose.msra.mxu0 %v3442
      %3470 = vmatprep.subr.mxu0 0.0
      %3471 = vmatpush1.xpose.msra.mxu0 %v3445
      %3472 = vmatprep.subr.mxu0 0.0
      %3473 = vmatpush1.xpose.msra.mxu0 %v3448
      %3474 = vmatprep.subr.mxu0 0.0
      %3475 = vmatpush1.xpose.msra.mxu0 %v3451
      %3476 = vmatprep.subr.mxu0 0.0
      %3477 = vmatpush1.xpose.msra.mxu0 %v3454
      %3478 = vmatprep.subr.mxu0 0.0
      %3479 = vmatpush1.xpose.msra.mxu0 %v3457
      %3480 = vmatprep.subr.mxu0 0.0
      %3481 = vmatpush1.xpose.msra.mxu0 %v3460
      %3482 = vmatprep.subr.mxu0 0.0
      %3483 = vmatpush1.xpose.msra.mxu0 %v3463
      %3484 = vmatprep.subr.mxu0 0.0
      %3485 = vmatpush1.xpose.msra.mxu0 %v3466
      %3486 = vmatprep.subr.mxu0 0.0
      %3487 = vmatpush1.xpose.msra.mxu0 0.0
      %3488 = vmatprep.subr.mxu0 0.0
      %3489 = vmatpush1.xpose.msra.mxu0 0.0
      %3490 = vmatprep.subr.mxu0 0.0
      %3491 = vmatpush1.xpose.msra.mxu0 0.0
      %3492 = vmatprep.subr.mxu0 0.0
      %3493 = vmatpush1.xpose.msra.mxu0 0.0
      %3494 = vmatprep.subr.mxu0 0.0
      %3495 = vmatpush1.xpose.msra.mxu0 0.0
      %3496 = vmatprep.subr.mxu0 0.0
      %3497 = vmatpush1.xpose.msra.mxu0 0.0
      %3498 = vmatprep.subr.mxu0 0.0
      %3499 = vmatpush1.xpose.msra.mxu0 0.0
      %3500 = vmatprep.subr.mxu0 0.0
      %3501 = vmatpush1.xpose.msra.mxu0 0.0
      %3502 = vmatprep.subr.mxu0 0.0
      %3503 = vmatpush1.xpose.msra.mxu0 0.0
      %3504 = vmatprep.subr.mxu0 0.0
      %3505 = vmatpush1.xpose.msra.mxu0 0.0
      %3506 = vmatprep.subr.mxu0 0.0
      %3507 = vmatpush1.xpose.msra.mxu0 0.0
      %3508 = vmatprep.subr.mxu0 0.0
      %3509 = vmatpush1.xpose.msra.mxu0 0.0
      %3510 = vmatprep.subr.mxu0 0.0
      %3511 = vmatpush1.xpose.msra.mxu0 0.0
      %3512 = vmatprep.subr.mxu0 0.0
      %3513 = vmatpush1.xpose.msra.mxu0 0.0
      %3514 = vmatprep.subr.mxu0 0.0
      %3515 = vmatpush1.xpose.msra.mxu0 0.0
      %3516 = vmatprep.subr.mxu0 0.0
      %3517 = vmatpush1.xpose.msra.mxu0 0.0
      %3518 = vmatprep.subr.mxu0 0.0
      %3519 = vmatpush1.xpose.msra.mxu0 0.0
      %3520 = vmatprep.subr.mxu0 0.0
      %3521 = vmatpush1.xpose.msra.mxu0 0.0
      %3522 = vmatprep.subr.mxu0 0.0
      %3523 = vmatpush1.xpose.msra.mxu0 0.0
      %3524 = vmatprep.subr.mxu0 0.0
      %3525 = vmatpush1.xpose.msra.mxu0 0.0
      %3526 = vmatprep.subr.mxu0 0.0
      %3527 = vmatpush1.xpose.msra.mxu0 0.0
      %3528 = vmatprep.subr.mxu0 0.0
      %3529 = vmatpush1.xpose.msra.mxu0 0.0
      %3530 = vmatprep.subr.mxu0 0.0
      %3531 = vmatpush1.xpose.msra.mxu0 0.0
      %3532 = vmatprep.mubr.f32.mxu0 0.0
      %3533 = vmatmul.mubr.f32.gmra.mrb[0].mxu0 %v3415
      %v3534 = vpop.f32.mrb[0].mxu0
      %v3535 = vadd.f32 0.0, %v3534
      %v3536 = vpop.f32.mrb[0].mxu0
      %3537 = vmatprep.mubr.f32.mxu0 0.0
      %3538 = vmatmul.mubr.f32.gmra.mrb[0].mxu0 %v3418
      %v3539 = vpop.f32.mrb[0].mxu0
      %v3540 = vadd.f32 0.0, %v3539
      %v3541 = vpop.f32.mrb[0].mxu0
      %3542 = vmatprep.mubr.f32.mxu0 0.0
      %3543 = vmatmul.mubr.f32.gmra.mrb[0].mxu0 %v3421
      %v3544 = vpop.f32.mrb[0].mxu0
      %v3545 = vadd.f32 0.0, %v3544
      %v3546 = vpop.f32.mrb[0].mxu0
      %3547 = vmatprep.mubr.f32.mxu0 0.0
      %3548 = vmatmul.mubr.f32.gmra.mrb[0].mxu0 %v3424
      %v3549 = vpop.f32.mrb[0].mxu0
      %v3550 = vadd.f32 0.0, %v3549
      %v3551 = vpop.f32.mrb[0].mxu0
      %3552 = vmatprep.mubr.f32.mxu0 0.0
      %3553 = vmatmul.mubr.f32.gmra.mrb[0].mxu0 %v3427
      %v3554 = vpop.f32.mrb[0].mxu0
      %v3555 = vadd.f32 0.0, %v3554
      %v3556 = vpop.f32.mrb[0].mxu0
      %3557 = vmatprep.mubr.f32.mxu0 0.0
      %3558 = vmatmul.mubr.f32.gmra.mrb[0].mxu0 %v3430
      %v3559 = vpop.f32.mrb[0].mxu0
      %v3560 = vadd.f32 0.0, %v3559
      %v3561 = vpop.f32.mrb[0].mxu0
      %3562 = vmatprep.mubr.f32.mxu0 0.0
      %3563 = vmatmul.mubr.f32.gmra.mrb[0].mxu0 %v3433
      %v3564 = vpop.f32.mrb[0].mxu0
      %v3565 = vadd.f32 0.0, %v3564
      %v3566 = vpop.f32.mrb[0].mxu0
      %3567 = vmatprep.mubr.f32.mxu0 0.0
      %3568 = vmatmul.mubr.f32.gmra.mrb[0].mxu0 %v3436
      %v3569 = vpop.f32.mrb[0].mxu0
      %v3570 = vadd.f32 0.0, %v3569
      %v3571 = vpop.f32.mrb[0].mxu0
      %3572 = vmatprep.mubr.f32.mxu0 0.0
      %3573 = vmatmul.mubr.f32.gmra.mrb[0].mxu0 %v3439
      %v3574 = vpop.f32.mrb[0].mxu0
      %v3575 = vadd.f32 0.0, %v3574
      %v3576 = vpop.f32.mrb[0].mxu0
      %3577 = vdwg.mxu0
      %v3578 = vmul.f32 %v3535, 0.5
      %v3579 = vmul.f32 %v3540, 0.5
      %v3580 = vmul.f32 %v3545, 0.5
      %v3581 = vmul.f32 %v3550, 0.5
      %v3582 = vmul.f32 %v3555, 0.5
      %v3583 = vmul.f32 %v3560, 0.5
      %v3584 = vmul.f32 %v3565, 0.5
      %v3585 = vmul.f32 %v3570, 0.5
      %v3586 = vmul.f32 %v3575, 0.5
      %v3587 = vsel %vm904, %v3578, -inf
      %3588 = vmax.xlane.f32.xlu0 %v3587
      %v3589 = vpop.xlane.xlu0 %3588
      %v3590 = vsel %vm904, %v3579, -inf
      %3591 = vmax.xlane.f32.xlu0 %v3590
      %v3592 = vpop.xlane.xlu0 %3591
      %v3593 = vsel %vm904, %v3580, -inf
      %3594 = vmax.xlane.f32.xlu0 %v3593
      %v3595 = vpop.xlane.xlu0 %3594
      %v3596 = vsel %vm904, %v3581, -inf
      %3597 = vmax.xlane.f32.xlu0 %v3596
      %v3598 = vpop.xlane.xlu0 %3597
      %v3599 = vsel %vm904, %v3582, -inf
      %3600 = vmax.xlane.f32.xlu0 %v3599
      %v3601 = vpop.xlane.xlu0 %3600
      %v3602 = vsel %vm904, %v3583, -inf
      %3603 = vmax.xlane.f32.xlu0 %v3602
      %v3604 = vpop.xlane.xlu0 %3603
      %v3605 = vsel %vm904, %v3584, -inf
      %3606 = vmax.xlane.f32.xlu0 %v3605
      %v3607 = vpop.xlane.xlu0 %3606
      %v3608 = vsel %vm904, %v3585, -inf
      %3609 = vmax.xlane.f32.xlu0 %v3608
      %v3610 = vpop.xlane.xlu0 %3609
      %v3611 = vsel %vm904, %v3586, -inf
      %3612 = vmax.xlane.f32.xlu0 %v3611
      %v3613 = vpop.xlane.xlu0 %3612
      %v3614 = vsub.f32 %v3578, %v3589
      %v3615 = vsub.f32 %v3579, %v3592
      %v3616 = vsub.f32 %v3580, %v3595
      %v3617 = vsub.f32 %v3581, %v3598
      %v3618 = vsub.f32 %v3582, %v3601
      %v3619 = vsub.f32 %v3583, %v3604
      %v3620 = vsub.f32 %v3584, %v3607
      %v3621 = vsub.f32 %v3585, %v3610
      %v3622 = vsub.f32 %v3586, %v3613
      %v3623 = vmul.f32 %v3614, 1.442695
      %v3624 = vpow.pop %v3623
      %v3625 = vmul.f32 %v3615, 1.442695
      %v3626 = vpow.pop %v3625
      %v3627 = vmul.f32 %v3616, 1.442695
      %v3628 = vpow.pop %v3627
      %v3629 = vmul.f32 %v3617, 1.442695
      %v3630 = vpow.pop %v3629
      %v3631 = vmul.f32 %v3618, 1.442695
      %v3632 = vpow.pop %v3631
      %v3633 = vmul.f32 %v3619, 1.442695
      %v3634 = vpow.pop %v3633
      %v3635 = vmul.f32 %v3620, 1.442695
      %v3636 = vpow.pop %v3635
      %v3637 = vmul.f32 %v3621, 1.442695
      %v3638 = vpow.pop %v3637
      %v3639 = vmul.f32 %v3622, 1.442695
      %v3640 = vpow.pop %v3639
      %v3641 = vsel %vm904, %v3624, 0.0
      %3642 = vadd.xlane.f32.xlu0 %v3641
      %v3643 = vpop.xlane.xlu0 %3642
      %v3644 = vsel %vm904, %v3626, 0.0
      %3645 = vadd.xlane.f32.xlu0 %v3644
      %v3646 = vpop.xlane.xlu0 %3645
      %v3647 = vsel %vm904, %v3628, 0.0
      %3648 = vadd.xlane.f32.xlu0 %v3647
      %v3649 = vpop.xlane.xlu0 %3648
      %v3650 = vsel %vm904, %v3630, 0.0
      %3651 = vadd.xlane.f32.xlu0 %v3650
      %v3652 = vpop.xlane.xlu0 %3651
      %v3653 = vsel %vm904, %v3632, 0.0
      %3654 = vadd.xlane.f32.xlu0 %v3653
      %v3655 = vpop.xlane.xlu0 %3654
      %v3656 = vsel %vm904, %v3634, 0.0
      %3657 = vadd.xlane.f32.xlu0 %v3656
      %v3658 = vpop.xlane.xlu0 %3657
      %v3659 = vsel %vm904, %v3636, 0.0
      %3660 = vadd.xlane.f32.xlu0 %v3659
      %v3661 = vpop.xlane.xlu0 %3660
      %v3662 = vsel %vm904, %v3638, 0.0
      %3663 = vadd.xlane.f32.xlu0 %v3662
      %v3664 = vpop.xlane.xlu0 %3663
      %v3665 = vsel %vm904, %v3640, 0.0
      %3666 = vadd.xlane.f32.xlu0 %v3665
      %v3667 = vpop.xlane.xlu0 %3666
      %v3668 = vrcp.pop %v3643
      %v3669 = vrcp.pop %v3646
      %v3670 = vrcp.pop %v3649
      %v3671 = vrcp.pop %v3652
      %v3672 = vrcp.pop %v3655
      %v3673 = vrcp.pop %v3658
      %v3674 = vrcp.pop %v3661
      %v3675 = vrcp.pop %v3664
      %v3676 = vrcp.pop %v3667
      %v3677 = vmul.f32 %v3624, %v3668
      %v3678 = vmul.f32 %v3626, %v3669
      %v3679 = vmul.f32 %v3628, %v3670
      %v3680 = vmul.f32 %v3630, %v3671
      %v3681 = vmul.f32 %v3632, %v3672
      %v3682 = vmul.f32 %v3634, %v3673
      %v3683 = vmul.f32 %v3636, %v3674
      %v3684 = vmul.f32 %v3638, %v3675
      %v3685 = vmul.f32 %v3640, %v3676
      %v3687 = vsel %vm904, %v3677, 0
      %v3690 = vsel %vm904, %v3678, 0
      %v3693 = vsel %vm904, %v3679, 0
      %v3696 = vsel %vm904, %v3680, 0
      %v3699 = vsel %vm904, %v3681, 0
      %v3702 = vsel %vm904, %v3682, 0
      %v3705 = vsel %vm904, %v3683, 0
      %v3708 = vsel %vm904, %v3684, 0
      %v3711 = vsel %vm904, %v3685, 0
      %3713 = vmatprep.subr.mxu0 0.0
      %3714 = vmatpush1.msra.mxu0 %v3405
      %3715 = vmatprep.subr.mxu0 0.0
      %3716 = vmatpush1.msra.mxu0 %v3406
      %3717 = vmatprep.subr.mxu0 0.0
      %3718 = vmatpush1.msra.mxu0 %v3407
      %3719 = vmatprep.subr.mxu0 0.0
      %3720 = vmatpush1.msra.mxu0 %v3408
      %3721 = vmatprep.subr.mxu0 0.0
      %3722 = vmatpush1.msra.mxu0 %v3409
      %3723 = vmatprep.subr.mxu0 0.0
      %3724 = vmatpush1.msra.mxu0 %v3410
      %3725 = vmatprep.subr.mxu0 0.0
      %3726 = vmatpush1.msra.mxu0 %v3411
      %3727 = vmatprep.subr.mxu0 0.0
      %3728 = vmatpush1.msra.mxu0 %v3412
      %3729 = vmatprep.subr.mxu0 0.0
      %3730 = vmatpush1.msra.mxu0 %v3413
      %3731 = vmatprep.subr.mxu0 0.0
      %3732 = vmatpush1.msra.mxu0 0.0
      %3733 = vmatprep.subr.mxu0 0.0
      %3734 = vmatpush1.msra.mxu0 0.0
      %3735 = vmatprep.subr.mxu0 0.0
      %3736 = vmatpush1.msra.mxu0 0.0
      %3737 = vmatprep.subr.mxu0 0.0
      %3738 = vmatpush1.msra.mxu0 0.0
      %3739 = vmatprep.subr.mxu0 0.0
      %3740 = vmatpush1.msra.mxu0 0.0
      %3741 = vmatprep.subr.mxu0 0.0
      %3742 = vmatpush1.msra.mxu0 0.0
      %3743 = vmatprep.subr.mxu0 0.0
      %3744 = vmatpush1.msra.mxu0 0.0
      %3745 = vmatprep.subr.mxu0 0.0
      %3746 = vmatpush1.msra.mxu0 0.0
      %3747 = vmatprep.subr.mxu0 0.0
      %3748 = vmatpush1.msra.mxu0 0.0
      %3749 = vmatprep.subr.mxu0 0.0
      %3750 = vmatpush1.msra.mxu0 0.0
      %3751 = vmatprep.subr.mxu0 0.0
      %3752 = vmatpush1.msra.mxu0 0.0
      %3753 = vmatprep.subr.mxu0 0.0
      %3754 = vmatpush1.msra.mxu0 0.0
      %3755 = vmatprep.subr.mxu0 0.0
      %3756 = vmatpush1.msra.mxu0 0.0
      %3757 = vmatprep.subr.mxu0 0.0
      %3758 = vmatpush1.msra.mxu0 0.0
      %3759 = vmatprep.subr.mxu0 0.0
      %3760 = vmatpush1.msra.mxu0 0.0
      %3761 = vmatprep.subr.mxu0 0.0
      %3762 = vmatpush1.msra.mxu0 0.0
      %3763 = vmatprep.subr.mxu0 0.0
      %3764 = vmatpush1.msra.mxu0 0.0
      %3765 = vmatprep.subr.mxu0 0.0
      %3766 = vmatpush1.msra.mxu0 0.0
      %3767 = vmatprep.subr.mxu0 0.0
      %3768 = vmatpush1.msra.mxu0 0.0
      %3769 = vmatprep.subr.mxu0 0.0
      %3770 = vmatpush1.msra.mxu0 0.0
      %3771 = vmatprep.subr.mxu0 0.0
      %3772 = vmatpush1.msra.mxu0 0.0
      %3773 = vmatprep.subr.mxu0 0.0
      %3774 = vmatpush1.msra.mxu0 0.0
      %3775 = vmatprep.subr.mxu0 0.0
      %3776 = vmatpush1.msra.mxu0 0.0
      %3777 = vmatprep.mubr.f32.mxu0 0.0
      %3778 = vmatmul.mubr.f32.gmra.mrb[0].mxu0 %v3687
      %v3779 = vpop.f32.mrb[0].mxu0
      %v3780 = vadd.f32 0.0, %v3779
      %v3781 = vpop.f32.mrb[0].mxu0
      %3782 = vmatprep.mubr.f32.mxu0 0.0
      %3783 = vmatmul.mubr.f32.gmra.mrb[0].mxu0 %v3690
      %v3784 = vpop.f32.mrb[0].mxu0
      %v3785 = vadd.f32 0.0, %v3784
      %v3786 = vpop.f32.mrb[0].mxu0
      %3787 = vmatprep.mubr.f32.mxu0 0.0
      %3788 = vmatmul.mubr.f32.gmra.mrb[0].mxu0 %v3693
      %v3789 = vpop.f32.mrb[0].mxu0
      %v3790 = vadd.f32 0.0, %v3789
      %v3791 = vpop.f32.mrb[0].mxu0
      %3792 = vmatprep.mubr.f32.mxu0 0.0
      %3793 = vmatmul.mubr.f32.gmra.mrb[0].mxu0 %v3696
      %v3794 = vpop.f32.mrb[0].mxu0
      %v3795 = vadd.f32 0.0, %v3794
      %v3796 = vpop.f32.mrb[0].mxu0
      %3797 = vmatprep.mubr.f32.mxu0 0.0
      %3798 = vmatmul.mubr.f32.gmra.mrb[0].mxu0 %v3699
      %v3799 = vpop.f32.mrb[0].mxu0
      %v3800 = vadd.f32 0.0, %v3799
      %v3801 = vpop.f32.mrb[0].mxu0
      %3802 = vmatprep.mubr.f32.mxu0 0.0
      %3803 = vmatmul.mubr.f32.gmra.mrb[0].mxu0 %v3702
      %v3804 = vpop.f32.mrb[0].mxu0
      %v3805 = vadd.f32 0.0, %v3804
      %v3806 = vpop.f32.mrb[0].mxu0
      %3807 = vmatprep.mubr.f32.mxu0 0.0
      %3808 = vmatmul.mubr.f32.gmra.mrb[0].mxu0 %v3705
      %v3809 = vpop.f32.mrb[0].mxu0
      %v3810 = vadd.f32 0.0, %v3809
      %v3811 = vpop.f32.mrb[0].mxu0
      %3812 = vmatprep.mubr.f32.mxu0 0.0
      %3813 = vmatmul.mubr.f32.gmra.mrb[0].mxu0 %v3708
      %v3814 = vpop.f32.mrb[0].mxu0
      %v3815 = vadd.f32 0.0, %v3814
      %v3816 = vpop.f32.mrb[0].mxu0
      %3817 = vmatprep.mubr.f32.mxu0 0.0
      %3818 = vmatmul.mubr.f32.gmra.mrb[0].mxu0 %v3711
      %v3819 = vpop.f32.mrb[0].mxu0
      %v3820 = vadd.f32 0.0, %v3819
      %v3821 = vpop.f32.mrb[0].mxu0
      %3822 = vdwg.mxu0
      %v3823 = vadd.f32 %v3373, %v3780
      %v3824 = vadd.f32 %v3374, %v3785
      %v3825 = vadd.f32 %v3375, %v3790
      %v3826 = vadd.f32 %v3376, %v3795
      %v3827 = vadd.f32 %v3377, %v3800
      %v3828 = vadd.f32 %v3378, %v3805
      %v3829 = vadd.f32 %v3379, %v3810
      %v3830 = vadd.f32 %v3380, %v3815
      %v3831 = vadd.f32 %v3381, %v3820
      %vm3832 = vcmp.ge.s32.totalorder %v635, 28
      %vm3833 = vcmp.lt.s32.totalorder %v635, 32
      %vm3834 = vmand %vm3832, %vm3833
      %v3835 = vsel %vm3834, 1, 0
      %vm3836 = vcmp.eq.s32.totalorder %v3835, 1
      %v3837 = vsel %vm3836, %v591, 0.0
      %v3838 = vsel %vm3836, %v596, 0.0
      %v3839 = vsel %vm3836, %v601, 0.0
      %v3840 = vsel %vm3836, %v606, 0.0
      %v3841 = vsel %vm3836, %v611, 0.0
      %v3842 = vsel %vm3836, %v616, 0.0
      %v3843 = vsel %vm3836, %v621, 0.0
      %v3844 = vsel %vm3836, %v626, 0.0
      %v3845 = vsel %vm3836, %v631, 0.0
      %v3846 = vsel %vm3836, %v660, 0.0
      %v3847 = vsel %vm3836, %v662, 0.0
      %v3848 = vsel %vm3836, %v664, 0.0
      %v3849 = vsel %vm3836, %v666, 0.0
      %v3850 = vsel %vm3836, %v668, 0.0
      %v3851 = vsel %vm3836, %v670, 0.0
      %v3852 = vsel %vm3836, %v672, 0.0
      %v3853 = vsel %vm3836, %v674, 0.0
      %v3854 = vsel %vm3836, %v676, 0.0
      %v3855 = vsel %vm3836, %v696, 0.0
      %v3856 = vsel %vm3836, %v698, 0.0
      %v3857 = vsel %vm3836, %v700, 0.0
      %v3858 = vsel %vm3836, %v702, 0.0
      %v3859 = vsel %vm3836, %v704, 0.0
      %v3860 = vsel %vm3836, %v706, 0.0
      %v3861 = vsel %vm3836, %v708, 0.0
      %v3862 = vsel %vm3836, %v710, 0.0
      %v3863 = vsel %vm3836, %v712, 0.0
      %v3865 = vsel %vm342, %v3837, 0
      %v3868 = vsel %vm342, %v3838, 0
      %v3871 = vsel %vm342, %v3839, 0
      %v3874 = vsel %vm342, %v3840, 0
      %v3877 = vsel %vm342, %v3841, 0
      %v3880 = vsel %vm342, %v3842, 0
      %v3883 = vsel %vm342, %v3843, 0
      %v3886 = vsel %vm342, %v3844, 0
      %v3889 = vsel %vm342, %v3845, 0
      %v3892 = vsel %vm342, %v3846, 0
      %v3895 = vsel %vm342, %v3847, 0
      %v3898 = vsel %vm342, %v3848, 0
      %v3901 = vsel %vm342, %v3849, 0
      %v3904 = vsel %vm342, %v3850, 0
      %v3907 = vsel %vm342, %v3851, 0
      %v3910 = vsel %vm342, %v3852, 0
      %v3913 = vsel %vm342, %v3853, 0
      %v3916 = vsel %vm342, %v3854, 0
      %3918 = vmatprep.subr.mxu0 0.0
      %3919 = vmatpush1.xpose.msra.mxu0 %v3892
      %3920 = vmatprep.subr.mxu0 0.0
      %3921 = vmatpush1.xpose.msra.mxu0 %v3895
      %3922 = vmatprep.subr.mxu0 0.0
      %3923 = vmatpush1.xpose.msra.mxu0 %v3898
      %3924 = vmatprep.subr.mxu0 0.0
      %3925 = vmatpush1.xpose.msra.mxu0 %v3901
      %3926 = vmatprep.subr.mxu0 0.0
      %3927 = vmatpush1.xpose.msra.mxu0 %v3904
      %3928 = vmatprep.subr.mxu0 0.0
      %3929 = vmatpush1.xpose.msra.mxu0 %v3907
      %3930 = vmatprep.subr.mxu0 0.0
      %3931 = vmatpush1.xpose.msra.mxu0 %v3910
      %3932 = vmatprep.subr.mxu0 0.0
      %3933 = vmatpush1.xpose.msra.mxu0 %v3913
      %3934 = vmatprep.subr.mxu0 0.0
      %3935 = vmatpush1.xpose.msra.mxu0 %v3916
      %3936 = vmatprep.subr.mxu0 0.0
      %3937 = vmatpush1.xpose.msra.mxu0 0.0
      %3938 = vmatprep.subr.mxu0 0.0
      %3939 = vmatpush1.xpose.msra.mxu0 0.0
      %3940 = vmatprep.subr.mxu0 0.0
      %3941 = vmatpush1.xpose.msra.mxu0 0.0
      %3942 = vmatprep.subr.mxu0 0.0
      %3943 = vmatpush1.xpose.msra.mxu0 0.0
      %3944 = vmatprep.subr.mxu0 0.0
      %3945 = vmatpush1.xpose.msra.mxu0 0.0
      %3946 = vmatprep.subr.mxu0 0.0
      %3947 = vmatpush1.xpose.msra.mxu0 0.0
      %3948 = vmatprep.subr.mxu0 0.0
      %3949 = vmatpush1.xpose.msra.mxu0 0.0
      %3950 = vmatprep.subr.mxu0 0.0
      %3951 = vmatpush1.xpose.msra.mxu0 0.0
      %3952 = vmatprep.subr.mxu0 0.0
      %3953 = vmatpush1.xpose.msra.mxu0 0.0
      %3954 = vmatprep.subr.mxu0 0.0
      %3955 = vmatpush1.xpose.msra.mxu0 0.0
      %3956 = vmatprep.subr.mxu0 0.0
      %3957 = vmatpush1.xpose.msra.mxu0 0.0
      %3958 = vmatprep.subr.mxu0 0.0
      %3959 = vmatpush1.xpose.msra.mxu0 0.0
      %3960 = vmatprep.subr.mxu0 0.0
      %3961 = vmatpush1.xpose.msra.mxu0 0.0
      %3962 = vmatprep.subr.mxu0 0.0
      %3963 = vmatpush1.xpose.msra.mxu0 0.0
      %3964 = vmatprep.subr.mxu0 0.0
      %3965 = vmatpush1.xpose.msra.mxu0 0.0
      %3966 = vmatprep.subr.mxu0 0.0
      %3967 = vmatpush1.xpose.msra.mxu0 0.0
      %3968 = vmatprep.subr.mxu0 0.0
      %3969 = vmatpush1.xpose.msra.mxu0 0.0
      %3970 = vmatprep.subr.mxu0 0.0
      %3971 = vmatpush1.xpose.msra.mxu0 0.0
      %3972 = vmatprep.subr.mxu0 0.0
      %3973 = vmatpush1.xpose.msra.mxu0 0.0
      %3974 = vmatprep.subr.mxu0 0.0
      %3975 = vmatpush1.xpose.msra.mxu0 0.0
      %3976 = vmatprep.subr.mxu0 0.0
      %3977 = vmatpush1.xpose.msra.mxu0 0.0
      %3978 = vmatprep.subr.mxu0 0.0
      %3979 = vmatpush1.xpose.msra.mxu0 0.0
      %3980 = vmatprep.subr.mxu0 0.0
      %3981 = vmatpush1.xpose.msra.mxu0 0.0
      %3982 = vmatprep.mubr.f32.mxu0 0.0
      %3983 = vmatmul.mubr.f32.gmra.mrb[0].mxu0 %v3865
      %v3984 = vpop.f32.mrb[0].mxu0
      %v3985 = vadd.f32 0.0, %v3984
      %v3986 = vpop.f32.mrb[0].mxu0
      %3987 = vmatprep.mubr.f32.mxu0 0.0
      %3988 = vmatmul.mubr.f32.gmra.mrb[0].mxu0 %v3868
      %v3989 = vpop.f32.mrb[0].mxu0
      %v3990 = vadd.f32 0.0, %v3989
      %v3991 = vpop.f32.mrb[0].mxu0
      %3992 = vmatprep.mubr.f32.mxu0 0.0
      %3993 = vmatmul.mubr.f32.gmra.mrb[0].mxu0 %v3871
      %v3994 = vpop.f32.mrb[0].mxu0
      %v3995 = vadd.f32 0.0, %v3994
      %v3996 = vpop.f32.mrb[0].mxu0
      %3997 = vmatprep.mubr.f32.mxu0 0.0
      %3998 = vmatmul.mubr.f32.gmra.mrb[0].mxu0 %v3874
      %v3999 = vpop.f32.mrb[0].mxu0
      %v4000 = vadd.f32 0.0, %v3999
      %v4001 = vpop.f32.mrb[0].mxu0
      %4002 = vmatprep.mubr.f32.mxu0 0.0
      %4003 = vmatmul.mubr.f32.gmra.mrb[0].mxu0 %v3877
      %v4004 = vpop.f32.mrb[0].mxu0
      %v4005 = vadd.f32 0.0, %v4004
      %v4006 = vpop.f32.mrb[0].mxu0
      %4007 = vmatprep.mubr.f32.mxu0 0.0
      %4008 = vmatmul.mubr.f32.gmra.mrb[0].mxu0 %v3880
      %v4009 = vpop.f32.mrb[0].mxu0
      %v4010 = vadd.f32 0.0, %v4009
      %v4011 = vpop.f32.mrb[0].mxu0
      %4012 = vmatprep.mubr.f32.mxu0 0.0
      %4013 = vmatmul.mubr.f32.gmra.mrb[0].mxu0 %v3883
      %v4014 = vpop.f32.mrb[0].mxu0
      %v4015 = vadd.f32 0.0, %v4014
      %v4016 = vpop.f32.mrb[0].mxu0
      %4017 = vmatprep.mubr.f32.mxu0 0.0
      %4018 = vmatmul.mubr.f32.gmra.mrb[0].mxu0 %v3886
      %v4019 = vpop.f32.mrb[0].mxu0
      %v4020 = vadd.f32 0.0, %v4019
      %v4021 = vpop.f32.mrb[0].mxu0
      %4022 = vmatprep.mubr.f32.mxu0 0.0
      %4023 = vmatmul.mubr.f32.gmra.mrb[0].mxu0 %v3889
      %v4024 = vpop.f32.mrb[0].mxu0
      %v4025 = vadd.f32 0.0, %v4024
      %v4026 = vpop.f32.mrb[0].mxu0
      %4027 = vdwg.mxu0
      %v4028 = vmul.f32 %v3985, 0.5
      %v4029 = vmul.f32 %v3990, 0.5
      %v4030 = vmul.f32 %v3995, 0.5
      %v4031 = vmul.f32 %v4000, 0.5
      %v4032 = vmul.f32 %v4005, 0.5
      %v4033 = vmul.f32 %v4010, 0.5
      %v4034 = vmul.f32 %v4015, 0.5
      %v4035 = vmul.f32 %v4020, 0.5
      %v4036 = vmul.f32 %v4025, 0.5
      %v4037 = vsel %vm904, %v4028, -inf
      %4038 = vmax.xlane.f32.xlu0 %v4037
      %v4039 = vpop.xlane.xlu0 %4038
      %v4040 = vsel %vm904, %v4029, -inf
      %4041 = vmax.xlane.f32.xlu0 %v4040
      %v4042 = vpop.xlane.xlu0 %4041
      %v4043 = vsel %vm904, %v4030, -inf
      %4044 = vmax.xlane.f32.xlu0 %v4043
      %v4045 = vpop.xlane.xlu0 %4044
      %v4046 = vsel %vm904, %v4031, -inf
      %4047 = vmax.xlane.f32.xlu0 %v4046
      %v4048 = vpop.xlane.xlu0 %4047
      %v4049 = vsel %vm904, %v4032, -inf
      %4050 = vmax.xlane.f32.xlu0 %v4049
      %v4051 = vpop.xlane.xlu0 %4050
      %v4052 = vsel %vm904, %v4033, -inf
      %4053 = vmax.xlane.f32.xlu0 %v4052
      %v4054 = vpop.xlane.xlu0 %4053
      %v4055 = vsel %vm904, %v4034, -inf
      %4056 = vmax.xlane.f32.xlu0 %v4055
      %v4057 = vpop.xlane.xlu0 %4056
      %v4058 = vsel %vm904, %v4035, -inf
      %4059 = vmax.xlane.f32.xlu0 %v4058
      %v4060 = vpop.xlane.xlu0 %4059
      %v4061 = vsel %vm904, %v4036, -inf
      %4062 = vmax.xlane.f32.xlu0 %v4061
      %v4063 = vpop.xlane.xlu0 %4062
      %v4064 = vsub.f32 %v4028, %v4039
      %v4065 = vsub.f32 %v4029, %v4042
      %v4066 = vsub.f32 %v4030, %v4045
      %v4067 = vsub.f32 %v4031, %v4048
      %v4068 = vsub.f32 %v4032, %v4051
      %v4069 = vsub.f32 %v4033, %v4054
      %v4070 = vsub.f32 %v4034, %v4057
      %v4071 = vsub.f32 %v4035, %v4060
      %v4072 = vsub.f32 %v4036, %v4063
      %v4073 = vmul.f32 %v4064, 1.442695
      %v4074 = vpow.pop %v4073
      %v4075 = vmul.f32 %v4065, 1.442695
      %v4076 = vpow.pop %v4075
      %v4077 = vmul.f32 %v4066, 1.442695
      %v4078 = vpow.pop %v4077
      %v4079 = vmul.f32 %v4067, 1.442695
      %v4080 = vpow.pop %v4079
      %v4081 = vmul.f32 %v4068, 1.442695
      %v4082 = vpow.pop %v4081
      %v4083 = vmul.f32 %v4069, 1.442695
      %v4084 = vpow.pop %v4083
      %v4085 = vmul.f32 %v4070, 1.442695
      %v4086 = vpow.pop %v4085
      %v4087 = vmul.f32 %v4071, 1.442695
      %v4088 = vpow.pop %v4087
      %v4089 = vmul.f32 %v4072, 1.442695
      %v4090 = vpow.pop %v4089
      %v4091 = vsel %vm904, %v4074, 0.0
      %4092 = vadd.xlane.f32.xlu0 %v4091
      %v4093 = vpop.xlane.xlu0 %4092
      %v4094 = vsel %vm904, %v4076, 0.0
      %4095 = vadd.xlane.f32.xlu0 %v4094
      %v4096 = vpop.xlane.xlu0 %4095
      %v4097 = vsel %vm904, %v4078, 0.0
      %4098 = vadd.xlane.f32.xlu0 %v4097
      %v4099 = vpop.xlane.xlu0 %4098
      %v4100 = vsel %vm904, %v4080, 0.0
      %4101 = vadd.xlane.f32.xlu0 %v4100
      %v4102 = vpop.xlane.xlu0 %4101
      %v4103 = vsel %vm904, %v4082, 0.0
      %4104 = vadd.xlane.f32.xlu0 %v4103
      %v4105 = vpop.xlane.xlu0 %4104
      %v4106 = vsel %vm904, %v4084, 0.0
      %4107 = vadd.xlane.f32.xlu0 %v4106
      %v4108 = vpop.xlane.xlu0 %4107
      %v4109 = vsel %vm904, %v4086, 0.0
      %4110 = vadd.xlane.f32.xlu0 %v4109
      %v4111 = vpop.xlane.xlu0 %4110
      %v4112 = vsel %vm904, %v4088, 0.0
      %4113 = vadd.xlane.f32.xlu0 %v4112
      %v4114 = vpop.xlane.xlu0 %4113
      %v4115 = vsel %vm904, %v4090, 0.0
      %4116 = vadd.xlane.f32.xlu0 %v4115
      %v4117 = vpop.xlane.xlu0 %4116
      %v4118 = vrcp.pop %v4093
      %v4119 = vrcp.pop %v4096
      %v4120 = vrcp.pop %v4099
      %v4121 = vrcp.pop %v4102
      %v4122 = vrcp.pop %v4105
      %v4123 = vrcp.pop %v4108
      %v4124 = vrcp.pop %v4111
      %v4125 = vrcp.pop %v4114
      %v4126 = vrcp.pop %v4117
      %v4127 = vmul.f32 %v4074, %v4118
      %v4128 = vmul.f32 %v4076, %v4119
      %v4129 = vmul.f32 %v4078, %v4120
      %v4130 = vmul.f32 %v4080, %v4121
      %v4131 = vmul.f32 %v4082, %v4122
      %v4132 = vmul.f32 %v4084, %v4123
      %v4133 = vmul.f32 %v4086, %v4124
      %v4134 = vmul.f32 %v4088, %v4125
      %v4135 = vmul.f32 %v4090, %v4126
      %v4137 = vsel %vm904, %v4127, 0
      %v4140 = vsel %vm904, %v4128, 0
      %v4143 = vsel %vm904, %v4129, 0
      %v4146 = vsel %vm904, %v4130, 0
      %v4149 = vsel %vm904, %v4131, 0
      %v4152 = vsel %vm904, %v4132, 0
      %v4155 = vsel %vm904, %v4133, 0
      %v4158 = vsel %vm904, %v4134, 0
      %v4161 = vsel %vm904, %v4135, 0
      %4163 = vmatprep.subr.mxu0 0.0
      %4164 = vmatpush1.msra.mxu0 %v3855
      %4165 = vmatprep.subr.mxu0 0.0
      %4166 = vmatpush1.msra.mxu0 %v3856
      %4167 = vmatprep.subr.mxu0 0.0
      %4168 = vmatpush1.msra.mxu0 %v3857
      %4169 = vmatprep.subr.mxu0 0.0
      %4170 = vmatpush1.msra.mxu0 %v3858
      %4171 = vmatprep.subr.mxu0 0.0
      %4172 = vmatpush1.msra.mxu0 %v3859
      %4173 = vmatprep.subr.mxu0 0.0
      %4174 = vmatpush1.msra.mxu0 %v3860
      %4175 = vmatprep.subr.mxu0 0.0
      %4176 = vmatpush1.msra.mxu0 %v3861
      %4177 = vmatprep.subr.mxu0 0.0
      %4178 = vmatpush1.msra.mxu0 %v3862
      %4179 = vmatprep.subr.mxu0 0.0
      %4180 = vmatpush1.msra.mxu0 %v3863
      %4181 = vmatprep.subr.mxu0 0.0
      %4182 = vmatpush1.msra.mxu0 0.0
      %4183 = vmatprep.subr.mxu0 0.0
      %4184 = vmatpush1.msra.mxu0 0.0
      %4185 = vmatprep.subr.mxu0 0.0
      %4186 = vmatpush1.msra.mxu0 0.0
      %4187 = vmatprep.subr.mxu0 0.0
      %4188 = vmatpush1.msra.mxu0 0.0
      %4189 = vmatprep.subr.mxu0 0.0
      %4190 = vmatpush1.msra.mxu0 0.0
      %4191 = vmatprep.subr.mxu0 0.0
      %4192 = vmatpush1.msra.mxu0 0.0
      %4193 = vmatprep.subr.mxu0 0.0
      %4194 = vmatpush1.msra.mxu0 0.0
      %4195 = vmatprep.subr.mxu0 0.0
      %4196 = vmatpush1.msra.mxu0 0.0
      %4197 = vmatprep.subr.mxu0 0.0
      %4198 = vmatpush1.msra.mxu0 0.0
      %4199 = vmatprep.subr.mxu0 0.0
      %4200 = vmatpush1.msra.mxu0 0.0
      %4201 = vmatprep.subr.mxu0 0.0
      %4202 = vmatpush1.msra.mxu0 0.0
      %4203 = vmatprep.subr.mxu0 0.0
      %4204 = vmatpush1.msra.mxu0 0.0
      %4205 = vmatprep.subr.mxu0 0.0
      %4206 = vmatpush1.msra.mxu0 0.0
      %4207 = vmatprep.subr.mxu0 0.0
      %4208 = vmatpush1.msra.mxu0 0.0
      %4209 = vmatprep.subr.mxu0 0.0
      %4210 = vmatpush1.msra.mxu0 0.0
      %4211 = vmatprep.subr.mxu0 0.0
      %4212 = vmatpush1.msra.mxu0 0.0
      %4213 = vmatprep.subr.mxu0 0.0
      %4214 = vmatpush1.msra.mxu0 0.0
      %4215 = vmatprep.subr.mxu0 0.0
      %4216 = vmatpush1.msra.mxu0 0.0
      %4217 = vmatprep.subr.mxu0 0.0
      %4218 = vmatpush1.msra.mxu0 0.0
      %4219 = vmatprep.subr.mxu0 0.0
      %4220 = vmatpush1.msra.mxu0 0.0
      %4221 = vmatprep.subr.mxu0 0.0
      %4222 = vmatpush1.msra.mxu0 0.0
      %4223 = vmatprep.subr.mxu0 0.0
      %4224 = vmatpush1.msra.mxu0 0.0
      %4225 = vmatprep.subr.mxu0 0.0
      %4226 = vmatpush1.msra.mxu0 0.0
      %4227 = vmatprep.mubr.f32.mxu0 0.0
      %4228 = vmatmul.mubr.f32.gmra.mrb[0].mxu0 %v4137
      %v4229 = vpop.f32.mrb[0].mxu0
      %v4230 = vadd.f32 0.0, %v4229
      %v4231 = vpop.f32.mrb[0].mxu0
      %4232 = vmatprep.mubr.f32.mxu0 0.0
      %4233 = vmatmul.mubr.f32.gmra.mrb[0].mxu0 %v4140
      %v4234 = vpop.f32.mrb[0].mxu0
      %v4235 = vadd.f32 0.0, %v4234
      %v4236 = vpop.f32.mrb[0].mxu0
      %4237 = vmatprep.mubr.f32.mxu0 0.0
      %4238 = vmatmul.mubr.f32.gmra.mrb[0].mxu0 %v4143
      %v4239 = vpop.f32.mrb[0].mxu0
      %v4240 = vadd.f32 0.0, %v4239
      %v4241 = vpop.f32.mrb[0].mxu0
      %4242 = vmatprep.mubr.f32.mxu0 0.0
      %4243 = vmatmul.mubr.f32.gmra.mrb[0].mxu0 %v4146
      %v4244 = vpop.f32.mrb[0].mxu0
      %v4245 = vadd.f32 0.0, %v4244
      %v4246 = vpop.f32.mrb[0].mxu0
      %4247 = vmatprep.mubr.f32.mxu0 0.0
      %4248 = vmatmul.mubr.f32.gmra.mrb[0].mxu0 %v4149
      %v4249 = vpop.f32.mrb[0].mxu0
      %v4250 = vadd.f32 0.0, %v4249
      %v4251 = vpop.f32.mrb[0].mxu0
      %4252 = vmatprep.mubr.f32.mxu0 0.0
      %4253 = vmatmul.mubr.f32.gmra.mrb[0].mxu0 %v4152
      %v4254 = vpop.f32.mrb[0].mxu0
      %v4255 = vadd.f32 0.0, %v4254
      %v4256 = vpop.f32.mrb[0].mxu0
      %4257 = vmatprep.mubr.f32.mxu0 0.0
      %4258 = vmatmul.mubr.f32.gmra.mrb[0].mxu0 %v4155
      %v4259 = vpop.f32.mrb[0].mxu0
      %v4260 = vadd.f32 0.0, %v4259
      %v4261 = vpop.f32.mrb[0].mxu0
      %4262 = vmatprep.mubr.f32.mxu0 0.0
      %4263 = vmatmul.mubr.f32.gmra.mrb[0].mxu0 %v4158
      %v4264 = vpop.f32.mrb[0].mxu0
      %v4265 = vadd.f32 0.0, %v4264
      %v4266 = vpop.f32.mrb[0].mxu0
      %4267 = vmatprep.mubr.f32.mxu0 0.0
      %4268 = vmatmul.mubr.f32.gmra.mrb[0].mxu0 %v4161
      %v4269 = vpop.f32.mrb[0].mxu0
      %v4270 = vadd.f32 0.0, %v4269
      %v4271 = vpop.f32.mrb[0].mxu0
      %4272 = vdwg.mxu0
      %v4273 = vadd.f32 %v3823, %v4230
      %v4274 = vadd.f32 %v3824, %v4235
      %v4275 = vadd.f32 %v3825, %v4240
      %v4276 = vadd.f32 %v3826, %v4245
      %v4277 = vadd.f32 %v3827, %v4250
      %v4278 = vadd.f32 %v3828, %v4255
      %v4279 = vadd.f32 %v3829, %v4260
      %v4280 = vadd.f32 %v3830, %v4265
      %v4281 = vadd.f32 %v3831, %v4270
      %v4282 = vld [vmem:[%s8] sm:$0xff]
      %v4283 = vld [vmem:[%s8 + $0x8] sm:$0xff]
      %v4284 = vld [vmem:[%s8 + $0x10] sm:$0xff]
      %v4285 = vld [vmem:[%s8 + $0x18] sm:$0xff]
      %v4286 = vld [vmem:[%s8 + $0x20] sm:$0xff]
      %v4287 = vld [vmem:[%s8 + $0x28] sm:$0xff]
      %v4288 = vld [vmem:[%s8 + $0x30] sm:$0xff]
      %v4289 = vld [vmem:[%s8 + $0x38] sm:$0xff]
      %v4290 = vld [vmem:[%s8 + $0x40] sm:$0xff]
      %v4292 = vsel %vm904, %v4282, 0
      %v4295 = vsel %vm904, %v4283, 0
      %v4298 = vsel %vm904, %v4284, 0
      %v4301 = vsel %vm904, %v4285, 0
      %v4304 = vsel %vm904, %v4286, 0
      %v4307 = vsel %vm904, %v4287, 0
      %v4310 = vsel %vm904, %v4288, 0
      %v4313 = vsel %vm904, %v4289, 0
      %v4316 = vsel %vm904, %v4290, 0
      %4318 = vmatprep.subr.mxu0 0.0
      %4319 = vmatpush1.msra.mxu0 %v696
      %4320 = vmatprep.subr.mxu0 0.0
      %4321 = vmatpush1.msra.mxu0 %v698
      %4322 = vmatprep.subr.mxu0 0.0
      %4323 = vmatpush1.msra.mxu0 %v700
      %4324 = vmatprep.subr.mxu0 0.0
      %4325 = vmatpush1.msra.mxu0 %v702
      %4326 = vmatprep.subr.mxu0 0.0
      %4327 = vmatpush1.msra.mxu0 %v704
      %4328 = vmatprep.subr.mxu0 0.0
      %4329 = vmatpush1.msra.mxu0 %v706
      %4330 = vmatprep.subr.mxu0 0.0
      %4331 = vmatpush1.msra.mxu0 %v708
      %4332 = vmatprep.subr.mxu0 0.0
      %4333 = vmatpush1.msra.mxu0 %v710
      %4334 = vmatprep.subr.mxu0 0.0
      %4335 = vmatpush1.msra.mxu0 %v712
      %4336 = vmatprep.subr.mxu0 0.0
      %4337 = vmatpush1.msra.mxu0 0.0
      %4338 = vmatprep.subr.mxu0 0.0
      %4339 = vmatpush1.msra.mxu0 0.0
      %4340 = vmatprep.subr.mxu0 0.0
      %4341 = vmatpush1.msra.mxu0 0.0
      %4342 = vmatprep.subr.mxu0 0.0
      %4343 = vmatpush1.msra.mxu0 0.0
      %4344 = vmatprep.subr.mxu0 0.0
      %4345 = vmatpush1.msra.mxu0 0.0
      %4346 = vmatprep.subr.mxu0 0.0
      %4347 = vmatpush1.msra.mxu0 0.0
      %4348 = vmatprep.subr.mxu0 0.0
      %4349 = vmatpush1.msra.mxu0 0.0
      %4350 = vmatprep.subr.mxu0 0.0
      %4351 = vmatpush1.msra.mxu0 0.0
      %4352 = vmatprep.subr.mxu0 0.0
      %4353 = vmatpush1.msra.mxu0 0.0
      %4354 = vmatprep.subr.mxu0 0.0
      %4355 = vmatpush1.msra.mxu0 0.0
      %4356 = vmatprep.subr.mxu0 0.0
      %4357 = vmatpush1.msra.mxu0 0.0
      %4358 = vmatprep.subr.mxu0 0.0
      %4359 = vmatpush1.msra.mxu0 0.0
      %4360 = vmatprep.subr.mxu0 0.0
      %4361 = vmatpush1.msra.mxu0 0.0
      %4362 = vmatprep.subr.mxu0 0.0
      %4363 = vmatpush1.msra.mxu0 0.0
      %4364 = vmatprep.subr.mxu0 0.0
      %4365 = vmatpush1.msra.mxu0 0.0
      %4366 = vmatprep.subr.mxu0 0.0
      %4367 = vmatpush1.msra.mxu0 0.0
      %4368 = vmatprep.subr.mxu0 0.0
      %4369 = vmatpush1.msra.mxu0 0.0
      %4370 = vmatprep.subr.mxu0 0.0
      %4371 = vmatpush1.msra.mxu0 0.0
      %4372 = vmatprep.subr.mxu0 0.0
      %4373 = vmatpush1.msra.mxu0 0.0
      %4374 = vmatprep.subr.mxu0 0.0
      %4375 = vmatpush1.msra.mxu0 0.0
      %4376 = vmatprep.subr.mxu0 0.0
      %4377 = vmatpush1.msra.mxu0 0.0
      %4378 = vmatprep.subr.mxu0 0.0
      %4379 = vmatpush1.msra.mxu0 0.0
      %4380 = vmatprep.subr.mxu0 0.0
      %4381 = vmatpush1.msra.mxu0 0.0
      %4382 = vmatprep.mubr.f32.mxu0 0.0
      %4383 = vmatmul.mubr.f32.gmra.mrb[0].mxu0 %v4292
      %v4384 = vpop.f32.mrb[0].mxu0
      %v4385 = vadd.f32 0.0, %v4384
      %v4386 = vpop.f32.mrb[0].mxu0
      %4387 = vmatprep.mubr.f32.mxu0 0.0
      %4388 = vmatmul.mubr.f32.gmra.mrb[0].mxu0 %v4295
      %v4389 = vpop.f32.mrb[0].mxu0
      %v4390 = vadd.f32 0.0, %v4389
      %v4391 = vpop.f32.mrb[0].mxu0
      %4392 = vmatprep.mubr.f32.mxu0 0.0
      %4393 = vmatmul.mubr.f32.gmra.mrb[0].mxu0 %v4298
      %v4394 = vpop.f32.mrb[0].mxu0
      %v4395 = vadd.f32 0.0, %v4394
      %v4396 = vpop.f32.mrb[0].mxu0
      %4397 = vmatprep.mubr.f32.mxu0 0.0
      %4398 = vmatmul.mubr.f32.gmra.mrb[0].mxu0 %v4301
      %v4399 = vpop.f32.mrb[0].mxu0
      %v4400 = vadd.f32 0.0, %v4399
      %v4401 = vpop.f32.mrb[0].mxu0
      %4402 = vmatprep.mubr.f32.mxu0 0.0
      %4403 = vmatmul.mubr.f32.gmra.mrb[0].mxu0 %v4304
      %v4404 = vpop.f32.mrb[0].mxu0
      %v4405 = vadd.f32 0.0, %v4404
      %v4406 = vpop.f32.mrb[0].mxu0
      %4407 = vmatprep.mubr.f32.mxu0 0.0
      %4408 = vmatmul.mubr.f32.gmra.mrb[0].mxu0 %v4307
      %v4409 = vpop.f32.mrb[0].mxu0
      %v4410 = vadd.f32 0.0, %v4409
      %v4411 = vpop.f32.mrb[0].mxu0
      %4412 = vmatprep.mubr.f32.mxu0 0.0
      %4413 = vmatmul.mubr.f32.gmra.mrb[0].mxu0 %v4310
      %v4414 = vpop.f32.mrb[0].mxu0
      %v4415 = vadd.f32 0.0, %v4414
      %v4416 = vpop.f32.mrb[0].mxu0
      %4417 = vmatprep.mubr.f32.mxu0 0.0
      %4418 = vmatmul.mubr.f32.gmra.mrb[0].mxu0 %v4313
      %v4419 = vpop.f32.mrb[0].mxu0
      %v4420 = vadd.f32 0.0, %v4419
      %v4421 = vpop.f32.mrb[0].mxu0
      %4422 = vmatprep.mubr.f32.mxu0 0.0
      %4423 = vmatmul.mubr.f32.gmra.mrb[0].mxu0 %v4316
      %v4424 = vpop.f32.mrb[0].mxu0
      %v4425 = vadd.f32 0.0, %v4424
      %v4426 = vpop.f32.mrb[0].mxu0
      %4427 = vdwg.mxu0
      %v4428 = vld [vmem:[%s4] sm:$0x1]
      %v4430 = vlaneseq
      %v4431 = vshrl.u32 %v4430, 7
      %v4432 = vsub.s32 0, %v4431
      %v4433 = vrot.slane %v4428, %v4432
      %v4435 = vmul.f32 %v4385, %v4433
      %v4436 = vmul.f32 %v4390, %v4433
      %v4437 = vmul.f32 %v4395, %v4433
      %v4438 = vmul.f32 %v4400, %v4433
      %v4439 = vmul.f32 %v4405, %v4433
      %v4440 = vmul.f32 %v4410, %v4433
      %v4441 = vmul.f32 %v4415, %v4433
      %v4442 = vmul.f32 %v4420, %v4433
      %v4443 = vmul.f32 %v4425, %v4433
      %v4444 = vadd.f32 %v4435, 0.0
      %v4445 = vadd.f32 %v4436, 0.0
      %v4446 = vadd.f32 %v4437, 0.0
      %v4447 = vadd.f32 %v4438, 0.0
      %v4448 = vadd.f32 %v4439, 0.0
      %v4449 = vadd.f32 %v4440, 0.0
      %v4450 = vadd.f32 %v4441, 0.0
      %v4451 = vadd.f32 %v4442, 0.0
      %v4452 = vadd.f32 %v4443, 0.0
      %s4453 = scalar_lea.vmem %s8, 72
      %v4454 = vld [vmem:[%s4453] sm:$0xff]
      %v4455 = vld [vmem:[%s4453 + $0x8] sm:$0xff]
      %v4456 = vld [vmem:[%s4453 + $0x10] sm:$0xff]
      %v4457 = vld [vmem:[%s4453 + $0x18] sm:$0xff]
      %v4458 = vld [vmem:[%s4453 + $0x20] sm:$0xff]
      %v4459 = vld [vmem:[%s4453 + $0x28] sm:$0xff]
      %v4460 = vld [vmem:[%s4453 + $0x30] sm:$0xff]
      %v4461 = vld [vmem:[%s4453 + $0x38] sm:$0xff]
      %v4462 = vld [vmem:[%s4453 + $0x40] sm:$0xff]
      %v4464 = vsel %vm904, %v4454, 0
      %v4467 = vsel %vm904, %v4455, 0
      %v4470 = vsel %vm904, %v4456, 0
      %v4473 = vsel %vm904, %v4457, 0
      %v4476 = vsel %vm904, %v4458, 0
      %v4479 = vsel %vm904, %v4459, 0
      %v4482 = vsel %vm904, %v4460, 0
      %v4485 = vsel %vm904, %v4461, 0
      %v4488 = vsel %vm904, %v4462, 0
      %4490 = vmatprep.subr.mxu0 0.0
      %4491 = vmatpush1.msra.mxu0 %v696
      %4492 = vmatprep.subr.mxu0 0.0
      %4493 = vmatpush1.msra.mxu0 %v698
      %4494 = vmatprep.subr.mxu0 0.0
      %4495 = vmatpush1.msra.mxu0 %v700
      %4496 = vmatprep.subr.mxu0 0.0
      %4497 = vmatpush1.msra.mxu0 %v702
      %4498 = vmatprep.subr.mxu0 0.0
      %4499 = vmatpush1.msra.mxu0 %v704
      %4500 = vmatprep.subr.mxu0 0.0
      %4501 = vmatpush1.msra.mxu0 %v706
      %4502 = vmatprep.subr.mxu0 0.0
      %4503 = vmatpush1.msra.mxu0 %v708
      %4504 = vmatprep.subr.mxu0 0.0
      %4505 = vmatpush1.msra.mxu0 %v710
      %4506 = vmatprep.subr.mxu0 0.0
      %4507 = vmatpush1.msra.mxu0 %v712
      %4508 = vmatprep.subr.mxu0 0.0
      %4509 = vmatpush1.msra.mxu0 0.0
      %4510 = vmatprep.subr.mxu0 0.0
      %4511 = vmatpush1.msra.mxu0 0.0
      %4512 = vmatprep.subr.mxu0 0.0
      %4513 = vmatpush1.msra.mxu0 0.0
      %4514 = vmatprep.subr.mxu0 0.0
      %4515 = vmatpush1.msra.mxu0 0.0
      %4516 = vmatprep.subr.mxu0 0.0
      %4517 = vmatpush1.msra.mxu0 0.0
      %4518 = vmatprep.subr.mxu0 0.0
      %4519 = vmatpush1.msra.mxu0 0.0
      %4520 = vmatprep.subr.mxu0 0.0
      %4521 = vmatpush1.msra.mxu0 0.0
      %4522 = vmatprep.subr.mxu0 0.0
      %4523 = vmatpush1.msra.mxu0 0.0
      %4524 = vmatprep.subr.mxu0 0.0
      %4525 = vmatpush1.msra.mxu0 0.0
      %4526 = vmatprep.subr.mxu0 0.0
      %4527 = vmatpush1.msra.mxu0 0.0
      %4528 = vmatprep.subr.mxu0 0.0
      %4529 = vmatpush1.msra.mxu0 0.0
      %4530 = vmatprep.subr.mxu0 0.0
      %4531 = vmatpush1.msra.mxu0 0.0
      %4532 = vmatprep.subr.mxu0 0.0
      %4533 = vmatpush1.msra.mxu0 0.0
      %4534 = vmatprep.subr.mxu0 0.0
      %4535 = vmatpush1.msra.mxu0 0.0
      %4536 = vmatprep.subr.mxu0 0.0
      %4537 = vmatpush1.msra.mxu0 0.0
      %4538 = vmatprep.subr.mxu0 0.0
      %4539 = vmatpush1.msra.mxu0 0.0
      %4540 = vmatprep.subr.mxu0 0.0
      %4541 = vmatpush1.msra.mxu0 0.0
      %4542 = vmatprep.subr.mxu0 0.0
      %4543 = vmatpush1.msra.mxu0 0.0
      %4544 = vmatprep.subr.mxu0 0.0
      %4545 = vmatpush1.msra.mxu0 0.0
      %4546 = vmatprep.subr.mxu0 0.0
      %4547 = vmatpush1.msra.mxu0 0.0
      %4548 = vmatprep.subr.mxu0 0.0
      %4549 = vmatpush1.msra.mxu0 0.0
      %4550 = vmatprep.subr.mxu0 0.0
      %4551 = vmatpush1.msra.mxu0 0.0
      %4552 = vmatprep.subr.mxu0 0.0
      %4553 = vmatpush1.msra.mxu0 0.0
      %4554 = vmatprep.mubr.f32.mxu0 0.0
      %4555 = vmatmul.mubr.f32.gmra.mrb[0].mxu0 %v4464
      %v4556 = vpop.f32.mrb[0].mxu0
      %v4557 = vadd.f32 0.0, %v4556
      %v4558 = vpop.f32.mrb[0].mxu0
      %4559 = vmatprep.mubr.f32.mxu0 0.0
      %4560 = vmatmul.mubr.f32.gmra.mrb[0].mxu0 %v4467
      %v4561 = vpop.f32.mrb[0].mxu0
      %v4562 = vadd.f32 0.0, %v4561
      %v4563 = vpop.f32.mrb[0].mxu0
      %4564 = vmatprep.mubr.f32.mxu0 0.0
      %4565 = vmatmul.mubr.f32.gmra.mrb[0].mxu0 %v4470
      %v4566 = vpop.f32.mrb[0].mxu0
      %v4567 = vadd.f32 0.0, %v4566
      %v4568 = vpop.f32.mrb[0].mxu0
      %4569 = vmatprep.mubr.f32.mxu0 0.0
      %4570 = vmatmul.mubr.f32.gmra.mrb[0].mxu0 %v4473
      %v4571 = vpop.f32.mrb[0].mxu0
      %v4572 = vadd.f32 0.0, %v4571
      %v4573 = vpop.f32.mrb[0].mxu0
      %4574 = vmatprep.mubr.f32.mxu0 0.0
      %4575 = vmatmul.mubr.f32.gmra.mrb[0].mxu0 %v4476
      %v4576 = vpop.f32.mrb[0].mxu0
      %v4577 = vadd.f32 0.0, %v4576
      %v4578 = vpop.f32.mrb[0].mxu0
      %4579 = vmatprep.mubr.f32.mxu0 0.0
      %4580 = vmatmul.mubr.f32.gmra.mrb[0].mxu0 %v4479
      %v4581 = vpop.f32.mrb[0].mxu0
      %v4582 = vadd.f32 0.0, %v4581
      %v4583 = vpop.f32.mrb[0].mxu0
      %4584 = vmatprep.mubr.f32.mxu0 0.0
      %4585 = vmatmul.mubr.f32.gmra.mrb[0].mxu0 %v4482
      %v4586 = vpop.f32.mrb[0].mxu0
      %v4587 = vadd.f32 0.0, %v4586
      %v4588 = vpop.f32.mrb[0].mxu0
      %4589 = vmatprep.mubr.f32.mxu0 0.0
      %4590 = vmatmul.mubr.f32.gmra.mrb[0].mxu0 %v4485
      %v4591 = vpop.f32.mrb[0].mxu0
      %v4592 = vadd.f32 0.0, %v4591
      %v4593 = vpop.f32.mrb[0].mxu0
      %4594 = vmatprep.mubr.f32.mxu0 0.0
      %4595 = vmatmul.mubr.f32.gmra.mrb[0].mxu0 %v4488
      %v4596 = vpop.f32.mrb[0].mxu0
      %v4597 = vadd.f32 0.0, %v4596
      %v4598 = vpop.f32.mrb[0].mxu0
      %4599 = vdwg.mxu0
      %s4600 = scalar_lea.vmem %s4, 1
      %v4601 = vld [vmem:[%s4600] sm:$0x1]
      %v4603 = vlaneseq
      %v4604 = vshrl.u32 %v4603, 7
      %v4605 = vsub.s32 0, %v4604
      %v4606 = vrot.slane %v4601, %v4605
      %v4608 = vmul.f32 %v4557, %v4606
      %v4609 = vmul.f32 %v4562, %v4606
      %v4610 = vmul.f32 %v4567, %v4606
      %v4611 = vmul.f32 %v4572, %v4606
      %v4612 = vmul.f32 %v4577, %v4606
      %v4613 = vmul.f32 %v4582, %v4606
      %v4614 = vmul.f32 %v4587, %v4606
      %v4615 = vmul.f32 %v4592, %v4606
      %v4616 = vmul.f32 %v4597, %v4606
      %v4617 = vadd.f32 %v4444, %v4608
      %v4618 = vadd.f32 %v4445, %v4609
      %v4619 = vadd.f32 %v4446, %v4610
      %v4620 = vadd.f32 %v4447, %v4611
      %v4621 = vadd.f32 %v4448, %v4612
      %v4622 = vadd.f32 %v4449, %v4613
      %v4623 = vadd.f32 %v4450, %v4614
      %v4624 = vadd.f32 %v4451, %v4615
      %v4625 = vadd.f32 %v4452, %v4616
      %s4626 = scalar_lea.vmem %s8, 144
      %v4627 = vld [vmem:[%s4626] sm:$0xff]
      %v4628 = vld [vmem:[%s4626 + $0x8] sm:$0xff]
      %v4629 = vld [vmem:[%s4626 + $0x10] sm:$0xff]
      %v4630 = vld [vmem:[%s4626 + $0x18] sm:$0xff]
      %v4631 = vld [vmem:[%s4626 + $0x20] sm:$0xff]
      %v4632 = vld [vmem:[%s4626 + $0x28] sm:$0xff]
      %v4633 = vld [vmem:[%s4626 + $0x30] sm:$0xff]
      %v4634 = vld [vmem:[%s4626 + $0x38] sm:$0xff]
      %v4635 = vld [vmem:[%s4626 + $0x40] sm:$0xff]
      %v4637 = vsel %vm904, %v4627, 0
      %v4640 = vsel %vm904, %v4628, 0
      %v4643 = vsel %vm904, %v4629, 0
      %v4646 = vsel %vm904, %v4630, 0
      %v4649 = vsel %vm904, %v4631, 0
      %v4652 = vsel %vm904, %v4632, 0
      %v4655 = vsel %vm904, %v4633, 0
      %v4658 = vsel %vm904, %v4634, 0
      %v4661 = vsel %vm904, %v4635, 0
      %4663 = vmatprep.subr.mxu0 0.0
      %4664 = vmatpush1.msra.mxu0 %v696
      %4665 = vmatprep.subr.mxu0 0.0
      %4666 = vmatpush1.msra.mxu0 %v698
      %4667 = vmatprep.subr.mxu0 0.0
      %4668 = vmatpush1.msra.mxu0 %v700
      %4669 = vmatprep.subr.mxu0 0.0
      %4670 = vmatpush1.msra.mxu0 %v702
      %4671 = vmatprep.subr.mxu0 0.0
      %4672 = vmatpush1.msra.mxu0 %v704
      %4673 = vmatprep.subr.mxu0 0.0
      %4674 = vmatpush1.msra.mxu0 %v706
      %4675 = vmatprep.subr.mxu0 0.0
      %4676 = vmatpush1.msra.mxu0 %v708
      %4677 = vmatprep.subr.mxu0 0.0
      %4678 = vmatpush1.msra.mxu0 %v710
      %4679 = vmatprep.subr.mxu0 0.0
      %4680 = vmatpush1.msra.mxu0 %v712
      %4681 = vmatprep.subr.mxu0 0.0
      %4682 = vmatpush1.msra.mxu0 0.0
      %4683 = vmatprep.subr.mxu0 0.0
      %4684 = vmatpush1.msra.mxu0 0.0
      %4685 = vmatprep.subr.mxu0 0.0
      %4686 = vmatpush1.msra.mxu0 0.0
      %4687 = vmatprep.subr.mxu0 0.0
      %4688 = vmatpush1.msra.mxu0 0.0
      %4689 = vmatprep.subr.mxu0 0.0
      %4690 = vmatpush1.msra.mxu0 0.0
      %4691 = vmatprep.subr.mxu0 0.0
      %4692 = vmatpush1.msra.mxu0 0.0
      %4693 = vmatprep.subr.mxu0 0.0
      %4694 = vmatpush1.msra.mxu0 0.0
      %4695 = vmatprep.subr.mxu0 0.0
      %4696 = vmatpush1.msra.mxu0 0.0
      %4697 = vmatprep.subr.mxu0 0.0
      %4698 = vmatpush1.msra.mxu0 0.0
      %4699 = vmatprep.subr.mxu0 0.0
      %4700 = vmatpush1.msra.mxu0 0.0
      %4701 = vmatprep.subr.mxu0 0.0
      %4702 = vmatpush1.msra.mxu0 0.0
      %4703 = vmatprep.subr.mxu0 0.0
      %4704 = vmatpush1.msra.mxu0 0.0
      %4705 = vmatprep.subr.mxu0 0.0
      %4706 = vmatpush1.msra.mxu0 0.0
      %4707 = vmatprep.subr.mxu0 0.0
      %4708 = vmatpush1.msra.mxu0 0.0
      %4709 = vmatprep.subr.mxu0 0.0
      %4710 = vmatpush1.msra.mxu0 0.0
      %4711 = vmatprep.subr.mxu0 0.0
      %4712 = vmatpush1.msra.mxu0 0.0
      %4713 = vmatprep.subr.mxu0 0.0
      %4714 = vmatpush1.msra.mxu0 0.0
      %4715 = vmatprep.subr.mxu0 0.0
      %4716 = vmatpush1.msra.mxu0 0.0
      %4717 = vmatprep.subr.mxu0 0.0
      %4718 = vmatpush1.msra.mxu0 0.0
      %4719 = vmatprep.subr.mxu0 0.0
      %4720 = vmatpush1.msra.mxu0 0.0
      %4721 = vmatprep.subr.mxu0 0.0
      %4722 = vmatpush1.msra.mxu0 0.0
      %4723 = vmatprep.subr.mxu0 0.0
      %4724 = vmatpush1.msra.mxu0 0.0
      %4725 = vmatprep.subr.mxu0 0.0
      %4726 = vmatpush1.msra.mxu0 0.0
      %4727 = vmatprep.mubr.f32.mxu0 0.0
      %4728 = vmatmul.mubr.f32.gmra.mrb[0].mxu0 %v4637
      %v4729 = vpop.f32.mrb[0].mxu0
      %v4730 = vadd.f32 0.0, %v4729
      %v4731 = vpop.f32.mrb[0].mxu0
      %4732 = vmatprep.mubr.f32.mxu0 0.0
      %4733 = vmatmul.mubr.f32.gmra.mrb[0].mxu0 %v4640
      %v4734 = vpop.f32.mrb[0].mxu0
      %v4735 = vadd.f32 0.0, %v4734
      %v4736 = vpop.f32.mrb[0].mxu0
      %4737 = vmatprep.mubr.f32.mxu0 0.0
      %4738 = vmatmul.mubr.f32.gmra.mrb[0].mxu0 %v4643
      %v4739 = vpop.f32.mrb[0].mxu0
      %v4740 = vadd.f32 0.0, %v4739
      %v4741 = vpop.f32.mrb[0].mxu0
      %4742 = vmatprep.mubr.f32.mxu0 0.0
      %4743 = vmatmul.mubr.f32.gmra.mrb[0].mxu0 %v4646
      %v4744 = vpop.f32.mrb[0].mxu0
      %v4745 = vadd.f32 0.0, %v4744
      %v4746 = vpop.f32.mrb[0].mxu0
      %4747 = vmatprep.mubr.f32.mxu0 0.0
      %4748 = vmatmul.mubr.f32.gmra.mrb[0].mxu0 %v4649
      %v4749 = vpop.f32.mrb[0].mxu0
      %v4750 = vadd.f32 0.0, %v4749
      %v4751 = vpop.f32.mrb[0].mxu0
      %4752 = vmatprep.mubr.f32.mxu0 0.0
      %4753 = vmatmul.mubr.f32.gmra.mrb[0].mxu0 %v4652
      %v4754 = vpop.f32.mrb[0].mxu0
      %v4755 = vadd.f32 0.0, %v4754
      %v4756 = vpop.f32.mrb[0].mxu0
      %4757 = vmatprep.mubr.f32.mxu0 0.0
      %4758 = vmatmul.mubr.f32.gmra.mrb[0].mxu0 %v4655
      %v4759 = vpop.f32.mrb[0].mxu0
      %v4760 = vadd.f32 0.0, %v4759
      %v4761 = vpop.f32.mrb[0].mxu0
      %4762 = vmatprep.mubr.f32.mxu0 0.0
      %4763 = vmatmul.mubr.f32.gmra.mrb[0].mxu0 %v4658
      %v4764 = vpop.f32.mrb[0].mxu0
      %v4765 = vadd.f32 0.0, %v4764
      %v4766 = vpop.f32.mrb[0].mxu0
      %4767 = vmatprep.mubr.f32.mxu0 0.0
      %4768 = vmatmul.mubr.f32.gmra.mrb[0].mxu0 %v4661
      %v4769 = vpop.f32.mrb[0].mxu0
      %v4770 = vadd.f32 0.0, %v4769
      %v4771 = vpop.f32.mrb[0].mxu0
      %4772 = vdwg.mxu0
      %s4773 = scalar_lea.vmem %s4, 2
      %v4774 = vld [vmem:[%s4773] sm:$0x1]
      %v4776 = vlaneseq
      %v4777 = vshrl.u32 %v4776, 7
      %v4778 = vsub.s32 0, %v4777
      %v4779 = vrot.slane %v4774, %v4778
      %v4781 = vmul.f32 %v4730, %v4779
      %v4782 = vmul.f32 %v4735, %v4779
      %v4783 = vmul.f32 %v4740, %v4779
      %v4784 = vmul.f32 %v4745, %v4779
      %v4785 = vmul.f32 %v4750, %v4779
      %v4786 = vmul.f32 %v4755, %v4779
      %v4787 = vmul.f32 %v4760, %v4779
      %v4788 = vmul.f32 %v4765, %v4779
      %v4789 = vmul.f32 %v4770, %v4779
      %v4790 = vadd.f32 %v4617, %v4781
      %v4791 = vadd.f32 %v4618, %v4782
      %v4792 = vadd.f32 %v4619, %v4783
      %v4793 = vadd.f32 %v4620, %v4784
      %v4794 = vadd.f32 %v4621, %v4785
      %v4795 = vadd.f32 %v4622, %v4786
      %v4796 = vadd.f32 %v4623, %v4787
      %v4797 = vadd.f32 %v4624, %v4788
      %v4798 = vadd.f32 %v4625, %v4789
      %s4799 = scalar_lea.vmem %s8, 216
      %v4800 = vld [vmem:[%s4799] sm:$0xff]
      %v4801 = vld [vmem:[%s4799 + $0x8] sm:$0xff]
      %v4802 = vld [vmem:[%s4799 + $0x10] sm:$0xff]
      %v4803 = vld [vmem:[%s4799 + $0x18] sm:$0xff]
      %v4804 = vld [vmem:[%s4799 + $0x20] sm:$0xff]
      %v4805 = vld [vmem:[%s4799 + $0x28] sm:$0xff]
      %v4806 = vld [vmem:[%s4799 + $0x30] sm:$0xff]
      %v4807 = vld [vmem:[%s4799 + $0x38] sm:$0xff]
      %v4808 = vld [vmem:[%s4799 + $0x40] sm:$0xff]
      %v4810 = vsel %vm904, %v4800, 0
      %v4813 = vsel %vm904, %v4801, 0
      %v4816 = vsel %vm904, %v4802, 0
      %v4819 = vsel %vm904, %v4803, 0
      %v4822 = vsel %vm904, %v4804, 0
      %v4825 = vsel %vm904, %v4805, 0
      %v4828 = vsel %vm904, %v4806, 0
      %v4831 = vsel %vm904, %v4807, 0
      %v4834 = vsel %vm904, %v4808, 0
      %4836 = vmatprep.subr.mxu0 0.0
      %4837 = vmatpush1.msra.mxu0 %v696
      %4838 = vmatprep.subr.mxu0 0.0
      %4839 = vmatpush1.msra.mxu0 %v698
      %4840 = vmatprep.subr.mxu0 0.0
      %4841 = vmatpush1.msra.mxu0 %v700
      %4842 = vmatprep.subr.mxu0 0.0
      %4843 = vmatpush1.msra.mxu0 %v702
      %4844 = vmatprep.subr.mxu0 0.0
      %4845 = vmatpush1.msra.mxu0 %v704
      %4846 = vmatprep.subr.mxu0 0.0
      %4847 = vmatpush1.msra.mxu0 %v706
      %4848 = vmatprep.subr.mxu0 0.0
      %4849 = vmatpush1.msra.mxu0 %v708
      %4850 = vmatprep.subr.mxu0 0.0
      %4851 = vmatpush1.msra.mxu0 %v710
      %4852 = vmatprep.subr.mxu0 0.0
      %4853 = vmatpush1.msra.mxu0 %v712
      %4854 = vmatprep.subr.mxu0 0.0
      %4855 = vmatpush1.msra.mxu0 0.0
      %4856 = vmatprep.subr.mxu0 0.0
      %4857 = vmatpush1.msra.mxu0 0.0
      %4858 = vmatprep.subr.mxu0 0.0
      %4859 = vmatpush1.msra.mxu0 0.0
      %4860 = vmatprep.subr.mxu0 0.0
      %4861 = vmatpush1.msra.mxu0 0.0
      %4862 = vmatprep.subr.mxu0 0.0
      %4863 = vmatpush1.msra.mxu0 0.0
      %4864 = vmatprep.subr.mxu0 0.0
      %4865 = vmatpush1.msra.mxu0 0.0
      %4866 = vmatprep.subr.mxu0 0.0
      %4867 = vmatpush1.msra.mxu0 0.0
      %4868 = vmatprep.subr.mxu0 0.0
      %4869 = vmatpush1.msra.mxu0 0.0
      %4870 = vmatprep.subr.mxu0 0.0
      %4871 = vmatpush1.msra.mxu0 0.0
      %4872 = vmatprep.subr.mxu0 0.0
      %4873 = vmatpush1.msra.mxu0 0.0
      %4874 = vmatprep.subr.mxu0 0.0
      %4875 = vmatpush1.msra.mxu0 0.0
      %4876 = vmatprep.subr.mxu0 0.0
      %4877 = vmatpush1.msra.mxu0 0.0
      %4878 = vmatprep.subr.mxu0 0.0
      %4879 = vmatpush1.msra.mxu0 0.0
      %4880 = vmatprep.subr.mxu0 0.0
      %4881 = vmatpush1.msra.mxu0 0.0
      %4882 = vmatprep.subr.mxu0 0.0
      %4883 = vmatpush1.msra.mxu0 0.0
      %4884 = vmatprep.subr.mxu0 0.0
      %4885 = vmatpush1.msra.mxu0 0.0
      %4886 = vmatprep.subr.mxu0 0.0
      %4887 = vmatpush1.msra.mxu0 0.0
      %4888 = vmatprep.subr.mxu0 0.0
      %4889 = vmatpush1.msra.mxu0 0.0
      %4890 = vmatprep.subr.mxu0 0.0
      %4891 = vmatpush1.msra.mxu0 0.0
      %4892 = vmatprep.subr.mxu0 0.0
      %4893 = vmatpush1.msra.mxu0 0.0
      %4894 = vmatprep.subr.mxu0 0.0
      %4895 = vmatpush1.msra.mxu0 0.0
      %4896 = vmatprep.subr.mxu0 0.0
      %4897 = vmatpush1.msra.mxu0 0.0
      %4898 = vmatprep.subr.mxu0 0.0
      %4899 = vmatpush1.msra.mxu0 0.0
      %4900 = vmatprep.mubr.f32.mxu0 0.0
      %4901 = vmatmul.mubr.f32.gmra.mrb[0].mxu0 %v4810
      %v4902 = vpop.f32.mrb[0].mxu0
      %v4903 = vadd.f32 0.0, %v4902
      %v4904 = vpop.f32.mrb[0].mxu0
      %4905 = vmatprep.mubr.f32.mxu0 0.0
      %4906 = vmatmul.mubr.f32.gmra.mrb[0].mxu0 %v4813
      %v4907 = vpop.f32.mrb[0].mxu0
      %v4908 = vadd.f32 0.0, %v4907
      %v4909 = vpop.f32.mrb[0].mxu0
      %4910 = vmatprep.mubr.f32.mxu0 0.0
      %4911 = vmatmul.mubr.f32.gmra.mrb[0].mxu0 %v4816
      %v4912 = vpop.f32.mrb[0].mxu0
      %v4913 = vadd.f32 0.0, %v4912
      %v4914 = vpop.f32.mrb[0].mxu0
      %4915 = vmatprep.mubr.f32.mxu0 0.0
      %4916 = vmatmul.mubr.f32.gmra.mrb[0].mxu0 %v4819
      %v4917 = vpop.f32.mrb[0].mxu0
      %v4918 = vadd.f32 0.0, %v4917
      %v4919 = vpop.f32.mrb[0].mxu0
      %4920 = vmatprep.mubr.f32.mxu0 0.0
      %4921 = vmatmul.mubr.f32.gmra.mrb[0].mxu0 %v4822
      %v4922 = vpop.f32.mrb[0].mxu0
      %v4923 = vadd.f32 0.0, %v4922
      %v4924 = vpop.f32.mrb[0].mxu0
      %4925 = vmatprep.mubr.f32.mxu0 0.0
      %4926 = vmatmul.mubr.f32.gmra.mrb[0].mxu0 %v4825
      %v4927 = vpop.f32.mrb[0].mxu0
      %v4928 = vadd.f32 0.0, %v4927
      %v4929 = vpop.f32.mrb[0].mxu0
      %4930 = vmatprep.mubr.f32.mxu0 0.0
      %4931 = vmatmul.mubr.f32.gmra.mrb[0].mxu0 %v4828
      %v4932 = vpop.f32.mrb[0].mxu0
      %v4933 = vadd.f32 0.0, %v4932
      %v4934 = vpop.f32.mrb[0].mxu0
      %4935 = vmatprep.mubr.f32.mxu0 0.0
      %4936 = vmatmul.mubr.f32.gmra.mrb[0].mxu0 %v4831
      %v4937 = vpop.f32.mrb[0].mxu0
      %v4938 = vadd.f32 0.0, %v4937
      %v4939 = vpop.f32.mrb[0].mxu0
      %4940 = vmatprep.mubr.f32.mxu0 0.0
      %4941 = vmatmul.mubr.f32.gmra.mrb[0].mxu0 %v4834
      %v4942 = vpop.f32.mrb[0].mxu0
      %v4943 = vadd.f32 0.0, %v4942
      %v4944 = vpop.f32.mrb[0].mxu0
      %4945 = vdwg.mxu0
      %s4946 = scalar_lea.vmem %s4, 3
      %v4947 = vld [vmem:[%s4946] sm:$0x1]
      %v4949 = vlaneseq
      %v4950 = vshrl.u32 %v4949, 7
      %v4951 = vsub.s32 0, %v4950
      %v4952 = vrot.slane %v4947, %v4951
      %v4954 = vmul.f32 %v4903, %v4952
      %v4955 = vmul.f32 %v4908, %v4952
      %v4956 = vmul.f32 %v4913, %v4952
      %v4957 = vmul.f32 %v4918, %v4952
      %v4958 = vmul.f32 %v4923, %v4952
      %v4959 = vmul.f32 %v4928, %v4952
      %v4960 = vmul.f32 %v4933, %v4952
      %v4961 = vmul.f32 %v4938, %v4952
      %v4962 = vmul.f32 %v4943, %v4952
      %v4963 = vadd.f32 %v4790, %v4954
      %v4964 = vadd.f32 %v4791, %v4955
      %v4965 = vadd.f32 %v4792, %v4956
      %v4966 = vadd.f32 %v4793, %v4957
      %v4967 = vadd.f32 %v4794, %v4958
      %v4968 = vadd.f32 %v4795, %v4959
      %v4969 = vadd.f32 %v4796, %v4960
      %v4970 = vadd.f32 %v4797, %v4961
      %v4971 = vadd.f32 %v4798, %v4962
      %s4972 = scalar_lea.vmem %s8, 288
      %v4973 = vld [vmem:[%s4972] sm:$0xff]
      %v4974 = vld [vmem:[%s4972 + $0x8] sm:$0xff]
      %v4975 = vld [vmem:[%s4972 + $0x10] sm:$0xff]
      %v4976 = vld [vmem:[%s4972 + $0x18] sm:$0xff]
      %v4977 = vld [vmem:[%s4972 + $0x20] sm:$0xff]
      %v4978 = vld [vmem:[%s4972 + $0x28] sm:$0xff]
      %v4979 = vld [vmem:[%s4972 + $0x30] sm:$0xff]
      %v4980 = vld [vmem:[%s4972 + $0x38] sm:$0xff]
      %v4981 = vld [vmem:[%s4972 + $0x40] sm:$0xff]
      %v4983 = vsel %vm904, %v4973, 0
      %v4986 = vsel %vm904, %v4974, 0
      %v4989 = vsel %vm904, %v4975, 0
      %v4992 = vsel %vm904, %v4976, 0
      %v4995 = vsel %vm904, %v4977, 0
      %v4998 = vsel %vm904, %v4978, 0
      %v5001 = vsel %vm904, %v4979, 0
      %v5004 = vsel %vm904, %v4980, 0
      %v5007 = vsel %vm904, %v4981, 0
      %5009 = vmatprep.subr.mxu0 0.0
      %5010 = vmatpush1.msra.mxu0 %v696
      %5011 = vmatprep.subr.mxu0 0.0
      %5012 = vmatpush1.msra.mxu0 %v698
      %5013 = vmatprep.subr.mxu0 0.0
      %5014 = vmatpush1.msra.mxu0 %v700
      %5015 = vmatprep.subr.mxu0 0.0
      %5016 = vmatpush1.msra.mxu0 %v702
      %5017 = vmatprep.subr.mxu0 0.0
      %5018 = vmatpush1.msra.mxu0 %v704
      %5019 = vmatprep.subr.mxu0 0.0
      %5020 = vmatpush1.msra.mxu0 %v706
      %5021 = vmatprep.subr.mxu0 0.0
      %5022 = vmatpush1.msra.mxu0 %v708
      %5023 = vmatprep.subr.mxu0 0.0
      %5024 = vmatpush1.msra.mxu0 %v710
      %5025 = vmatprep.subr.mxu0 0.0
      %5026 = vmatpush1.msra.mxu0 %v712
      %5027 = vmatprep.subr.mxu0 0.0
      %5028 = vmatpush1.msra.mxu0 0.0
      %5029 = vmatprep.subr.mxu0 0.0
      %5030 = vmatpush1.msra.mxu0 0.0
      %5031 = vmatprep.subr.mxu0 0.0
      %5032 = vmatpush1.msra.mxu0 0.0
      %5033 = vmatprep.subr.mxu0 0.0
      %5034 = vmatpush1.msra.mxu0 0.0
      %5035 = vmatprep.subr.mxu0 0.0
      %5036 = vmatpush1.msra.mxu0 0.0
      %5037 = vmatprep.subr.mxu0 0.0
      %5038 = vmatpush1.msra.mxu0 0.0
      %5039 = vmatprep.subr.mxu0 0.0
      %5040 = vmatpush1.msra.mxu0 0.0
      %5041 = vmatprep.subr.mxu0 0.0
      %5042 = vmatpush1.msra.mxu0 0.0
      %5043 = vmatprep.subr.mxu0 0.0
      %5044 = vmatpush1.msra.mxu0 0.0
      %5045 = vmatprep.subr.mxu0 0.0
      %5046 = vmatpush1.msra.mxu0 0.0
      %5047 = vmatprep.subr.mxu0 0.0
      %5048 = vmatpush1.msra.mxu0 0.0
      %5049 = vmatprep.subr.mxu0 0.0
      %5050 = vmatpush1.msra.mxu0 0.0
      %5051 = vmatprep.subr.mxu0 0.0
      %5052 = vmatpush1.msra.mxu0 0.0
      %5053 = vmatprep.subr.mxu0 0.0
      %5054 = vmatpush1.msra.mxu0 0.0
      %5055 = vmatprep.subr.mxu0 0.0
      %5056 = vmatpush1.msra.mxu0 0.0
      %5057 = vmatprep.subr.mxu0 0.0
      %5058 = vmatpush1.msra.mxu0 0.0
      %5059 = vmatprep.subr.mxu0 0.0
      %5060 = vmatpush1.msra.mxu0 0.0
      %5061 = vmatprep.subr.mxu0 0.0
      %5062 = vmatpush1.msra.mxu0 0.0
      %5063 = vmatprep.subr.mxu0 0.0
      %5064 = vmatpush1.msra.mxu0 0.0
      %5065 = vmatprep.subr.mxu0 0.0
      %5066 = vmatpush1.msra.mxu0 0.0
      %5067 = vmatprep.subr.mxu0 0.0
      %5068 = vmatpush1.msra.mxu0 0.0
      %5069 = vmatprep.subr.mxu0 0.0
      %5070 = vmatpush1.msra.mxu0 0.0
      %5071 = vmatprep.subr.mxu0 0.0
      %5072 = vmatpush1.msra.mxu0 0.0
      %5073 = vmatprep.mubr.f32.mxu0 0.0
      %5074 = vmatmul.mubr.f32.gmra.mrb[0].mxu0 %v4983
      %v5075 = vpop.f32.mrb[0].mxu0
      %v5076 = vadd.f32 0.0, %v5075
      %v5077 = vpop.f32.mrb[0].mxu0
      %5078 = vmatprep.mubr.f32.mxu0 0.0
      %5079 = vmatmul.mubr.f32.gmra.mrb[0].mxu0 %v4986
      %v5080 = vpop.f32.mrb[0].mxu0
      %v5081 = vadd.f32 0.0, %v5080
      %v5082 = vpop.f32.mrb[0].mxu0
      %5083 = vmatprep.mubr.f32.mxu0 0.0
      %5084 = vmatmul.mubr.f32.gmra.mrb[0].mxu0 %v4989
      %v5085 = vpop.f32.mrb[0].mxu0
      %v5086 = vadd.f32 0.0, %v5085
      %v5087 = vpop.f32.mrb[0].mxu0
      %5088 = vmatprep.mubr.f32.mxu0 0.0
      %5089 = vmatmul.mubr.f32.gmra.mrb[0].mxu0 %v4992
      %v5090 = vpop.f32.mrb[0].mxu0
      %v5091 = vadd.f32 0.0, %v5090
      %v5092 = vpop.f32.mrb[0].mxu0
      %5093 = vmatprep.mubr.f32.mxu0 0.0
      %5094 = vmatmul.mubr.f32.gmra.mrb[0].mxu0 %v4995
      %v5095 = vpop.f32.mrb[0].mxu0
      %v5096 = vadd.f32 0.0, %v5095
      %v5097 = vpop.f32.mrb[0].mxu0
      %5098 = vmatprep.mubr.f32.mxu0 0.0
      %5099 = vmatmul.mubr.f32.gmra.mrb[0].mxu0 %v4998
      %v5100 = vpop.f32.mrb[0].mxu0
      %v5101 = vadd.f32 0.0, %v5100
      %v5102 = vpop.f32.mrb[0].mxu0
      %5103 = vmatprep.mubr.f32.mxu0 0.0
      %5104 = vmatmul.mubr.f32.gmra.mrb[0].mxu0 %v5001
      %v5105 = vpop.f32.mrb[0].mxu0
      %v5106 = vadd.f32 0.0, %v5105
      %v5107 = vpop.f32.mrb[0].mxu0
      %5108 = vmatprep.mubr.f32.mxu0 0.0
      %5109 = vmatmul.mubr.f32.gmra.mrb[0].mxu0 %v5004
      %v5110 = vpop.f32.mrb[0].mxu0
      %v5111 = vadd.f32 0.0, %v5110
      %v5112 = vpop.f32.mrb[0].mxu0
      %5113 = vmatprep.mubr.f32.mxu0 0.0
      %5114 = vmatmul.mubr.f32.gmra.mrb[0].mxu0 %v5007
      %v5115 = vpop.f32.mrb[0].mxu0
      %v5116 = vadd.f32 0.0, %v5115
      %v5117 = vpop.f32.mrb[0].mxu0
      %5118 = vdwg.mxu0
      %s5119 = scalar_lea.vmem %s4, 4
      %v5120 = vld [vmem:[%s5119] sm:$0x1]
      %v5122 = vlaneseq
      %v5123 = vshrl.u32 %v5122, 7
      %v5124 = vsub.s32 0, %v5123
      %v5125 = vrot.slane %v5120, %v5124
      %v5127 = vmul.f32 %v5076, %v5125
      %v5128 = vmul.f32 %v5081, %v5125
      %v5129 = vmul.f32 %v5086, %v5125
      %v5130 = vmul.f32 %v5091, %v5125
      %v5131 = vmul.f32 %v5096, %v5125
      %v5132 = vmul.f32 %v5101, %v5125
      %v5133 = vmul.f32 %v5106, %v5125
      %v5134 = vmul.f32 %v5111, %v5125
      %v5135 = vmul.f32 %v5116, %v5125
      %v5136 = vadd.f32 %v4963, %v5127
      %v5137 = vadd.f32 %v4964, %v5128
      %v5138 = vadd.f32 %v4965, %v5129
      %v5139 = vadd.f32 %v4966, %v5130
      %v5140 = vadd.f32 %v4967, %v5131
      %v5141 = vadd.f32 %v4968, %v5132
      %v5142 = vadd.f32 %v4969, %v5133
      %v5143 = vadd.f32 %v4970, %v5134
      %v5144 = vadd.f32 %v4971, %v5135
      %s5145 = scalar_lea.vmem %s8, 360
      %v5146 = vld [vmem:[%s5145] sm:$0xff]
      %v5147 = vld [vmem:[%s5145 + $0x8] sm:$0xff]
      %v5148 = vld [vmem:[%s5145 + $0x10] sm:$0xff]
      %v5149 = vld [vmem:[%s5145 + $0x18] sm:$0xff]
      %v5150 = vld [vmem:[%s5145 + $0x20] sm:$0xff]
      %v5151 = vld [vmem:[%s5145 + $0x28] sm:$0xff]
      %v5152 = vld [vmem:[%s5145 + $0x30] sm:$0xff]
      %v5153 = vld [vmem:[%s5145 + $0x38] sm:$0xff]
      %v5154 = vld [vmem:[%s5145 + $0x40] sm:$0xff]
      %v5156 = vsel %vm904, %v5146, 0
      %v5159 = vsel %vm904, %v5147, 0
      %v5162 = vsel %vm904, %v5148, 0
      %v5165 = vsel %vm904, %v5149, 0
      %v5168 = vsel %vm904, %v5150, 0
      %v5171 = vsel %vm904, %v5151, 0
      %v5174 = vsel %vm904, %v5152, 0
      %v5177 = vsel %vm904, %v5153, 0
      %v5180 = vsel %vm904, %v5154, 0
      %5182 = vmatprep.subr.mxu0 0.0
      %5183 = vmatpush1.msra.mxu0 %v696
      %5184 = vmatprep.subr.mxu0 0.0
      %5185 = vmatpush1.msra.mxu0 %v698
      %5186 = vmatprep.subr.mxu0 0.0
      %5187 = vmatpush1.msra.mxu0 %v700
      %5188 = vmatprep.subr.mxu0 0.0
      %5189 = vmatpush1.msra.mxu0 %v702
      %5190 = vmatprep.subr.mxu0 0.0
      %5191 = vmatpush1.msra.mxu0 %v704
      %5192 = vmatprep.subr.mxu0 0.0
      %5193 = vmatpush1.msra.mxu0 %v706
      %5194 = vmatprep.subr.mxu0 0.0
      %5195 = vmatpush1.msra.mxu0 %v708
      %5196 = vmatprep.subr.mxu0 0.0
      %5197 = vmatpush1.msra.mxu0 %v710
      %5198 = vmatprep.subr.mxu0 0.0
      %5199 = vmatpush1.msra.mxu0 %v712
      %5200 = vmatprep.subr.mxu0 0.0
      %5201 = vmatpush1.msra.mxu0 0.0
      %5202 = vmatprep.subr.mxu0 0.0
      %5203 = vmatpush1.msra.mxu0 0.0
      %5204 = vmatprep.subr.mxu0 0.0
      %5205 = vmatpush1.msra.mxu0 0.0
      %5206 = vmatprep.subr.mxu0 0.0
      %5207 = vmatpush1.msra.mxu0 0.0
      %5208 = vmatprep.subr.mxu0 0.0
      %5209 = vmatpush1.msra.mxu0 0.0
      %5210 = vmatprep.subr.mxu0 0.0
      %5211 = vmatpush1.msra.mxu0 0.0
      %5212 = vmatprep.subr.mxu0 0.0
      %5213 = vmatpush1.msra.mxu0 0.0
      %5214 = vmatprep.subr.mxu0 0.0
      %5215 = vmatpush1.msra.mxu0 0.0
      %5216 = vmatprep.subr.mxu0 0.0
      %5217 = vmatpush1.msra.mxu0 0.0
      %5218 = vmatprep.subr.mxu0 0.0
      %5219 = vmatpush1.msra.mxu0 0.0
      %5220 = vmatprep.subr.mxu0 0.0
      %5221 = vmatpush1.msra.mxu0 0.0
      %5222 = vmatprep.subr.mxu0 0.0
      %5223 = vmatpush1.msra.mxu0 0.0
      %5224 = vmatprep.subr.mxu0 0.0
      %5225 = vmatpush1.msra.mxu0 0.0
      %5226 = vmatprep.subr.mxu0 0.0
      %5227 = vmatpush1.msra.mxu0 0.0
      %5228 = vmatprep.subr.mxu0 0.0
      %5229 = vmatpush1.msra.mxu0 0.0
      %5230 = vmatprep.subr.mxu0 0.0
      %5231 = vmatpush1.msra.mxu0 0.0
      %5232 = vmatprep.subr.mxu0 0.0
      %5233 = vmatpush1.msra.mxu0 0.0
      %5234 = vmatprep.subr.mxu0 0.0
      %5235 = vmatpush1.msra.mxu0 0.0
      %5236 = vmatprep.subr.mxu0 0.0
      %5237 = vmatpush1.msra.mxu0 0.0
      %5238 = vmatprep.subr.mxu0 0.0
      %5239 = vmatpush1.msra.mxu0 0.0
      %5240 = vmatprep.subr.mxu0 0.0
      %5241 = vmatpush1.msra.mxu0 0.0
      %5242 = vmatprep.subr.mxu0 0.0
      %5243 = vmatpush1.msra.mxu0 0.0
      %5244 = vmatprep.subr.mxu0 0.0
      %5245 = vmatpush1.msra.mxu0 0.0
      %5246 = vmatprep.mubr.f32.mxu0 0.0
      %5247 = vmatmul.mubr.f32.gmra.mrb[0].mxu0 %v5156
      %v5248 = vpop.f32.mrb[0].mxu0
      %v5249 = vadd.f32 0.0, %v5248
      %v5250 = vpop.f32.mrb[0].mxu0
      %5251 = vmatprep.mubr.f32.mxu0 0.0
      %5252 = vmatmul.mubr.f32.gmra.mrb[0].mxu0 %v5159
      %v5253 = vpop.f32.mrb[0].mxu0
      %v5254 = vadd.f32 0.0, %v5253
      %v5255 = vpop.f32.mrb[0].mxu0
      %5256 = vmatprep.mubr.f32.mxu0 0.0
      %5257 = vmatmul.mubr.f32.gmra.mrb[0].mxu0 %v5162
      %v5258 = vpop.f32.mrb[0].mxu0
      %v5259 = vadd.f32 0.0, %v5258
      %v5260 = vpop.f32.mrb[0].mxu0
      %5261 = vmatprep.mubr.f32.mxu0 0.0
      %5262 = vmatmul.mubr.f32.gmra.mrb[0].mxu0 %v5165
      %v5263 = vpop.f32.mrb[0].mxu0
      %v5264 = vadd.f32 0.0, %v5263
      %v5265 = vpop.f32.mrb[0].mxu0
      %5266 = vmatprep.mubr.f32.mxu0 0.0
      %5267 = vmatmul.mubr.f32.gmra.mrb[0].mxu0 %v5168
      %v5268 = vpop.f32.mrb[0].mxu0
      %v5269 = vadd.f32 0.0, %v5268
      %v5270 = vpop.f32.mrb[0].mxu0
      %5271 = vmatprep.mubr.f32.mxu0 0.0
      %5272 = vmatmul.mubr.f32.gmra.mrb[0].mxu0 %v5171
      %v5273 = vpop.f32.mrb[0].mxu0
      %v5274 = vadd.f32 0.0, %v5273
      %v5275 = vpop.f32.mrb[0].mxu0
      %5276 = vmatprep.mubr.f32.mxu0 0.0
      %5277 = vmatmul.mubr.f32.gmra.mrb[0].mxu0 %v5174
      %v5278 = vpop.f32.mrb[0].mxu0
      %v5279 = vadd.f32 0.0, %v5278
      %v5280 = vpop.f32.mrb[0].mxu0
      %5281 = vmatprep.mubr.f32.mxu0 0.0
      %5282 = vmatmul.mubr.f32.gmra.mrb[0].mxu0 %v5177
      %v5283 = vpop.f32.mrb[0].mxu0
      %v5284 = vadd.f32 0.0, %v5283
      %v5285 = vpop.f32.mrb[0].mxu0
      %5286 = vmatprep.mubr.f32.mxu0 0.0
      %5287 = vmatmul.mubr.f32.gmra.mrb[0].mxu0 %v5180
      %v5288 = vpop.f32.mrb[0].mxu0
      %v5289 = vadd.f32 0.0, %v5288
      %v5290 = vpop.f32.mrb[0].mxu0
      %5291 = vdwg.mxu0
      %s5292 = scalar_lea.vmem %s4, 5
      %v5293 = vld [vmem:[%s5292] sm:$0x1]
      %v5295 = vlaneseq
      %v5296 = vshrl.u32 %v5295, 7
      %v5297 = vsub.s32 0, %v5296
      %v5298 = vrot.slane %v5293, %v5297
      %v5300 = vmul.f32 %v5249, %v5298
      %v5301 = vmul.f32 %v5254, %v5298
      %v5302 = vmul.f32 %v5259, %v5298
      %v5303 = vmul.f32 %v5264, %v5298
      %v5304 = vmul.f32 %v5269, %v5298
      %v5305 = vmul.f32 %v5274, %v5298
      %v5306 = vmul.f32 %v5279, %v5298
      %v5307 = vmul.f32 %v5284, %v5298
      %v5308 = vmul.f32 %v5289, %v5298
      %v5309 = vadd.f32 %v5136, %v5300
      %v5310 = vadd.f32 %v5137, %v5301
      %v5311 = vadd.f32 %v5138, %v5302
      %v5312 = vadd.f32 %v5139, %v5303
      %v5313 = vadd.f32 %v5140, %v5304
      %v5314 = vadd.f32 %v5141, %v5305
      %v5315 = vadd.f32 %v5142, %v5306
      %v5316 = vadd.f32 %v5143, %v5307
      %v5317 = vadd.f32 %v5144, %v5308
      %s5318 = scalar_lea.vmem %s8, 432
      %v5319 = vld [vmem:[%s5318] sm:$0xff]
      %v5320 = vld [vmem:[%s5318 + $0x8] sm:$0xff]
      %v5321 = vld [vmem:[%s5318 + $0x10] sm:$0xff]
      %v5322 = vld [vmem:[%s5318 + $0x18] sm:$0xff]
      %v5323 = vld [vmem:[%s5318 + $0x20] sm:$0xff]
      %v5324 = vld [vmem:[%s5318 + $0x28] sm:$0xff]
      %v5325 = vld [vmem:[%s5318 + $0x30] sm:$0xff]
      %v5326 = vld [vmem:[%s5318 + $0x38] sm:$0xff]
      %v5327 = vld [vmem:[%s5318 + $0x40] sm:$0xff]
      %v5329 = vsel %vm904, %v5319, 0
      %v5332 = vsel %vm904, %v5320, 0
      %v5335 = vsel %vm904, %v5321, 0
      %v5338 = vsel %vm904, %v5322, 0
      %v5341 = vsel %vm904, %v5323, 0
      %v5344 = vsel %vm904, %v5324, 0
      %v5347 = vsel %vm904, %v5325, 0
      %v5350 = vsel %vm904, %v5326, 0
      %v5353 = vsel %vm904, %v5327, 0
      %5355 = vmatprep.subr.mxu0 0.0
      %5356 = vmatpush1.msra.mxu0 %v696
      %5357 = vmatprep.subr.mxu0 0.0
      %5358 = vmatpush1.msra.mxu0 %v698
      %5359 = vmatprep.subr.mxu0 0.0
      %5360 = vmatpush1.msra.mxu0 %v700
      %5361 = vmatprep.subr.mxu0 0.0
      %5362 = vmatpush1.msra.mxu0 %v702
      %5363 = vmatprep.subr.mxu0 0.0
      %5364 = vmatpush1.msra.mxu0 %v704
      %5365 = vmatprep.subr.mxu0 0.0
      %5366 = vmatpush1.msra.mxu0 %v706
      %5367 = vmatprep.subr.mxu0 0.0
      %5368 = vmatpush1.msra.mxu0 %v708
      %5369 = vmatprep.subr.mxu0 0.0
      %5370 = vmatpush1.msra.mxu0 %v710
      %5371 = vmatprep.subr.mxu0 0.0
      %5372 = vmatpush1.msra.mxu0 %v712
      %5373 = vmatprep.subr.mxu0 0.0
      %5374 = vmatpush1.msra.mxu0 0.0
      %5375 = vmatprep.subr.mxu0 0.0
      %5376 = vmatpush1.msra.mxu0 0.0
      %5377 = vmatprep.subr.mxu0 0.0
      %5378 = vmatpush1.msra.mxu0 0.0
      %5379 = vmatprep.subr.mxu0 0.0
      %5380 = vmatpush1.msra.mxu0 0.0
      %5381 = vmatprep.subr.mxu0 0.0
      %5382 = vmatpush1.msra.mxu0 0.0
      %5383 = vmatprep.subr.mxu0 0.0
      %5384 = vmatpush1.msra.mxu0 0.0
      %5385 = vmatprep.subr.mxu0 0.0
      %5386 = vmatpush1.msra.mxu0 0.0
      %5387 = vmatprep.subr.mxu0 0.0
      %5388 = vmatpush1.msra.mxu0 0.0
      %5389 = vmatprep.subr.mxu0 0.0
      %5390 = vmatpush1.msra.mxu0 0.0
      %5391 = vmatprep.subr.mxu0 0.0
      %5392 = vmatpush1.msra.mxu0 0.0
      %5393 = vmatprep.subr.mxu0 0.0
      %5394 = vmatpush1.msra.mxu0 0.0
      %5395 = vmatprep.subr.mxu0 0.0
      %5396 = vmatpush1.msra.mxu0 0.0
      %5397 = vmatprep.subr.mxu0 0.0
      %5398 = vmatpush1.msra.mxu0 0.0
      %5399 = vmatprep.subr.mxu0 0.0
      %5400 = vmatpush1.msra.mxu0 0.0
      %5401 = vmatprep.subr.mxu0 0.0
      %5402 = vmatpush1.msra.mxu0 0.0
      %5403 = vmatprep.subr.mxu0 0.0
      %5404 = vmatpush1.msra.mxu0 0.0
      %5405 = vmatprep.subr.mxu0 0.0
      %5406 = vmatpush1.msra.mxu0 0.0
      %5407 = vmatprep.subr.mxu0 0.0
      %5408 = vmatpush1.msra.mxu0 0.0
      %5409 = vmatprep.subr.mxu0 0.0
      %5410 = vmatpush1.msra.mxu0 0.0
      %5411 = vmatprep.subr.mxu0 0.0
      %5412 = vmatpush1.msra.mxu0 0.0
      %5413 = vmatprep.subr.mxu0 0.0
      %5414 = vmatpush1.msra.mxu0 0.0
      %5415 = vmatprep.subr.mxu0 0.0
      %5416 = vmatpush1.msra.mxu0 0.0
      %5417 = vmatprep.subr.mxu0 0.0
      %5418 = vmatpush1.msra.mxu0 0.0
      %5419 = vmatprep.mubr.f32.mxu0 0.0
      %5420 = vmatmul.mubr.f32.gmra.mrb[0].mxu0 %v5329
      %v5421 = vpop.f32.mrb[0].mxu0
      %v5422 = vadd.f32 0.0, %v5421
      %v5423 = vpop.f32.mrb[0].mxu0
      %5424 = vmatprep.mubr.f32.mxu0 0.0
      %5425 = vmatmul.mubr.f32.gmra.mrb[0].mxu0 %v5332
      %v5426 = vpop.f32.mrb[0].mxu0
      %v5427 = vadd.f32 0.0, %v5426
      %v5428 = vpop.f32.mrb[0].mxu0
      %5429 = vmatprep.mubr.f32.mxu0 0.0
      %5430 = vmatmul.mubr.f32.gmra.mrb[0].mxu0 %v5335
      %v5431 = vpop.f32.mrb[0].mxu0
      %v5432 = vadd.f32 0.0, %v5431
      %v5433 = vpop.f32.mrb[0].mxu0
      %5434 = vmatprep.mubr.f32.mxu0 0.0
      %5435 = vmatmul.mubr.f32.gmra.mrb[0].mxu0 %v5338
      %v5436 = vpop.f32.mrb[0].mxu0
      %v5437 = vadd.f32 0.0, %v5436
      %v5438 = vpop.f32.mrb[0].mxu0
      %5439 = vmatprep.mubr.f32.mxu0 0.0
      %5440 = vmatmul.mubr.f32.gmra.mrb[0].mxu0 %v5341
      %v5441 = vpop.f32.mrb[0].mxu0
      %v5442 = vadd.f32 0.0, %v5441
      %v5443 = vpop.f32.mrb[0].mxu0
      %5444 = vmatprep.mubr.f32.mxu0 0.0
      %5445 = vmatmul.mubr.f32.gmra.mrb[0].mxu0 %v5344
      %v5446 = vpop.f32.mrb[0].mxu0
      %v5447 = vadd.f32 0.0, %v5446
      %v5448 = vpop.f32.mrb[0].mxu0
      %5449 = vmatprep.mubr.f32.mxu0 0.0
      %5450 = vmatmul.mubr.f32.gmra.mrb[0].mxu0 %v5347
      %v5451 = vpop.f32.mrb[0].mxu0
      %v5452 = vadd.f32 0.0, %v5451
      %v5453 = vpop.f32.mrb[0].mxu0
      %5454 = vmatprep.mubr.f32.mxu0 0.0
      %5455 = vmatmul.mubr.f32.gmra.mrb[0].mxu0 %v5350
      %v5456 = vpop.f32.mrb[0].mxu0
      %v5457 = vadd.f32 0.0, %v5456
      %v5458 = vpop.f32.mrb[0].mxu0
      %5459 = vmatprep.mubr.f32.mxu0 0.0
      %5460 = vmatmul.mubr.f32.gmra.mrb[0].mxu0 %v5353
      %v5461 = vpop.f32.mrb[0].mxu0
      %v5462 = vadd.f32 0.0, %v5461
      %v5463 = vpop.f32.mrb[0].mxu0
      %5464 = vdwg.mxu0
      %s5465 = scalar_lea.vmem %s4, 6
      %v5466 = vld [vmem:[%s5465] sm:$0x1]
      %v5468 = vlaneseq
      %v5469 = vshrl.u32 %v5468, 7
      %v5470 = vsub.s32 0, %v5469
      %v5471 = vrot.slane %v5466, %v5470
      %v5473 = vmul.f32 %v5422, %v5471
      %v5474 = vmul.f32 %v5427, %v5471
      %v5475 = vmul.f32 %v5432, %v5471
      %v5476 = vmul.f32 %v5437, %v5471
      %v5477 = vmul.f32 %v5442, %v5471
      %v5478 = vmul.f32 %v5447, %v5471
      %v5479 = vmul.f32 %v5452, %v5471
      %v5480 = vmul.f32 %v5457, %v5471
      %v5481 = vmul.f32 %v5462, %v5471
      %v5482 = vadd.f32 %v5309, %v5473
      %v5483 = vadd.f32 %v5310, %v5474
      %v5484 = vadd.f32 %v5311, %v5475
      %v5485 = vadd.f32 %v5312, %v5476
      %v5486 = vadd.f32 %v5313, %v5477
      %v5487 = vadd.f32 %v5314, %v5478
      %v5488 = vadd.f32 %v5315, %v5479
      %v5489 = vadd.f32 %v5316, %v5480
      %v5490 = vadd.f32 %v5317, %v5481
      %s5491 = scalar_lea.vmem %s8, 504
      %v5492 = vld [vmem:[%s5491] sm:$0xff]
      %v5493 = vld [vmem:[%s5491 + $0x8] sm:$0xff]
      %v5494 = vld [vmem:[%s5491 + $0x10] sm:$0xff]
      %v5495 = vld [vmem:[%s5491 + $0x18] sm:$0xff]
      %v5496 = vld [vmem:[%s5491 + $0x20] sm:$0xff]
      %v5497 = vld [vmem:[%s5491 + $0x28] sm:$0xff]
      %v5498 = vld [vmem:[%s5491 + $0x30] sm:$0xff]
      %v5499 = vld [vmem:[%s5491 + $0x38] sm:$0xff]
      %v5500 = vld [vmem:[%s5491 + $0x40] sm:$0xff]
      %v5502 = vsel %vm904, %v5492, 0
      %v5505 = vsel %vm904, %v5493, 0
      %v5508 = vsel %vm904, %v5494, 0
      %v5511 = vsel %vm904, %v5495, 0
      %v5514 = vsel %vm904, %v5496, 0
      %v5517 = vsel %vm904, %v5497, 0
      %v5520 = vsel %vm904, %v5498, 0
      %v5523 = vsel %vm904, %v5499, 0
      %v5526 = vsel %vm904, %v5500, 0
      %5528 = vmatprep.subr.mxu0 0.0
      %5529 = vmatpush1.msra.mxu0 %v696
      %5530 = vmatprep.subr.mxu0 0.0
      %5531 = vmatpush1.msra.mxu0 %v698
      %5532 = vmatprep.subr.mxu0 0.0
      %5533 = vmatpush1.msra.mxu0 %v700
      %5534 = vmatprep.subr.mxu0 0.0
      %5535 = vmatpush1.msra.mxu0 %v702
      %5536 = vmatprep.subr.mxu0 0.0
      %5537 = vmatpush1.msra.mxu0 %v704
      %5538 = vmatprep.subr.mxu0 0.0
      %5539 = vmatpush1.msra.mxu0 %v706
      %5540 = vmatprep.subr.mxu0 0.0
      %5541 = vmatpush1.msra.mxu0 %v708
      %5542 = vmatprep.subr.mxu0 0.0
      %5543 = vmatpush1.msra.mxu0 %v710
      %5544 = vmatprep.subr.mxu0 0.0
      %5545 = vmatpush1.msra.mxu0 %v712
      %5546 = vmatprep.subr.mxu0 0.0
      %5547 = vmatpush1.msra.mxu0 0.0
      %5548 = vmatprep.subr.mxu0 0.0
      %5549 = vmatpush1.msra.mxu0 0.0
      %5550 = vmatprep.subr.mxu0 0.0
      %5551 = vmatpush1.msra.mxu0 0.0
      %5552 = vmatprep.subr.mxu0 0.0
      %5553 = vmatpush1.msra.mxu0 0.0
      %5554 = vmatprep.subr.mxu0 0.0
      %5555 = vmatpush1.msra.mxu0 0.0
      %5556 = vmatprep.subr.mxu0 0.0
      %5557 = vmatpush1.msra.mxu0 0.0
      %5558 = vmatprep.subr.mxu0 0.0
      %5559 = vmatpush1.msra.mxu0 0.0
      %5560 = vmatprep.subr.mxu0 0.0
      %5561 = vmatpush1.msra.mxu0 0.0
      %5562 = vmatprep.subr.mxu0 0.0
      %5563 = vmatpush1.msra.mxu0 0.0
      %5564 = vmatprep.subr.mxu0 0.0
      %5565 = vmatpush1.msra.mxu0 0.0
      %5566 = vmatprep.subr.mxu0 0.0
      %5567 = vmatpush1.msra.mxu0 0.0
      %5568 = vmatprep.subr.mxu0 0.0
      %5569 = vmatpush1.msra.mxu0 0.0
      %5570 = vmatprep.subr.mxu0 0.0
      %5571 = vmatpush1.msra.mxu0 0.0
      %5572 = vmatprep.subr.mxu0 0.0
      %5573 = vmatpush1.msra.mxu0 0.0
      %5574 = vmatprep.subr.mxu0 0.0
      %5575 = vmatpush1.msra.mxu0 0.0
      %5576 = vmatprep.subr.mxu0 0.0
      %5577 = vmatpush1.msra.mxu0 0.0
      %5578 = vmatprep.subr.mxu0 0.0
      %5579 = vmatpush1.msra.mxu0 0.0
      %5580 = vmatprep.subr.mxu0 0.0
      %5581 = vmatpush1.msra.mxu0 0.0
      %5582 = vmatprep.subr.mxu0 0.0
      %5583 = vmatpush1.msra.mxu0 0.0
      %5584 = vmatprep.subr.mxu0 0.0
      %5585 = vmatpush1.msra.mxu0 0.0
      %5586 = vmatprep.subr.mxu0 0.0
      %5587 = vmatpush1.msra.mxu0 0.0
      %5588 = vmatprep.subr.mxu0 0.0
      %5589 = vmatpush1.msra.mxu0 0.0
      %5590 = vmatprep.subr.mxu0 0.0
      %5591 = vmatpush1.msra.mxu0 0.0
      %5592 = vmatprep.mubr.f32.mxu0 0.0
      %5593 = vmatmul.mubr.f32.gmra.mrb[0].mxu0 %v5502
      %v5594 = vpop.f32.mrb[0].mxu0
      %v5595 = vadd.f32 0.0, %v5594
      %v5596 = vpop.f32.mrb[0].mxu0
      %5597 = vmatprep.mubr.f32.mxu0 0.0
      %5598 = vmatmul.mubr.f32.gmra.mrb[0].mxu0 %v5505
      %v5599 = vpop.f32.mrb[0].mxu0
      %v5600 = vadd.f32 0.0, %v5599
      %v5601 = vpop.f32.mrb[0].mxu0
      %5602 = vmatprep.mubr.f32.mxu0 0.0
      %5603 = vmatmul.mubr.f32.gmra.mrb[0].mxu0 %v5508
      %v5604 = vpop.f32.mrb[0].mxu0
      %v5605 = vadd.f32 0.0, %v5604
      %v5606 = vpop.f32.mrb[0].mxu0
      %5607 = vmatprep.mubr.f32.mxu0 0.0
      %5608 = vmatmul.mubr.f32.gmra.mrb[0].mxu0 %v5511
      %v5609 = vpop.f32.mrb[0].mxu0
      %v5610 = vadd.f32 0.0, %v5609
      %v5611 = vpop.f32.mrb[0].mxu0
      %5612 = vmatprep.mubr.f32.mxu0 0.0
      %5613 = vmatmul.mubr.f32.gmra.mrb[0].mxu0 %v5514
      %v5614 = vpop.f32.mrb[0].mxu0
      %v5615 = vadd.f32 0.0, %v5614
      %v5616 = vpop.f32.mrb[0].mxu0
      %5617 = vmatprep.mubr.f32.mxu0 0.0
      %5618 = vmatmul.mubr.f32.gmra.mrb[0].mxu0 %v5517
      %v5619 = vpop.f32.mrb[0].mxu0
      %v5620 = vadd.f32 0.0, %v5619
      %v5621 = vpop.f32.mrb[0].mxu0
      %5622 = vmatprep.mubr.f32.mxu0 0.0
      %5623 = vmatmul.mubr.f32.gmra.mrb[0].mxu0 %v5520
      %v5624 = vpop.f32.mrb[0].mxu0
      %v5625 = vadd.f32 0.0, %v5624
      %v5626 = vpop.f32.mrb[0].mxu0
      %5627 = vmatprep.mubr.f32.mxu0 0.0
      %5628 = vmatmul.mubr.f32.gmra.mrb[0].mxu0 %v5523
      %v5629 = vpop.f32.mrb[0].mxu0
      %v5630 = vadd.f32 0.0, %v5629
      %v5631 = vpop.f32.mrb[0].mxu0
      %5632 = vmatprep.mubr.f32.mxu0 0.0
      %5633 = vmatmul.mubr.f32.gmra.mrb[0].mxu0 %v5526
      %v5634 = vpop.f32.mrb[0].mxu0
      %v5635 = vadd.f32 0.0, %v5634
      %v5636 = vpop.f32.mrb[0].mxu0
      %5637 = vdwg.mxu0
      %s5638 = scalar_lea.vmem %s4, 7
      %v5639 = vld [vmem:[%s5638] sm:$0x1]
      %v5641 = vlaneseq
      %v5642 = vshrl.u32 %v5641, 7
      %v5643 = vsub.s32 0, %v5642
      %v5644 = vrot.slane %v5639, %v5643
      %v5646 = vmul.f32 %v5595, %v5644
      %v5647 = vmul.f32 %v5600, %v5644
      %v5648 = vmul.f32 %v5605, %v5644
      %v5649 = vmul.f32 %v5610, %v5644
      %v5650 = vmul.f32 %v5615, %v5644
      %v5651 = vmul.f32 %v5620, %v5644
      %v5652 = vmul.f32 %v5625, %v5644
      %v5653 = vmul.f32 %v5630, %v5644
      %v5654 = vmul.f32 %v5635, %v5644
      %v5655 = vadd.f32 %v5482, %v5646
      %v5656 = vadd.f32 %v5483, %v5647
      %v5657 = vadd.f32 %v5484, %v5648
      %v5658 = vadd.f32 %v5485, %v5649
      %v5659 = vadd.f32 %v5486, %v5650
      %v5660 = vadd.f32 %v5487, %v5651
      %v5661 = vadd.f32 %v5488, %v5652
      %v5662 = vadd.f32 %v5489, %v5653
      %v5663 = vadd.f32 %v5490, %v5654
      %s5664 = scalar_lea.vmem %s8, 576
      %v5665 = vld [vmem:[%s5664] sm:$0xff]
      %v5666 = vld [vmem:[%s5664 + $0x8] sm:$0xff]
      %v5667 = vld [vmem:[%s5664 + $0x10] sm:$0xff]
      %v5668 = vld [vmem:[%s5664 + $0x18] sm:$0xff]
      %v5669 = vld [vmem:[%s5664 + $0x20] sm:$0xff]
      %v5670 = vld [vmem:[%s5664 + $0x28] sm:$0xff]
      %v5671 = vld [vmem:[%s5664 + $0x30] sm:$0xff]
      %v5672 = vld [vmem:[%s5664 + $0x38] sm:$0xff]
      %v5673 = vld [vmem:[%s5664 + $0x40] sm:$0xff]
      %v5675 = vsel %vm904, %v5665, 0
      %v5678 = vsel %vm904, %v5666, 0
      %v5681 = vsel %vm904, %v5667, 0
      %v5684 = vsel %vm904, %v5668, 0
      %v5687 = vsel %vm904, %v5669, 0
      %v5690 = vsel %vm904, %v5670, 0
      %v5693 = vsel %vm904, %v5671, 0
      %v5696 = vsel %vm904, %v5672, 0
      %v5699 = vsel %vm904, %v5673, 0
      %5701 = vmatprep.subr.mxu0 0.0
      %5702 = vmatpush1.msra.mxu0 %v696
      %5703 = vmatprep.subr.mxu0 0.0
      %5704 = vmatpush1.msra.mxu0 %v698
      %5705 = vmatprep.subr.mxu0 0.0
      %5706 = vmatpush1.msra.mxu0 %v700
      %5707 = vmatprep.subr.mxu0 0.0
      %5708 = vmatpush1.msra.mxu0 %v702
      %5709 = vmatprep.subr.mxu0 0.0
      %5710 = vmatpush1.msra.mxu0 %v704
      %5711 = vmatprep.subr.mxu0 0.0
      %5712 = vmatpush1.msra.mxu0 %v706
      %5713 = vmatprep.subr.mxu0 0.0
      %5714 = vmatpush1.msra.mxu0 %v708
      %5715 = vmatprep.subr.mxu0 0.0
      %5716 = vmatpush1.msra.mxu0 %v710
      %5717 = vmatprep.subr.mxu0 0.0
      %5718 = vmatpush1.msra.mxu0 %v712
      %5719 = vmatprep.subr.mxu0 0.0
      %5720 = vmatpush1.msra.mxu0 0.0
      %5721 = vmatprep.subr.mxu0 0.0
      %5722 = vmatpush1.msra.mxu0 0.0
      %5723 = vmatprep.subr.mxu0 0.0
      %5724 = vmatpush1.msra.mxu0 0.0
      %5725 = vmatprep.subr.mxu0 0.0
      %5726 = vmatpush1.msra.mxu0 0.0
      %5727 = vmatprep.subr.mxu0 0.0
      %5728 = vmatpush1.msra.mxu0 0.0
      %5729 = vmatprep.subr.mxu0 0.0
      %5730 = vmatpush1.msra.mxu0 0.0
      %5731 = vmatprep.subr.mxu0 0.0
      %5732 = vmatpush1.msra.mxu0 0.0
      %5733 = vmatprep.subr.mxu0 0.0
      %5734 = vmatpush1.msra.mxu0 0.0
      %5735 = vmatprep.subr.mxu0 0.0
      %5736 = vmatpush1.msra.mxu0 0.0
      %5737 = vmatprep.subr.mxu0 0.0
      %5738 = vmatpush1.msra.mxu0 0.0
      %5739 = vmatprep.subr.mxu0 0.0
      %5740 = vmatpush1.msra.mxu0 0.0
      %5741 = vmatprep.subr.mxu0 0.0
      %5742 = vmatpush1.msra.mxu0 0.0
      %5743 = vmatprep.subr.mxu0 0.0
      %5744 = vmatpush1.msra.mxu0 0.0
      %5745 = vmatprep.subr.mxu0 0.0
      %5746 = vmatpush1.msra.mxu0 0.0
      %5747 = vmatprep.subr.mxu0 0.0
      %5748 = vmatpush1.msra.mxu0 0.0
      %5749 = vmatprep.subr.mxu0 0.0
      %5750 = vmatpush1.msra.mxu0 0.0
      %5751 = vmatprep.subr.mxu0 0.0
      %5752 = vmatpush1.msra.mxu0 0.0
      %5753 = vmatprep.subr.mxu0 0.0
      %5754 = vmatpush1.msra.mxu0 0.0
      %5755 = vmatprep.subr.mxu0 0.0
      %5756 = vmatpush1.msra.mxu0 0.0
      %5757 = vmatprep.subr.mxu0 0.0
      %5758 = vmatpush1.msra.mxu0 0.0
      %5759 = vmatprep.subr.mxu0 0.0
      %5760 = vmatpush1.msra.mxu0 0.0
      %5761 = vmatprep.subr.mxu0 0.0
      %5762 = vmatpush1.msra.mxu0 0.0
      %5763 = vmatprep.subr.mxu0 0.0
      %5764 = vmatpush1.msra.mxu0 0.0
      %5765 = vmatprep.mubr.f32.mxu0 0.0
      %5766 = vmatmul.mubr.f32.gmra.mrb[0].mxu0 %v5675
      %v5767 = vpop.f32.mrb[0].mxu0
      %v5768 = vadd.f32 0.0, %v5767
      %v5769 = vpop.f32.mrb[0].mxu0
      %5770 = vmatprep.mubr.f32.mxu0 0.0
      %5771 = vmatmul.mubr.f32.gmra.mrb[0].mxu0 %v5678
      %v5772 = vpop.f32.mrb[0].mxu0
      %v5773 = vadd.f32 0.0, %v5772
      %v5774 = vpop.f32.mrb[0].mxu0
      %5775 = vmatprep.mubr.f32.mxu0 0.0
      %5776 = vmatmul.mubr.f32.gmra.mrb[0].mxu0 %v5681
      %v5777 = vpop.f32.mrb[0].mxu0
      %v5778 = vadd.f32 0.0, %v5777
      %v5779 = vpop.f32.mrb[0].mxu0
      %5780 = vmatprep.mubr.f32.mxu0 0.0
      %5781 = vmatmul.mubr.f32.gmra.mrb[0].mxu0 %v5684
      %v5782 = vpop.f32.mrb[0].mxu0
      %v5783 = vadd.f32 0.0, %v5782
      %v5784 = vpop.f32.mrb[0].mxu0
      %5785 = vmatprep.mubr.f32.mxu0 0.0
      %5786 = vmatmul.mubr.f32.gmra.mrb[0].mxu0 %v5687
      %v5787 = vpop.f32.mrb[0].mxu0
      %v5788 = vadd.f32 0.0, %v5787
      %v5789 = vpop.f32.mrb[0].mxu0
      %5790 = vmatprep.mubr.f32.mxu0 0.0
      %5791 = vmatmul.mubr.f32.gmra.mrb[0].mxu0 %v5690
      %v5792 = vpop.f32.mrb[0].mxu0
      %v5793 = vadd.f32 0.0, %v5792
      %v5794 = vpop.f32.mrb[0].mxu0
      %5795 = vmatprep.mubr.f32.mxu0 0.0
      %5796 = vmatmul.mubr.f32.gmra.mrb[0].mxu0 %v5693
      %v5797 = vpop.f32.mrb[0].mxu0
      %v5798 = vadd.f32 0.0, %v5797
      %v5799 = vpop.f32.mrb[0].mxu0
      %5800 = vmatprep.mubr.f32.mxu0 0.0
      %5801 = vmatmul.mubr.f32.gmra.mrb[0].mxu0 %v5696
      %v5802 = vpop.f32.mrb[0].mxu0
      %v5803 = vadd.f32 0.0, %v5802
      %v5804 = vpop.f32.mrb[0].mxu0
      %5805 = vmatprep.mubr.f32.mxu0 0.0
      %5806 = vmatmul.mubr.f32.gmra.mrb[0].mxu0 %v5699
      %v5807 = vpop.f32.mrb[0].mxu0
      %v5808 = vadd.f32 0.0, %v5807
      %v5809 = vpop.f32.mrb[0].mxu0
      %5810 = vdwg.mxu0
      %s5811 = scalar_lea.vmem %s4, 8
      %v5812 = vld [vmem:[%s5811] sm:$0x1]
      %v5814 = vlaneseq
      %v5815 = vshrl.u32 %v5814, 7
      %v5816 = vsub.s32 0, %v5815
      %v5817 = vrot.slane %v5812, %v5816
      %v5819 = vmul.f32 %v5768, %v5817
      %v5820 = vmul.f32 %v5773, %v5817
      %v5821 = vmul.f32 %v5778, %v5817
      %v5822 = vmul.f32 %v5783, %v5817
      %v5823 = vmul.f32 %v5788, %v5817
      %v5824 = vmul.f32 %v5793, %v5817
      %v5825 = vmul.f32 %v5798, %v5817
      %v5826 = vmul.f32 %v5803, %v5817
      %v5827 = vmul.f32 %v5808, %v5817
      %v5828 = vadd.f32 %v5655, %v5819
      %v5829 = vadd.f32 %v5656, %v5820
      %v5830 = vadd.f32 %v5657, %v5821
      %v5831 = vadd.f32 %v5658, %v5822
      %v5832 = vadd.f32 %v5659, %v5823
      %v5833 = vadd.f32 %v5660, %v5824
      %v5834 = vadd.f32 %v5661, %v5825
      %v5835 = vadd.f32 %v5662, %v5826
      %v5836 = vadd.f32 %v5663, %v5827
      %v5837 = vlaneseq
      %v5838 = vshrl.u32 %v5837, 7
      %v5839 = vadd.s32 %v5838, 8
      %v5840 = vadd.s32 %v5838, 16
      %v5841 = vadd.s32 %v5838, 24
      %v5842 = vadd.s32 %v5838, 32
      %v5843 = vadd.s32 %v5838, 40
      %v5844 = vadd.s32 %v5838, 48
      %v5845 = vadd.s32 %v5838, 56
      %v5846 = vadd.s32 %v5838, 64
      %vm5847 = vcmp.lt.s32.totalorder %v5838, 64
      %vm5848 = vcmp.lt.s32.totalorder %v5839, 64
      %vm5849 = vcmp.lt.s32.totalorder %v5840, 64
      %vm5850 = vcmp.lt.s32.totalorder %v5841, 64
      %vm5851 = vcmp.lt.s32.totalorder %v5842, 64
      %vm5852 = vcmp.lt.s32.totalorder %v5843, 64
      %vm5853 = vcmp.lt.s32.totalorder %v5844, 64
      %vm5854 = vcmp.lt.s32.totalorder %v5845, 64
      %vm5855 = vcmp.lt.s32.totalorder %v5846, 64
      %v5856 = vld [vmem:[%s5] sm:$0x1]
      %v5858 = vlaneseq
      %v5859 = vshrl.u32 %v5858, 7
      %v5860 = vsub.s32 0, %v5859
      %v5861 = vrot.slane %v5856, %v5860
      %v5863 = vadd.f32 %v5828, %v5861
      %v5864 = vadd.f32 %v5829, %v5861
      %v5865 = vadd.f32 %v5830, %v5861
      %v5866 = vadd.f32 %v5831, %v5861
      %v5867 = vadd.f32 %v5832, %v5861
      %v5868 = vadd.f32 %v5833, %v5861
      %v5869 = vadd.f32 %v5834, %v5861
      %v5870 = vadd.f32 %v5835, %v5861
      %v5871 = vadd.f32 %v5836, %v5861
      %v5872 = vsel %vm5847, 1, 0
      %v5873 = vsel %vm5848, 1, 0
      %v5874 = vsel %vm5849, 1, 0
      %v5875 = vsel %vm5850, 1, 0
      %v5876 = vsel %vm5851, 1, 0
      %v5877 = vsel %vm5852, 1, 0
      %v5878 = vsel %vm5853, 1, 0
      %v5879 = vsel %vm5854, 1, 0
      %v5880 = vsel %vm5855, 1, 0
      %vm5881 = vcmp.eq.s32.totalorder %v5872, 1
      %vm5882 = vcmp.eq.s32.totalorder %v5873, 1
      %vm5883 = vcmp.eq.s32.totalorder %v5874, 1
      %vm5884 = vcmp.eq.s32.totalorder %v5875, 1
      %vm5885 = vcmp.eq.s32.totalorder %v5876, 1
      %vm5886 = vcmp.eq.s32.totalorder %v5877, 1
      %vm5887 = vcmp.eq.s32.totalorder %v5878, 1
      %vm5888 = vcmp.eq.s32.totalorder %v5879, 1
      %vm5889 = vcmp.eq.s32.totalorder %v5880, 1
      %v5890 = vsel %vm5881, %v5863, %v696
      %v5891 = vsel %vm5882, %v5864, %v698
      %v5892 = vsel %vm5883, %v5865, %v700
      %v5893 = vsel %vm5884, %v5866, %v702
      %v5894 = vsel %vm5885, %v5867, %v704
      %v5895 = vsel %vm5886, %v5868, %v706
      %v5896 = vsel %vm5887, %v5869, %v708
      %v5897 = vsel %vm5888, %v5870, %v710
      %v5898 = vsel %vm5889, %v5871, %v712
      %v5899 = vadd.f32 %v4273, %v5890
      %v5900 = vadd.f32 %v4274, %v5891
      %v5901 = vadd.f32 %v4275, %v5892
      %v5902 = vadd.f32 %v4276, %v5893
      %v5903 = vadd.f32 %v4277, %v5894
      %v5904 = vadd.f32 %v4278, %v5895
      %v5905 = vadd.f32 %v4279, %v5896
      %v5906 = vadd.f32 %v4280, %v5897
      %v5907 = vadd.f32 %v4281, %v5898
      %v5908 = vld [vmem:[%s6] sm:$0xff]
      %v5909 = vld [vmem:[%s6 + $0x8] sm:$0xff]
      %v5910 = vld [vmem:[%s6 + $0x10] sm:$0xff]
      %v5911 = vld [vmem:[%s6 + $0x18] sm:$0xff]
      %v5912 = vld [vmem:[%s7] sm:$0x1]
      %v5914 = vlaneseq
      %v5915 = vshrl.u32 %v5914, 7
      %v5916 = vsub.s32 0, %v5915
      %v5917 = vrot.slane %v5912, %v5916
      %v5920 = vsel %vm342, %v5899, 0
      %v5923 = vsel %vm342, %v5900, 0
      %v5926 = vsel %vm342, %v5901, 0
      %v5929 = vsel %vm342, %v5902, 0
      %v5932 = vsel %vm342, %v5903, 0
      %v5935 = vsel %vm342, %v5904, 0
      %v5938 = vsel %vm342, %v5905, 0
      %v5941 = vsel %vm342, %v5906, 0
      %v5944 = vsel %vm342, %v5907, 0
      %5946 = vmatprep.subr.mxu0 0.0
      %5947 = vmatpush1.msra.mxu0 %v5908
      %5948 = vmatprep.subr.mxu0 0.0
      %5949 = vmatpush1.msra.mxu0 %v5909
      %5950 = vmatprep.subr.mxu0 0.0
      %5951 = vmatpush1.msra.mxu0 %v5910
      %5952 = vmatprep.subr.mxu0 0.0
      %5953 = vmatpush1.msra.mxu0 %v5911
      %5954 = vmatprep.subr.mxu0 0.0
      %5955 = vmatpush1.msra.mxu0 0.0
      %5956 = vmatprep.subr.mxu0 0.0
      %5957 = vmatpush1.msra.mxu0 0.0
      %5958 = vmatprep.subr.mxu0 0.0
      %5959 = vmatpush1.msra.mxu0 0.0
      %5960 = vmatprep.subr.mxu0 0.0
      %5961 = vmatpush1.msra.mxu0 0.0
      %5962 = vmatprep.subr.mxu0 0.0
      %5963 = vmatpush1.msra.mxu0 0.0
      %5964 = vmatprep.subr.mxu0 0.0
      %5965 = vmatpush1.msra.mxu0 0.0
      %5966 = vmatprep.subr.mxu0 0.0
      %5967 = vmatpush1.msra.mxu0 0.0
      %5968 = vmatprep.subr.mxu0 0.0
      %5969 = vmatpush1.msra.mxu0 0.0
      %5970 = vmatprep.subr.mxu0 0.0
      %5971 = vmatpush1.msra.mxu0 0.0
      %5972 = vmatprep.subr.mxu0 0.0
      %5973 = vmatpush1.msra.mxu0 0.0
      %5974 = vmatprep.subr.mxu0 0.0
      %5975 = vmatpush1.msra.mxu0 0.0
      %5976 = vmatprep.subr.mxu0 0.0
      %5977 = vmatpush1.msra.mxu0 0.0
      %5978 = vmatprep.subr.mxu0 0.0
      %5979 = vmatpush1.msra.mxu0 0.0
      %5980 = vmatprep.subr.mxu0 0.0
      %5981 = vmatpush1.msra.mxu0 0.0
      %5982 = vmatprep.subr.mxu0 0.0
      %5983 = vmatpush1.msra.mxu0 0.0
      %5984 = vmatprep.subr.mxu0 0.0
      %5985 = vmatpush1.msra.mxu0 0.0
      %5986 = vmatprep.subr.mxu0 0.0
      %5987 = vmatpush1.msra.mxu0 0.0
      %5988 = vmatprep.subr.mxu0 0.0
      %5989 = vmatpush1.msra.mxu0 0.0
      %5990 = vmatprep.subr.mxu0 0.0
      %5991 = vmatpush1.msra.mxu0 0.0
      %5992 = vmatprep.subr.mxu0 0.0
      %5993 = vmatpush1.msra.mxu0 0.0
      %5994 = vmatprep.subr.mxu0 0.0
      %5995 = vmatpush1.msra.mxu0 0.0
      %5996 = vmatprep.subr.mxu0 0.0
      %5997 = vmatpush1.msra.mxu0 0.0
      %5998 = vmatprep.subr.mxu0 0.0
      %5999 = vmatpush1.msra.mxu0 0.0
      %6000 = vmatprep.subr.mxu0 0.0
      %6001 = vmatpush1.msra.mxu0 0.0
      %6002 = vmatprep.subr.mxu0 0.0
      %6003 = vmatpush1.msra.mxu0 0.0
      %6004 = vmatprep.subr.mxu0 0.0
      %6005 = vmatpush1.msra.mxu0 0.0
      %6006 = vmatprep.subr.mxu0 0.0
      %6007 = vmatpush1.msra.mxu0 0.0
      %6008 = vmatprep.subr.mxu0 0.0
      %6009 = vmatpush1.msra.mxu0 0.0
      %6010 = vmatprep.mubr.f32.mxu0 0.0
      %6011 = vmatmul.mubr.f32.gmra.mrb[0].mxu0 %v5920
      %v6012 = vpop.f32.mrb[0].mxu0
      %v6013 = vadd.f32 %v5917, %v6012
      %v6014 = vpop.f32.mrb[0].mxu0
      %6015 = vmatprep.mubr.f32.mxu0 0.0
      %6016 = vmatmul.mubr.f32.gmra.mrb[0].mxu0 %v5923
      %v6017 = vpop.f32.mrb[0].mxu0
      %v6018 = vadd.f32 %v5917, %v6017
      %v6019 = vpop.f32.mrb[0].mxu0
      %6020 = vmatprep.mubr.f32.mxu0 0.0
      %6021 = vmatmul.mubr.f32.gmra.mrb[0].mxu0 %v5926
      %v6022 = vpop.f32.mrb[0].mxu0
      %v6023 = vadd.f32 %v5917, %v6022
      %v6024 = vpop.f32.mrb[0].mxu0
      %6025 = vmatprep.mubr.f32.mxu0 0.0
      %6026 = vmatmul.mubr.f32.gmra.mrb[0].mxu0 %v5929
      %v6027 = vpop.f32.mrb[0].mxu0
      %v6028 = vadd.f32 %v5917, %v6027
      %v6029 = vpop.f32.mrb[0].mxu0
      %6030 = vmatprep.mubr.f32.mxu0 0.0
      %6031 = vmatmul.mubr.f32.gmra.mrb[0].mxu0 %v5932
      %v6032 = vpop.f32.mrb[0].mxu0
      %v6033 = vadd.f32 %v5917, %v6032
      %v6034 = vpop.f32.mrb[0].mxu0
      %6035 = vmatprep.mubr.f32.mxu0 0.0
      %6036 = vmatmul.mubr.f32.gmra.mrb[0].mxu0 %v5935
      %v6037 = vpop.f32.mrb[0].mxu0
      %v6038 = vadd.f32 %v5917, %v6037
      %v6039 = vpop.f32.mrb[0].mxu0
      %6040 = vmatprep.mubr.f32.mxu0 0.0
      %6041 = vmatmul.mubr.f32.gmra.mrb[0].mxu0 %v5938
      %v6042 = vpop.f32.mrb[0].mxu0
      %v6043 = vadd.f32 %v5917, %v6042
      %v6044 = vpop.f32.mrb[0].mxu0
      %6045 = vmatprep.mubr.f32.mxu0 0.0
      %6046 = vmatmul.mubr.f32.gmra.mrb[0].mxu0 %v5941
      %v6047 = vpop.f32.mrb[0].mxu0
      %v6048 = vadd.f32 %v5917, %v6047
      %v6049 = vpop.f32.mrb[0].mxu0
      %6050 = vmatprep.mubr.f32.mxu0 0.0
      %6051 = vmatmul.mubr.f32.gmra.mrb[0].mxu0 %v5944
      %v6052 = vpop.f32.mrb[0].mxu0
      %v6053 = vadd.f32 %v5917, %v6052
      %v6054 = vpop.f32.mrb[0].mxu0
      %6055 = vdwg.mxu0
      %v6056 = vadd.f32 %v333, %v6013
      %v6057 = vadd.f32 %v334, %v6018
      %v6058 = vadd.f32 %v335, %v6023
      %v6059 = vadd.f32 %v336, %v6028
      %v6060 = vadd.f32 %v337, %v6033
      %v6061 = vadd.f32 %v338, %v6038
      %v6062 = vadd.f32 %v339, %v6043
      %v6063 = vadd.f32 %v340, %v6048
      %v6064 = vadd.f32 %v341, %v6053
      %6065 = vst.msk [vmem:[%s332] sm:$0xff] %vm342, %v6056
      %6066 = vst.msk [vmem:[%s332 + $0x8] sm:$0xff] %vm342, %v6057
      %6067 = vst.msk [vmem:[%s332 + $0x10] sm:$0xff] %vm342, %v6058
      %6068 = vst.msk [vmem:[%s332 + $0x18] sm:$0xff] %vm342, %v6059
      %6069 = vst.msk [vmem:[%s332 + $0x20] sm:$0xff] %vm342, %v6060
      %6070 = vst.msk [vmem:[%s332 + $0x28] sm:$0xff] %vm342, %v6061
      %6071 = vst.msk [vmem:[%s332 + $0x30] sm:$0xff] %vm342, %v6062
      %6072 = vst.msk [vmem:[%s332 + $0x38] sm:$0xff] %vm342, %v6063
      %6073 = vst.msk [vmem:[%s332 + $0x40] sm:$0xff] %vm342, %v6064
      %p6074 = scmp.lt.s32.totalorder %s20, 1
      %s6075 = scalar_select %p6074, %s20, 1
      %s6076 = smul.addr %s6075, 9
      %s6077 = smul.addr %s6076, 8
      %s6078 = scalar_lea.vmem %s9, %s6077
      // Predicated region
      $region57: #{_lambda_.2} parent=55 // pred_check
        %p6079 = pneg %p232
      $region58: #{_lambda_.2} parent=55 // pred_check_branch
        %6081 = sbr.rel (%p6079) target = $region60
      $region59: #{_lambda_.2} parent=55 // pred_region
        _
      $region60: #{_lambda_.2} parent=55 // pred_fallthru
        _
    $region56: #{_lambda_.2} parent=5 // pred_fallthru
      _
    %p6082 = scmp.le.s32.totalorder 2, %s15
    // Predicated region
    $region61: #{_lambda_.2} parent=5 // pred_check
      %p6083 = pneg %p6082
    $region62: #{_lambda_.2} parent=5 // pred_check_branch
      %6085 = sbr.rel (%p6083) target = $region64
    $region63: #{_lambda_.2} parent=5 // pred_region
      %s6086 = ssub.s32 %s15, 2
      // Predicated region
      $region65: #{_lambda_.2} parent=63 // pred_check
        %p6087 = pneg %p238
      $region66: #{_lambda_.2} parent=63 // pred_check_branch
        %6089 = sbr.rel (%p6087) target = $region68
      $region67: #{_lambda_.2} parent=63 // pred_region
        %p6090 = scmp.lt.s32.totalorder %s21, 1
        %s6091 = scalar_select %p6090, %s21, 1
        %s6092 = smul.addr %s6091, 9
        %s6093 = smul.addr %s6092, 8
        %s6094 = scalar_lea.vmem %s9, %s6093
      $region68: #{_lambda_.2} parent=63 // pred_fallthru
        _
    $region64: #{_lambda_.2} parent=5 // pred_fallthru
      _
  $region6: #{_lambda_.2} parent=0 // loop_footer
    %s19 = sadd.s32 1, %s15
  $region7: #{_lambda_.2} parent=0 // loop_footer_branch
    %14 = sbr.rel target = $region3
  $region8: #{_lambda_.2} parent=0 // loop_exit
    _

</llo_original>
